<compile_context>
chip_gen: v7x
topology: tpu7x:2x2x1
jax: 0.10.0
libtpu: 0.0.40
codegen_flags: <defaults>
</compile_context>

<pallas_src>
import math

import numpy as np

import jax
import jax.numpy as jnp
from jax.experimental import pallas as pl
from jax.experimental.pallas import tpu as pltpu

# ----------------------- small-model configuration -------------------------
D_MODEL = 32          # d_model
HEADS = 4             # heads
HEAD_DIM = D_MODEL // HEADS
D_FF = 64             # d_ff
VOCAB = 512           # num_text_tokens
DES_LEN = 8
OBJ_LEN = 8
TGT_LEN = 8
RES = 32              # input_resolution
PATCH = 16            # patch_size
FMAP = RES // PATCH   # image_fmap_size
IMG_LEN = FMAP * FMAP
BATCH = 2

# txt_pos_embed is an Embedding(des_len, d_model) indexed with arange(obj_len)
# / arange(tgt_len) in the reference -- only valid when these hold:
assert OBJ_LEN <= DES_LEN and TGT_LEN <= DES_LEN


# ===================== trace-time constants (numpy) =========================
def _shift_stack(f, batch):
    """(9*batch*f*f, batch*f*f) vertical stack over the 9 conv taps of the
    batch-block-diagonal spatial shift matrix (zero padding, 3x3 conv)."""
    n = f * f
    s = np.zeros((9, n, n), np.float32)
    t = 0
    for di in (-1, 0, 1):
        for dj in (-1, 0, 1):
            for i in range(f):
                for j in range(f):
                    ii, jj = i + di, j + dj
                    if 0 <= ii < f and 0 <= jj < f:
                        s[t, i * f + j, ii * f + jj] = 1.0
            t += 1
    big = np.zeros((9, batch * n, batch * n), np.float32)
    for t in range(9):
        for b in range(batch):
            big[t, b * n:(b + 1) * n, b * n:(b + 1) * n] = s[t]
    return big.reshape(9 * batch * n, batch * n)


def _attn_bias(rows, cols, rlen, clen, causal=False):
    """Additive attention bias (0 / -1e9) making the batch-stacked attention
    block-diagonal over the batch (and optionally causal within a block)."""
    rb = np.arange(rows)[:, None] // rlen
    cb = np.arange(cols)[None, :] // clen
    ok = rb == cb
    if causal:
        ok = ok & ((np.arange(cols)[None, :] % clen)
                   <= (np.arange(rows)[:, None] % rlen))
    return np.where(ok, 0.0, -1e9).astype(np.float32)


# ===================== fused PrefixLM forward kernel ========================
def _prefix_lm_kernel(
        patches_ref, sshift_ref, img_pos_ref, obj_ref, tgt_ref,
        enc_bias_ref, slf_bias_ref, crs_bias_ref,
        stem_w, stem_b,
        b1w1, b1b1, b1w2, b1b2, b1w3, b1b3, b1ws, b1bs,
        b2w1, b2b1, b2w2, b2b2, b2w3, b2b3, b2ws, b2bs,
        enc_wq, enc_bq, enc_wkv, enc_bkv, enc_wo, enc_bo,
        slf_wqkv, slf_bqkv, slf_wo, slf_bo,
        crs_wq, crs_bq, crs_wkv, crs_bkv, crs_wo, crs_bo,
        ln_ref, ffw1, ffb1, ffw2, ffb2,
        lgln_ref, lgw, lgb,
        out_ref):
    d, nh, dh = D_MODEL, HEADS, HEAD_DIM
    scale = 1.0 / math.sqrt(dh)

    def mm(a, b):
        # bf16 MXU matmul, f32 accumulation; astype is a no-op on pre-cast
        # bf16 weights, so only activations pay a cast.
        return jnp.dot(a.astype(jnp.bfloat16), b.astype(jnp.bfloat16),
                       preferred_element_type=jnp.float32)

    def mm_bt(a, b):
        # a @ b.T without materializing a transpose
        return jax.lax.dot_general(
            a.astype(jnp.bfloat16), b.astype(jnp.bfloat16),
            dimension_numbers=(((1,), (1,)), ((), ())),
            preferred_element_type=jnp.float32)

    # ----------------------- ResNet stem + bottlenecks ----------------------
    def conv3x3(v, w_ref, b_ref):
        # 3x3 conv over the FMAPxFMAP grid (batch block-diag rows): one shift
        # matmul + 9 sublane-aligned tap matmuls accumulated (no lane concat).
        rows, cin = v.shape
        shifted = mm(sshift_ref[...], v)                     # (9*rows, cin)
        acc = None
        for t in range(9):
            part = mm(shifted[t * rows:(t + 1) * rows, :],
                      w_ref[t * cin:(t + 1) * cin, :])
            acc = part if acc is None else acc + part
        return acc + b_ref[...]

    def bottleneck(v, w1, b1, w2, b2, w3, b3, ws, bs):
        h = jnp.maximum(mm(v, w1[...]) + b1[...], 0.0)       # 1x1 reduce
        h = jnp.maximum(conv3x3(h, w2, b2), 0.0)             # 3x3
        h = mm(h, w3[...]) + b3[...]                         # 1x1 expand
        sc = mm(v, ws[...]) + bs[...]                        # 1x1 shortcut
        return jnp.maximum(h + sc, 0.0)

    x = mm(patches_ref[...], stem_w[...]) + stem_b[...]      # (B*n, 64)
    x = bottleneck(x, b1w1, b1b1, b1w2, b1b2, b1w3, b1b3, b1ws, b1bs)
    x = bottleneck(x, b2w1, b2b1, b2w2, b2b2, b2w3, b2b3, b2ws, b2bs)
    img = x + img_pos_ref[...]        # (B*n, D) -- stays in VMEM, never to HBM

    # --------------------------- attention helpers --------------------------
    def attend(q, k, v, bias, wo_ref, bo_ref):
        # Unrolled over heads; output projection folded per head via
        # sublane-aligned f32 wo row slices (no lane concatenation).
        # TODO(synk): head-batched einsum form skipped for lowering robustness
        # at head_dim=8 / seq_len=16.
        wo = wo_ref[...]
        out = None
        for h in range(nh):
            qh = q[:, h * dh:(h + 1) * dh]
            kh = k[:, h * dh:(h + 1) * dh]
            vh = v[:, h * dh:(h + 1) * dh]
            s = mm_bt(qh, kh) * scale + bias                 # mask before exp
            s = s - jnp.max(s, axis=-1, keepdims=True)
            p = jnp.exp(s)
            p = p * pl.reciprocal(jnp.sum(p, axis=-1, keepdims=True),
                                  approx=True)
            oh = mm(p, vh)                                   # (rows, dh)
            part = mm(oh, wo[h * dh:(h + 1) * dh, :])
            out = part if out is None else out + part
        return out + bo_ref[...]

    def mha_self(xx, wqkv_ref, bqkv_ref, wo_ref, bo_ref, bias):
        qkv = mm(xx, wqkv_ref[...]) + bqkv_ref[...]          # one packed push
        q, k, v = qkv[:, :d], qkv[:, d:2 * d], qkv[:, 2 * d:]
        return attend(q, k, v, bias, wo_ref, bo_ref)

    def mha_cross(xq, xkv, wq_ref, bq_ref, wkv_ref, bkv_ref,
                  wo_ref, bo_ref, bias):
        q = mm(xq, wq_ref[...]) + bq_ref[...]
        kv = mm(xkv, wkv_ref[...]) + bkv_ref[...]            # packed K,V push
        k, v = kv[:, :d], kv[:, d:]
        return attend(q, k, v, bias, wo_ref, bo_ref)

    def layer_norm(v, g, b, eps=1e-5):
        mu = jnp.mean(v, axis=-1, keepdims=True)
        var = jnp.mean((v - mu) ** 2, axis=-1, keepdims=True)
        return (v - mu) * jax.lax.rsqrt(var + eps) * g + b

    obj = obj_ref[...]            # (B*OBJ_LEN, D)
    tgt = tgt_ref[...]            # (B*TGT_LEN, D)
    ln = ln_ref[...]              # rows: ln1_g, ln1_b, ln2_g, ln2_b, ln3_g, ln3_b
    lgln = lgln_ref[...]          # rows: lg_g, lg_b

    # TODO(synk): Model005 internals not provided in reference; stand-in:
    # cross-attn "encoder" (q=obj, kv=img) + one masked decoder layer on tgt.
    memory = mha_cross(obj, img, enc_wq, enc_bq, enc_wkv, enc_bkv,
                       enc_wo, enc_bo, enc_bias_ref[...])
    x = tgt + mha_self(tgt, slf_wqkv, slf_bqkv, slf_wo, slf_bo,
                       slf_bias_ref[...])
    x = layer_norm(x, ln[0:1], ln[1:2])
    x = x + mha_cross(x, memory, crs_wq, crs_bq, crs_wkv, crs_bkv,
                      crs_wo, crs_bo, crs_bias_ref[...])
    x = layer_norm(x, ln[2:3], ln[3:4])
    hid = jnp.maximum(mm(x, ffw1[...]) + ffb1[...], 0.0)
    x = x + mm(hid, ffw2[...]) + ffb2[...]
    x = layer_norm(x, ln[4:5], ln[5:6])
    # to_logits: LayerNorm + Linear (lane-dense VOCAB=512 output)
    x = layer_norm(x, lgln[0:1], lgln[1:2])
    out_ref[...] = mm(x, lgw[...]) + lgb[...]


# ================================ forward ===================================
def prefix_lm_forward(params, img_nchw, des, obj, tgt):
    B = des.shape[0]
    f, n = FMAP, IMG_LEN

    # ---- image -> non-overlapping patches (pure reshape glue, NCHW->NHWC),
    #      batch stacked along sublanes, pre-cast to bf16 -------------------
    img = jnp.transpose(img_nchw, (0, 2, 3, 1))
    patches = img.reshape(B, f, PATCH, f, PATCH, 3).transpose(0, 1, 3, 2, 4, 5)
    patches = patches.reshape(B * n, PATCH * PATCH * 3).astype(jnp.bfloat16)

    # axial positional embedding (summed over the two axes), tiled over batch
    img_pos = (params["img_pos_h"][:, None, :] +
               params["img_pos_w"][None, :, :]).reshape(n, D_MODEL)
    img_pos = jnp.tile(img_pos, (B, 1))

    # ---- text (embedding gathers + pad stay in XLA glue) --------------------
    tgt_p = jnp.pad(tgt, ((0, 0), (1, 0)), constant_values=4)
    labels = tgt_p[:, 1:]
    tgt_in = tgt_p[:, :-1]
    txt_e, pos_e = params["txt_embed"], params["txt_pos_embed"]
    # TODO(synk): des_embed is unused by the Model005 stand-in (Model005
    # internals are not in the reference source), so it is not materialized.
    obj_emb = (txt_e[obj] + pos_e[jnp.arange(OBJ_LEN)][None]
               ).reshape(B * OBJ_LEN, D_MODEL)
    tgt_emb = (txt_e[tgt_in] + pos_e[jnp.arange(TGT_LEN)][None]
               ).reshape(B * TGT_LEN, D_MODEL)

    # ---- trace-time constants ----------------------------------------------
    sshift = jnp.asarray(_shift_stack(f, B), jnp.bfloat16)
    enc_bias = jnp.asarray(_attn_bias(B * OBJ_LEN, B * n, OBJ_LEN, n))
    slf_bias = jnp.asarray(_attn_bias(B * TGT_LEN, B * TGT_LEN,
                                      TGT_LEN, TGT_LEN, causal=True))
    crs_bias = jnp.asarray(_attn_bias(B * TGT_LEN, B * OBJ_LEN,
                                      TGT_LEN, OBJ_LEN))

    p1, p2, m = params["bn1"], params["bn2"], params["m005"]
    args = [
        patches, sshift, img_pos, obj_emb, tgt_emb,
        enc_bias, slf_bias, crs_bias,
        params["stem_w"], params["stem_b"],
        p1["w1"], p1["b1"], p1["w2"], p1["b2"],
        p1["w3"], p1["b3"], p1["ws"], p1["bs"],
        p2["w1"], p2["b1"], p2["w2"], p2["b2"],
        p2["w3"], p2["b3"], p2["ws"], p2["bs"],
        m["enc_wq"], m["enc_bq"], m["enc_wkv"], m["enc_bkv"],
        m["enc_wo"], m["enc_bo"],
        m["self_wqkv"], m["self_bqkv"], m["self_wo"], m["self_bo"],
        m["cross_wq"], m["cross_bq"], m["cross_wkv"], m["cross_bkv"],
        m["cross_wo"], m["cross_bo"],
        m["ln_pack"], m["ff_w1"], m["ff_b1"], m["ff_w2"], m["ff_b2"],
        params["lg_ln"], params["lg_w"], params["lg_b"],
    ]

    logits_flat = pl.pallas_call(
        _prefix_lm_kernel,
        out_shape=jax.ShapeDtypeStruct((B * TGT_LEN, VOCAB), jnp.float32),
        cost_estimate=pl.CostEstimate(flops=6_400_000, transcendentals=2_560,
                                      bytes_accessed=850_000),
    )(*args)
    return logits_flat.reshape(B, TGT_LEN, VOCAB), labels


# ============================ parameter init ================================
def init_params(key):
    keys = iter(jax.random.split(key, 64))

    def w(shape, scale=0.02, dtype=jnp.bfloat16):
        return (jax.random.normal(next(keys), shape, jnp.float32)
                * scale).astype(dtype)

    def zeros(shape, dtype=jnp.bfloat16):
        return jnp.zeros(shape, dtype)

    txt_embed = w((VOCAB, D_MODEL), dtype=jnp.float32).at[0].set(0.0)  # padding_idx=0
    ln_pack = jnp.concatenate([jnp.ones((1, D_MODEL), jnp.float32),
                               jnp.zeros((1, D_MODEL), jnp.float32)] * 3, 0)
    lg_ln = jnp.concatenate([jnp.ones((1, D_MODEL), jnp.float32),
                             jnp.zeros((1, D_MODEL), jnp.float32)], 0)

    params = dict(
        # Conv2d(3->64, k=PATCH, s=PATCH) as a matmul over flattened patches
        stem_w=w((PATCH * PATCH * 3, 64)), stem_b=zeros((1, 64)),
        # BottleneckBlock(64 -> 256, bottleneck 64)
        bn1=dict(w1=w((64, 64)), b1=zeros((1, 64)),
                 w2=w((9 * 64, 64)), b2=zeros((1, 64)),
                 w3=w((64, 256)), b3=zeros((1, 256)),
                 ws=w((64, 256)), bs=zeros((1, 256))),
        # BottleneckBlock(256 -> d_model, bottleneck 128)
        bn2=dict(w1=w((256, 128)), b1=zeros((1, 128)),
                 w2=w((9 * 128, 128)), b2=zeros((1, 128)),
                 w3=w((128, D_MODEL)), b3=zeros((1, D_MODEL)),
                 ws=w((256, D_MODEL)), bs=zeros((1, D_MODEL))),
        txt_embed=txt_embed,
        txt_pos_embed=w((DES_LEN, D_MODEL), dtype=jnp.float32),
        img_pos_h=w((FMAP, D_MODEL), dtype=jnp.float32),
        img_pos_w=w((FMAP, D_MODEL), dtype=jnp.float32),
        m005=dict(
            # cross-attn "encoder": separate q, packed kv
            enc_wq=w((D_MODEL, D_MODEL)), enc_bq=zeros((1, D_MODEL)),
            enc_wkv=w((D_MODEL, 2 * D_MODEL)), enc_bkv=zeros((1, 2 * D_MODEL)),
            enc_wo=w((D_MODEL, D_MODEL), dtype=jnp.float32),
            enc_bo=zeros((1, D_MODEL)),
            # masked decoder self-attn: packed qkv
            self_wqkv=w((D_MODEL, 3 * D_MODEL)),
            self_bqkv=zeros((1, 3 * D_MODEL)),
            self_wo=w((D_MODEL, D_MODEL), dtype=jnp.float32),
            self_bo=zeros((1, D_MODEL)),
            # decoder cross-attn
            cross_wq=w((D_MODEL, D_MODEL)), cross_bq=zeros((1, D_MODEL)),
            cross_wkv=w((D_MODEL, 2 * D_MODEL)),
            cross_bkv=zeros((1, 2 * D_MODEL)),
            cross_wo=w((D_MODEL, D_MODEL), dtype=jnp.float32),
            cross_bo=zeros((1, D_MODEL)),
            ln_pack=ln_pack,
            ff_w1=w((D_MODEL, D_FF)), ff_b1=zeros((1, D_FF)),
            ff_w2=w((D_FF, D_MODEL)), ff_b2=zeros((1, D_MODEL)),
        ),
        lg_ln=lg_ln,
        lg_w=w((D_MODEL, VOCAB)), lg_b=zeros((1, VOCAB)),
    )
    return params


# ================================= main =====================================
if __name__ == "__main__":
    key = jax.random.PRNGKey(0)
    pkey, ikey, dkey, okey, tkey = jax.random.split(key, 5)

    params = init_params(pkey)

    img = jax.random.normal(ikey, (BATCH, 3, RES, RES), jnp.float32)   # NCHW like PyTorch
    des = jax.random.randint(dkey, (BATCH, DES_LEN), 1, VOCAB, dtype=jnp.int32)
    obj = jax.random.randint(okey, (BATCH, OBJ_LEN), 1, VOCAB, dtype=jnp.int32)
    tgt = jax.random.randint(tkey, (BATCH, TGT_LEN), 1, VOCAB, dtype=jnp.int32)

    logits, labels = jax.jit(prefix_lm_forward)(params, img, des, obj, tgt)
    jax.block_until_ready(logits)

    assert logits.shape == (BATCH, TGT_LEN, VOCAB)
    assert labels.shape == (BATCH, TGT_LEN)
    assert bool(jnp.all(jnp.isfinite(logits)))
    print("KERNEL_OK")
</pallas_src>

<mosaic_0001>
module attributes {stable_mosaic.version = 11 : i64} {
  func.func @_prefix_lm_kernel(%arg0: memref<8x768xbf16, #tpu.memory_space<vmem>>, %arg1: memref<72x8xbf16, #tpu.memory_space<vmem>>, %arg2: memref<8x32xf32, #tpu.memory_space<vmem>>, %arg3: memref<16x32xf32, #tpu.memory_space<vmem>>, %arg4: memref<16x32xf32, #tpu.memory_space<vmem>>, %arg5: memref<16x8xf32, #tpu.memory_space<vmem>>, %arg6: memref<16x16xf32, #tpu.memory_space<vmem>>, %arg7: memref<16x16xf32, #tpu.memory_space<vmem>>, %arg8: memref<768x64xbf16, #tpu.memory_space<vmem>>, %arg9: memref<1x64xbf16, #tpu.memory_space<vmem>>, %arg10: memref<64x64xbf16, #tpu.memory_space<vmem>>, %arg11: memref<1x64xbf16, #tpu.memory_space<vmem>>, %arg12: memref<576x64xbf16, #tpu.memory_space<vmem>>, %arg13: memref<1x64xbf16, #tpu.memory_space<vmem>>, %arg14: memref<64x256xbf16, #tpu.memory_space<vmem>>, %arg15: memref<1x256xbf16, #tpu.memory_space<vmem>>, %arg16: memref<64x256xbf16, #tpu.memory_space<vmem>>, %arg17: memref<1x256xbf16, #tpu.memory_space<vmem>>, %arg18: memref<256x128xbf16, #tpu.memory_space<vmem>>, %arg19: memref<1x128xbf16, #tpu.memory_space<vmem>>, %arg20: memref<1152x128xbf16, #tpu.memory_space<vmem>>, %arg21: memref<1x128xbf16, #tpu.memory_space<vmem>>, %arg22: memref<128x32xbf16, #tpu.memory_space<vmem>>, %arg23: memref<1x32xbf16, #tpu.memory_space<vmem>>, %arg24: memref<256x32xbf16, #tpu.memory_space<vmem>>, %arg25: memref<1x32xbf16, #tpu.memory_space<vmem>>, %arg26: memref<32x32xbf16, #tpu.memory_space<vmem>>, %arg27: memref<1x32xbf16, #tpu.memory_space<vmem>>, %arg28: memref<32x64xbf16, #tpu.memory_space<vmem>>, %arg29: memref<1x64xbf16, #tpu.memory_space<vmem>>, %arg30: memref<32x32xf32, #tpu.memory_space<vmem>>, %arg31: memref<1x32xbf16, #tpu.memory_space<vmem>>, %arg32: memref<32x96xbf16, #tpu.memory_space<vmem>>, %arg33: memref<1x96xbf16, #tpu.memory_space<vmem>>, %arg34: memref<32x32xf32, #tpu.memory_space<vmem>>, %arg35: memref<1x32xbf16, #tpu.memory_space<vmem>>, %arg36: memref<32x32xbf16, #tpu.memory_space<vmem>>, %arg37: memref<1x32xbf16, #tpu.memory_space<vmem>>, %arg38: memref<32x64xbf16, #tpu.memory_space<vmem>>, %arg39: memref<1x64xbf16, #tpu.memory_space<vmem>>, %arg40: memref<32x32xf32, #tpu.memory_space<vmem>>, %arg41: memref<1x32xbf16, #tpu.memory_space<vmem>>, %arg42: memref<6x32xf32, #tpu.memory_space<vmem>>, %arg43: memref<32x64xbf16, #tpu.memory_space<vmem>>, %arg44: memref<1x64xbf16, #tpu.memory_space<vmem>>, %arg45: memref<64x32xbf16, #tpu.memory_space<vmem>>, %arg46: memref<1x32xbf16, #tpu.memory_space<vmem>>, %arg47: memref<2x32xf32, #tpu.memory_space<vmem>>, %arg48: memref<32x512xbf16, #tpu.memory_space<vmem>>, %arg49: memref<1x512xbf16, #tpu.memory_space<vmem>>, %arg50: memref<16x512xf32, #tpu.memory_space<vmem>>) attributes {dimension_semantics = [], scalar_prefetch = 0 : i64, scratch_operands = 0 : i64, tpu.core_type = #tpu.core_type<tc>} {
    %c0 = arith.constant 0 : index
    %c0_0 = arith.constant 0 : index
    %0 = vector.load %arg0[%c0, %c0_0] : memref<8x768xbf16, #tpu.memory_space<vmem>>, vector<8x768xbf16>
    %c0_1 = arith.constant 0 : index
    %c0_2 = arith.constant 0 : index
    %1 = vector.load %arg8[%c0_1, %c0_2] : memref<768x64xbf16, #tpu.memory_space<vmem>>, vector<768x64xbf16>
    %cst = arith.constant dense<0.000000e+00> : vector<8x64xf32>
    %2 = tpu.matmul %0, %1, %cst {dimension_numbers = #tpu.dot_dimension_numbers<[1], [0], [0], [1], [0, 0, 1, 1], [], []>} : vector<8x768xbf16>, vector<768x64xbf16>, vector<8x64xf32> -> vector<8x64xf32>
    %c0_3 = arith.constant 0 : index
    %c0_4 = arith.constant 0 : index
    %3 = vector.load %arg9[%c0_3, %c0_4] : memref<1x64xbf16, #tpu.memory_space<vmem>>, vector<1x64xbf16>
    %4 = arith.extf %3 : vector<1x64xbf16> to vector<1x64xf32>
    %5 = vector.broadcast %4 : vector<1x64xf32> to vector<8x64xf32>
    %6 = arith.addf %2, %5 : vector<8x64xf32>
    %c0_5 = arith.constant 0 : index
    %c0_6 = arith.constant 0 : index
    %7 = vector.load %arg10[%c0_5, %c0_6] : memref<64x64xbf16, #tpu.memory_space<vmem>>, vector<64x64xbf16>
    %8 = arith.truncf %6 : vector<8x64xf32> to vector<8x64xbf16>
    %cst_7 = arith.constant dense<0.000000e+00> : vector<8x64xf32>
    %9 = tpu.matmul %8, %7, %cst_7 {dimension_numbers = #tpu.dot_dimension_numbers<[1], [0], [0], [1], [0, 0, 1, 1], [], []>} : vector<8x64xbf16>, vector<64x64xbf16>, vector<8x64xf32> -> vector<8x64xf32>
    %c0_8 = arith.constant 0 : index
    %c0_9 = arith.constant 0 : index
    %10 = vector.load %arg11[%c0_8, %c0_9] : memref<1x64xbf16, #tpu.memory_space<vmem>>, vector<1x64xbf16>
    %11 = arith.extf %10 : vector<1x64xbf16> to vector<1x64xf32>
    %12 = vector.broadcast %11 : vector<1x64xf32> to vector<8x64xf32>
    %13 = arith.addf %9, %12 : vector<8x64xf32>
    %cst_10 = arith.constant 0.000000e+00 : f32
    %14 = vector.broadcast %cst_10 : f32 to vector<8x64xf32>
    %15 = arith.maximumf %13, %14 : vector<8x64xf32>
    %c0_11 = arith.constant 0 : index
    %c0_12 = arith.constant 0 : index
    %16 = vector.load %arg1[%c0_11, %c0_12] : memref<72x8xbf16, #tpu.memory_space<vmem>>, vector<72x8xbf16>
    %17 = arith.truncf %15 : vector<8x64xf32> to vector<8x64xbf16>
    %cst_13 = arith.constant dense<0.000000e+00> : vector<72x64xf32>
    %18 = tpu.matmul %16, %17, %cst_13 {dimension_numbers = #tpu.dot_dimension_numbers<[1], [0], [0], [1], [0, 0, 1, 1], [], []>} : vector<72x8xbf16>, vector<8x64xbf16>, vector<72x64xf32> -> vector<72x64xf32>
    %19 = vector.extract_strided_slice %18 {offsets = [0, 0], sizes = [8, 64], strides = [1, 1]} : vector<72x64xf32> to vector<8x64xf32>
    %c0_14 = arith.constant 0 : index
    %c0_15 = arith.constant 0 : index
    %20 = vector.load %arg12[%c0_14, %c0_15] : memref<576x64xbf16, #tpu.memory_space<vmem>>, vector<64x64xbf16>
    %21 = arith.truncf %19 : vector<8x64xf32> to vector<8x64xbf16>
    %cst_16 = arith.constant dense<0.000000e+00> : vector<8x64xf32>
    %22 = tpu.matmul %21, %20, %cst_16 {dimension_numbers = #tpu.dot_dimension_numbers<[1], [0], [0], [1], [0, 0, 1, 1], [], []>} : vector<8x64xbf16>, vector<64x64xbf16>, vector<8x64xf32> -> vector<8x64xf32>
    %23 = vector.extract_strided_slice %18 {offsets = [8, 0], sizes = [8, 64], strides = [1, 1]} : vector<72x64xf32> to vector<8x64xf32>
    %c64 = arith.constant 64 : index
    %c0_17 = arith.constant 0 : index
    %24 = vector.load %arg12[%c64, %c0_17] : memref<576x64xbf16, #tpu.memory_space<vmem>>, vector<64x64xbf16>
    %25 = arith.truncf %23 : vector<8x64xf32> to vector<8x64xbf16>
    %cst_18 = arith.constant dense<0.000000e+00> : vector<8x64xf32>
    %26 = tpu.matmul %25, %24, %cst_18 {dimension_numbers = #tpu.dot_dimension_numbers<[1], [0], [0], [1], [0, 0, 1, 1], [], []>} : vector<8x64xbf16>, vector<64x64xbf16>, vector<8x64xf32> -> vector<8x64xf32>
    %27 = arith.addf %22, %26 : vector<8x64xf32>
    %28 = vector.extract_strided_slice %18 {offsets = [16, 0], sizes = [8, 64], strides = [1, 1]} : vector<72x64xf32> to vector<8x64xf32>
    %c128 = arith.constant 128 : index
    %c0_19 = arith.constant 0 : index
    %29 = vector.load %arg12[%c128, %c0_19] : memref<576x64xbf16, #tpu.memory_space<vmem>>, vector<64x64xbf16>
    %30 = arith.truncf %28 : vector<8x64xf32> to vector<8x64xbf16>
    %cst_20 = arith.constant dense<0.000000e+00> : vector<8x64xf32>
    %31 = tpu.matmul %30, %29, %cst_20 {dimension_numbers = #tpu.dot_dimension_numbers<[1], [0], [0], [1], [0, 0, 1, 1], [], []>} : vector<8x64xbf16>, vector<64x64xbf16>, vector<8x64xf32> -> vector<8x64xf32>
    %32 = arith.addf %27, %31 : vector<8x64xf32>
    %33 = vector.extract_strided_slice %18 {offsets = [24, 0], sizes = [8, 64], strides = [1, 1]} : vector<72x64xf32> to vector<8x64xf32>
    %c192 = arith.constant 192 : index
    %c0_21 = arith.constant 0 : index
    %34 = vector.load %arg12[%c192, %c0_21] : memref<576x64xbf16, #tpu.memory_space<vmem>>, vector<64x64xbf16>
    %35 = arith.truncf %33 : vector<8x64xf32> to vector<8x64xbf16>
    %cst_22 = arith.constant dense<0.000000e+00> : vector<8x64xf32>
    %36 = tpu.matmul %35, %34, %cst_22 {dimension_numbers = #tpu.dot_dimension_numbers<[1], [0], [0], [1], [0, 0, 1, 1], [], []>} : vector<8x64xbf16>, vector<64x64xbf16>, vector<8x64xf32> -> vector<8x64xf32>
    %37 = arith.addf %32, %36 : vector<8x64xf32>
    %38 = vector.extract_strided_slice %18 {offsets = [32, 0], sizes = [8, 64], strides = [1, 1]} : vector<72x64xf32> to vector<8x64xf32>
    %c256 = arith.constant 256 : index
    %c0_23 = arith.constant 0 : index
    %39 = vector.load %arg12[%c256, %c0_23] : memref<576x64xbf16, #tpu.memory_space<vmem>>, vector<64x64xbf16>
    %40 = arith.truncf %38 : vector<8x64xf32> to vector<8x64xbf16>
    %cst_24 = arith.constant dense<0.000000e+00> : vector<8x64xf32>
    %41 = tpu.matmul %40, %39, %cst_24 {dimension_numbers = #tpu.dot_dimension_numbers<[1], [0], [0], [1], [0, 0, 1, 1], [], []>} : vector<8x64xbf16>, vector<64x64xbf16>, vector<8x64xf32> -> vector<8x64xf32>
    %42 = arith.addf %37, %41 : vector<8x64xf32>
    %43 = vector.extract_strided_slice %18 {offsets = [40, 0], sizes = [8, 64], strides = [1, 1]} : vector<72x64xf32> to vector<8x64xf32>
    %c320 = arith.constant 320 : index
    %c0_25 = arith.constant 0 : index
    %44 = vector.load %arg12[%c320, %c0_25] : memref<576x64xbf16, #tpu.memory_space<vmem>>, vector<64x64xbf16>
    %45 = arith.truncf %43 : vector<8x64xf32> to vector<8x64xbf16>
    %cst_26 = arith.constant dense<0.000000e+00> : vector<8x64xf32>
    %46 = tpu.matmul %45, %44, %cst_26 {dimension_numbers = #tpu.dot_dimension_numbers<[1], [0], [0], [1], [0, 0, 1, 1], [], []>} : vector<8x64xbf16>, vector<64x64xbf16>, vector<8x64xf32> -> vector<8x64xf32>
    %47 = arith.addf %42, %46 : vector<8x64xf32>
    %48 = vector.extract_strided_slice %18 {offsets = [48, 0], sizes = [8, 64], strides = [1, 1]} : vector<72x64xf32> to vector<8x64xf32>
    %c384 = arith.constant 384 : index
    %c0_27 = arith.constant 0 : index
    %49 = vector.load %arg12[%c384, %c0_27] : memref<576x64xbf16, #tpu.memory_space<vmem>>, vector<64x64xbf16>
    %50 = arith.truncf %48 : vector<8x64xf32> to vector<8x64xbf16>
    %cst_28 = arith.constant dense<0.000000e+00> : vector<8x64xf32>
    %51 = tpu.matmul %50, %49, %cst_28 {dimension_numbers = #tpu.dot_dimension_numbers<[1], [0], [0], [1], [0, 0, 1, 1], [], []>} : vector<8x64xbf16>, vector<64x64xbf16>, vector<8x64xf32> -> vector<8x64xf32>
    %52 = arith.addf %47, %51 : vector<8x64xf32>
    %53 = vector.extract_strided_slice %18 {offsets = [56, 0], sizes = [8, 64], strides = [1, 1]} : vector<72x64xf32> to vector<8x64xf32>
    %c448 = arith.constant 448 : index
    %c0_29 = arith.constant 0 : index
    %54 = vector.load %arg12[%c448, %c0_29] : memref<576x64xbf16, #tpu.memory_space<vmem>>, vector<64x64xbf16>
    %55 = arith.truncf %53 : vector<8x64xf32> to vector<8x64xbf16>
    %cst_30 = arith.constant dense<0.000000e+00> : vector<8x64xf32>
    %56 = tpu.matmul %55, %54, %cst_30 {dimension_numbers = #tpu.dot_dimension_numbers<[1], [0], [0], [1], [0, 0, 1, 1], [], []>} : vector<8x64xbf16>, vector<64x64xbf16>, vector<8x64xf32> -> vector<8x64xf32>
    %57 = arith.addf %52, %56 : vector<8x64xf32>
    %58 = vector.extract_strided_slice %18 {offsets = [64, 0], sizes = [8, 64], strides = [1, 1]} : vector<72x64xf32> to vector<8x64xf32>
    %c512 = arith.constant 512 : index
    %c0_31 = arith.constant 0 : index
    %59 = vector.load %arg12[%c512, %c0_31] : memref<576x64xbf16, #tpu.memory_space<vmem>>, vector<64x64xbf16>
    %60 = arith.truncf %58 : vector<8x64xf32> to vector<8x64xbf16>
    %cst_32 = arith.constant dense<0.000000e+00> : vector<8x64xf32>
    %61 = tpu.matmul %60, %59, %cst_32 {dimension_numbers = #tpu.dot_dimension_numbers<[1], [0], [0], [1], [0, 0, 1, 1], [], []>} : vector<8x64xbf16>, vector<64x64xbf16>, vector<8x64xf32> -> vector<8x64xf32>
    %62 = arith.addf %57, %61 : vector<8x64xf32>
    %c0_33 = arith.constant 0 : index
    %c0_34 = arith.constant 0 : index
    %63 = vector.load %arg13[%c0_33, %c0_34] : memref<1x64xbf16, #tpu.memory_space<vmem>>, vector<1x64xbf16>
    %64 = arith.extf %63 : vector<1x64xbf16> to vector<1x64xf32>
    %65 = vector.broadcast %64 : vector<1x64xf32> to vector<8x64xf32>
    %66 = arith.addf %62, %65 : vector<8x64xf32>
    %cst_35 = arith.constant 0.000000e+00 : f32
    %67 = vector.broadcast %cst_35 : f32 to vector<8x64xf32>
    %68 = arith.maximumf %66, %67 : vector<8x64xf32>
    %c0_36 = arith.constant 0 : index
    %c0_37 = arith.constant 0 : index
    %69 = vector.load %arg14[%c0_36, %c0_37] : memref<64x256xbf16, #tpu.memory_space<vmem>>, vector<64x256xbf16>
    %70 = arith.truncf %68 : vector<8x64xf32> to vector<8x64xbf16>
    %cst_38 = arith.constant dense<0.000000e+00> : vector<8x256xf32>
    %71 = tpu.matmul %70, %69, %cst_38 {dimension_numbers = #tpu.dot_dimension_numbers<[1], [0], [0], [1], [0, 0, 1, 1], [], []>} : vector<8x64xbf16>, vector<64x256xbf16>, vector<8x256xf32> -> vector<8x256xf32>
    %c0_39 = arith.constant 0 : index
    %c0_40 = arith.constant 0 : index
    %72 = vector.load %arg15[%c0_39, %c0_40] : memref<1x256xbf16, #tpu.memory_space<vmem>>, vector<1x256xbf16>
    %73 = arith.extf %72 : vector<1x256xbf16> to vector<1x256xf32>
    %74 = vector.broadcast %73 : vector<1x256xf32> to vector<8x256xf32>
    %75 = arith.addf %71, %74 : vector<8x256xf32>
    %c0_41 = arith.constant 0 : index
    %c0_42 = arith.constant 0 : index
    %76 = vector.load %arg16[%c0_41, %c0_42] : memref<64x256xbf16, #tpu.memory_space<vmem>>, vector<64x256xbf16>
    %77 = arith.truncf %6 : vector<8x64xf32> to vector<8x64xbf16>
    %cst_43 = arith.constant dense<0.000000e+00> : vector<8x256xf32>
    %78 = tpu.matmul %77, %76, %cst_43 {dimension_numbers = #tpu.dot_dimension_numbers<[1], [0], [0], [1], [0, 0, 1, 1], [], []>} : vector<8x64xbf16>, vector<64x256xbf16>, vector<8x256xf32> -> vector<8x256xf32>
    %c0_44 = arith.constant 0 : index
    %c0_45 = arith.constant 0 : index
    %79 = vector.load %arg17[%c0_44, %c0_45] : memref<1x256xbf16, #tpu.memory_space<vmem>>, vector<1x256xbf16>
    %80 = arith.extf %79 : vector<1x256xbf16> to vector<1x256xf32>
    %81 = vector.broadcast %80 : vector<1x256xf32> to vector<8x256xf32>
    %82 = arith.addf %78, %81 : vector<8x256xf32>
    %83 = arith.addf %75, %82 : vector<8x256xf32>
    %cst_46 = arith.constant 0.000000e+00 : f32
    %84 = vector.broadcast %cst_46 : f32 to vector<8x256xf32>
    %85 = arith.maximumf %83, %84 : vector<8x256xf32>
    %c0_47 = arith.constant 0 : index
    %c0_48 = arith.constant 0 : index
    %86 = vector.load %arg18[%c0_47, %c0_48] : memref<256x128xbf16, #tpu.memory_space<vmem>>, vector<256x128xbf16>
    %87 = arith.truncf %85 : vector<8x256xf32> to vector<8x256xbf16>
    %cst_49 = arith.constant dense<0.000000e+00> : vector<8x128xf32>
    %88 = tpu.matmul %87, %86, %cst_49 {dimension_numbers = #tpu.dot_dimension_numbers<[1], [0], [0], [1], [0, 0, 1, 1], [], []>} : vector<8x256xbf16>, vector<256x128xbf16>, vector<8x128xf32> -> vector<8x128xf32>
    %c0_50 = arith.constant 0 : index
    %c0_51 = arith.constant 0 : index
    %89 = vector.load %arg19[%c0_50, %c0_51] : memref<1x128xbf16, #tpu.memory_space<vmem>>, vector<1x128xbf16>
    %90 = arith.extf %89 : vector<1x128xbf16> to vector<1x128xf32>
    %91 = vector.broadcast %90 : vector<1x128xf32> to vector<8x128xf32>
    %92 = arith.addf %88, %91 : vector<8x128xf32>
    %cst_52 = arith.constant 0.000000e+00 : f32
    %93 = vector.broadcast %cst_52 : f32 to vector<8x128xf32>
    %94 = arith.maximumf %92, %93 : vector<8x128xf32>
    %c0_53 = arith.constant 0 : index
    %c0_54 = arith.constant 0 : index
    %95 = vector.load %arg1[%c0_53, %c0_54] : memref<72x8xbf16, #tpu.memory_space<vmem>>, vector<72x8xbf16>
    %96 = arith.truncf %94 : vector<8x128xf32> to vector<8x128xbf16>
    %cst_55 = arith.constant dense<0.000000e+00> : vector<72x128xf32>
    %97 = tpu.matmul %95, %96, %cst_55 {dimension_numbers = #tpu.dot_dimension_numbers<[1], [0], [0], [1], [0, 0, 1, 1], [], []>} : vector<72x8xbf16>, vector<8x128xbf16>, vector<72x128xf32> -> vector<72x128xf32>
    %98 = vector.extract_strided_slice %97 {offsets = [0, 0], sizes = [8, 128], strides = [1, 1]} : vector<72x128xf32> to vector<8x128xf32>
    %c0_56 = arith.constant 0 : index
    %c0_57 = arith.constant 0 : index
    %99 = vector.load %arg20[%c0_56, %c0_57] : memref<1152x128xbf16, #tpu.memory_space<vmem>>, vector<128x128xbf16>
    %100 = arith.truncf %98 : vector<8x128xf32> to vector<8x128xbf16>
    %cst_58 = arith.constant dense<0.000000e+00> : vector<8x128xf32>
    %101 = tpu.matmul %100, %99, %cst_58 {dimension_numbers = #tpu.dot_dimension_numbers<[1], [0], [0], [1], [0, 0, 1, 1], [], []>} : vector<8x128xbf16>, vector<128x128xbf16>, vector<8x128xf32> -> vector<8x128xf32>
    %102 = vector.extract_strided_slice %97 {offsets = [8, 0], sizes = [8, 128], strides = [1, 1]} : vector<72x128xf32> to vector<8x128xf32>
    %c128_59 = arith.constant 128 : index
    %c0_60 = arith.constant 0 : index
    %103 = vector.load %arg20[%c128_59, %c0_60] : memref<1152x128xbf16, #tpu.memory_space<vmem>>, vector<128x128xbf16>
    %104 = arith.truncf %102 : vector<8x128xf32> to vector<8x128xbf16>
    %cst_61 = arith.constant dense<0.000000e+00> : vector<8x128xf32>
    %105 = tpu.matmul %104, %103, %cst_61 {dimension_numbers = #tpu.dot_dimension_numbers<[1], [0], [0], [1], [0, 0, 1, 1], [], []>} : vector<8x128xbf16>, vector<128x128xbf16>, vector<8x128xf32> -> vector<8x128xf32>
    %106 = arith.addf %101, %105 : vector<8x128xf32>
    %107 = vector.extract_strided_slice %97 {offsets = [16, 0], sizes = [8, 128], strides = [1, 1]} : vector<72x128xf32> to vector<8x128xf32>
    %c256_62 = arith.constant 256 : index
    %c0_63 = arith.constant 0 : index
    %108 = vector.load %arg20[%c256_62, %c0_63] : memref<1152x128xbf16, #tpu.memory_space<vmem>>, vector<128x128xbf16>
    %109 = arith.truncf %107 : vector<8x128xf32> to vector<8x128xbf16>
    %cst_64 = arith.constant dense<0.000000e+00> : vector<8x128xf32>
    %110 = tpu.matmul %109, %108, %cst_64 {dimension_numbers = #tpu.dot_dimension_numbers<[1], [0], [0], [1], [0, 0, 1, 1], [], []>} : vector<8x128xbf16>, vector<128x128xbf16>, vector<8x128xf32> -> vector<8x128xf32>
    %111 = arith.addf %106, %110 : vector<8x128xf32>
    %112 = vector.extract_strided_slice %97 {offsets = [24, 0], sizes = [8, 128], strides = [1, 1]} : vector<72x128xf32> to vector<8x128xf32>
    %c384_65 = arith.constant 384 : index
    %c0_66 = arith.constant 0 : index
    %113 = vector.load %arg20[%c384_65, %c0_66] : memref<1152x128xbf16, #tpu.memory_space<vmem>>, vector<128x128xbf16>
    %114 = arith.truncf %112 : vector<8x128xf32> to vector<8x128xbf16>
    %cst_67 = arith.constant dense<0.000000e+00> : vector<8x128xf32>
    %115 = tpu.matmul %114, %113, %cst_67 {dimension_numbers = #tpu.dot_dimension_numbers<[1], [0], [0], [1], [0, 0, 1, 1], [], []>} : vector<8x128xbf16>, vector<128x128xbf16>, vector<8x128xf32> -> vector<8x128xf32>
    %116 = arith.addf %111, %115 : vector<8x128xf32>
    %117 = vector.extract_strided_slice %97 {offsets = [32, 0], sizes = [8, 128], strides = [1, 1]} : vector<72x128xf32> to vector<8x128xf32>
    %c512_68 = arith.constant 512 : index
    %c0_69 = arith.constant 0 : index
    %118 = vector.load %arg20[%c512_68, %c0_69] : memref<1152x128xbf16, #tpu.memory_space<vmem>>, vector<128x128xbf16>
    %119 = arith.truncf %117 : vector<8x128xf32> to vector<8x128xbf16>
    %cst_70 = arith.constant dense<0.000000e+00> : vector<8x128xf32>
    %120 = tpu.matmul %119, %118, %cst_70 {dimension_numbers = #tpu.dot_dimension_numbers<[1], [0], [0], [1], [0, 0, 1, 1], [], []>} : vector<8x128xbf16>, vector<128x128xbf16>, vector<8x128xf32> -> vector<8x128xf32>
    %121 = arith.addf %116, %120 : vector<8x128xf32>
    %122 = vector.extract_strided_slice %97 {offsets = [40, 0], sizes = [8, 128], strides = [1, 1]} : vector<72x128xf32> to vector<8x128xf32>
    %c640 = arith.constant 640 : index
    %c0_71 = arith.constant 0 : index
    %123 = vector.load %arg20[%c640, %c0_71] : memref<1152x128xbf16, #tpu.memory_space<vmem>>, vector<128x128xbf16>
    %124 = arith.truncf %122 : vector<8x128xf32> to vector<8x128xbf16>
    %cst_72 = arith.constant dense<0.000000e+00> : vector<8x128xf32>
    %125 = tpu.matmul %124, %123, %cst_72 {dimension_numbers = #tpu.dot_dimension_numbers<[1], [0], [0], [1], [0, 0, 1, 1], [], []>} : vector<8x128xbf16>, vector<128x128xbf16>, vector<8x128xf32> -> vector<8x128xf32>
    %126 = arith.addf %121, %125 : vector<8x128xf32>
    %127 = vector.extract_strided_slice %97 {offsets = [48, 0], sizes = [8, 128], strides = [1, 1]} : vector<72x128xf32> to vector<8x128xf32>
    %c768 = arith.constant 768 : index
    %c0_73 = arith.constant 0 : index
    %128 = vector.load %arg20[%c768, %c0_73] : memref<1152x128xbf16, #tpu.memory_space<vmem>>, vector<128x128xbf16>
    %129 = arith.truncf %127 : vector<8x128xf32> to vector<8x128xbf16>
    %cst_74 = arith.constant dense<0.000000e+00> : vector<8x128xf32>
    %130 = tpu.matmul %129, %128, %cst_74 {dimension_numbers = #tpu.dot_dimension_numbers<[1], [0], [0], [1], [0, 0, 1, 1], [], []>} : vector<8x128xbf16>, vector<128x128xbf16>, vector<8x128xf32> -> vector<8x128xf32>
    %131 = arith.addf %126, %130 : vector<8x128xf32>
    %132 = vector.extract_strided_slice %97 {offsets = [56, 0], sizes = [8, 128], strides = [1, 1]} : vector<72x128xf32> to vector<8x128xf32>
    %c896 = arith.constant 896 : index
    %c0_75 = arith.constant 0 : index
    %133 = vector.load %arg20[%c896, %c0_75] : memref<1152x128xbf16, #tpu.memory_space<vmem>>, vector<128x128xbf16>
    %134 = arith.truncf %132 : vector<8x128xf32> to vector<8x128xbf16>
    %cst_76 = arith.constant dense<0.000000e+00> : vector<8x128xf32>
    %135 = tpu.matmul %134, %133, %cst_76 {dimension_numbers = #tpu.dot_dimension_numbers<[1], [0], [0], [1], [0, 0, 1, 1], [], []>} : vector<8x128xbf16>, vector<128x128xbf16>, vector<8x128xf32> -> vector<8x128xf32>
    %136 = arith.addf %131, %135 : vector<8x128xf32>
    %137 = vector.extract_strided_slice %97 {offsets = [64, 0], sizes = [8, 128], strides = [1, 1]} : vector<72x128xf32> to vector<8x128xf32>
    %c1024 = arith.constant 1024 : index
    %c0_77 = arith.constant 0 : index
    %138 = vector.load %arg20[%c1024, %c0_77] : memref<1152x128xbf16, #tpu.memory_space<vmem>>, vector<128x128xbf16>
    %139 = arith.truncf %137 : vector<8x128xf32> to vector<8x128xbf16>
    %cst_78 = arith.constant dense<0.000000e+00> : vector<8x128xf32>
    %140 = tpu.matmul %139, %138, %cst_78 {dimension_numbers = #tpu.dot_dimension_numbers<[1], [0], [0], [1], [0, 0, 1, 1], [], []>} : vector<8x128xbf16>, vector<128x128xbf16>, vector<8x128xf32> -> vector<8x128xf32>
    %141 = arith.addf %136, %140 : vector<8x128xf32>
    %c0_79 = arith.constant 0 : index
    %c0_80 = arith.constant 0 : index
    %142 = vector.load %arg21[%c0_79, %c0_80] : memref<1x128xbf16, #tpu.memory_space<vmem>>, vector<1x128xbf16>
    %143 = arith.extf %142 : vector<1x128xbf16> to vector<1x128xf32>
    %144 = vector.broadcast %143 : vector<1x128xf32> to vector<8x128xf32>
    %145 = arith.addf %141, %144 : vector<8x128xf32>
    %cst_81 = arith.constant 0.000000e+00 : f32
    %146 = vector.broadcast %cst_81 : f32 to vector<8x128xf32>
    %147 = arith.maximumf %145, %146 : vector<8x128xf32>
    %c0_82 = arith.constant 0 : index
    %c0_83 = arith.constant 0 : index
    %148 = vector.load %arg22[%c0_82, %c0_83] : memref<128x32xbf16, #tpu.memory_space<vmem>>, vector<128x32xbf16>
    %149 = arith.truncf %147 : vector<8x128xf32> to vector<8x128xbf16>
    %cst_84 = arith.constant dense<0.000000e+00> : vector<8x32xf32>
    %150 = tpu.matmul %149, %148, %cst_84 {dimension_numbers = #tpu.dot_dimension_numbers<[1], [0], [0], [1], [0, 0, 1, 1], [], []>} : vector<8x128xbf16>, vector<128x32xbf16>, vector<8x32xf32> -> vector<8x32xf32>
    %c0_85 = arith.constant 0 : index
    %c0_86 = arith.constant 0 : index
    %151 = vector.load %arg23[%c0_85, %c0_86] : memref<1x32xbf16, #tpu.memory_space<vmem>>, vector<1x32xbf16>
    %152 = arith.extf %151 : vector<1x32xbf16> to vector<1x32xf32>
    %153 = vector.broadcast %152 : vector<1x32xf32> to vector<8x32xf32>
    %154 = arith.addf %150, %153 : vector<8x32xf32>
    %c0_87 = arith.constant 0 : index
    %c0_88 = arith.constant 0 : index
    %155 = vector.load %arg24[%c0_87, %c0_88] : memref<256x32xbf16, #tpu.memory_space<vmem>>, vector<256x32xbf16>
    %156 = arith.truncf %85 : vector<8x256xf32> to vector<8x256xbf16>
    %cst_89 = arith.constant dense<0.000000e+00> : vector<8x32xf32>
    %157 = tpu.matmul %156, %155, %cst_89 {dimension_numbers = #tpu.dot_dimension_numbers<[1], [0], [0], [1], [0, 0, 1, 1], [], []>} : vector<8x256xbf16>, vector<256x32xbf16>, vector<8x32xf32> -> vector<8x32xf32>
    %c0_90 = arith.constant 0 : index
    %c0_91 = arith.constant 0 : index
    %158 = vector.load %arg25[%c0_90, %c0_91] : memref<1x32xbf16, #tpu.memory_space<vmem>>, vector<1x32xbf16>
    %159 = arith.extf %158 : vector<1x32xbf16> to vector<1x32xf32>
    %160 = vector.broadcast %159 : vector<1x32xf32> to vector<8x32xf32>
    %161 = arith.addf %157, %160 : vector<8x32xf32>
    %162 = arith.addf %154, %161 : vector<8x32xf32>
    %cst_92 = arith.constant 0.000000e+00 : f32
    %163 = vector.broadcast %cst_92 : f32 to vector<8x32xf32>
    %164 = arith.maximumf %162, %163 : vector<8x32xf32>
    %c0_93 = arith.constant 0 : index
    %c0_94 = arith.constant 0 : index
    %165 = vector.load %arg2[%c0_93, %c0_94] : memref<8x32xf32, #tpu.memory_space<vmem>>, vector<8x32xf32>
    %166 = arith.addf %164, %165 : vector<8x32xf32>
    %c0_95 = arith.constant 0 : index
    %c0_96 = arith.constant 0 : index
    %167 = vector.load %arg3[%c0_95, %c0_96] : memref<16x32xf32, #tpu.memory_space<vmem>>, vector<16x32xf32>
    %c0_97 = arith.constant 0 : index
    %c0_98 = arith.constant 0 : index
    %168 = vector.load %arg4[%c0_97, %c0_98] : memref<16x32xf32, #tpu.memory_space<vmem>>, vector<16x32xf32>
    %c0_99 = arith.constant 0 : index
    %c0_100 = arith.constant 0 : index
    %169 = vector.load %arg42[%c0_99, %c0_100] : memref<6x32xf32, #tpu.memory_space<vmem>>, vector<6x32xf32>
    %c0_101 = arith.constant 0 : index
    %c0_102 = arith.constant 0 : index
    %170 = vector.load %arg47[%c0_101, %c0_102] : memref<2x32xf32, #tpu.memory_space<vmem>>, vector<2x32xf32>
    %c0_103 = arith.constant 0 : index
    %c0_104 = arith.constant 0 : index
    %171 = vector.load %arg5[%c0_103, %c0_104] : memref<16x8xf32, #tpu.memory_space<vmem>>, vector<16x8xf32>
    %c0_105 = arith.constant 0 : index
    %c0_106 = arith.constant 0 : index
    %172 = vector.load %arg26[%c0_105, %c0_106] : memref<32x32xbf16, #tpu.memory_space<vmem>>, vector<32x32xbf16>
    %173 = arith.truncf %167 : vector<16x32xf32> to vector<16x32xbf16>
    %cst_107 = arith.constant dense<0.000000e+00> : vector<16x32xf32>
    %174 = tpu.matmul %173, %172, %cst_107 {dimension_numbers = #tpu.dot_dimension_numbers<[1], [0], [0], [1], [0, 0, 1, 1], [], []>} : vector<16x32xbf16>, vector<32x32xbf16>, vector<16x32xf32> -> vector<16x32xf32>
    %c0_108 = arith.constant 0 : index
    %c0_109 = arith.constant 0 : index
    %175 = vector.load %arg27[%c0_108, %c0_109] : memref<1x32xbf16, #tpu.memory_space<vmem>>, vector<1x32xbf16>
    %176 = arith.extf %175 : vector<1x32xbf16> to vector<1x32xf32>
    %177 = vector.broadcast %176 : vector<1x32xf32> to vector<16x32xf32>
    %178 = arith.addf %174, %177 : vector<16x32xf32>
    %c0_110 = arith.constant 0 : index
    %c0_111 = arith.constant 0 : index
    %179 = vector.load %arg28[%c0_110, %c0_111] : memref<32x64xbf16, #tpu.memory_space<vmem>>, vector<32x64xbf16>
    %180 = arith.truncf %166 : vector<8x32xf32> to vector<8x32xbf16>
    %cst_112 = arith.constant dense<0.000000e+00> : vector<8x64xf32>
    %181 = tpu.matmul %180, %179, %cst_112 {dimension_numbers = #tpu.dot_dimension_numbers<[1], [0], [0], [1], [0, 0, 1, 1], [], []>} : vector<8x32xbf16>, vector<32x64xbf16>, vector<8x64xf32> -> vector<8x64xf32>
    %c0_113 = arith.constant 0 : index
    %c0_114 = arith.constant 0 : index
    %182 = vector.load %arg29[%c0_113, %c0_114] : memref<1x64xbf16, #tpu.memory_space<vmem>>, vector<1x64xbf16>
    %183 = arith.extf %182 : vector<1x64xbf16> to vector<1x64xf32>
    %184 = vector.broadcast %183 : vector<1x64xf32> to vector<8x64xf32>
    %185 = arith.addf %181, %184 : vector<8x64xf32>
    %186 = vector.extract_strided_slice %185 {offsets = [0, 0], sizes = [8, 32], strides = [1, 1]} : vector<8x64xf32> to vector<8x32xf32>
    %187 = vector.extract_strided_slice %185 {offsets = [0, 32], sizes = [8, 32], strides = [1, 1]} : vector<8x64xf32> to vector<8x32xf32>
    %c0_115 = arith.constant 0 : index
    %c0_116 = arith.constant 0 : index
    %188 = vector.load %arg30[%c0_115, %c0_116] : memref<32x32xf32, #tpu.memory_space<vmem>>, vector<32x32xf32>
    %189 = vector.extract_strided_slice %178 {offsets = [0, 0], sizes = [16, 8], strides = [1, 1]} : vector<16x32xf32> to vector<16x8xf32>
    %190 = vector.extract_strided_slice %186 {offsets = [0, 0], sizes = [8, 8], strides = [1, 1]} : vector<8x32xf32> to vector<8x8xf32>
    %191 = vector.extract_strided_slice %187 {offsets = [0, 0], sizes = [8, 8], strides = [1, 1]} : vector<8x32xf32> to vector<8x8xf32>
    %192 = arith.truncf %189 : vector<16x8xf32> to vector<16x8xbf16>
    %193 = arith.truncf %190 : vector<8x8xf32> to vector<8x8xbf16>
    %cst_117 = arith.constant dense<0.000000e+00> : vector<16x8xf32>
    %194 = tpu.matmul %192, %193, %cst_117 {dimension_numbers = #tpu.dot_dimension_numbers<[1], [1], [0], [0], [0, 0, 1, 0], [], []>} : vector<16x8xbf16>, vector<8x8xbf16>, vector<16x8xf32> -> vector<16x8xf32>
    %cst_118 = arith.constant 0.353553385 : f32
    %195 = vector.broadcast %cst_118 : f32 to vector<16x8xf32>
    %196 = arith.mulf %194, %195 : vector<16x8xf32>
    %197 = arith.addf %196, %171 : vector<16x8xf32>
    %cst_119 = arith.constant dense<0xFF800000> : vector<16xf32>
    %198 = vector.multi_reduction <maximumf>, %197, %cst_119 [1] : vector<16x8xf32> to vector<16xf32>
    %199 = vector.shape_cast %198 : vector<16xf32> to vector<16x1xf32>
    %200 = vector.broadcast %199 : vector<16x1xf32> to vector<16x8xf32>
    %201 = arith.subf %197, %200 : vector<16x8xf32>
    %202 = math.exp %201 : vector<16x8xf32>
    %cst_120 = arith.constant dense<0.000000e+00> : vector<16xf32>
    %203 = vector.multi_reduction <add>, %202, %cst_120 [1] : vector<16x8xf32> to vector<16xf32>
    %204 = vector.shape_cast %203 : vector<16xf32> to vector<16x1xf32>
    %205 = tpu.reciprocal %204 {approx = true} : vector<16x1xf32> -> vector<16x1xf32>
    %206 = vector.broadcast %205 : vector<16x1xf32> to vector<16x8xf32>
    %207 = arith.mulf %202, %206 : vector<16x8xf32>
    %208 = arith.truncf %207 : vector<16x8xf32> to vector<16x8xbf16>
    %209 = arith.truncf %191 : vector<8x8xf32> to vector<8x8xbf16>
    %cst_121 = arith.constant dense<0.000000e+00> : vector<16x8xf32>
    %210 = tpu.matmul %208, %209, %cst_121 {dimension_numbers = #tpu.dot_dimension_numbers<[1], [0], [0], [1], [0, 0, 1, 1], [], []>} : vector<16x8xbf16>, vector<8x8xbf16>, vector<16x8xf32> -> vector<16x8xf32>
    %211 = vector.extract_strided_slice %188 {offsets = [0, 0], sizes = [8, 32], strides = [1, 1]} : vector<32x32xf32> to vector<8x32xf32>
    %212 = arith.truncf %210 : vector<16x8xf32> to vector<16x8xbf16>
    %213 = arith.truncf %211 : vector<8x32xf32> to vector<8x32xbf16>
    %cst_122 = arith.constant dense<0.000000e+00> : vector<16x32xf32>
    %214 = tpu.matmul %212, %213, %cst_122 {dimension_numbers = #tpu.dot_dimension_numbers<[1], [0], [0], [1], [0, 0, 1, 1], [], []>} : vector<16x8xbf16>, vector<8x32xbf16>, vector<16x32xf32> -> vector<16x32xf32>
    %215 = vector.extract_strided_slice %178 {offsets = [0, 8], sizes = [16, 8], strides = [1, 1]} : vector<16x32xf32> to vector<16x8xf32>
    %216 = vector.extract_strided_slice %186 {offsets = [0, 8], sizes = [8, 8], strides = [1, 1]} : vector<8x32xf32> to vector<8x8xf32>
    %217 = vector.extract_strided_slice %187 {offsets = [0, 8], sizes = [8, 8], strides = [1, 1]} : vector<8x32xf32> to vector<8x8xf32>
    %218 = arith.truncf %215 : vector<16x8xf32> to vector<16x8xbf16>
    %219 = arith.truncf %216 : vector<8x8xf32> to vector<8x8xbf16>
    %cst_123 = arith.constant dense<0.000000e+00> : vector<16x8xf32>
    %220 = tpu.matmul %218, %219, %cst_123 {dimension_numbers = #tpu.dot_dimension_numbers<[1], [1], [0], [0], [0, 0, 1, 0], [], []>} : vector<16x8xbf16>, vector<8x8xbf16>, vector<16x8xf32> -> vector<16x8xf32>
    %cst_124 = arith.constant 0.353553385 : f32
    %221 = vector.broadcast %cst_124 : f32 to vector<16x8xf32>
    %222 = arith.mulf %220, %221 : vector<16x8xf32>
    %223 = arith.addf %222, %171 : vector<16x8xf32>
    %cst_125 = arith.constant dense<0xFF800000> : vector<16xf32>
    %224 = vector.multi_reduction <maximumf>, %223, %cst_125 [1] : vector<16x8xf32> to vector<16xf32>
    %225 = vector.shape_cast %224 : vector<16xf32> to vector<16x1xf32>
    %226 = vector.broadcast %225 : vector<16x1xf32> to vector<16x8xf32>
    %227 = arith.subf %223, %226 : vector<16x8xf32>
    %228 = math.exp %227 : vector<16x8xf32>
    %cst_126 = arith.constant dense<0.000000e+00> : vector<16xf32>
    %229 = vector.multi_reduction <add>, %228, %cst_126 [1] : vector<16x8xf32> to vector<16xf32>
    %230 = vector.shape_cast %229 : vector<16xf32> to vector<16x1xf32>
    %231 = tpu.reciprocal %230 {approx = true} : vector<16x1xf32> -> vector<16x1xf32>
    %232 = vector.broadcast %231 : vector<16x1xf32> to vector<16x8xf32>
    %233 = arith.mulf %228, %232 : vector<16x8xf32>
    %234 = arith.truncf %233 : vector<16x8xf32> to vector<16x8xbf16>
    %235 = arith.truncf %217 : vector<8x8xf32> to vector<8x8xbf16>
    %cst_127 = arith.constant dense<0.000000e+00> : vector<16x8xf32>
    %236 = tpu.matmul %234, %235, %cst_127 {dimension_numbers = #tpu.dot_dimension_numbers<[1], [0], [0], [1], [0, 0, 1, 1], [], []>} : vector<16x8xbf16>, vector<8x8xbf16>, vector<16x8xf32> -> vector<16x8xf32>
    %237 = vector.extract_strided_slice %188 {offsets = [8, 0], sizes = [8, 32], strides = [1, 1]} : vector<32x32xf32> to vector<8x32xf32>
    %238 = arith.truncf %236 : vector<16x8xf32> to vector<16x8xbf16>
    %239 = arith.truncf %237 : vector<8x32xf32> to vector<8x32xbf16>
    %cst_128 = arith.constant dense<0.000000e+00> : vector<16x32xf32>
    %240 = tpu.matmul %238, %239, %cst_128 {dimension_numbers = #tpu.dot_dimension_numbers<[1], [0], [0], [1], [0, 0, 1, 1], [], []>} : vector<16x8xbf16>, vector<8x32xbf16>, vector<16x32xf32> -> vector<16x32xf32>
    %241 = arith.addf %214, %240 : vector<16x32xf32>
    %242 = vector.extract_strided_slice %178 {offsets = [0, 16], sizes = [16, 8], strides = [1, 1]} : vector<16x32xf32> to vector<16x8xf32>
    %243 = vector.extract_strided_slice %186 {offsets = [0, 16], sizes = [8, 8], strides = [1, 1]} : vector<8x32xf32> to vector<8x8xf32>
    %244 = vector.extract_strided_slice %187 {offsets = [0, 16], sizes = [8, 8], strides = [1, 1]} : vector<8x32xf32> to vector<8x8xf32>
    %245 = arith.truncf %242 : vector<16x8xf32> to vector<16x8xbf16>
    %246 = arith.truncf %243 : vector<8x8xf32> to vector<8x8xbf16>
    %cst_129 = arith.constant dense<0.000000e+00> : vector<16x8xf32>
    %247 = tpu.matmul %245, %246, %cst_129 {dimension_numbers = #tpu.dot_dimension_numbers<[1], [1], [0], [0], [0, 0, 1, 0], [], []>} : vector<16x8xbf16>, vector<8x8xbf16>, vector<16x8xf32> -> vector<16x8xf32>
    %cst_130 = arith.constant 0.353553385 : f32
    %248 = vector.broadcast %cst_130 : f32 to vector<16x8xf32>
    %249 = arith.mulf %247, %248 : vector<16x8xf32>
    %250 = arith.addf %249, %171 : vector<16x8xf32>
    %cst_131 = arith.constant dense<0xFF800000> : vector<16xf32>
    %251 = vector.multi_reduction <maximumf>, %250, %cst_131 [1] : vector<16x8xf32> to vector<16xf32>
    %252 = vector.shape_cast %251 : vector<16xf32> to vector<16x1xf32>
    %253 = vector.broadcast %252 : vector<16x1xf32> to vector<16x8xf32>
    %254 = arith.subf %250, %253 : vector<16x8xf32>
    %255 = math.exp %254 : vector<16x8xf32>
    %cst_132 = arith.constant dense<0.000000e+00> : vector<16xf32>
    %256 = vector.multi_reduction <add>, %255, %cst_132 [1] : vector<16x8xf32> to vector<16xf32>
    %257 = vector.shape_cast %256 : vector<16xf32> to vector<16x1xf32>
    %258 = tpu.reciprocal %257 {approx = true} : vector<16x1xf32> -> vector<16x1xf32>
    %259 = vector.broadcast %258 : vector<16x1xf32> to vector<16x8xf32>
    %260 = arith.mulf %255, %259 : vector<16x8xf32>
    %261 = arith.truncf %260 : vector<16x8xf32> to vector<16x8xbf16>
    %262 = arith.truncf %244 : vector<8x8xf32> to vector<8x8xbf16>
    %cst_133 = arith.constant dense<0.000000e+00> : vector<16x8xf32>
    %263 = tpu.matmul %261, %262, %cst_133 {dimension_numbers = #tpu.dot_dimension_numbers<[1], [0], [0], [1], [0, 0, 1, 1], [], []>} : vector<16x8xbf16>, vector<8x8xbf16>, vector<16x8xf32> -> vector<16x8xf32>
    %264 = vector.extract_strided_slice %188 {offsets = [16, 0], sizes = [8, 32], strides = [1, 1]} : vector<32x32xf32> to vector<8x32xf32>
    %265 = arith.truncf %263 : vector<16x8xf32> to vector<16x8xbf16>
    %266 = arith.truncf %264 : vector<8x32xf32> to vector<8x32xbf16>
    %cst_134 = arith.constant dense<0.000000e+00> : vector<16x32xf32>
    %267 = tpu.matmul %265, %266, %cst_134 {dimension_numbers = #tpu.dot_dimension_numbers<[1], [0], [0], [1], [0, 0, 1, 1], [], []>} : vector<16x8xbf16>, vector<8x32xbf16>, vector<16x32xf32> -> vector<16x32xf32>
    %268 = arith.addf %241, %267 : vector<16x32xf32>
    %269 = vector.extract_strided_slice %178 {offsets = [0, 24], sizes = [16, 8], strides = [1, 1]} : vector<16x32xf32> to vector<16x8xf32>
    %270 = vector.extract_strided_slice %186 {offsets = [0, 24], sizes = [8, 8], strides = [1, 1]} : vector<8x32xf32> to vector<8x8xf32>
    %271 = vector.extract_strided_slice %187 {offsets = [0, 24], sizes = [8, 8], strides = [1, 1]} : vector<8x32xf32> to vector<8x8xf32>
    %272 = arith.truncf %269 : vector<16x8xf32> to vector<16x8xbf16>
    %273 = arith.truncf %270 : vector<8x8xf32> to vector<8x8xbf16>
    %cst_135 = arith.constant dense<0.000000e+00> : vector<16x8xf32>
    %274 = tpu.matmul %272, %273, %cst_135 {dimension_numbers = #tpu.dot_dimension_numbers<[1], [1], [0], [0], [0, 0, 1, 0], [], []>} : vector<16x8xbf16>, vector<8x8xbf16>, vector<16x8xf32> -> vector<16x8xf32>
    %cst_136 = arith.constant 0.353553385 : f32
    %275 = vector.broadcast %cst_136 : f32 to vector<16x8xf32>
    %276 = arith.mulf %274, %275 : vector<16x8xf32>
    %277 = arith.addf %276, %171 : vector<16x8xf32>
    %cst_137 = arith.constant dense<0xFF800000> : vector<16xf32>
    %278 = vector.multi_reduction <maximumf>, %277, %cst_137 [1] : vector<16x8xf32> to vector<16xf32>
    %279 = vector.shape_cast %278 : vector<16xf32> to vector<16x1xf32>
    %280 = vector.broadcast %279 : vector<16x1xf32> to vector<16x8xf32>
    %281 = arith.subf %277, %280 : vector<16x8xf32>
    %282 = math.exp %281 : vector<16x8xf32>
    %cst_138 = arith.constant dense<0.000000e+00> : vector<16xf32>
    %283 = vector.multi_reduction <add>, %282, %cst_138 [1] : vector<16x8xf32> to vector<16xf32>
    %284 = vector.shape_cast %283 : vector<16xf32> to vector<16x1xf32>
    %285 = tpu.reciprocal %284 {approx = true} : vector<16x1xf32> -> vector<16x1xf32>
    %286 = vector.broadcast %285 : vector<16x1xf32> to vector<16x8xf32>
    %287 = arith.mulf %282, %286 : vector<16x8xf32>
    %288 = arith.truncf %287 : vector<16x8xf32> to vector<16x8xbf16>
    %289 = arith.truncf %271 : vector<8x8xf32> to vector<8x8xbf16>
    %cst_139 = arith.constant dense<0.000000e+00> : vector<16x8xf32>
    %290 = tpu.matmul %288, %289, %cst_139 {dimension_numbers = #tpu.dot_dimension_numbers<[1], [0], [0], [1], [0, 0, 1, 1], [], []>} : vector<16x8xbf16>, vector<8x8xbf16>, vector<16x8xf32> -> vector<16x8xf32>
    %291 = vector.extract_strided_slice %188 {offsets = [24, 0], sizes = [8, 32], strides = [1, 1]} : vector<32x32xf32> to vector<8x32xf32>
    %292 = arith.truncf %290 : vector<16x8xf32> to vector<16x8xbf16>
    %293 = arith.truncf %291 : vector<8x32xf32> to vector<8x32xbf16>
    %cst_140 = arith.constant dense<0.000000e+00> : vector<16x32xf32>
    %294 = tpu.matmul %292, %293, %cst_140 {dimension_numbers = #tpu.dot_dimension_numbers<[1], [0], [0], [1], [0, 0, 1, 1], [], []>} : vector<16x8xbf16>, vector<8x32xbf16>, vector<16x32xf32> -> vector<16x32xf32>
    %295 = arith.addf %268, %294 : vector<16x32xf32>
    %c0_141 = arith.constant 0 : index
    %c0_142 = arith.constant 0 : index
    %296 = vector.load %arg31[%c0_141, %c0_142] : memref<1x32xbf16, #tpu.memory_space<vmem>>, vector<1x32xbf16>
    %297 = arith.extf %296 : vector<1x32xbf16> to vector<1x32xf32>
    %298 = vector.broadcast %297 : vector<1x32xf32> to vector<16x32xf32>
    %299 = arith.addf %295, %298 : vector<16x32xf32>
    %c0_143 = arith.constant 0 : index
    %c0_144 = arith.constant 0 : index
    %300 = vector.load %arg6[%c0_143, %c0_144] : memref<16x16xf32, #tpu.memory_space<vmem>>, vector<16x16xf32>
    %c0_145 = arith.constant 0 : index
    %c0_146 = arith.constant 0 : index
    %301 = vector.load %arg32[%c0_145, %c0_146] : memref<32x96xbf16, #tpu.memory_space<vmem>>, vector<32x96xbf16>
    %302 = arith.truncf %168 : vector<16x32xf32> to vector<16x32xbf16>
    %cst_147 = arith.constant dense<0.000000e+00> : vector<16x96xf32>
    %303 = tpu.matmul %302, %301, %cst_147 {dimension_numbers = #tpu.dot_dimension_numbers<[1], [0], [0], [1], [0, 0, 1, 1], [], []>} : vector<16x32xbf16>, vector<32x96xbf16>, vector<16x96xf32> -> vector<16x96xf32>
    %c0_148 = arith.constant 0 : index
    %c0_149 = arith.constant 0 : index
    %304 = vector.load %arg33[%c0_148, %c0_149] : memref<1x96xbf16, #tpu.memory_space<vmem>>, vector<1x96xbf16>
    %305 = arith.extf %304 : vector<1x96xbf16> to vector<1x96xf32>
    %306 = vector.broadcast %305 : vector<1x96xf32> to vector<16x96xf32>
    %307 = arith.addf %303, %306 : vector<16x96xf32>
    %308 = vector.extract_strided_slice %307 {offsets = [0, 0], sizes = [16, 32], strides = [1, 1]} : vector<16x96xf32> to vector<16x32xf32>
    %309 = vector.extract_strided_slice %307 {offsets = [0, 32], sizes = [16, 32], strides = [1, 1]} : vector<16x96xf32> to vector<16x32xf32>
    %310 = vector.extract_strided_slice %307 {offsets = [0, 64], sizes = [16, 32], strides = [1, 1]} : vector<16x96xf32> to vector<16x32xf32>
    %c0_150 = arith.constant 0 : index
    %c0_151 = arith.constant 0 : index
    %311 = vector.load %arg34[%c0_150, %c0_151] : memref<32x32xf32, #tpu.memory_space<vmem>>, vector<32x32xf32>
    %312 = vector.extract_strided_slice %308 {offsets = [0, 0], sizes = [16, 8], strides = [1, 1]} : vector<16x32xf32> to vector<16x8xf32>
    %313 = vector.extract_strided_slice %309 {offsets = [0, 0], sizes = [16, 8], strides = [1, 1]} : vector<16x32xf32> to vector<16x8xf32>
    %314 = vector.extract_strided_slice %310 {offsets = [0, 0], sizes = [16, 8], strides = [1, 1]} : vector<16x32xf32> to vector<16x8xf32>
    %315 = arith.truncf %312 : vector<16x8xf32> to vector<16x8xbf16>
    %316 = arith.truncf %313 : vector<16x8xf32> to vector<16x8xbf16>
    %cst_152 = arith.constant dense<0.000000e+00> : vector<16x16xf32>
    %317 = tpu.matmul %315, %316, %cst_152 {dimension_numbers = #tpu.dot_dimension_numbers<[1], [1], [0], [0], [0, 0, 1, 0], [], []>} : vector<16x8xbf16>, vector<16x8xbf16>, vector<16x16xf32> -> vector<16x16xf32>
    %cst_153 = arith.constant 0.353553385 : f32
    %318 = vector.broadcast %cst_153 : f32 to vector<16x16xf32>
    %319 = arith.mulf %317, %318 : vector<16x16xf32>
    %320 = arith.addf %319, %300 : vector<16x16xf32>
    %cst_154 = arith.constant dense<0xFF800000> : vector<16xf32>
    %321 = vector.multi_reduction <maximumf>, %320, %cst_154 [1] : vector<16x16xf32> to vector<16xf32>
    %322 = vector.shape_cast %321 : vector<16xf32> to vector<16x1xf32>
    %323 = vector.broadcast %322 : vector<16x1xf32> to vector<16x16xf32>
    %324 = arith.subf %320, %323 : vector<16x16xf32>
    %325 = math.exp %324 : vector<16x16xf32>
    %cst_155 = arith.constant dense<0.000000e+00> : vector<16xf32>
    %326 = vector.multi_reduction <add>, %325, %cst_155 [1] : vector<16x16xf32> to vector<16xf32>
    %327 = vector.shape_cast %326 : vector<16xf32> to vector<16x1xf32>
    %328 = tpu.reciprocal %327 {approx = true} : vector<16x1xf32> -> vector<16x1xf32>
    %329 = vector.broadcast %328 : vector<16x1xf32> to vector<16x16xf32>
    %330 = arith.mulf %325, %329 : vector<16x16xf32>
    %331 = arith.truncf %330 : vector<16x16xf32> to vector<16x16xbf16>
    %332 = arith.truncf %314 : vector<16x8xf32> to vector<16x8xbf16>
    %cst_156 = arith.constant dense<0.000000e+00> : vector<16x8xf32>
    %333 = tpu.matmul %331, %332, %cst_156 {dimension_numbers = #tpu.dot_dimension_numbers<[1], [0], [0], [1], [0, 0, 1, 1], [], []>} : vector<16x16xbf16>, vector<16x8xbf16>, vector<16x8xf32> -> vector<16x8xf32>
    %334 = vector.extract_strided_slice %311 {offsets = [0, 0], sizes = [8, 32], strides = [1, 1]} : vector<32x32xf32> to vector<8x32xf32>
    %335 = arith.truncf %333 : vector<16x8xf32> to vector<16x8xbf16>
    %336 = arith.truncf %334 : vector<8x32xf32> to vector<8x32xbf16>
    %cst_157 = arith.constant dense<0.000000e+00> : vector<16x32xf32>
    %337 = tpu.matmul %335, %336, %cst_157 {dimension_numbers = #tpu.dot_dimension_numbers<[1], [0], [0], [1], [0, 0, 1, 1], [], []>} : vector<16x8xbf16>, vector<8x32xbf16>, vector<16x32xf32> -> vector<16x32xf32>
    %338 = vector.extract_strided_slice %308 {offsets = [0, 8], sizes = [16, 8], strides = [1, 1]} : vector<16x32xf32> to vector<16x8xf32>
    %339 = vector.extract_strided_slice %309 {offsets = [0, 8], sizes = [16, 8], strides = [1, 1]} : vector<16x32xf32> to vector<16x8xf32>
    %340 = vector.extract_strided_slice %310 {offsets = [0, 8], sizes = [16, 8], strides = [1, 1]} : vector<16x32xf32> to vector<16x8xf32>
    %341 = arith.truncf %338 : vector<16x8xf32> to vector<16x8xbf16>
    %342 = arith.truncf %339 : vector<16x8xf32> to vector<16x8xbf16>
    %cst_158 = arith.constant dense<0.000000e+00> : vector<16x16xf32>
    %343 = tpu.matmul %341, %342, %cst_158 {dimension_numbers = #tpu.dot_dimension_numbers<[1], [1], [0], [0], [0, 0, 1, 0], [], []>} : vector<16x8xbf16>, vector<16x8xbf16>, vector<16x16xf32> -> vector<16x16xf32>
    %cst_159 = arith.constant 0.353553385 : f32
    %344 = vector.broadcast %cst_159 : f32 to vector<16x16xf32>
    %345 = arith.mulf %343, %344 : vector<16x16xf32>
    %346 = arith.addf %345, %300 : vector<16x16xf32>
    %cst_160 = arith.constant dense<0xFF800000> : vector<16xf32>
    %347 = vector.multi_reduction <maximumf>, %346, %cst_160 [1] : vector<16x16xf32> to vector<16xf32>
    %348 = vector.shape_cast %347 : vector<16xf32> to vector<16x1xf32>
    %349 = vector.broadcast %348 : vector<16x1xf32> to vector<16x16xf32>
    %350 = arith.subf %346, %349 : vector<16x16xf32>
    %351 = math.exp %350 : vector<16x16xf32>
    %cst_161 = arith.constant dense<0.000000e+00> : vector<16xf32>
    %352 = vector.multi_reduction <add>, %351, %cst_161 [1] : vector<16x16xf32> to vector<16xf32>
    %353 = vector.shape_cast %352 : vector<16xf32> to vector<16x1xf32>
    %354 = tpu.reciprocal %353 {approx = true} : vector<16x1xf32> -> vector<16x1xf32>
    %355 = vector.broadcast %354 : vector<16x1xf32> to vector<16x16xf32>
    %356 = arith.mulf %351, %355 : vector<16x16xf32>
    %357 = arith.truncf %356 : vector<16x16xf32> to vector<16x16xbf16>
    %358 = arith.truncf %340 : vector<16x8xf32> to vector<16x8xbf16>
    %cst_162 = arith.constant dense<0.000000e+00> : vector<16x8xf32>
    %359 = tpu.matmul %357, %358, %cst_162 {dimension_numbers = #tpu.dot_dimension_numbers<[1], [0], [0], [1], [0, 0, 1, 1], [], []>} : vector<16x16xbf16>, vector<16x8xbf16>, vector<16x8xf32> -> vector<16x8xf32>
    %360 = vector.extract_strided_slice %311 {offsets = [8, 0], sizes = [8, 32], strides = [1, 1]} : vector<32x32xf32> to vector<8x32xf32>
    %361 = arith.truncf %359 : vector<16x8xf32> to vector<16x8xbf16>
    %362 = arith.truncf %360 : vector<8x32xf32> to vector<8x32xbf16>
    %cst_163 = arith.constant dense<0.000000e+00> : vector<16x32xf32>
    %363 = tpu.matmul %361, %362, %cst_163 {dimension_numbers = #tpu.dot_dimension_numbers<[1], [0], [0], [1], [0, 0, 1, 1], [], []>} : vector<16x8xbf16>, vector<8x32xbf16>, vector<16x32xf32> -> vector<16x32xf32>
    %364 = arith.addf %337, %363 : vector<16x32xf32>
    %365 = vector.extract_strided_slice %308 {offsets = [0, 16], sizes = [16, 8], strides = [1, 1]} : vector<16x32xf32> to vector<16x8xf32>
    %366 = vector.extract_strided_slice %309 {offsets = [0, 16], sizes = [16, 8], strides = [1, 1]} : vector<16x32xf32> to vector<16x8xf32>
    %367 = vector.extract_strided_slice %310 {offsets = [0, 16], sizes = [16, 8], strides = [1, 1]} : vector<16x32xf32> to vector<16x8xf32>
    %368 = arith.truncf %365 : vector<16x8xf32> to vector<16x8xbf16>
    %369 = arith.truncf %366 : vector<16x8xf32> to vector<16x8xbf16>
    %cst_164 = arith.constant dense<0.000000e+00> : vector<16x16xf32>
    %370 = tpu.matmul %368, %369, %cst_164 {dimension_numbers = #tpu.dot_dimension_numbers<[1], [1], [0], [0], [0, 0, 1, 0], [], []>} : vector<16x8xbf16>, vector<16x8xbf16>, vector<16x16xf32> -> vector<16x16xf32>
    %cst_165 = arith.constant 0.353553385 : f32
    %371 = vector.broadcast %cst_165 : f32 to vector<16x16xf32>
    %372 = arith.mulf %370, %371 : vector<16x16xf32>
    %373 = arith.addf %372, %300 : vector<16x16xf32>
    %cst_166 = arith.constant dense<0xFF800000> : vector<16xf32>
    %374 = vector.multi_reduction <maximumf>, %373, %cst_166 [1] : vector<16x16xf32> to vector<16xf32>
    %375 = vector.shape_cast %374 : vector<16xf32> to vector<16x1xf32>
    %376 = vector.broadcast %375 : vector<16x1xf32> to vector<16x16xf32>
    %377 = arith.subf %373, %376 : vector<16x16xf32>
    %378 = math.exp %377 : vector<16x16xf32>
    %cst_167 = arith.constant dense<0.000000e+00> : vector<16xf32>
    %379 = vector.multi_reduction <add>, %378, %cst_167 [1] : vector<16x16xf32> to vector<16xf32>
    %380 = vector.shape_cast %379 : vector<16xf32> to vector<16x1xf32>
    %381 = tpu.reciprocal %380 {approx = true} : vector<16x1xf32> -> vector<16x1xf32>
    %382 = vector.broadcast %381 : vector<16x1xf32> to vector<16x16xf32>
    %383 = arith.mulf %378, %382 : vector<16x16xf32>
    %384 = arith.truncf %383 : vector<16x16xf32> to vector<16x16xbf16>
    %385 = arith.truncf %367 : vector<16x8xf32> to vector<16x8xbf16>
    %cst_168 = arith.constant dense<0.000000e+00> : vector<16x8xf32>
    %386 = tpu.matmul %384, %385, %cst_168 {dimension_numbers = #tpu.dot_dimension_numbers<[1], [0], [0], [1], [0, 0, 1, 1], [], []>} : vector<16x16xbf16>, vector<16x8xbf16>, vector<16x8xf32> -> vector<16x8xf32>
    %387 = vector.extract_strided_slice %311 {offsets = [16, 0], sizes = [8, 32], strides = [1, 1]} : vector<32x32xf32> to vector<8x32xf32>
    %388 = arith.truncf %386 : vector<16x8xf32> to vector<16x8xbf16>
    %389 = arith.truncf %387 : vector<8x32xf32> to vector<8x32xbf16>
    %cst_169 = arith.constant dense<0.000000e+00> : vector<16x32xf32>
    %390 = tpu.matmul %388, %389, %cst_169 {dimension_numbers = #tpu.dot_dimension_numbers<[1], [0], [0], [1], [0, 0, 1, 1], [], []>} : vector<16x8xbf16>, vector<8x32xbf16>, vector<16x32xf32> -> vector<16x32xf32>
    %391 = arith.addf %364, %390 : vector<16x32xf32>
    %392 = vector.extract_strided_slice %308 {offsets = [0, 24], sizes = [16, 8], strides = [1, 1]} : vector<16x32xf32> to vector<16x8xf32>
    %393 = vector.extract_strided_slice %309 {offsets = [0, 24], sizes = [16, 8], strides = [1, 1]} : vector<16x32xf32> to vector<16x8xf32>
    %394 = vector.extract_strided_slice %310 {offsets = [0, 24], sizes = [16, 8], strides = [1, 1]} : vector<16x32xf32> to vector<16x8xf32>
    %395 = arith.truncf %392 : vector<16x8xf32> to vector<16x8xbf16>
    %396 = arith.truncf %393 : vector<16x8xf32> to vector<16x8xbf16>
    %cst_170 = arith.constant dense<0.000000e+00> : vector<16x16xf32>
    %397 = tpu.matmul %395, %396, %cst_170 {dimension_numbers = #tpu.dot_dimension_numbers<[1], [1], [0], [0], [0, 0, 1, 0], [], []>} : vector<16x8xbf16>, vector<16x8xbf16>, vector<16x16xf32> -> vector<16x16xf32>
    %cst_171 = arith.constant 0.353553385 : f32
    %398 = vector.broadcast %cst_171 : f32 to vector<16x16xf32>
    %399 = arith.mulf %397, %398 : vector<16x16xf32>
    %400 = arith.addf %399, %300 : vector<16x16xf32>
    %cst_172 = arith.constant dense<0xFF800000> : vector<16xf32>
    %401 = vector.multi_reduction <maximumf>, %400, %cst_172 [1] : vector<16x16xf32> to vector<16xf32>
    %402 = vector.shape_cast %401 : vector<16xf32> to vector<16x1xf32>
    %403 = vector.broadcast %402 : vector<16x1xf32> to vector<16x16xf32>
    %404 = arith.subf %400, %403 : vector<16x16xf32>
    %405 = math.exp %404 : vector<16x16xf32>
    %cst_173 = arith.constant dense<0.000000e+00> : vector<16xf32>
    %406 = vector.multi_reduction <add>, %405, %cst_173 [1] : vector<16x16xf32> to vector<16xf32>
    %407 = vector.shape_cast %406 : vector<16xf32> to vector<16x1xf32>
    %408 = tpu.reciprocal %407 {approx = true} : vector<16x1xf32> -> vector<16x1xf32>
    %409 = vector.broadcast %408 : vector<16x1xf32> to vector<16x16xf32>
    %410 = arith.mulf %405, %409 : vector<16x16xf32>
    %411 = arith.truncf %410 : vector<16x16xf32> to vector<16x16xbf16>
    %412 = arith.truncf %394 : vector<16x8xf32> to vector<16x8xbf16>
    %cst_174 = arith.constant dense<0.000000e+00> : vector<16x8xf32>
    %413 = tpu.matmul %411, %412, %cst_174 {dimension_numbers = #tpu.dot_dimension_numbers<[1], [0], [0], [1], [0, 0, 1, 1], [], []>} : vector<16x16xbf16>, vector<16x8xbf16>, vector<16x8xf32> -> vector<16x8xf32>
    %414 = vector.extract_strided_slice %311 {offsets = [24, 0], sizes = [8, 32], strides = [1, 1]} : vector<32x32xf32> to vector<8x32xf32>
    %415 = arith.truncf %413 : vector<16x8xf32> to vector<16x8xbf16>
    %416 = arith.truncf %414 : vector<8x32xf32> to vector<8x32xbf16>
    %cst_175 = arith.constant dense<0.000000e+00> : vector<16x32xf32>
    %417 = tpu.matmul %415, %416, %cst_175 {dimension_numbers = #tpu.dot_dimension_numbers<[1], [0], [0], [1], [0, 0, 1, 1], [], []>} : vector<16x8xbf16>, vector<8x32xbf16>, vector<16x32xf32> -> vector<16x32xf32>
    %418 = arith.addf %391, %417 : vector<16x32xf32>
    %c0_176 = arith.constant 0 : index
    %c0_177 = arith.constant 0 : index
    %419 = vector.load %arg35[%c0_176, %c0_177] : memref<1x32xbf16, #tpu.memory_space<vmem>>, vector<1x32xbf16>
    %420 = arith.extf %419 : vector<1x32xbf16> to vector<1x32xf32>
    %421 = vector.broadcast %420 : vector<1x32xf32> to vector<16x32xf32>
    %422 = arith.addf %418, %421 : vector<16x32xf32>
    %423 = arith.addf %168, %422 : vector<16x32xf32>
    %424 = vector.extract_strided_slice %169 {offsets = [0, 0], sizes = [1, 32], strides = [1, 1]} : vector<6x32xf32> to vector<1x32xf32>
    %425 = vector.extract_strided_slice %169 {offsets = [1, 0], sizes = [1, 32], strides = [1, 1]} : vector<6x32xf32> to vector<1x32xf32>
    %cst_178 = arith.constant dense<0.000000e+00> : vector<16xf32>
    %426 = vector.multi_reduction <add>, %423, %cst_178 [1] : vector<16x32xf32> to vector<16xf32>
    %427 = vector.shape_cast %426 : vector<16xf32> to vector<16x1xf32>
    %cst_179 = arith.constant 3.200000e+01 : f32
    %428 = vector.broadcast %cst_179 : f32 to vector<16x1xf32>
    %429 = arith.divf %427, %428 : vector<16x1xf32>
    %430 = vector.broadcast %429 : vector<16x1xf32> to vector<16x32xf32>
    %431 = arith.subf %423, %430 : vector<16x32xf32>
    %432 = arith.mulf %431, %431 : vector<16x32xf32>
    %cst_180 = arith.constant dense<0.000000e+00> : vector<16xf32>
    %433 = vector.multi_reduction <add>, %432, %cst_180 [1] : vector<16x32xf32> to vector<16xf32>
    %434 = vector.shape_cast %433 : vector<16xf32> to vector<16x1xf32>
    %cst_181 = arith.constant 3.200000e+01 : f32
    %435 = vector.broadcast %cst_181 : f32 to vector<16x1xf32>
    %436 = arith.divf %434, %435 : vector<16x1xf32>
    %437 = vector.broadcast %429 : vector<16x1xf32> to vector<16x32xf32>
    %438 = arith.subf %423, %437 : vector<16x32xf32>
    %cst_182 = arith.constant 9.99999974E-6 : f32
    %439 = vector.broadcast %cst_182 : f32 to vector<16x1xf32>
    %440 = arith.addf %436, %439 : vector<16x1xf32>
    %441 = math.rsqrt %440 : vector<16x1xf32>
    %442 = vector.broadcast %441 : vector<16x1xf32> to vector<16x32xf32>
    %443 = arith.mulf %438, %442 : vector<16x32xf32>
    %444 = vector.broadcast %424 : vector<1x32xf32> to vector<16x32xf32>
    %445 = arith.mulf %443, %444 : vector<16x32xf32>
    %446 = vector.broadcast %425 : vector<1x32xf32> to vector<16x32xf32>
    %447 = arith.addf %445, %446 : vector<16x32xf32>
    %c0_183 = arith.constant 0 : index
    %c0_184 = arith.constant 0 : index
    %448 = vector.load %arg7[%c0_183, %c0_184] : memref<16x16xf32, #tpu.memory_space<vmem>>, vector<16x16xf32>
    %c0_185 = arith.constant 0 : index
    %c0_186 = arith.constant 0 : index
    %449 = vector.load %arg36[%c0_185, %c0_186] : memref<32x32xbf16, #tpu.memory_space<vmem>>, vector<32x32xbf16>
    %450 = arith.truncf %447 : vector<16x32xf32> to vector<16x32xbf16>
    %cst_187 = arith.constant dense<0.000000e+00> : vector<16x32xf32>
    %451 = tpu.matmul %450, %449, %cst_187 {dimension_numbers = #tpu.dot_dimension_numbers<[1], [0], [0], [1], [0, 0, 1, 1], [], []>} : vector<16x32xbf16>, vector<32x32xbf16>, vector<16x32xf32> -> vector<16x32xf32>
    %c0_188 = arith.constant 0 : index
    %c0_189 = arith.constant 0 : index
    %452 = vector.load %arg37[%c0_188, %c0_189] : memref<1x32xbf16, #tpu.memory_space<vmem>>, vector<1x32xbf16>
    %453 = arith.extf %452 : vector<1x32xbf16> to vector<1x32xf32>
    %454 = vector.broadcast %453 : vector<1x32xf32> to vector<16x32xf32>
    %455 = arith.addf %451, %454 : vector<16x32xf32>
    %c0_190 = arith.constant 0 : index
    %c0_191 = arith.constant 0 : index
    %456 = vector.load %arg38[%c0_190, %c0_191] : memref<32x64xbf16, #tpu.memory_space<vmem>>, vector<32x64xbf16>
    %457 = arith.truncf %299 : vector<16x32xf32> to vector<16x32xbf16>
    %cst_192 = arith.constant dense<0.000000e+00> : vector<16x64xf32>
    %458 = tpu.matmul %457, %456, %cst_192 {dimension_numbers = #tpu.dot_dimension_numbers<[1], [0], [0], [1], [0, 0, 1, 1], [], []>} : vector<16x32xbf16>, vector<32x64xbf16>, vector<16x64xf32> -> vector<16x64xf32>
    %c0_193 = arith.constant 0 : index
    %c0_194 = arith.constant 0 : index
    %459 = vector.load %arg39[%c0_193, %c0_194] : memref<1x64xbf16, #tpu.memory_space<vmem>>, vector<1x64xbf16>
    %460 = arith.extf %459 : vector<1x64xbf16> to vector<1x64xf32>
    %461 = vector.broadcast %460 : vector<1x64xf32> to vector<16x64xf32>
    %462 = arith.addf %458, %461 : vector<16x64xf32>
    %463 = vector.extract_strided_slice %462 {offsets = [0, 0], sizes = [16, 32], strides = [1, 1]} : vector<16x64xf32> to vector<16x32xf32>
    %464 = vector.extract_strided_slice %462 {offsets = [0, 32], sizes = [16, 32], strides = [1, 1]} : vector<16x64xf32> to vector<16x32xf32>
    %c0_195 = arith.constant 0 : index
    %c0_196 = arith.constant 0 : index
    %465 = vector.load %arg40[%c0_195, %c0_196] : memref<32x32xf32, #tpu.memory_space<vmem>>, vector<32x32xf32>
    %466 = vector.extract_strided_slice %455 {offsets = [0, 0], sizes = [16, 8], strides = [1, 1]} : vector<16x32xf32> to vector<16x8xf32>
    %467 = vector.extract_strided_slice %463 {offsets = [0, 0], sizes = [16, 8], strides = [1, 1]} : vector<16x32xf32> to vector<16x8xf32>
    %468 = vector.extract_strided_slice %464 {offsets = [0, 0], sizes = [16, 8], strides = [1, 1]} : vector<16x32xf32> to vector<16x8xf32>
    %469 = arith.truncf %466 : vector<16x8xf32> to vector<16x8xbf16>
    %470 = arith.truncf %467 : vector<16x8xf32> to vector<16x8xbf16>
    %cst_197 = arith.constant dense<0.000000e+00> : vector<16x16xf32>
    %471 = tpu.matmul %469, %470, %cst_197 {dimension_numbers = #tpu.dot_dimension_numbers<[1], [1], [0], [0], [0, 0, 1, 0], [], []>} : vector<16x8xbf16>, vector<16x8xbf16>, vector<16x16xf32> -> vector<16x16xf32>
    %cst_198 = arith.constant 0.353553385 : f32
    %472 = vector.broadcast %cst_198 : f32 to vector<16x16xf32>
    %473 = arith.mulf %471, %472 : vector<16x16xf32>
    %474 = arith.addf %473, %448 : vector<16x16xf32>
    %cst_199 = arith.constant dense<0xFF800000> : vector<16xf32>
    %475 = vector.multi_reduction <maximumf>, %474, %cst_199 [1] : vector<16x16xf32> to vector<16xf32>
    %476 = vector.shape_cast %475 : vector<16xf32> to vector<16x1xf32>
    %477 = vector.broadcast %476 : vector<16x1xf32> to vector<16x16xf32>
    %478 = arith.subf %474, %477 : vector<16x16xf32>
    %479 = math.exp %478 : vector<16x16xf32>
    %cst_200 = arith.constant dense<0.000000e+00> : vector<16xf32>
    %480 = vector.multi_reduction <add>, %479, %cst_200 [1] : vector<16x16xf32> to vector<16xf32>
    %481 = vector.shape_cast %480 : vector<16xf32> to vector<16x1xf32>
    %482 = tpu.reciprocal %481 {approx = true} : vector<16x1xf32> -> vector<16x1xf32>
    %483 = vector.broadcast %482 : vector<16x1xf32> to vector<16x16xf32>
    %484 = arith.mulf %479, %483 : vector<16x16xf32>
    %485 = arith.truncf %484 : vector<16x16xf32> to vector<16x16xbf16>
    %486 = arith.truncf %468 : vector<16x8xf32> to vector<16x8xbf16>
    %cst_201 = arith.constant dense<0.000000e+00> : vector<16x8xf32>
    %487 = tpu.matmul %485, %486, %cst_201 {dimension_numbers = #tpu.dot_dimension_numbers<[1], [0], [0], [1], [0, 0, 1, 1], [], []>} : vector<16x16xbf16>, vector<16x8xbf16>, vector<16x8xf32> -> vector<16x8xf32>
    %488 = vector.extract_strided_slice %465 {offsets = [0, 0], sizes = [8, 32], strides = [1, 1]} : vector<32x32xf32> to vector<8x32xf32>
    %489 = arith.truncf %487 : vector<16x8xf32> to vector<16x8xbf16>
    %490 = arith.truncf %488 : vector<8x32xf32> to vector<8x32xbf16>
    %cst_202 = arith.constant dense<0.000000e+00> : vector<16x32xf32>
    %491 = tpu.matmul %489, %490, %cst_202 {dimension_numbers = #tpu.dot_dimension_numbers<[1], [0], [0], [1], [0, 0, 1, 1], [], []>} : vector<16x8xbf16>, vector<8x32xbf16>, vector<16x32xf32> -> vector<16x32xf32>
    %492 = vector.extract_strided_slice %455 {offsets = [0, 8], sizes = [16, 8], strides = [1, 1]} : vector<16x32xf32> to vector<16x8xf32>
    %493 = vector.extract_strided_slice %463 {offsets = [0, 8], sizes = [16, 8], strides = [1, 1]} : vector<16x32xf32> to vector<16x8xf32>
    %494 = vector.extract_strided_slice %464 {offsets = [0, 8], sizes = [16, 8], strides = [1, 1]} : vector<16x32xf32> to vector<16x8xf32>
    %495 = arith.truncf %492 : vector<16x8xf32> to vector<16x8xbf16>
    %496 = arith.truncf %493 : vector<16x8xf32> to vector<16x8xbf16>
    %cst_203 = arith.constant dense<0.000000e+00> : vector<16x16xf32>
    %497 = tpu.matmul %495, %496, %cst_203 {dimension_numbers = #tpu.dot_dimension_numbers<[1], [1], [0], [0], [0, 0, 1, 0], [], []>} : vector<16x8xbf16>, vector<16x8xbf16>, vector<16x16xf32> -> vector<16x16xf32>
    %cst_204 = arith.constant 0.353553385 : f32
    %498 = vector.broadcast %cst_204 : f32 to vector<16x16xf32>
    %499 = arith.mulf %497, %498 : vector<16x16xf32>
    %500 = arith.addf %499, %448 : vector<16x16xf32>
    %cst_205 = arith.constant dense<0xFF800000> : vector<16xf32>
    %501 = vector.multi_reduction <maximumf>, %500, %cst_205 [1] : vector<16x16xf32> to vector<16xf32>
    %502 = vector.shape_cast %501 : vector<16xf32> to vector<16x1xf32>
    %503 = vector.broadcast %502 : vector<16x1xf32> to vector<16x16xf32>
    %504 = arith.subf %500, %503 : vector<16x16xf32>
    %505 = math.exp %504 : vector<16x16xf32>
    %cst_206 = arith.constant dense<0.000000e+00> : vector<16xf32>
    %506 = vector.multi_reduction <add>, %505, %cst_206 [1] : vector<16x16xf32> to vector<16xf32>
    %507 = vector.shape_cast %506 : vector<16xf32> to vector<16x1xf32>
    %508 = tpu.reciprocal %507 {approx = true} : vector<16x1xf32> -> vector<16x1xf32>
    %509 = vector.broadcast %508 : vector<16x1xf32> to vector<16x16xf32>
    %510 = arith.mulf %505, %509 : vector<16x16xf32>
    %511 = arith.truncf %510 : vector<16x16xf32> to vector<16x16xbf16>
    %512 = arith.truncf %494 : vector<16x8xf32> to vector<16x8xbf16>
    %cst_207 = arith.constant dense<0.000000e+00> : vector<16x8xf32>
    %513 = tpu.matmul %511, %512, %cst_207 {dimension_numbers = #tpu.dot_dimension_numbers<[1], [0], [0], [1], [0, 0, 1, 1], [], []>} : vector<16x16xbf16>, vector<16x8xbf16>, vector<16x8xf32> -> vector<16x8xf32>
    %514 = vector.extract_strided_slice %465 {offsets = [8, 0], sizes = [8, 32], strides = [1, 1]} : vector<32x32xf32> to vector<8x32xf32>
    %515 = arith.truncf %513 : vector<16x8xf32> to vector<16x8xbf16>
    %516 = arith.truncf %514 : vector<8x32xf32> to vector<8x32xbf16>
    %cst_208 = arith.constant dense<0.000000e+00> : vector<16x32xf32>
    %517 = tpu.matmul %515, %516, %cst_208 {dimension_numbers = #tpu.dot_dimension_numbers<[1], [0], [0], [1], [0, 0, 1, 1], [], []>} : vector<16x8xbf16>, vector<8x32xbf16>, vector<16x32xf32> -> vector<16x32xf32>
    %518 = arith.addf %491, %517 : vector<16x32xf32>
    %519 = vector.extract_strided_slice %455 {offsets = [0, 16], sizes = [16, 8], strides = [1, 1]} : vector<16x32xf32> to vector<16x8xf32>
    %520 = vector.extract_strided_slice %463 {offsets = [0, 16], sizes = [16, 8], strides = [1, 1]} : vector<16x32xf32> to vector<16x8xf32>
    %521 = vector.extract_strided_slice %464 {offsets = [0, 16], sizes = [16, 8], strides = [1, 1]} : vector<16x32xf32> to vector<16x8xf32>
    %522 = arith.truncf %519 : vector<16x8xf32> to vector<16x8xbf16>
    %523 = arith.truncf %520 : vector<16x8xf32> to vector<16x8xbf16>
    %cst_209 = arith.constant dense<0.000000e+00> : vector<16x16xf32>
    %524 = tpu.matmul %522, %523, %cst_209 {dimension_numbers = #tpu.dot_dimension_numbers<[1], [1], [0], [0], [0, 0, 1, 0], [], []>} : vector<16x8xbf16>, vector<16x8xbf16>, vector<16x16xf32> -> vector<16x16xf32>
    %cst_210 = arith.constant 0.353553385 : f32
    %525 = vector.broadcast %cst_210 : f32 to vector<16x16xf32>
    %526 = arith.mulf %524, %525 : vector<16x16xf32>
    %527 = arith.addf %526, %448 : vector<16x16xf32>
    %cst_211 = arith.constant dense<0xFF800000> : vector<16xf32>
    %528 = vector.multi_reduction <maximumf>, %527, %cst_211 [1] : vector<16x16xf32> to vector<16xf32>
    %529 = vector.shape_cast %528 : vector<16xf32> to vector<16x1xf32>
    %530 = vector.broadcast %529 : vector<16x1xf32> to vector<16x16xf32>
    %531 = arith.subf %527, %530 : vector<16x16xf32>
    %532 = math.exp %531 : vector<16x16xf32>
    %cst_212 = arith.constant dense<0.000000e+00> : vector<16xf32>
    %533 = vector.multi_reduction <add>, %532, %cst_212 [1] : vector<16x16xf32> to vector<16xf32>
    %534 = vector.shape_cast %533 : vector<16xf32> to vector<16x1xf32>
    %535 = tpu.reciprocal %534 {approx = true} : vector<16x1xf32> -> vector<16x1xf32>
    %536 = vector.broadcast %535 : vector<16x1xf32> to vector<16x16xf32>
    %537 = arith.mulf %532, %536 : vector<16x16xf32>
    %538 = arith.truncf %537 : vector<16x16xf32> to vector<16x16xbf16>
    %539 = arith.truncf %521 : vector<16x8xf32> to vector<16x8xbf16>
    %cst_213 = arith.constant dense<0.000000e+00> : vector<16x8xf32>
    %540 = tpu.matmul %538, %539, %cst_213 {dimension_numbers = #tpu.dot_dimension_numbers<[1], [0], [0], [1], [0, 0, 1, 1], [], []>} : vector<16x16xbf16>, vector<16x8xbf16>, vector<16x8xf32> -> vector<16x8xf32>
    %541 = vector.extract_strided_slice %465 {offsets = [16, 0], sizes = [8, 32], strides = [1, 1]} : vector<32x32xf32> to vector<8x32xf32>
    %542 = arith.truncf %540 : vector<16x8xf32> to vector<16x8xbf16>
    %543 = arith.truncf %541 : vector<8x32xf32> to vector<8x32xbf16>
    %cst_214 = arith.constant dense<0.000000e+00> : vector<16x32xf32>
    %544 = tpu.matmul %542, %543, %cst_214 {dimension_numbers = #tpu.dot_dimension_numbers<[1], [0], [0], [1], [0, 0, 1, 1], [], []>} : vector<16x8xbf16>, vector<8x32xbf16>, vector<16x32xf32> -> vector<16x32xf32>
    %545 = arith.addf %518, %544 : vector<16x32xf32>
    %546 = vector.extract_strided_slice %455 {offsets = [0, 24], sizes = [16, 8], strides = [1, 1]} : vector<16x32xf32> to vector<16x8xf32>
    %547 = vector.extract_strided_slice %463 {offsets = [0, 24], sizes = [16, 8], strides = [1, 1]} : vector<16x32xf32> to vector<16x8xf32>
    %548 = vector.extract_strided_slice %464 {offsets = [0, 24], sizes = [16, 8], strides = [1, 1]} : vector<16x32xf32> to vector<16x8xf32>
    %549 = arith.truncf %546 : vector<16x8xf32> to vector<16x8xbf16>
    %550 = arith.truncf %547 : vector<16x8xf32> to vector<16x8xbf16>
    %cst_215 = arith.constant dense<0.000000e+00> : vector<16x16xf32>
    %551 = tpu.matmul %549, %550, %cst_215 {dimension_numbers = #tpu.dot_dimension_numbers<[1], [1], [0], [0], [0, 0, 1, 0], [], []>} : vector<16x8xbf16>, vector<16x8xbf16>, vector<16x16xf32> -> vector<16x16xf32>
    %cst_216 = arith.constant 0.353553385 : f32
    %552 = vector.broadcast %cst_216 : f32 to vector<16x16xf32>
    %553 = arith.mulf %551, %552 : vector<16x16xf32>
    %554 = arith.addf %553, %448 : vector<16x16xf32>
    %cst_217 = arith.constant dense<0xFF800000> : vector<16xf32>
    %555 = vector.multi_reduction <maximumf>, %554, %cst_217 [1] : vector<16x16xf32> to vector<16xf32>
    %556 = vector.shape_cast %555 : vector<16xf32> to vector<16x1xf32>
    %557 = vector.broadcast %556 : vector<16x1xf32> to vector<16x16xf32>
    %558 = arith.subf %554, %557 : vector<16x16xf32>
    %559 = math.exp %558 : vector<16x16xf32>
    %cst_218 = arith.constant dense<0.000000e+00> : vector<16xf32>
    %560 = vector.multi_reduction <add>, %559, %cst_218 [1] : vector<16x16xf32> to vector<16xf32>
    %561 = vector.shape_cast %560 : vector<16xf32> to vector<16x1xf32>
    %562 = tpu.reciprocal %561 {approx = true} : vector<16x1xf32> -> vector<16x1xf32>
    %563 = vector.broadcast %562 : vector<16x1xf32> to vector<16x16xf32>
    %564 = arith.mulf %559, %563 : vector<16x16xf32>
    %565 = arith.truncf %564 : vector<16x16xf32> to vector<16x16xbf16>
    %566 = arith.truncf %548 : vector<16x8xf32> to vector<16x8xbf16>
    %cst_219 = arith.constant dense<0.000000e+00> : vector<16x8xf32>
    %567 = tpu.matmul %565, %566, %cst_219 {dimension_numbers = #tpu.dot_dimension_numbers<[1], [0], [0], [1], [0, 0, 1, 1], [], []>} : vector<16x16xbf16>, vector<16x8xbf16>, vector<16x8xf32> -> vector<16x8xf32>
    %568 = vector.extract_strided_slice %465 {offsets = [24, 0], sizes = [8, 32], strides = [1, 1]} : vector<32x32xf32> to vector<8x32xf32>
    %569 = arith.truncf %567 : vector<16x8xf32> to vector<16x8xbf16>
    %570 = arith.truncf %568 : vector<8x32xf32> to vector<8x32xbf16>
    %cst_220 = arith.constant dense<0.000000e+00> : vector<16x32xf32>
    %571 = tpu.matmul %569, %570, %cst_220 {dimension_numbers = #tpu.dot_dimension_numbers<[1], [0], [0], [1], [0, 0, 1, 1], [], []>} : vector<16x8xbf16>, vector<8x32xbf16>, vector<16x32xf32> -> vector<16x32xf32>
    %572 = arith.addf %545, %571 : vector<16x32xf32>
    %c0_221 = arith.constant 0 : index
    %c0_222 = arith.constant 0 : index
    %573 = vector.load %arg41[%c0_221, %c0_222] : memref<1x32xbf16, #tpu.memory_space<vmem>>, vector<1x32xbf16>
    %574 = arith.extf %573 : vector<1x32xbf16> to vector<1x32xf32>
    %575 = vector.broadcast %574 : vector<1x32xf32> to vector<16x32xf32>
    %576 = arith.addf %572, %575 : vector<16x32xf32>
    %577 = arith.addf %447, %576 : vector<16x32xf32>
    %578 = vector.extract_strided_slice %169 {offsets = [2, 0], sizes = [1, 32], strides = [1, 1]} : vector<6x32xf32> to vector<1x32xf32>
    %579 = vector.extract_strided_slice %169 {offsets = [3, 0], sizes = [1, 32], strides = [1, 1]} : vector<6x32xf32> to vector<1x32xf32>
    %cst_223 = arith.constant dense<0.000000e+00> : vector<16xf32>
    %580 = vector.multi_reduction <add>, %577, %cst_223 [1] : vector<16x32xf32> to vector<16xf32>
    %581 = vector.shape_cast %580 : vector<16xf32> to vector<16x1xf32>
    %cst_224 = arith.constant 3.200000e+01 : f32
    %582 = vector.broadcast %cst_224 : f32 to vector<16x1xf32>
    %583 = arith.divf %581, %582 : vector<16x1xf32>
    %584 = vector.broadcast %583 : vector<16x1xf32> to vector<16x32xf32>
    %585 = arith.subf %577, %584 : vector<16x32xf32>
    %586 = arith.mulf %585, %585 : vector<16x32xf32>
    %cst_225 = arith.constant dense<0.000000e+00> : vector<16xf32>
    %587 = vector.multi_reduction <add>, %586, %cst_225 [1] : vector<16x32xf32> to vector<16xf32>
    %588 = vector.shape_cast %587 : vector<16xf32> to vector<16x1xf32>
    %cst_226 = arith.constant 3.200000e+01 : f32
    %589 = vector.broadcast %cst_226 : f32 to vector<16x1xf32>
    %590 = arith.divf %588, %589 : vector<16x1xf32>
    %591 = vector.broadcast %583 : vector<16x1xf32> to vector<16x32xf32>
    %592 = arith.subf %577, %591 : vector<16x32xf32>
    %cst_227 = arith.constant 9.99999974E-6 : f32
    %593 = vector.broadcast %cst_227 : f32 to vector<16x1xf32>
    %594 = arith.addf %590, %593 : vector<16x1xf32>
    %595 = math.rsqrt %594 : vector<16x1xf32>
    %596 = vector.broadcast %595 : vector<16x1xf32> to vector<16x32xf32>
    %597 = arith.mulf %592, %596 : vector<16x32xf32>
    %598 = vector.broadcast %578 : vector<1x32xf32> to vector<16x32xf32>
    %599 = arith.mulf %597, %598 : vector<16x32xf32>
    %600 = vector.broadcast %579 : vector<1x32xf32> to vector<16x32xf32>
    %601 = arith.addf %599, %600 : vector<16x32xf32>
    %c0_228 = arith.constant 0 : index
    %c0_229 = arith.constant 0 : index
    %602 = vector.load %arg43[%c0_228, %c0_229] : memref<32x64xbf16, #tpu.memory_space<vmem>>, vector<32x64xbf16>
    %603 = arith.truncf %601 : vector<16x32xf32> to vector<16x32xbf16>
    %cst_230 = arith.constant dense<0.000000e+00> : vector<16x64xf32>
    %604 = tpu.matmul %603, %602, %cst_230 {dimension_numbers = #tpu.dot_dimension_numbers<[1], [0], [0], [1], [0, 0, 1, 1], [], []>} : vector<16x32xbf16>, vector<32x64xbf16>, vector<16x64xf32> -> vector<16x64xf32>
    %c0_231 = arith.constant 0 : index
    %c0_232 = arith.constant 0 : index
    %605 = vector.load %arg44[%c0_231, %c0_232] : memref<1x64xbf16, #tpu.memory_space<vmem>>, vector<1x64xbf16>
    %606 = arith.extf %605 : vector<1x64xbf16> to vector<1x64xf32>
    %607 = vector.broadcast %606 : vector<1x64xf32> to vector<16x64xf32>
    %608 = arith.addf %604, %607 : vector<16x64xf32>
    %cst_233 = arith.constant 0.000000e+00 : f32
    %609 = vector.broadcast %cst_233 : f32 to vector<16x64xf32>
    %610 = arith.maximumf %608, %609 : vector<16x64xf32>
    %c0_234 = arith.constant 0 : index
    %c0_235 = arith.constant 0 : index
    %611 = vector.load %arg45[%c0_234, %c0_235] : memref<64x32xbf16, #tpu.memory_space<vmem>>, vector<64x32xbf16>
    %612 = arith.truncf %610 : vector<16x64xf32> to vector<16x64xbf16>
    %cst_236 = arith.constant dense<0.000000e+00> : vector<16x32xf32>
    %613 = tpu.matmul %612, %611, %cst_236 {dimension_numbers = #tpu.dot_dimension_numbers<[1], [0], [0], [1], [0, 0, 1, 1], [], []>} : vector<16x64xbf16>, vector<64x32xbf16>, vector<16x32xf32> -> vector<16x32xf32>
    %614 = arith.addf %601, %613 : vector<16x32xf32>
    %c0_237 = arith.constant 0 : index
    %c0_238 = arith.constant 0 : index
    %615 = vector.load %arg46[%c0_237, %c0_238] : memref<1x32xbf16, #tpu.memory_space<vmem>>, vector<1x32xbf16>
    %616 = arith.extf %615 : vector<1x32xbf16> to vector<1x32xf32>
    %617 = vector.broadcast %616 : vector<1x32xf32> to vector<16x32xf32>
    %618 = arith.addf %614, %617 : vector<16x32xf32>
    %619 = vector.extract_strided_slice %169 {offsets = [4, 0], sizes = [1, 32], strides = [1, 1]} : vector<6x32xf32> to vector<1x32xf32>
    %620 = vector.extract_strided_slice %169 {offsets = [5, 0], sizes = [1, 32], strides = [1, 1]} : vector<6x32xf32> to vector<1x32xf32>
    %cst_239 = arith.constant dense<0.000000e+00> : vector<16xf32>
    %621 = vector.multi_reduction <add>, %618, %cst_239 [1] : vector<16x32xf32> to vector<16xf32>
    %622 = vector.shape_cast %621 : vector<16xf32> to vector<16x1xf32>
    %cst_240 = arith.constant 3.200000e+01 : f32
    %623 = vector.broadcast %cst_240 : f32 to vector<16x1xf32>
    %624 = arith.divf %622, %623 : vector<16x1xf32>
    %625 = vector.broadcast %624 : vector<16x1xf32> to vector<16x32xf32>
    %626 = arith.subf %618, %625 : vector<16x32xf32>
    %627 = arith.mulf %626, %626 : vector<16x32xf32>
    %cst_241 = arith.constant dense<0.000000e+00> : vector<16xf32>
    %628 = vector.multi_reduction <add>, %627, %cst_241 [1] : vector<16x32xf32> to vector<16xf32>
    %629 = vector.shape_cast %628 : vector<16xf32> to vector<16x1xf32>
    %cst_242 = arith.constant 3.200000e+01 : f32
    %630 = vector.broadcast %cst_242 : f32 to vector<16x1xf32>
    %631 = arith.divf %629, %630 : vector<16x1xf32>
    %632 = vector.broadcast %624 : vector<16x1xf32> to vector<16x32xf32>
    %633 = arith.subf %618, %632 : vector<16x32xf32>
    %cst_243 = arith.constant 9.99999974E-6 : f32
    %634 = vector.broadcast %cst_243 : f32 to vector<16x1xf32>
    %635 = arith.addf %631, %634 : vector<16x1xf32>
    %636 = math.rsqrt %635 : vector<16x1xf32>
    %637 = vector.broadcast %636 : vector<16x1xf32> to vector<16x32xf32>
    %638 = arith.mulf %633, %637 : vector<16x32xf32>
    %639 = vector.broadcast %619 : vector<1x32xf32> to vector<16x32xf32>
    %640 = arith.mulf %638, %639 : vector<16x32xf32>
    %641 = vector.broadcast %620 : vector<1x32xf32> to vector<16x32xf32>
    %642 = arith.addf %640, %641 : vector<16x32xf32>
    %643 = vector.extract_strided_slice %170 {offsets = [0, 0], sizes = [1, 32], strides = [1, 1]} : vector<2x32xf32> to vector<1x32xf32>
    %644 = vector.extract_strided_slice %170 {offsets = [1, 0], sizes = [1, 32], strides = [1, 1]} : vector<2x32xf32> to vector<1x32xf32>
    %cst_244 = arith.constant dense<0.000000e+00> : vector<16xf32>
    %645 = vector.multi_reduction <add>, %642, %cst_244 [1] : vector<16x32xf32> to vector<16xf32>
    %646 = vector.shape_cast %645 : vector<16xf32> to vector<16x1xf32>
    %cst_245 = arith.constant 3.200000e+01 : f32
    %647 = vector.broadcast %cst_245 : f32 to vector<16x1xf32>
    %648 = arith.divf %646, %647 : vector<16x1xf32>
    %649 = vector.broadcast %648 : vector<16x1xf32> to vector<16x32xf32>
    %650 = arith.subf %642, %649 : vector<16x32xf32>
    %651 = arith.mulf %650, %650 : vector<16x32xf32>
    %cst_246 = arith.constant dense<0.000000e+00> : vector<16xf32>
    %652 = vector.multi_reduction <add>, %651, %cst_246 [1] : vector<16x32xf32> to vector<16xf32>
    %653 = vector.shape_cast %652 : vector<16xf32> to vector<16x1xf32>
    %cst_247 = arith.constant 3.200000e+01 : f32
    %654 = vector.broadcast %cst_247 : f32 to vector<16x1xf32>
    %655 = arith.divf %653, %654 : vector<16x1xf32>
    %656 = vector.broadcast %648 : vector<16x1xf32> to vector<16x32xf32>
    %657 = arith.subf %642, %656 : vector<16x32xf32>
    %cst_248 = arith.constant 9.99999974E-6 : f32
    %658 = vector.broadcast %cst_248 : f32 to vector<16x1xf32>
    %659 = arith.addf %655, %658 : vector<16x1xf32>
    %660 = math.rsqrt %659 : vector<16x1xf32>
    %661 = vector.broadcast %660 : vector<16x1xf32> to vector<16x32xf32>
    %662 = arith.mulf %657, %661 : vector<16x32xf32>
    %663 = vector.broadcast %643 : vector<1x32xf32> to vector<16x32xf32>
    %664 = arith.mulf %662, %663 : vector<16x32xf32>
    %665 = vector.broadcast %644 : vector<1x32xf32> to vector<16x32xf32>
    %666 = arith.addf %664, %665 : vector<16x32xf32>
    %c0_249 = arith.constant 0 : index
    %c0_250 = arith.constant 0 : index
    %667 = vector.load %arg48[%c0_249, %c0_250] : memref<32x512xbf16, #tpu.memory_space<vmem>>, vector<32x512xbf16>
    %668 = arith.truncf %666 : vector<16x32xf32> to vector<16x32xbf16>
    %cst_251 = arith.constant dense<0.000000e+00> : vector<16x512xf32>
    %669 = tpu.matmul %668, %667, %cst_251 {dimension_numbers = #tpu.dot_dimension_numbers<[1], [0], [0], [1], [0, 0, 1, 1], [], []>} : vector<16x32xbf16>, vector<32x512xbf16>, vector<16x512xf32> -> vector<16x512xf32>
    %c0_252 = arith.constant 0 : index
    %c0_253 = arith.constant 0 : index
    %670 = vector.load %arg49[%c0_252, %c0_253] : memref<1x512xbf16, #tpu.memory_space<vmem>>, vector<1x512xbf16>
    %671 = arith.extf %670 : vector<1x512xbf16> to vector<1x512xf32>
    %672 = vector.broadcast %671 : vector<1x512xf32> to vector<16x512xf32>
    %673 = arith.addf %669, %672 : vector<16x512xf32>
    %c0_254 = arith.constant 0 : index
    %c0_255 = arith.constant 0 : index
    %674 = vector.load %arg50[%c0_254, %c0_255] : memref<16x512xf32, #tpu.memory_space<vmem>>, vector<16x512xf32>
    tpu.vector_store %arg50[%c0_254, %c0_255], %673 {strides = array<i32>} : memref<16x512xf32, #tpu.memory_space<vmem>>, vector<16x512xf32>,
    return
  }
}

</mosaic_0001>

<llo_original>
// kernel: prefix_lm_forward.1
$region0: #{prefix_lm_forward.1}
  #allocation0 [shape = 'u32[]', space=smem, size = 0x4, offset = 0x4, fixed_abs, tag = 'smem constant byte address 0x4 - core index']
  #allocation1 [shape = 'u32[144,128]{1,0:T(1,128)}', space=vmem, size = 0x12000, scoped, tag = 'internal scratch']
  %s0 = inlined_call_operand.smem [shape: u32[51], index: -1, kind: input, shape index: {}]
  %s1 = sld [smem:[%s0]]
  %s2 = scalar_lea.smem %s0, 1
  %s3 = sld [smem:[%s2]]
  %s4 = scalar_lea.smem %s0, 2
  %s5 = sld [smem:[%s4]]
  %s6 = scalar_lea.smem %s0, 3
  %s7 = sld [smem:[%s6]]
  %s8 = scalar_lea.smem %s0, 4
  %s9 = sld [smem:[%s8]]
  %s10 = scalar_lea.smem %s0, 5
  %s11 = sld [smem:[%s10]]
  %s12 = scalar_lea.smem %s0, 6
  %s13 = sld [smem:[%s12]]
  %s14 = scalar_lea.smem %s0, 7
  %s15 = sld [smem:[%s14]]
  %s16 = scalar_lea.smem %s0, 8
  %s17 = sld [smem:[%s16]]
  %s18 = scalar_lea.smem %s0, 9
  %s19 = sld [smem:[%s18]]
  %s20 = scalar_lea.smem %s0, 10
  %s21 = sld [smem:[%s20]]
  %s22 = scalar_lea.smem %s0, 11
  %s23 = sld [smem:[%s22]]
  %s24 = scalar_lea.smem %s0, 12
  %s25 = sld [smem:[%s24]]
  %s26 = scalar_lea.smem %s0, 13
  %s27 = sld [smem:[%s26]]
  %s28 = scalar_lea.smem %s0, 14
  %s29 = sld [smem:[%s28]]
  %s30 = scalar_lea.smem %s0, 15
  %s31 = sld [smem:[%s30]]
  %s32 = scalar_lea.smem %s0, 16
  %s33 = sld [smem:[%s32]]
  %s34 = scalar_lea.smem %s0, 17
  %s35 = sld [smem:[%s34]]
  %s36 = scalar_lea.smem %s0, 18
  %s37 = sld [smem:[%s36]]
  %s38 = scalar_lea.smem %s0, 19
  %s39 = sld [smem:[%s38]]
  %s40 = scalar_lea.smem %s0, 20
  %s41 = sld [smem:[%s40]]
  %s42 = scalar_lea.smem %s0, 21
  %s43 = sld [smem:[%s42]]
  %s44 = scalar_lea.smem %s0, 22
  %s45 = sld [smem:[%s44]]
  %s46 = scalar_lea.smem %s0, 23
  %s47 = sld [smem:[%s46]]
  %s48 = scalar_lea.smem %s0, 24
  %s49 = sld [smem:[%s48]]
  %s50 = scalar_lea.smem %s0, 25
  %s51 = sld [smem:[%s50]]
  %s52 = scalar_lea.smem %s0, 26
  %s53 = sld [smem:[%s52]]
  %s54 = scalar_lea.smem %s0, 27
  %s55 = sld [smem:[%s54]]
  %s56 = scalar_lea.smem %s0, 28
  %s57 = sld [smem:[%s56]]
  %s58 = scalar_lea.smem %s0, 29
  %s59 = sld [smem:[%s58]]
  %s60 = scalar_lea.smem %s0, 30
  %s61 = sld [smem:[%s60]]
  %s62 = scalar_lea.smem %s0, 31
  %s63 = sld [smem:[%s62]]
  %s64 = scalar_lea.smem %s0, 32
  %s65 = sld [smem:[%s64]]
  %s66 = scalar_lea.smem %s0, 33
  %s67 = sld [smem:[%s66]]
  %s68 = scalar_lea.smem %s0, 34
  %s69 = sld [smem:[%s68]]
  %s70 = scalar_lea.smem %s0, 35
  %s71 = sld [smem:[%s70]]
  %s72 = scalar_lea.smem %s0, 36
  %s73 = sld [smem:[%s72]]
  %s74 = scalar_lea.smem %s0, 37
  %s75 = sld [smem:[%s74]]
  %s76 = scalar_lea.smem %s0, 38
  %s77 = sld [smem:[%s76]]
  %s78 = scalar_lea.smem %s0, 39
  %s79 = sld [smem:[%s78]]
  %s80 = scalar_lea.smem %s0, 40
  %s81 = sld [smem:[%s80]]
  %s82 = scalar_lea.smem %s0, 41
  %s83 = sld [smem:[%s82]]
  %s84 = scalar_lea.smem %s0, 42
  %s85 = sld [smem:[%s84]]
  %s86 = scalar_lea.smem %s0, 43
  %s87 = sld [smem:[%s86]]
  %s88 = scalar_lea.smem %s0, 44
  %s89 = sld [smem:[%s88]]
  %s90 = scalar_lea.smem %s0, 45
  %s91 = sld [smem:[%s90]]
  %s92 = scalar_lea.smem %s0, 46
  %s93 = sld [smem:[%s92]]
  %s94 = scalar_lea.smem %s0, 47
  %s95 = sld [smem:[%s94]]
  %s96 = scalar_lea.smem %s0, 48
  %s97 = sld [smem:[%s96]]
  %s98 = scalar_lea.smem %s0, 49
  %s99 = sld [smem:[%s98]]
  %s100 = scalar_lea.smem %s0, 50
  %s101 = sld [smem:[%s100]]
  %s102 = sld [smem:[#allocation0]]
  $region242: #{prefix_lm_forward.1} parent=0
    _
  %s104 = ssub.s32 1, %s102
  %s105 = scalar_select 0, %s104, %s102
  $region1: #{prefix_lm_forward.1} parent=0
    #allocation2 [shape = 'u8[512]{0}', space=vmem, size = 0x400, scoped, tag = 'input window, operand 31, single buffered']
    #allocation3 [shape = 's32[1]{0}', space=sflag, size = 0x4, scoped, tag = 'scoped memory for prefix_lm_forward.1']
    #allocation4 [shape = 's32[1]{0}', space=sflag, size = 0x4, scoped, tag = 'scoped memory for prefix_lm_forward.1']
    #allocation5 [shape = 'u8[512]{0}', space=vmem, size = 0x400, scoped, tag = 'input window, operand 33, single buffered']
    #allocation6 [shape = 's32[1]{0}', space=sflag, size = 0x4, scoped, tag = 'scoped memory for prefix_lm_forward.1']
    #allocation7 [shape = 'u8[512]{0}', space=vmem, size = 0x400, scoped, tag = 'input window, operand 35, single buffered']
    #allocation8 [shape = 'u8[512]{0}', space=vmem, size = 0x400, scoped, tag = 'input window, operand 37, single buffered']
    #allocation9 [shape = 's32[1]{0}', space=sflag, size = 0x4, scoped, tag = 'scoped memory for prefix_lm_forward.1']
    #allocation10 [shape = 'u8[512]{0}', space=vmem, size = 0x400, scoped, tag = 'input window, operand 39, single buffered']
    #allocation11 [shape = 'u8[512]{0}', space=vmem, size = 0x400, scoped, tag = 'input window, operand 41, single buffered']
    #allocation12 [shape = 's32[1]{0}', space=sflag, size = 0x4, scoped, tag = 'scoped memory for prefix_lm_forward.1']
    #allocation13 [shape = 'u8[512]{0}', space=vmem, size = 0x400, scoped, tag = 'input window, operand 44, single buffered']
    #allocation14 [shape = 'u8[512]{0}', space=vmem, size = 0x400, scoped, tag = 'input window, operand 46, single buffered']
    #allocation15 [shape = 's32[1]{0}', space=sflag, size = 0x4, scoped, tag = 'scoped memory for prefix_lm_forward.1']
    #allocation16 [shape = 'u8[32768]{0}', space=vmem, size = 0x8000, scoped, tag = 'output window, operand 0, single buffered']
    %106 = vsyncpa [#allocation3], 0
    %107 = vsyncpa [#allocation6], 0
    %108 = vsyncpa [#allocation9], 0
    %109 = vsyncpa [#allocation12], 0
    %110 = vsyncpa [#allocation15], 0
    %111 = vsyncpa [#allocation4], 0
    // Predicated region
    $region2: #{prefix_lm_forward.1} parent=1 // pred_check
      _
    $region3: #{prefix_lm_forward.1} parent=1 // pred_check_branch
      %113 = sbr.rel (0) target = $region5
    $region4: #{prefix_lm_forward.1} parent=1 // pred_region
      _
    $region5: #{prefix_lm_forward.1} parent=1 // pred_fallthru
      _
    // Predicated region
    $region6: #{prefix_lm_forward.1} parent=1 // pred_check
      _
    $region7: #{prefix_lm_forward.1} parent=1 // pred_check_branch
      %115 = sbr.rel (0) target = $region9
    $region8: #{prefix_lm_forward.1} parent=1 // pred_region
      _
    $region9: #{prefix_lm_forward.1} parent=1 // pred_fallthru
      _
    // Predicated region
    $region10: #{prefix_lm_forward.1} parent=1 // pred_check
      _
    $region11: #{prefix_lm_forward.1} parent=1 // pred_check_branch
      %117 = sbr.rel (0) target = $region13
    $region12: #{prefix_lm_forward.1} parent=1 // pred_region
      _
    $region13: #{prefix_lm_forward.1} parent=1 // pred_fallthru
      _
    // Predicated region
    $region14: #{prefix_lm_forward.1} parent=1 // pred_check
      _
    $region15: #{prefix_lm_forward.1} parent=1 // pred_check_branch
      %119 = sbr.rel (0) target = $region17
    $region16: #{prefix_lm_forward.1} parent=1 // pred_region
      _
    $region17: #{prefix_lm_forward.1} parent=1 // pred_fallthru
      _
    // Predicated region
    $region18: #{prefix_lm_forward.1} parent=1 // pred_check
      _
    $region19: #{prefix_lm_forward.1} parent=1 // pred_check_branch
      %121 = sbr.rel (0) target = $region21
    $region20: #{prefix_lm_forward.1} parent=1 // pred_region
      _
    $region21: #{prefix_lm_forward.1} parent=1 // pred_fallthru
      _
    // Predicated region
    $region22: #{prefix_lm_forward.1} parent=1 // pred_check
      _
    $region23: #{prefix_lm_forward.1} parent=1 // pred_check_branch
      %123 = sbr.rel (0) target = $region25
    $region24: #{prefix_lm_forward.1} parent=1 // pred_region
      _
    $region25: #{prefix_lm_forward.1} parent=1 // pred_fallthru
      _
    // Predicated region
    $region26: #{prefix_lm_forward.1} parent=1 // pred_check
      _
    $region27: #{prefix_lm_forward.1} parent=1 // pred_check_branch
      %125 = sbr.rel (0) target = $region29
    $region28: #{prefix_lm_forward.1} parent=1 // pred_region
      _
    $region29: #{prefix_lm_forward.1} parent=1 // pred_fallthru
      _
    // Predicated region
    $region30: #{prefix_lm_forward.1} parent=1 // pred_check
      _
    $region31: #{prefix_lm_forward.1} parent=1 // pred_check_branch
      %127 = sbr.rel (0) target = $region33
    $region32: #{prefix_lm_forward.1} parent=1 // pred_region
      _
    $region33: #{prefix_lm_forward.1} parent=1 // pred_fallthru
      _
    // Predicated region
    $region34: #{prefix_lm_forward.1} parent=1 // pred_check
      _
    $region35: #{prefix_lm_forward.1} parent=1 // pred_check_branch
      %129 = sbr.rel (0) target = $region37
    $region36: #{prefix_lm_forward.1} parent=1 // pred_region
      _
    $region37: #{prefix_lm_forward.1} parent=1 // pred_fallthru
      _
    // Predicated region
    $region38: #{prefix_lm_forward.1} parent=1 // pred_check
      _
    $region39: #{prefix_lm_forward.1} parent=1 // pred_check_branch
      %131 = sbr.rel (0) target = $region41
    $region40: #{prefix_lm_forward.1} parent=1 // pred_region
      _
    $region41: #{prefix_lm_forward.1} parent=1 // pred_fallthru
      _
    // Predicated region
    $region42: #{prefix_lm_forward.1} parent=1 // pred_check
      _
    $region43: #{prefix_lm_forward.1} parent=1 // pred_check_branch
      %133 = sbr.rel (0) target = $region45
    $region44: #{prefix_lm_forward.1} parent=1 // pred_region
      _
    $region45: #{prefix_lm_forward.1} parent=1 // pred_fallthru
      _
    // Predicated region
    $region46: #{prefix_lm_forward.1} parent=1 // pred_check
      _
    $region47: #{prefix_lm_forward.1} parent=1 // pred_check_branch
      %135 = sbr.rel (0) target = $region49
    $region48: #{prefix_lm_forward.1} parent=1 // pred_region
      _
    $region49: #{prefix_lm_forward.1} parent=1 // pred_fallthru
      _
    // Predicated region
    $region50: #{prefix_lm_forward.1} parent=1 // pred_check
      _
    $region51: #{prefix_lm_forward.1} parent=1 // pred_check_branch
      %137 = sbr.rel (0) target = $region53
    $region52: #{prefix_lm_forward.1} parent=1 // pred_region
      _
    $region53: #{prefix_lm_forward.1} parent=1 // pred_fallthru
      _
    // Predicated region
    $region54: #{prefix_lm_forward.1} parent=1 // pred_check
      _
    $region55: #{prefix_lm_forward.1} parent=1 // pred_check_branch
      %139 = sbr.rel (0) target = $region57
    $region56: #{prefix_lm_forward.1} parent=1 // pred_region
      _
    $region57: #{prefix_lm_forward.1} parent=1 // pred_fallthru
      _
    // Predicated region
    $region58: #{prefix_lm_forward.1} parent=1 // pred_check
      _
    $region59: #{prefix_lm_forward.1} parent=1 // pred_check_branch
      %141 = sbr.rel (0) target = $region61
    $region60: #{prefix_lm_forward.1} parent=1 // pred_region
      _
    $region61: #{prefix_lm_forward.1} parent=1 // pred_fallthru
      _
    // Predicated region
    $region62: #{prefix_lm_forward.1} parent=1 // pred_check
      _
    $region63: #{prefix_lm_forward.1} parent=1 // pred_check_branch
      %143 = sbr.rel (0) target = $region65
    $region64: #{prefix_lm_forward.1} parent=1 // pred_region
      _
    $region65: #{prefix_lm_forward.1} parent=1 // pred_fallthru
      _
    // Predicated region
    $region66: #{prefix_lm_forward.1} parent=1 // pred_check
      _
    $region67: #{prefix_lm_forward.1} parent=1 // pred_check_branch
      %145 = sbr.rel (0) target = $region69
    $region68: #{prefix_lm_forward.1} parent=1 // pred_region
      _
    $region69: #{prefix_lm_forward.1} parent=1 // pred_fallthru
      _
    // Predicated region
    $region70: #{prefix_lm_forward.1} parent=1 // pred_check
      _
    $region71: #{prefix_lm_forward.1} parent=1 // pred_check_branch
      %147 = sbr.rel (0) target = $region73
    $region72: #{prefix_lm_forward.1} parent=1 // pred_region
      _
    $region73: #{prefix_lm_forward.1} parent=1 // pred_fallthru
      _
    // Predicated region
    $region74: #{prefix_lm_forward.1} parent=1 // pred_check
      _
    $region75: #{prefix_lm_forward.1} parent=1 // pred_check_branch
      %149 = sbr.rel (0) target = $region77
    $region76: #{prefix_lm_forward.1} parent=1 // pred_region
      _
    $region77: #{prefix_lm_forward.1} parent=1 // pred_fallthru
      _
    // Predicated region
    $region78: #{prefix_lm_forward.1} parent=1 // pred_check
      _
    $region79: #{prefix_lm_forward.1} parent=1 // pred_check_branch
      %151 = sbr.rel (0) target = $region81
    $region80: #{prefix_lm_forward.1} parent=1 // pred_region
      _
    $region81: #{prefix_lm_forward.1} parent=1 // pred_fallthru
      _
    // Predicated region
    $region82: #{prefix_lm_forward.1} parent=1 // pred_check
      _
    $region83: #{prefix_lm_forward.1} parent=1 // pred_check_branch
      %153 = sbr.rel (0) target = $region85
    $region84: #{prefix_lm_forward.1} parent=1 // pred_region
      _
    $region85: #{prefix_lm_forward.1} parent=1 // pred_fallthru
      _
    // Predicated region
    $region86: #{prefix_lm_forward.1} parent=1 // pred_check
      _
    $region87: #{prefix_lm_forward.1} parent=1 // pred_check_branch
      %155 = sbr.rel (0) target = $region89
    $region88: #{prefix_lm_forward.1} parent=1 // pred_region
      _
    $region89: #{prefix_lm_forward.1} parent=1 // pred_fallthru
      _
    // Predicated region
    $region90: #{prefix_lm_forward.1} parent=1 // pred_check
      _
    $region91: #{prefix_lm_forward.1} parent=1 // pred_check_branch
      %157 = sbr.rel (0) target = $region93
    $region92: #{prefix_lm_forward.1} parent=1 // pred_region
      _
    $region93: #{prefix_lm_forward.1} parent=1 // pred_fallthru
      _
    // Predicated region
    $region94: #{prefix_lm_forward.1} parent=1 // pred_check
      _
    $region95: #{prefix_lm_forward.1} parent=1 // pred_check_branch
      %159 = sbr.rel (0) target = $region97
    $region96: #{prefix_lm_forward.1} parent=1 // pred_region
      _
    $region97: #{prefix_lm_forward.1} parent=1 // pred_fallthru
      _
    // Predicated region
    $region98: #{prefix_lm_forward.1} parent=1 // pred_check
      _
    $region99: #{prefix_lm_forward.1} parent=1 // pred_check_branch
      %161 = sbr.rel (0) target = $region101
    $region100: #{prefix_lm_forward.1} parent=1 // pred_region
      _
    $region101: #{prefix_lm_forward.1} parent=1 // pred_fallthru
      _
    // Predicated region
    $region102: #{prefix_lm_forward.1} parent=1 // pred_check
      _
    $region103: #{prefix_lm_forward.1} parent=1 // pred_check_branch
      %163 = sbr.rel (0) target = $region105
    $region104: #{prefix_lm_forward.1} parent=1 // pred_region
      _
    $region105: #{prefix_lm_forward.1} parent=1 // pred_fallthru
      _
    // Predicated region
    $region106: #{prefix_lm_forward.1} parent=1 // pred_check
      _
    $region107: #{prefix_lm_forward.1} parent=1 // pred_check_branch
      %165 = sbr.rel (0) target = $region109
    $region108: #{prefix_lm_forward.1} parent=1 // pred_region
      _
    $region109: #{prefix_lm_forward.1} parent=1 // pred_fallthru
      _
    // Predicated region
    $region110: #{prefix_lm_forward.1} parent=1 // pred_check
      _
    $region111: #{prefix_lm_forward.1} parent=1 // pred_check_branch
      %167 = sbr.rel (0) target = $region113
    $region112: #{prefix_lm_forward.1} parent=1 // pred_region
      _
    $region113: #{prefix_lm_forward.1} parent=1 // pred_fallthru
      _
    // Predicated region
    $region114: #{prefix_lm_forward.1} parent=1 // pred_check
      _
    $region115: #{prefix_lm_forward.1} parent=1 // pred_check_branch
      %169 = sbr.rel (0) target = $region117
    $region116: #{prefix_lm_forward.1} parent=1 // pred_region
      _
    $region117: #{prefix_lm_forward.1} parent=1 // pred_fallthru
      _
    // Predicated region
    $region118: #{prefix_lm_forward.1} parent=1 // pred_check
      _
    $region119: #{prefix_lm_forward.1} parent=1 // pred_check_branch
      %171 = sbr.rel (0) target = $region121
    $region120: #{prefix_lm_forward.1} parent=1 // pred_region
      _
    $region121: #{prefix_lm_forward.1} parent=1 // pred_fallthru
      _
    // Predicated region
    $region122: #{prefix_lm_forward.1} parent=1 // pred_check
      _
    $region123: #{prefix_lm_forward.1} parent=1 // pred_check_branch
      %173 = sbr.rel (0) target = $region125
    $region124: #{prefix_lm_forward.1} parent=1 // pred_region
      _
    $region125: #{prefix_lm_forward.1} parent=1 // pred_fallthru
      _
    // Predicated region
    $region126: #{prefix_lm_forward.1} parent=1 // pred_check
      _
    $region127: #{prefix_lm_forward.1} parent=1 // pred_check_branch
      %175 = sbr.rel (0) target = $region129
    $region128: #{prefix_lm_forward.1} parent=1 // pred_region
      %s177 = ssub.s32 16, 16
      %178 = vsyncadd [#allocation3], %s177
      %s180 = sshll.u32 [#allocation2], 4
      %s181 = int_to_ptr.vmem [resolvable:$true] %s180
      %183 = dma.hbm_to_vmem [thread:$0]  %s63, 16, %s181, [#allocation3]
    $region129: #{prefix_lm_forward.1} parent=1 // pred_fallthru
      _
    // Predicated region
    $region130: #{prefix_lm_forward.1} parent=1 // pred_check
      _
    $region131: #{prefix_lm_forward.1} parent=1 // pred_check_branch
      %185 = sbr.rel (0) target = $region133
    $region132: #{prefix_lm_forward.1} parent=1 // pred_region
      _
    $region133: #{prefix_lm_forward.1} parent=1 // pred_fallthru
      _
    // Predicated region
    $region134: #{prefix_lm_forward.1} parent=1 // pred_check
      _
    $region135: #{prefix_lm_forward.1} parent=1 // pred_check_branch
      %187 = sbr.rel (0) target = $region137
    $region136: #{prefix_lm_forward.1} parent=1 // pred_region
      %s189 = ssub.s32 16, 16
      %190 = vsyncadd [#allocation6], %s189
      %s192 = sshll.u32 [#allocation5], 4
      %s193 = int_to_ptr.vmem [resolvable:$true] %s192
      %195 = dma.hbm_to_vmem [thread:$0]  %s67, 16, %s193, [#allocation6]
    $region137: #{prefix_lm_forward.1} parent=1 // pred_fallthru
      _
    // Predicated region
    $region138: #{prefix_lm_forward.1} parent=1 // pred_check
      _
    $region139: #{prefix_lm_forward.1} parent=1 // pred_check_branch
      %197 = sbr.rel (0) target = $region141
    $region140: #{prefix_lm_forward.1} parent=1 // pred_region
      _
    $region141: #{prefix_lm_forward.1} parent=1 // pred_fallthru
      _
    // Predicated region
    $region142: #{prefix_lm_forward.1} parent=1 // pred_check
      _
    $region143: #{prefix_lm_forward.1} parent=1 // pred_check_branch
      %199 = sbr.rel (0) target = $region145
    $region144: #{prefix_lm_forward.1} parent=1 // pred_region
      %s201 = ssub.s32 16, 16
      %202 = vsyncadd [#allocation6], %s201
      %s204 = sshll.u32 [#allocation7], 4
      %s205 = int_to_ptr.vmem [resolvable:$true] %s204
      %207 = dma.hbm_to_vmem [thread:$0]  %s71, 16, %s205, [#allocation6]
    $region145: #{prefix_lm_forward.1} parent=1 // pred_fallthru
      _
    // Predicated region
    $region146: #{prefix_lm_forward.1} parent=1 // pred_check
      _
    $region147: #{prefix_lm_forward.1} parent=1 // pred_check_branch
      %209 = sbr.rel (0) target = $region149
    $region148: #{prefix_lm_forward.1} parent=1 // pred_region
      _
    $region149: #{prefix_lm_forward.1} parent=1 // pred_fallthru
      _
    // Predicated region
    $region150: #{prefix_lm_forward.1} parent=1 // pred_check
      _
    $region151: #{prefix_lm_forward.1} parent=1 // pred_check_branch
      %211 = sbr.rel (0) target = $region153
    $region152: #{prefix_lm_forward.1} parent=1 // pred_region
      %s213 = ssub.s32 16, 16
      %214 = vsyncadd [#allocation9], %s213
      %s216 = sshll.u32 [#allocation8], 4
      %s217 = int_to_ptr.vmem [resolvable:$true] %s216
      %219 = dma.hbm_to_vmem [thread:$0]  %s75, 16, %s217, [#allocation9]
    $region153: #{prefix_lm_forward.1} parent=1 // pred_fallthru
      _
    // Predicated region
    $region154: #{prefix_lm_forward.1} parent=1 // pred_check
      _
    $region155: #{prefix_lm_forward.1} parent=1 // pred_check_branch
      %221 = sbr.rel (0) target = $region157
    $region156: #{prefix_lm_forward.1} parent=1 // pred_region
      _
    $region157: #{prefix_lm_forward.1} parent=1 // pred_fallthru
      _
    // Predicated region
    $region158: #{prefix_lm_forward.1} parent=1 // pred_check
      _
    $region159: #{prefix_lm_forward.1} parent=1 // pred_check_branch
      %223 = sbr.rel (0) target = $region161
    $region160: #{prefix_lm_forward.1} parent=1 // pred_region
      %s225 = ssub.s32 16, 16
      %226 = vsyncadd [#allocation9], %s225
      %s228 = sshll.u32 [#allocation10], 4
      %s229 = int_to_ptr.vmem [resolvable:$true] %s228
      %231 = dma.hbm_to_vmem [thread:$0]  %s79, 16, %s229, [#allocation9]
    $region161: #{prefix_lm_forward.1} parent=1 // pred_fallthru
      _
    // Predicated region
    $region162: #{prefix_lm_forward.1} parent=1 // pred_check
      _
    $region163: #{prefix_lm_forward.1} parent=1 // pred_check_branch
      %233 = sbr.rel (0) target = $region165
    $region164: #{prefix_lm_forward.1} parent=1 // pred_region
      _
    $region165: #{prefix_lm_forward.1} parent=1 // pred_fallthru
      _
    // Predicated region
    $region166: #{prefix_lm_forward.1} parent=1 // pred_check
      _
    $region167: #{prefix_lm_forward.1} parent=1 // pred_check_branch
      %235 = sbr.rel (0) target = $region169
    $region168: #{prefix_lm_forward.1} parent=1 // pred_region
      %s237 = ssub.s32 16, 16
      %238 = vsyncadd [#allocation12], %s237
      %s240 = sshll.u32 [#allocation11], 4
      %s241 = int_to_ptr.vmem [resolvable:$true] %s240
      %243 = dma.hbm_to_vmem [thread:$0]  %s83, 16, %s241, [#allocation12]
    $region169: #{prefix_lm_forward.1} parent=1 // pred_fallthru
      _
    // Predicated region
    $region170: #{prefix_lm_forward.1} parent=1 // pred_check
      _
    $region171: #{prefix_lm_forward.1} parent=1 // pred_check_branch
      %245 = sbr.rel (0) target = $region173
    $region172: #{prefix_lm_forward.1} parent=1 // pred_region
      _
    $region173: #{prefix_lm_forward.1} parent=1 // pred_fallthru
      _
    // Predicated region
    $region174: #{prefix_lm_forward.1} parent=1 // pred_check
      _
    $region175: #{prefix_lm_forward.1} parent=1 // pred_check_branch
      %247 = sbr.rel (0) target = $region177
    $region176: #{prefix_lm_forward.1} parent=1 // pred_region
      _
    $region177: #{prefix_lm_forward.1} parent=1 // pred_fallthru
      _
    // Predicated region
    $region178: #{prefix_lm_forward.1} parent=1 // pred_check
      _
    $region179: #{prefix_lm_forward.1} parent=1 // pred_check_branch
      %249 = sbr.rel (0) target = $region181
    $region180: #{prefix_lm_forward.1} parent=1 // pred_region
      %s251 = ssub.s32 16, 16
      %252 = vsyncadd [#allocation12], %s251
      %s254 = sshll.u32 [#allocation13], 4
      %s255 = int_to_ptr.vmem [resolvable:$true] %s254
      %257 = dma.hbm_to_vmem [thread:$0]  %s89, 16, %s255, [#allocation12]
    $region181: #{prefix_lm_forward.1} parent=1 // pred_fallthru
      _
    // Predicated region
    $region182: #{prefix_lm_forward.1} parent=1 // pred_check
      _
    $region183: #{prefix_lm_forward.1} parent=1 // pred_check_branch
      %259 = sbr.rel (0) target = $region185
    $region184: #{prefix_lm_forward.1} parent=1 // pred_region
      _
    $region185: #{prefix_lm_forward.1} parent=1 // pred_fallthru
      _
    // Predicated region
    $region186: #{prefix_lm_forward.1} parent=1 // pred_check
      _
    $region187: #{prefix_lm_forward.1} parent=1 // pred_check_branch
      %261 = sbr.rel (0) target = $region189
    $region188: #{prefix_lm_forward.1} parent=1 // pred_region
      %s263 = ssub.s32 16, 16
      %264 = vsyncadd [#allocation15], %s263
      %s266 = sshll.u32 [#allocation14], 4
      %s267 = int_to_ptr.vmem [resolvable:$true] %s266
      %269 = dma.hbm_to_vmem [thread:$0]  %s93, 16, %s267, [#allocation15]
    $region189: #{prefix_lm_forward.1} parent=1 // pred_fallthru
      _
    // Predicated region
    $region190: #{prefix_lm_forward.1} parent=1 // pred_check
      _
    $region191: #{prefix_lm_forward.1} parent=1 // pred_check_branch
      %271 = sbr.rel (0) target = $region193
    $region192: #{prefix_lm_forward.1} parent=1 // pred_region
      _
    $region193: #{prefix_lm_forward.1} parent=1 // pred_fallthru
      _
    // Predicated region
    $region194: #{prefix_lm_forward.1} parent=1 // pred_check
      _
    $region195: #{prefix_lm_forward.1} parent=1 // pred_check_branch
      %273 = sbr.rel (0) target = $region197
    $region196: #{prefix_lm_forward.1} parent=1 // pred_region
      _
    $region197: #{prefix_lm_forward.1} parent=1 // pred_fallthru
      _
    // Predicated region
    $region198: #{prefix_lm_forward.1} parent=1 // pred_check
      _
    $region199: #{prefix_lm_forward.1} parent=1 // pred_check_branch
      %275 = sbr.rel (0) target = $region201
    $region200: #{prefix_lm_forward.1} parent=1 // pred_region
      _
    $region201: #{prefix_lm_forward.1} parent=1 // pred_fallthru
      _
    // Predicated region
    $region202: #{prefix_lm_forward.1} parent=1 // pred_check
      _
    $region203: #{prefix_lm_forward.1} parent=1 // pred_check_branch
      %277 = sbr.rel (0) target = $region205
    $region204: #{prefix_lm_forward.1} parent=1 // pred_region
      %278 = dma.done [#allocation3], 16
    $region205: #{prefix_lm_forward.1} parent=1 // pred_fallthru
      _
    // Predicated region
    $region206: #{prefix_lm_forward.1} parent=1 // pred_check
      _
    $region207: #{prefix_lm_forward.1} parent=1 // pred_check_branch
      %280 = sbr.rel (0) target = $region209
    $region208: #{prefix_lm_forward.1} parent=1 // pred_region
      %281 = dma.done [#allocation6], 16
    $region209: #{prefix_lm_forward.1} parent=1 // pred_fallthru
      _
    // Predicated region
    $region210: #{prefix_lm_forward.1} parent=1 // pred_check
      _
    $region211: #{prefix_lm_forward.1} parent=1 // pred_check_branch
      %283 = sbr.rel (0) target = $region213
    $region212: #{prefix_lm_forward.1} parent=1 // pred_region
      %284 = dma.done [#allocation6], 16
    $region213: #{prefix_lm_forward.1} parent=1 // pred_fallthru
      _
    // Predicated region
    $region214: #{prefix_lm_forward.1} parent=1 // pred_check
      _
    $region215: #{prefix_lm_forward.1} parent=1 // pred_check_branch
      %286 = sbr.rel (0) target = $region217
    $region216: #{prefix_lm_forward.1} parent=1 // pred_region
      %287 = dma.done [#allocation9], 16
    $region217: #{prefix_lm_forward.1} parent=1 // pred_fallthru
      _
    // Predicated region
    $region218: #{prefix_lm_forward.1} parent=1 // pred_check
      _
    $region219: #{prefix_lm_forward.1} parent=1 // pred_check_branch
      %289 = sbr.rel (0) target = $region221
    $region220: #{prefix_lm_forward.1} parent=1 // pred_region
      %290 = dma.done [#allocation9], 16
    $region221: #{prefix_lm_forward.1} parent=1 // pred_fallthru
      _
    // Predicated region
    $region222: #{prefix_lm_forward.1} parent=1 // pred_check
      _
    $region223: #{prefix_lm_forward.1} parent=1 // pred_check_branch
      %292 = sbr.rel (0) target = $region225
    $region224: #{prefix_lm_forward.1} parent=1 // pred_region
      %293 = dma.done [#allocation12], 16
    $region225: #{prefix_lm_forward.1} parent=1 // pred_fallthru
      _
    // Predicated region
    $region226: #{prefix_lm_forward.1} parent=1 // pred_check
      _
    $region227: #{prefix_lm_forward.1} parent=1 // pred_check_branch
      %295 = sbr.rel (0) target = $region229
    $region228: #{prefix_lm_forward.1} parent=1 // pred_region
      %296 = dma.done [#allocation12], 16
    $region229: #{prefix_lm_forward.1} parent=1 // pred_fallthru
      _
    // Predicated region
    $region230: #{prefix_lm_forward.1} parent=1 // pred_check
      _
    $region231: #{prefix_lm_forward.1} parent=1 // pred_check_branch
      %298 = sbr.rel (0) target = $region233
    $region232: #{prefix_lm_forward.1} parent=1 // pred_region
      %299 = dma.done [#allocation15], 16
    $region233: #{prefix_lm_forward.1} parent=1 // pred_fallthru
      _
    %v301 = vld [vmem:[%s1] sm:$0xff]
    %v302 = vld [vmem:[%s1 + $0x8] sm:$0xff]
    %v303 = vld [vmem:[%s1 + $0x10] sm:$0xff]
    %v304 = vld [vmem:[%s17] sm:$0xf]
    %v305 = vld [vmem:[%s17 + $0x4] sm:$0xf]
    %v306 = vld [vmem:[%s17 + $0x8] sm:$0xf]
    %v307 = vld [vmem:[%s17 + $0xc] sm:$0xf]
    %v308 = vld [vmem:[%s17 + $0x10] sm:$0xf]
    %v309 = vld [vmem:[%s17 + $0x14] sm:$0xf]
    %v310 = vld [vmem:[%s17 + $0x18] sm:$0xf]
    %v311 = vld [vmem:[%s17 + $0x1c] sm:$0xf]
    %v312 = vld [vmem:[%s17 + $0x20] sm:$0xf]
    %v313 = vld [vmem:[%s17 + $0x24] sm:$0xf]
    %v314 = vld [vmem:[%s17 + $0x28] sm:$0xf]
    %v315 = vld [vmem:[%s17 + $0x2c] sm:$0xf]
    %v316 = vld [vmem:[%s17 + $0x30] sm:$0xf]
    %v317 = vld [vmem:[%s17 + $0x34] sm:$0xf]
    %v318 = vld [vmem:[%s17 + $0x38] sm:$0xf]
    %v319 = vld [vmem:[%s17 + $0x3c] sm:$0xf]
    %v320 = vld [vmem:[%s17 + $0x40] sm:$0xf]
    %v321 = vld [vmem:[%s17 + $0x44] sm:$0xf]
    %v322 = vld [vmem:[%s17 + $0x48] sm:$0xf]
    %v323 = vld [vmem:[%s17 + $0x4c] sm:$0xf]
    %v324 = vld [vmem:[%s17 + $0x50] sm:$0xf]
    %v325 = vld [vmem:[%s17 + $0x54] sm:$0xf]
    %v326 = vld [vmem:[%s17 + $0x58] sm:$0xf]
    %v327 = vld [vmem:[%s17 + $0x5c] sm:$0xf]
    %v328 = vld [vmem:[%s17 + $0x60] sm:$0xf]
    %v329 = vld [vmem:[%s17 + $0x64] sm:$0xf]
    %v330 = vld [vmem:[%s17 + $0x68] sm:$0xf]
    %v331 = vld [vmem:[%s17 + $0x6c] sm:$0xf]
    %v332 = vld [vmem:[%s17 + $0x70] sm:$0xf]
    %v333 = vld [vmem:[%s17 + $0x74] sm:$0xf]
    %v334 = vld [vmem:[%s17 + $0x78] sm:$0xf]
    %v335 = vld [vmem:[%s17 + $0x7c] sm:$0xf]
    %v336 = vld [vmem:[%s17 + $0x80] sm:$0xf]
    %v337 = vld [vmem:[%s17 + $0x84] sm:$0xf]
    %v338 = vld [vmem:[%s17 + $0x88] sm:$0xf]
    %v339 = vld [vmem:[%s17 + $0x8c] sm:$0xf]
    %v340 = vld [vmem:[%s17 + $0x90] sm:$0xf]
    %v341 = vld [vmem:[%s17 + $0x94] sm:$0xf]
    %v342 = vld [vmem:[%s17 + $0x98] sm:$0xf]
    %v343 = vld [vmem:[%s17 + $0x9c] sm:$0xf]
    %v344 = vld [vmem:[%s17 + $0xa0] sm:$0xf]
    %v345 = vld [vmem:[%s17 + $0xa4] sm:$0xf]
    %v346 = vld [vmem:[%s17 + $0xa8] sm:$0xf]
    %v347 = vld [vmem:[%s17 + $0xac] sm:$0xf]
    %v348 = vld [vmem:[%s17 + $0xb0] sm:$0xf]
    %v349 = vld [vmem:[%s17 + $0xb4] sm:$0xf]
    %v350 = vld [vmem:[%s17 + $0xb8] sm:$0xf]
    %v351 = vld [vmem:[%s17 + $0xbc] sm:$0xf]
    %v352 = vld [vmem:[%s17 + $0xc0] sm:$0xf]
    %v353 = vld [vmem:[%s17 + $0xc4] sm:$0xf]
    %v354 = vld [vmem:[%s17 + $0xc8] sm:$0xf]
    %v355 = vld [vmem:[%s17 + $0xcc] sm:$0xf]
    %v356 = vld [vmem:[%s17 + $0xd0] sm:$0xf]
    %v357 = vld [vmem:[%s17 + $0xd4] sm:$0xf]
    %v358 = vld [vmem:[%s17 + $0xd8] sm:$0xf]
    %v359 = vld [vmem:[%s17 + $0xdc] sm:$0xf]
    %v360 = vld [vmem:[%s17 + $0xe0] sm:$0xf]
    %v361 = vld [vmem:[%s17 + $0xe4] sm:$0xf]
    %v362 = vld [vmem:[%s17 + $0xe8] sm:$0xf]
    %v363 = vld [vmem:[%s17 + $0xec] sm:$0xf]
    %v364 = vld [vmem:[%s17 + $0xf0] sm:$0xf]
    %v365 = vld [vmem:[%s17 + $0xf4] sm:$0xf]
    %v366 = vld [vmem:[%s17 + $0xf8] sm:$0xf]
    %v367 = vld [vmem:[%s17 + $0xfc] sm:$0xf]
    %v368 = vld [vmem:[%s17 + $0x100] sm:$0xf]
    %v369 = vld [vmem:[%s17 + $0x104] sm:$0xf]
    %v370 = vld [vmem:[%s17 + $0x108] sm:$0xf]
    %v371 = vld [vmem:[%s17 + $0x10c] sm:$0xf]
    %v372 = vld [vmem:[%s17 + $0x110] sm:$0xf]
    %v373 = vld [vmem:[%s17 + $0x114] sm:$0xf]
    %v374 = vld [vmem:[%s17 + $0x118] sm:$0xf]
    %v375 = vld [vmem:[%s17 + $0x11c] sm:$0xf]
    %v376 = vld [vmem:[%s17 + $0x120] sm:$0xf]
    %v377 = vld [vmem:[%s17 + $0x124] sm:$0xf]
    %v378 = vld [vmem:[%s17 + $0x128] sm:$0xf]
    %v379 = vld [vmem:[%s17 + $0x12c] sm:$0xf]
    %v380 = vld [vmem:[%s17 + $0x130] sm:$0xf]
    %v381 = vld [vmem:[%s17 + $0x134] sm:$0xf]
    %v382 = vld [vmem:[%s17 + $0x138] sm:$0xf]
    %v383 = vld [vmem:[%s17 + $0x13c] sm:$0xf]
    %v384 = vld [vmem:[%s17 + $0x140] sm:$0xf]
    %v385 = vld [vmem:[%s17 + $0x144] sm:$0xf]
    %v386 = vld [vmem:[%s17 + $0x148] sm:$0xf]
    %v387 = vld [vmem:[%s17 + $0x14c] sm:$0xf]
    %v388 = vld [vmem:[%s17 + $0x150] sm:$0xf]
    %v389 = vld [vmem:[%s17 + $0x154] sm:$0xf]
    %v390 = vld [vmem:[%s17 + $0x158] sm:$0xf]
    %v391 = vld [vmem:[%s17 + $0x15c] sm:$0xf]
    %v392 = vld [vmem:[%s17 + $0x160] sm:$0xf]
    %v393 = vld [vmem:[%s17 + $0x164] sm:$0xf]
    %v394 = vld [vmem:[%s17 + $0x168] sm:$0xf]
    %v395 = vld [vmem:[%s17 + $0x16c] sm:$0xf]
    %v396 = vld [vmem:[%s17 + $0x170] sm:$0xf]
    %v397 = vld [vmem:[%s17 + $0x174] sm:$0xf]
    %v398 = vld [vmem:[%s17 + $0x178] sm:$0xf]
    %v399 = vld [vmem:[%s17 + $0x17c] sm:$0xf]
    %v400 = vld [vmem:[%s19] sm:$0x1]
    %v401 = vunpack.c.l.bf16 %v400
    %v402 = vlaneseq
    %v403 = vshrl.u32 %v402, 7
    %v404 = vsub.s32 0, %v403
    %v405 = vrot.slane %v401, %v404
    %v409 = vunpack.c.l.b16 %v301
    %v410 = vunpack.c.h.b16 %v301
    %v411 = vunpack.c.l.b16 %v302
    %v412 = vunpack.c.h.b16 %v302
    %v413 = vunpack.c.l.b16 %v303
    %v414 = vunpack.c.h.b16 %v303
    %v415 = vpack.c.b16 %v409, %v409
    %v416 = vpack.c.b16 %v410, %v410
    %v417 = vpack.c.b16 %v411, %v411
    %v418 = vpack.c.b16 %v412, %v412
    %v419 = vpack.c.b16 %v413, %v413
    %v420 = vpack.c.b16 %v414, %v414
    %v523 = vunpack.c.l.b16 %v304
    %v524 = vunpack.c.l.b16 %v305
    %v525 = vunpack.c.l.b16 %v306
    %v526 = vunpack.c.l.b16 %v307
    %v527 = vunpack.c.l.b16 %v308
    %v528 = vunpack.c.l.b16 %v309
    %v529 = vunpack.c.l.b16 %v310
    %v530 = vunpack.c.l.b16 %v311
    %v531 = vunpack.c.l.b16 %v312
    %v532 = vunpack.c.l.b16 %v313
    %v533 = vunpack.c.l.b16 %v314
    %v534 = vunpack.c.l.b16 %v315
    %v535 = vunpack.c.l.b16 %v316
    %v536 = vunpack.c.l.b16 %v317
    %v537 = vunpack.c.l.b16 %v318
    %v538 = vunpack.c.l.b16 %v319
    %v539 = vunpack.c.l.b16 %v320
    %v540 = vunpack.c.l.b16 %v321
    %v541 = vunpack.c.l.b16 %v322
    %v542 = vunpack.c.l.b16 %v323
    %v543 = vunpack.c.l.b16 %v324
    %v544 = vunpack.c.l.b16 %v325
    %v545 = vunpack.c.l.b16 %v326
    %v546 = vunpack.c.l.b16 %v327
    %v547 = vunpack.c.l.b16 %v328
    %v548 = vunpack.c.l.b16 %v329
    %v549 = vunpack.c.l.b16 %v330
    %v550 = vunpack.c.l.b16 %v331
    %v551 = vunpack.c.l.b16 %v332
    %v552 = vunpack.c.l.b16 %v333
    %v553 = vunpack.c.l.b16 %v334
    %v554 = vunpack.c.l.b16 %v335
    %v555 = vunpack.c.l.b16 %v336
    %v556 = vunpack.c.l.b16 %v337
    %v557 = vunpack.c.l.b16 %v338
    %v558 = vunpack.c.l.b16 %v339
    %v559 = vunpack.c.l.b16 %v340
    %v560 = vunpack.c.l.b16 %v341
    %v561 = vunpack.c.l.b16 %v342
    %v562 = vunpack.c.l.b16 %v343
    %v563 = vunpack.c.l.b16 %v344
    %v564 = vunpack.c.l.b16 %v345
    %v565 = vunpack.c.l.b16 %v346
    %v566 = vunpack.c.l.b16 %v347
    %v567 = vunpack.c.l.b16 %v348
    %v568 = vunpack.c.l.b16 %v349
    %v569 = vunpack.c.l.b16 %v350
    %v570 = vunpack.c.l.b16 %v351
    %v571 = vunpack.c.l.b16 %v352
    %v572 = vunpack.c.l.b16 %v353
    %v573 = vunpack.c.l.b16 %v354
    %v574 = vunpack.c.l.b16 %v355
    %v575 = vunpack.c.l.b16 %v356
    %v576 = vunpack.c.l.b16 %v357
    %v577 = vunpack.c.l.b16 %v358
    %v578 = vunpack.c.l.b16 %v359
    %v579 = vunpack.c.l.b16 %v360
    %v580 = vunpack.c.l.b16 %v361
    %v581 = vunpack.c.l.b16 %v362
    %v582 = vunpack.c.l.b16 %v363
    %v583 = vunpack.c.l.b16 %v364
    %v584 = vunpack.c.l.b16 %v365
    %v585 = vunpack.c.l.b16 %v366
    %v586 = vunpack.c.l.b16 %v367
    %v587 = vunpack.c.l.b16 %v368
    %v588 = vunpack.c.l.b16 %v369
    %v589 = vunpack.c.l.b16 %v370
    %v590 = vunpack.c.l.b16 %v371
    %v591 = vunpack.c.l.b16 %v372
    %v592 = vunpack.c.l.b16 %v373
    %v593 = vunpack.c.l.b16 %v374
    %v594 = vunpack.c.l.b16 %v375
    %v595 = vunpack.c.l.b16 %v376
    %v596 = vunpack.c.l.b16 %v377
    %v597 = vunpack.c.l.b16 %v378
    %v598 = vunpack.c.l.b16 %v379
    %v599 = vunpack.c.l.b16 %v380
    %v600 = vunpack.c.l.b16 %v381
    %v601 = vunpack.c.l.b16 %v382
    %v602 = vunpack.c.l.b16 %v383
    %v603 = vunpack.c.l.b16 %v384
    %v604 = vunpack.c.l.b16 %v385
    %v605 = vunpack.c.l.b16 %v386
    %v606 = vunpack.c.l.b16 %v387
    %v607 = vunpack.c.l.b16 %v388
    %v608 = vunpack.c.l.b16 %v389
    %v609 = vunpack.c.l.b16 %v390
    %v610 = vunpack.c.l.b16 %v391
    %v611 = vunpack.c.l.b16 %v392
    %v612 = vunpack.c.l.b16 %v393
    %v613 = vunpack.c.l.b16 %v394
    %v614 = vunpack.c.l.b16 %v395
    %v615 = vunpack.c.l.b16 %v396
    %v616 = vunpack.c.l.b16 %v397
    %v617 = vunpack.c.l.b16 %v398
    %v618 = vunpack.c.l.b16 %v399
    %v619 = vpack.c.b16 %v524, %v523
    %v620 = vpack.c.b16 %v526, %v525
    %v621 = vpack.c.b16 %v528, %v527
    %v622 = vpack.c.b16 %v530, %v529
    %v623 = vpack.c.b16 %v532, %v531
    %v624 = vpack.c.b16 %v534, %v533
    %v625 = vpack.c.b16 %v536, %v535
    %v626 = vpack.c.b16 %v538, %v537
    %v627 = vpack.c.b16 %v540, %v539
    %v628 = vpack.c.b16 %v542, %v541
    %v629 = vpack.c.b16 %v544, %v543
    %v630 = vpack.c.b16 %v546, %v545
    %v631 = vpack.c.b16 %v548, %v547
    %v632 = vpack.c.b16 %v550, %v549
    %v633 = vpack.c.b16 %v552, %v551
    %v634 = vpack.c.b16 %v554, %v553
    %v635 = vpack.c.b16 %v556, %v555
    %v636 = vpack.c.b16 %v558, %v557
    %v637 = vpack.c.b16 %v560, %v559
    %v638 = vpack.c.b16 %v562, %v561
    %v639 = vpack.c.b16 %v564, %v563
    %v640 = vpack.c.b16 %v566, %v565
    %v641 = vpack.c.b16 %v568, %v567
    %v642 = vpack.c.b16 %v570, %v569
    %v643 = vpack.c.b16 %v572, %v571
    %v644 = vpack.c.b16 %v574, %v573
    %v645 = vpack.c.b16 %v576, %v575
    %v646 = vpack.c.b16 %v578, %v577
    %v647 = vpack.c.b16 %v580, %v579
    %v648 = vpack.c.b16 %v582, %v581
    %v649 = vpack.c.b16 %v584, %v583
    %v650 = vpack.c.b16 %v586, %v585
    %v651 = vpack.c.b16 %v588, %v587
    %v652 = vpack.c.b16 %v590, %v589
    %v653 = vpack.c.b16 %v592, %v591
    %v654 = vpack.c.b16 %v594, %v593
    %v655 = vpack.c.b16 %v596, %v595
    %v656 = vpack.c.b16 %v598, %v597
    %v657 = vpack.c.b16 %v600, %v599
    %v658 = vpack.c.b16 %v602, %v601
    %v659 = vpack.c.b16 %v604, %v603
    %v660 = vpack.c.b16 %v606, %v605
    %v661 = vpack.c.b16 %v608, %v607
    %v662 = vpack.c.b16 %v610, %v609
    %v663 = vpack.c.b16 %v612, %v611
    %v664 = vpack.c.b16 %v614, %v613
    %v665 = vpack.c.b16 %v616, %v615
    %v666 = vpack.c.b16 %v618, %v617
    %715 = vmatprep.subr.bf16.mxu0 0
    %716 = vmatpush1.bf16.msra.mxu0 %v619
    %717 = vmatprep.subr.bf16.mxu0 0
    %718 = vmatpush1.bf16.msra.mxu0 %v620
    %719 = vmatprep.subr.bf16.mxu0 0
    %720 = vmatpush1.bf16.msra.mxu0 %v621
    %721 = vmatprep.subr.bf16.mxu0 0
    %722 = vmatpush1.bf16.msra.mxu0 %v622
    %723 = vmatprep.subr.bf16.mxu0 0
    %724 = vmatpush1.bf16.msra.mxu0 %v623
    %725 = vmatprep.subr.bf16.mxu0 0
    %726 = vmatpush1.bf16.msra.mxu0 %v624
    %727 = vmatprep.subr.bf16.mxu0 0
    %728 = vmatpush1.bf16.msra.mxu0 %v625
    %729 = vmatprep.subr.bf16.mxu0 0
    %730 = vmatpush1.bf16.msra.mxu0 %v626
    %731 = vmatprep.subr.bf16.mxu0 0
    %732 = vmatpush1.bf16.msra.mxu0 %v627
    %733 = vmatprep.subr.bf16.mxu0 0
    %734 = vmatpush1.bf16.msra.mxu0 %v628
    %735 = vmatprep.subr.bf16.mxu0 0
    %736 = vmatpush1.bf16.msra.mxu0 %v629
    %737 = vmatprep.subr.bf16.mxu0 0
    %738 = vmatpush1.bf16.msra.mxu0 %v630
    %739 = vmatprep.subr.bf16.mxu0 0
    %740 = vmatpush1.bf16.msra.mxu0 %v631
    %741 = vmatprep.subr.bf16.mxu0 0
    %742 = vmatpush1.bf16.msra.mxu0 %v632
    %743 = vmatprep.subr.bf16.mxu0 0
    %744 = vmatpush1.bf16.msra.mxu0 %v633
    %745 = vmatprep.subr.bf16.mxu0 0
    %746 = vmatpush1.bf16.msra.mxu0 %v634
    %747 = vmatprep.mubr.bf16.mxu0 %v416
    %748 = vmatmul.mubr.bf16.gmra.mrb[0].mxu0 %v415
    %v749 = vpop.f32.mrb[0].mxu0
    %v750 = vadd.f32 %v405, %v749
    %v751 = vpop.f32.mrb[0].mxu0
    %v752 = vpop.f32.mrb[0].mxu0
    %v753 = vpop.f32.mrb[0].mxu0
    %754 = vdwg.mxu0
    %755 = vmatprep.subr.bf16.mxu0 0
    %756 = vmatpush1.bf16.msra.mxu0 %v635
    %757 = vmatprep.subr.bf16.mxu0 0
    %758 = vmatpush1.bf16.msra.mxu0 %v636
    %759 = vmatprep.subr.bf16.mxu0 0
    %760 = vmatpush1.bf16.msra.mxu0 %v637
    %761 = vmatprep.subr.bf16.mxu0 0
    %762 = vmatpush1.bf16.msra.mxu0 %v638
    %763 = vmatprep.subr.bf16.mxu0 0
    %764 = vmatpush1.bf16.msra.mxu0 %v639
    %765 = vmatprep.subr.bf16.mxu0 0
    %766 = vmatpush1.bf16.msra.mxu0 %v640
    %767 = vmatprep.subr.bf16.mxu0 0
    %768 = vmatpush1.bf16.msra.mxu0 %v641
    %769 = vmatprep.subr.bf16.mxu0 0
    %770 = vmatpush1.bf16.msra.mxu0 %v642
    %771 = vmatprep.subr.bf16.mxu0 0
    %772 = vmatpush1.bf16.msra.mxu0 %v643
    %773 = vmatprep.subr.bf16.mxu0 0
    %774 = vmatpush1.bf16.msra.mxu0 %v644
    %775 = vmatprep.subr.bf16.mxu0 0
    %776 = vmatpush1.bf16.msra.mxu0 %v645
    %777 = vmatprep.subr.bf16.mxu0 0
    %778 = vmatpush1.bf16.msra.mxu0 %v646
    %779 = vmatprep.subr.bf16.mxu0 0
    %780 = vmatpush1.bf16.msra.mxu0 %v647
    %781 = vmatprep.subr.bf16.mxu0 0
    %782 = vmatpush1.bf16.msra.mxu0 %v648
    %783 = vmatprep.subr.bf16.mxu0 0
    %784 = vmatpush1.bf16.msra.mxu0 %v649
    %785 = vmatprep.subr.bf16.mxu0 0
    %786 = vmatpush1.bf16.msra.mxu0 %v650
    %787 = vmatprep.mubr.bf16.mxu0 %v418
    %788 = vmatmul.mubr.bf16.gmra.mrb[0].mxu0 %v417
    %v789 = vpop.f32.mrb[0].mxu0
    %v790 = vadd.f32 %v750, %v789
    %v791 = vpop.f32.mrb[0].mxu0
    %v792 = vpop.f32.mrb[0].mxu0
    %v793 = vpop.f32.mrb[0].mxu0
    %794 = vdwg.mxu0
    %795 = vmatprep.subr.bf16.mxu0 0
    %796 = vmatpush1.bf16.msra.mxu0 %v651
    %797 = vmatprep.subr.bf16.mxu0 0
    %798 = vmatpush1.bf16.msra.mxu0 %v652
    %799 = vmatprep.subr.bf16.mxu0 0
    %800 = vmatpush1.bf16.msra.mxu0 %v653
    %801 = vmatprep.subr.bf16.mxu0 0
    %802 = vmatpush1.bf16.msra.mxu0 %v654
    %803 = vmatprep.subr.bf16.mxu0 0
    %804 = vmatpush1.bf16.msra.mxu0 %v655
    %805 = vmatprep.subr.bf16.mxu0 0
    %806 = vmatpush1.bf16.msra.mxu0 %v656
    %807 = vmatprep.subr.bf16.mxu0 0
    %808 = vmatpush1.bf16.msra.mxu0 %v657
    %809 = vmatprep.subr.bf16.mxu0 0
    %810 = vmatpush1.bf16.msra.mxu0 %v658
    %811 = vmatprep.subr.bf16.mxu0 0
    %812 = vmatpush1.bf16.msra.mxu0 %v659
    %813 = vmatprep.subr.bf16.mxu0 0
    %814 = vmatpush1.bf16.msra.mxu0 %v660
    %815 = vmatprep.subr.bf16.mxu0 0
    %816 = vmatpush1.bf16.msra.mxu0 %v661
    %817 = vmatprep.subr.bf16.mxu0 0
    %818 = vmatpush1.bf16.msra.mxu0 %v662
    %819 = vmatprep.subr.bf16.mxu0 0
    %820 = vmatpush1.bf16.msra.mxu0 %v663
    %821 = vmatprep.subr.bf16.mxu0 0
    %822 = vmatpush1.bf16.msra.mxu0 %v664
    %823 = vmatprep.subr.bf16.mxu0 0
    %824 = vmatpush1.bf16.msra.mxu0 %v665
    %825 = vmatprep.subr.bf16.mxu0 0
    %826 = vmatpush1.bf16.msra.mxu0 %v666
    %827 = vmatprep.mubr.bf16.mxu0 %v420
    %828 = vmatmul.mubr.bf16.gmra.mrb[0].mxu0 %v419
    %v829 = vpop.f32.mrb[0].mxu0
    %v830 = vadd.f32 %v790, %v829
    %v831 = vpop.f32.mrb[0].mxu0
    %v832 = vpop.f32.mrb[0].mxu0
    %v833 = vpop.f32.mrb[0].mxu0
    %834 = vdwg.mxu0
    %v835 = vld [vmem:[%s21] sm:$0xf]
    %v836 = vld [vmem:[%s21 + $0x4] sm:$0xf]
    %v837 = vld [vmem:[%s21 + $0x8] sm:$0xf]
    %v838 = vld [vmem:[%s21 + $0xc] sm:$0xf]
    %v839 = vld [vmem:[%s21 + $0x10] sm:$0xf]
    %v840 = vld [vmem:[%s21 + $0x14] sm:$0xf]
    %v841 = vld [vmem:[%s21 + $0x18] sm:$0xf]
    %v842 = vld [vmem:[%s21 + $0x1c] sm:$0xf]
    %v843 = vpack.c.bf16 %v830, %v830
    %v844 = vld [vmem:[%s23] sm:$0x1]
    %v845 = vunpack.c.l.bf16 %v844
    %v846 = vlaneseq
    %v847 = vshrl.u32 %v846, 7
    %v848 = vsub.s32 0, %v847
    %v849 = vrot.slane %v845, %v848
    %v858 = vunpack.c.l.b16 %v835
    %v859 = vunpack.c.l.b16 %v836
    %v860 = vunpack.c.l.b16 %v837
    %v861 = vunpack.c.l.b16 %v838
    %v862 = vunpack.c.l.b16 %v839
    %v863 = vunpack.c.l.b16 %v840
    %v864 = vunpack.c.l.b16 %v841
    %v865 = vunpack.c.l.b16 %v842
    %v866 = vpack.c.b16 %v859, %v858
    %v867 = vpack.c.b16 %v861, %v860
    %v868 = vpack.c.b16 %v863, %v862
    %v869 = vpack.c.b16 %v865, %v864
    %vm874 = vcmask 523264
    %v876 = vsel %vm874, %v843, 0
    %878 = vmatprep.subr.bf16.mxu0 0
    %879 = vmatpush1.bf16.msra.mxu0 %v866
    %880 = vmatprep.subr.bf16.mxu0 0
    %881 = vmatpush1.bf16.msra.mxu0 %v867
    %882 = vmatprep.subr.bf16.mxu0 0
    %883 = vmatpush1.bf16.msra.mxu0 %v868
    %884 = vmatprep.subr.bf16.mxu0 0
    %885 = vmatpush1.bf16.msra.mxu0 %v869
    %886 = vmatprep.subr.bf16.mxu0 0
    %887 = vmatpush1.bf16.msra.mxu0 0
    %888 = vmatprep.subr.bf16.mxu0 0
    %889 = vmatpush1.bf16.msra.mxu0 0
    %890 = vmatprep.subr.bf16.mxu0 0
    %891 = vmatpush1.bf16.msra.mxu0 0
    %892 = vmatprep.subr.bf16.mxu0 0
    %893 = vmatpush1.bf16.msra.mxu0 0
    %894 = vmatprep.subr.bf16.mxu0 0
    %895 = vmatpush1.bf16.msra.mxu0 0
    %896 = vmatprep.subr.bf16.mxu0 0
    %897 = vmatpush1.bf16.msra.mxu0 0
    %898 = vmatprep.subr.bf16.mxu0 0
    %899 = vmatpush1.bf16.msra.mxu0 0
    %900 = vmatprep.subr.bf16.mxu0 0
    %901 = vmatpush1.bf16.msra.mxu0 0
    %902 = vmatprep.subr.bf16.mxu0 0
    %903 = vmatpush1.bf16.msra.mxu0 0
    %904 = vmatprep.subr.bf16.mxu0 0
    %905 = vmatpush1.bf16.msra.mxu0 0
    %906 = vmatprep.subr.bf16.mxu0 0
    %907 = vmatpush1.bf16.msra.mxu0 0
    %908 = vmatprep.subr.bf16.mxu0 0
    %909 = vmatpush1.bf16.msra.mxu0 0
    %910 = vmatprep.mubr.bf16.mxu0 0
    %911 = vmatmul.mubr.bf16.gmra.mrb[0].mxu0 %v876
    %v912 = vpop.f32.mrb[0].mxu0
    %v913 = vadd.f32 %v849, %v912
    %v914 = vpop.f32.mrb[0].mxu0
    %v915 = vpop.f32.mrb[0].mxu0
    %v916 = vpop.f32.mrb[0].mxu0
    %917 = vdwg.mxu0
    %v918 = vmax.f32 %v913, 0.0
    %v919 = vld [vmem:[%s3] sm:$0xf]
    %v920 = vld [vmem:[%s3 + $0x4] sm:$0xf]
    %v921 = vld [vmem:[%s3 + $0x8] sm:$0xf]
    %v922 = vld [vmem:[%s3 + $0xc] sm:$0xf]
    %v923 = vld [vmem:[%s3 + $0x10] sm:$0xf]
    %v924 = vld [vmem:[%s3 + $0x14] sm:$0xf]
    %v925 = vld [vmem:[%s3 + $0x18] sm:$0xf]
    %v926 = vld [vmem:[%s3 + $0x1c] sm:$0xf]
    %v927 = vld [vmem:[%s3 + $0x20] sm:$0xf]
    %v928 = vpack.c.bf16 %v918, %v918
    %v938 = vunpack.c.l.b16 %v919
    %v939 = vunpack.c.l.b16 %v920
    %v940 = vunpack.c.l.b16 %v921
    %v941 = vunpack.c.l.b16 %v922
    %v942 = vunpack.c.l.b16 %v923
    %v943 = vunpack.c.l.b16 %v924
    %v944 = vunpack.c.l.b16 %v925
    %v945 = vunpack.c.l.b16 %v926
    %v946 = vunpack.c.l.b16 %v927
    %v947 = vpack.c.b16 %v939, %v938
    %v948 = vpack.c.b16 %v941, %v940
    %v949 = vpack.c.b16 %v943, %v942
    %v950 = vpack.c.b16 %v945, %v944
    %v951 = vpack.c.b16 %v946, %v946
    %vm952 = vcmask 64512
    %v954 = vsel %vm952, %v947, 0
    %v957 = vsel %vm952, %v948, 0
    %v960 = vsel %vm952, %v949, 0
    %v963 = vsel %vm952, %v950, 0
    %v966 = vsel %vm952, %v951, 0
    %vm968 = vcmask 1043456
    %v970 = vsel %vm968, %v928, 0
    %972 = vmatprep.subr.bf16.mxu0 0
    %973 = vmatpush1.bf16.msra.mxu0 %v970
    %974 = vmatprep.subr.bf16.mxu0 0
    %975 = vmatpush1.bf16.msra.mxu0 0
    %976 = vmatprep.subr.bf16.mxu0 0
    %977 = vmatpush1.bf16.msra.mxu0 0
    %978 = vmatprep.subr.bf16.mxu0 0
    %979 = vmatpush1.bf16.msra.mxu0 0
    %980 = vmatprep.subr.bf16.mxu0 0
    %981 = vmatpush1.bf16.msra.mxu0 0
    %982 = vmatprep.subr.bf16.mxu0 0
    %983 = vmatpush1.bf16.msra.mxu0 0
    %984 = vmatprep.subr.bf16.mxu0 0
    %985 = vmatpush1.bf16.msra.mxu0 0
    %986 = vmatprep.subr.bf16.mxu0 0
    %987 = vmatpush1.bf16.msra.mxu0 0
    %988 = vmatprep.subr.bf16.mxu0 0
    %989 = vmatpush1.bf16.msra.mxu0 0
    %990 = vmatprep.subr.bf16.mxu0 0
    %991 = vmatpush1.bf16.msra.mxu0 0
    %992 = vmatprep.subr.bf16.mxu0 0
    %993 = vmatpush1.bf16.msra.mxu0 0
    %994 = vmatprep.subr.bf16.mxu0 0
    %995 = vmatpush1.bf16.msra.mxu0 0
    %996 = vmatprep.subr.bf16.mxu0 0
    %997 = vmatpush1.bf16.msra.mxu0 0
    %998 = vmatprep.subr.bf16.mxu0 0
    %999 = vmatpush1.bf16.msra.mxu0 0
    %1000 = vmatprep.subr.bf16.mxu0 0
    %1001 = vmatpush1.bf16.msra.mxu0 0
    %1002 = vmatprep.subr.bf16.mxu0 0
    %1003 = vmatpush1.bf16.msra.mxu0 0
    %1004 = vmatprep.mubr.bf16.mxu0 0
    %1005 = vmatmul.mubr.bf16.gmra.mrb[0].mxu0 %v954
    %v1006 = vpop.f32.mrb[0].mxu0
    %v1007 = vadd.f32 0.0, %v1006
    %v1008 = vpop.f32.mrb[0].mxu0
    %v1009 = vpop.f32.mrb[0].mxu0
    %v1010 = vadd.f32 0.0, %v1009
    %v1011 = vpop.f32.mrb[0].mxu0
    %1012 = vmatprep.mubr.bf16.mxu0 0
    %1013 = vmatmul.mubr.bf16.gmra.mrb[0].mxu0 %v957
    %v1014 = vpop.f32.mrb[0].mxu0
    %v1015 = vadd.f32 0.0, %v1014
    %v1016 = vpop.f32.mrb[0].mxu0
    %v1017 = vpop.f32.mrb[0].mxu0
    %v1018 = vadd.f32 0.0, %v1017
    %v1019 = vpop.f32.mrb[0].mxu0
    %1020 = vmatprep.mubr.bf16.mxu0 0
    %1021 = vmatmul.mubr.bf16.gmra.mrb[0].mxu0 %v960
    %v1022 = vpop.f32.mrb[0].mxu0
    %v1023 = vadd.f32 0.0, %v1022
    %v1024 = vpop.f32.mrb[0].mxu0
    %v1025 = vpop.f32.mrb[0].mxu0
    %v1026 = vadd.f32 0.0, %v1025
    %v1027 = vpop.f32.mrb[0].mxu0
    %1028 = vmatprep.mubr.bf16.mxu0 0
    %1029 = vmatmul.mubr.bf16.gmra.mrb[0].mxu0 %v963
    %v1030 = vpop.f32.mrb[0].mxu0
    %v1031 = vadd.f32 0.0, %v1030
    %v1032 = vpop.f32.mrb[0].mxu0
    %v1033 = vpop.f32.mrb[0].mxu0
    %v1034 = vadd.f32 0.0, %v1033
    %v1035 = vpop.f32.mrb[0].mxu0
    %1036 = vmatprep.mubr.bf16.mxu0 0
    %1037 = vmatmul.mubr.bf16.gmra.mrb[0].mxu0 %v966
    %v1038 = vpop.f32.mrb[0].mxu0
    %v1039 = vadd.f32 0.0, %v1038
    %v1040 = vpop.f32.mrb[0].mxu0
    %v1041 = vpop.f32.mrb[0].mxu0
    %v1042 = vpop.f32.mrb[0].mxu0
    %1043 = vdwg.mxu0
    %v1044 = vld [vmem:[%s25] sm:$0xf]
    %v1045 = vld [vmem:[%s25 + $0x4] sm:$0xf]
    %v1046 = vld [vmem:[%s25 + $0x8] sm:$0xf]
    %v1047 = vld [vmem:[%s25 + $0xc] sm:$0xf]
    %v1048 = vld [vmem:[%s25 + $0x10] sm:$0xf]
    %v1049 = vld [vmem:[%s25 + $0x14] sm:$0xf]
    %v1050 = vld [vmem:[%s25 + $0x18] sm:$0xf]
    %v1051 = vld [vmem:[%s25 + $0x1c] sm:$0xf]
    %v1052 = vpack.c.bf16 %v1007, %v1007
    %v1053 = vld [vmem:[%s25 + $0x20] sm:$0xf]
    %v1054 = vld [vmem:[%s25 + $0x24] sm:$0xf]
    %v1055 = vld [vmem:[%s25 + $0x28] sm:$0xf]
    %v1056 = vld [vmem:[%s25 + $0x2c] sm:$0xf]
    %v1057 = vld [vmem:[%s25 + $0x30] sm:$0xf]
    %v1058 = vld [vmem:[%s25 + $0x34] sm:$0xf]
    %v1059 = vld [vmem:[%s25 + $0x38] sm:$0xf]
    %v1060 = vld [vmem:[%s25 + $0x3c] sm:$0xf]
    %v1061 = vpack.c.bf16 %v1010, %v1010
    %v1070 = vunpack.c.l.b16 %v1053
    %v1071 = vunpack.c.l.b16 %v1054
    %v1072 = vunpack.c.l.b16 %v1055
    %v1073 = vunpack.c.l.b16 %v1056
    %v1074 = vunpack.c.l.b16 %v1057
    %v1075 = vunpack.c.l.b16 %v1058
    %v1076 = vunpack.c.l.b16 %v1059
    %v1077 = vunpack.c.l.b16 %v1060
    %v1078 = vpack.c.b16 %v1071, %v1070
    %v1079 = vpack.c.b16 %v1073, %v1072
    %v1080 = vpack.c.b16 %v1075, %v1074
    %v1081 = vpack.c.b16 %v1077, %v1076
    %v1087 = vsel %vm874, %v1061, 0
    %1089 = vmatprep.subr.bf16.mxu0 0
    %1090 = vmatpush1.bf16.msra.mxu0 %v1078
    %1091 = vmatprep.subr.bf16.mxu0 0
    %1092 = vmatpush1.bf16.msra.mxu0 %v1079
    %1093 = vmatprep.subr.bf16.mxu0 0
    %1094 = vmatpush1.bf16.msra.mxu0 %v1080
    %1095 = vmatprep.subr.bf16.mxu0 0
    %1096 = vmatpush1.bf16.msra.mxu0 %v1081
    %1097 = vmatprep.subr.bf16.mxu0 0
    %1098 = vmatpush1.bf16.msra.mxu0 0
    %1099 = vmatprep.subr.bf16.mxu0 0
    %1100 = vmatpush1.bf16.msra.mxu0 0
    %1101 = vmatprep.subr.bf16.mxu0 0
    %1102 = vmatpush1.bf16.msra.mxu0 0
    %1103 = vmatprep.subr.bf16.mxu0 0
    %1104 = vmatpush1.bf16.msra.mxu0 0
    %1105 = vmatprep.subr.bf16.mxu0 0
    %1106 = vmatpush1.bf16.msra.mxu0 0
    %1107 = vmatprep.subr.bf16.mxu0 0
    %1108 = vmatpush1.bf16.msra.mxu0 0
    %1109 = vmatprep.subr.bf16.mxu0 0
    %1110 = vmatpush1.bf16.msra.mxu0 0
    %1111 = vmatprep.subr.bf16.mxu0 0
    %1112 = vmatpush1.bf16.msra.mxu0 0
    %1113 = vmatprep.subr.bf16.mxu0 0
    %1114 = vmatpush1.bf16.msra.mxu0 0
    %1115 = vmatprep.subr.bf16.mxu0 0
    %1116 = vmatpush1.bf16.msra.mxu0 0
    %1117 = vmatprep.subr.bf16.mxu0 0
    %1118 = vmatpush1.bf16.msra.mxu0 0
    %1119 = vmatprep.subr.bf16.mxu0 0
    %1120 = vmatpush1.bf16.msra.mxu0 0
    %1121 = vmatprep.mubr.bf16.mxu0 0
    %1122 = vmatmul.mubr.bf16.gmra.mrb[0].mxu0 %v1087
    %v1123 = vpop.f32.mrb[0].mxu0
    %v1124 = vadd.f32 0.0, %v1123
    %v1125 = vpop.f32.mrb[0].mxu0
    %v1126 = vpop.f32.mrb[0].mxu0
    %v1127 = vpop.f32.mrb[0].mxu0
    %1128 = vdwg.mxu0
    %v1137 = vunpack.c.l.b16 %v1044
    %v1138 = vunpack.c.l.b16 %v1045
    %v1139 = vunpack.c.l.b16 %v1046
    %v1140 = vunpack.c.l.b16 %v1047
    %v1141 = vunpack.c.l.b16 %v1048
    %v1142 = vunpack.c.l.b16 %v1049
    %v1143 = vunpack.c.l.b16 %v1050
    %v1144 = vunpack.c.l.b16 %v1051
    %v1145 = vpack.c.b16 %v1138, %v1137
    %v1146 = vpack.c.b16 %v1140, %v1139
    %v1147 = vpack.c.b16 %v1142, %v1141
    %v1148 = vpack.c.b16 %v1144, %v1143
    %v1154 = vsel %vm874, %v1052, 0
    %1156 = vmatprep.subr.bf16.mxu0 0
    %1157 = vmatpush1.bf16.msra.mxu0 %v1145
    %1158 = vmatprep.subr.bf16.mxu0 0
    %1159 = vmatpush1.bf16.msra.mxu0 %v1146
    %1160 = vmatprep.subr.bf16.mxu0 0
    %1161 = vmatpush1.bf16.msra.mxu0 %v1147
    %1162 = vmatprep.subr.bf16.mxu0 0
    %1163 = vmatpush1.bf16.msra.mxu0 %v1148
    %1164 = vmatprep.subr.bf16.mxu0 0
    %1165 = vmatpush1.bf16.msra.mxu0 0
    %1166 = vmatprep.subr.bf16.mxu0 0
    %1167 = vmatpush1.bf16.msra.mxu0 0
    %1168 = vmatprep.subr.bf16.mxu0 0
    %1169 = vmatpush1.bf16.msra.mxu0 0
    %1170 = vmatprep.subr.bf16.mxu0 0
    %1171 = vmatpush1.bf16.msra.mxu0 0
    %1172 = vmatprep.subr.bf16.mxu0 0
    %1173 = vmatpush1.bf16.msra.mxu0 0
    %1174 = vmatprep.subr.bf16.mxu0 0
    %1175 = vmatpush1.bf16.msra.mxu0 0
    %1176 = vmatprep.subr.bf16.mxu0 0
    %1177 = vmatpush1.bf16.msra.mxu0 0
    %1178 = vmatprep.subr.bf16.mxu0 0
    %1179 = vmatpush1.bf16.msra.mxu0 0
    %1180 = vmatprep.subr.bf16.mxu0 0
    %1181 = vmatpush1.bf16.msra.mxu0 0
    %1182 = vmatprep.subr.bf16.mxu0 0
    %1183 = vmatpush1.bf16.msra.mxu0 0
    %1184 = vmatprep.subr.bf16.mxu0 0
    %1185 = vmatpush1.bf16.msra.mxu0 0
    %1186 = vmatprep.subr.bf16.mxu0 0
    %1187 = vmatpush1.bf16.msra.mxu0 0
    %1188 = vmatprep.mubr.bf16.mxu0 0
    %1189 = vmatmul.mubr.bf16.gmra.mrb[0].mxu0 %v1154
    %v1190 = vpop.f32.mrb[0].mxu0
    %v1191 = vadd.f32 %v1124, %v1190
    %v1192 = vpop.f32.mrb[0].mxu0
    %v1193 = vpop.f32.mrb[0].mxu0
    %v1194 = vpop.f32.mrb[0].mxu0
    %1195 = vdwg.mxu0
    %v1196 = vld [vmem:[%s25 + $0x40] sm:$0xf]
    %v1197 = vld [vmem:[%s25 + $0x44] sm:$0xf]
    %v1198 = vld [vmem:[%s25 + $0x48] sm:$0xf]
    %v1199 = vld [vmem:[%s25 + $0x4c] sm:$0xf]
    %v1200 = vld [vmem:[%s25 + $0x50] sm:$0xf]
    %v1201 = vld [vmem:[%s25 + $0x54] sm:$0xf]
    %v1202 = vld [vmem:[%s25 + $0x58] sm:$0xf]
    %v1203 = vld [vmem:[%s25 + $0x5c] sm:$0xf]
    %v1204 = vpack.c.bf16 %v1015, %v1015
    %v1213 = vunpack.c.l.b16 %v1196
    %v1214 = vunpack.c.l.b16 %v1197
    %v1215 = vunpack.c.l.b16 %v1198
    %v1216 = vunpack.c.l.b16 %v1199
    %v1217 = vunpack.c.l.b16 %v1200
    %v1218 = vunpack.c.l.b16 %v1201
    %v1219 = vunpack.c.l.b16 %v1202
    %v1220 = vunpack.c.l.b16 %v1203
    %v1221 = vpack.c.b16 %v1214, %v1213
    %v1222 = vpack.c.b16 %v1216, %v1215
    %v1223 = vpack.c.b16 %v1218, %v1217
    %v1224 = vpack.c.b16 %v1220, %v1219
    %v1230 = vsel %vm874, %v1204, 0
    %1232 = vmatprep.subr.bf16.mxu0 0
    %1233 = vmatpush1.bf16.msra.mxu0 %v1221
    %1234 = vmatprep.subr.bf16.mxu0 0
    %1235 = vmatpush1.bf16.msra.mxu0 %v1222
    %1236 = vmatprep.subr.bf16.mxu0 0
    %1237 = vmatpush1.bf16.msra.mxu0 %v1223
    %1238 = vmatprep.subr.bf16.mxu0 0
    %1239 = vmatpush1.bf16.msra.mxu0 %v1224
    %1240 = vmatprep.subr.bf16.mxu0 0
    %1241 = vmatpush1.bf16.msra.mxu0 0
    %1242 = vmatprep.subr.bf16.mxu0 0
    %1243 = vmatpush1.bf16.msra.mxu0 0
    %1244 = vmatprep.subr.bf16.mxu0 0
    %1245 = vmatpush1.bf16.msra.mxu0 0
    %1246 = vmatprep.subr.bf16.mxu0 0
    %1247 = vmatpush1.bf16.msra.mxu0 0
    %1248 = vmatprep.subr.bf16.mxu0 0
    %1249 = vmatpush1.bf16.msra.mxu0 0
    %1250 = vmatprep.subr.bf16.mxu0 0
    %1251 = vmatpush1.bf16.msra.mxu0 0
    %1252 = vmatprep.subr.bf16.mxu0 0
    %1253 = vmatpush1.bf16.msra.mxu0 0
    %1254 = vmatprep.subr.bf16.mxu0 0
    %1255 = vmatpush1.bf16.msra.mxu0 0
    %1256 = vmatprep.subr.bf16.mxu0 0
    %1257 = vmatpush1.bf16.msra.mxu0 0
    %1258 = vmatprep.subr.bf16.mxu0 0
    %1259 = vmatpush1.bf16.msra.mxu0 0
    %1260 = vmatprep.subr.bf16.mxu0 0
    %1261 = vmatpush1.bf16.msra.mxu0 0
    %1262 = vmatprep.subr.bf16.mxu0 0
    %1263 = vmatpush1.bf16.msra.mxu0 0
    %1264 = vmatprep.mubr.bf16.mxu0 0
    %1265 = vmatmul.mubr.bf16.gmra.mrb[0].mxu0 %v1230
    %v1266 = vpop.f32.mrb[0].mxu0
    %v1267 = vadd.f32 0.0, %v1266
    %v1268 = vpop.f32.mrb[0].mxu0
    %v1269 = vpop.f32.mrb[0].mxu0
    %v1270 = vpop.f32.mrb[0].mxu0
    %1271 = vdwg.mxu0
    %v1272 = vadd.f32 %v1191, %v1267
    %v1273 = vld [vmem:[%s25 + $0x60] sm:$0xf]
    %v1274 = vld [vmem:[%s25 + $0x64] sm:$0xf]
    %v1275 = vld [vmem:[%s25 + $0x68] sm:$0xf]
    %v1276 = vld [vmem:[%s25 + $0x6c] sm:$0xf]
    %v1277 = vld [vmem:[%s25 + $0x70] sm:$0xf]
    %v1278 = vld [vmem:[%s25 + $0x74] sm:$0xf]
    %v1279 = vld [vmem:[%s25 + $0x78] sm:$0xf]
    %v1280 = vld [vmem:[%s25 + $0x7c] sm:$0xf]
    %v1281 = vpack.c.bf16 %v1018, %v1018
    %v1290 = vunpack.c.l.b16 %v1273
    %v1291 = vunpack.c.l.b16 %v1274
    %v1292 = vunpack.c.l.b16 %v1275
    %v1293 = vunpack.c.l.b16 %v1276
    %v1294 = vunpack.c.l.b16 %v1277
    %v1295 = vunpack.c.l.b16 %v1278
    %v1296 = vunpack.c.l.b16 %v1279
    %v1297 = vunpack.c.l.b16 %v1280
    %v1298 = vpack.c.b16 %v1291, %v1290
    %v1299 = vpack.c.b16 %v1293, %v1292
    %v1300 = vpack.c.b16 %v1295, %v1294
    %v1301 = vpack.c.b16 %v1297, %v1296
    %v1307 = vsel %vm874, %v1281, 0
    %1309 = vmatprep.subr.bf16.mxu0 0
    %1310 = vmatpush1.bf16.msra.mxu0 %v1298
    %1311 = vmatprep.subr.bf16.mxu0 0
    %1312 = vmatpush1.bf16.msra.mxu0 %v1299
    %1313 = vmatprep.subr.bf16.mxu0 0
    %1314 = vmatpush1.bf16.msra.mxu0 %v1300
    %1315 = vmatprep.subr.bf16.mxu0 0
    %1316 = vmatpush1.bf16.msra.mxu0 %v1301
    %1317 = vmatprep.subr.bf16.mxu0 0
    %1318 = vmatpush1.bf16.msra.mxu0 0
    %1319 = vmatprep.subr.bf16.mxu0 0
    %1320 = vmatpush1.bf16.msra.mxu0 0
    %1321 = vmatprep.subr.bf16.mxu0 0
    %1322 = vmatpush1.bf16.msra.mxu0 0
    %1323 = vmatprep.subr.bf16.mxu0 0
    %1324 = vmatpush1.bf16.msra.mxu0 0
    %1325 = vmatprep.subr.bf16.mxu0 0
    %1326 = vmatpush1.bf16.msra.mxu0 0
    %1327 = vmatprep.subr.bf16.mxu0 0
    %1328 = vmatpush1.bf16.msra.mxu0 0
    %1329 = vmatprep.subr.bf16.mxu0 0
    %1330 = vmatpush1.bf16.msra.mxu0 0
    %1331 = vmatprep.subr.bf16.mxu0 0
    %1332 = vmatpush1.bf16.msra.mxu0 0
    %1333 = vmatprep.subr.bf16.mxu0 0
    %1334 = vmatpush1.bf16.msra.mxu0 0
    %1335 = vmatprep.subr.bf16.mxu0 0
    %1336 = vmatpush1.bf16.msra.mxu0 0
    %1337 = vmatprep.subr.bf16.mxu0 0
    %1338 = vmatpush1.bf16.msra.mxu0 0
    %1339 = vmatprep.subr.bf16.mxu0 0
    %1340 = vmatpush1.bf16.msra.mxu0 0
    %1341 = vmatprep.mubr.bf16.mxu0 0
    %1342 = vmatmul.mubr.bf16.gmra.mrb[0].mxu0 %v1307
    %v1343 = vpop.f32.mrb[0].mxu0
    %v1344 = vadd.f32 0.0, %v1343
    %v1345 = vpop.f32.mrb[0].mxu0
    %v1346 = vpop.f32.mrb[0].mxu0
    %v1347 = vpop.f32.mrb[0].mxu0
    %1348 = vdwg.mxu0
    %v1349 = vadd.f32 %v1272, %v1344
    %v1350 = vld [vmem:[%s25 + $0x80] sm:$0xf]
    %v1351 = vld [vmem:[%s25 + $0x84] sm:$0xf]
    %v1352 = vld [vmem:[%s25 + $0x88] sm:$0xf]
    %v1353 = vld [vmem:[%s25 + $0x8c] sm:$0xf]
    %v1354 = vld [vmem:[%s25 + $0x90] sm:$0xf]
    %v1355 = vld [vmem:[%s25 + $0x94] sm:$0xf]
    %v1356 = vld [vmem:[%s25 + $0x98] sm:$0xf]
    %v1357 = vld [vmem:[%s25 + $0x9c] sm:$0xf]
    %v1358 = vpack.c.bf16 %v1023, %v1023
    %v1367 = vunpack.c.l.b16 %v1350
    %v1368 = vunpack.c.l.b16 %v1351
    %v1369 = vunpack.c.l.b16 %v1352
    %v1370 = vunpack.c.l.b16 %v1353
    %v1371 = vunpack.c.l.b16 %v1354
    %v1372 = vunpack.c.l.b16 %v1355
    %v1373 = vunpack.c.l.b16 %v1356
    %v1374 = vunpack.c.l.b16 %v1357
    %v1375 = vpack.c.b16 %v1368, %v1367
    %v1376 = vpack.c.b16 %v1370, %v1369
    %v1377 = vpack.c.b16 %v1372, %v1371
    %v1378 = vpack.c.b16 %v1374, %v1373
    %v1384 = vsel %vm874, %v1358, 0
    %1386 = vmatprep.subr.bf16.mxu0 0
    %1387 = vmatpush1.bf16.msra.mxu0 %v1375
    %1388 = vmatprep.subr.bf16.mxu0 0
    %1389 = vmatpush1.bf16.msra.mxu0 %v1376
    %1390 = vmatprep.subr.bf16.mxu0 0
    %1391 = vmatpush1.bf16.msra.mxu0 %v1377
    %1392 = vmatprep.subr.bf16.mxu0 0
    %1393 = vmatpush1.bf16.msra.mxu0 %v1378
    %1394 = vmatprep.subr.bf16.mxu0 0
    %1395 = vmatpush1.bf16.msra.mxu0 0
    %1396 = vmatprep.subr.bf16.mxu0 0
    %1397 = vmatpush1.bf16.msra.mxu0 0
    %1398 = vmatprep.subr.bf16.mxu0 0
    %1399 = vmatpush1.bf16.msra.mxu0 0
    %1400 = vmatprep.subr.bf16.mxu0 0
    %1401 = vmatpush1.bf16.msra.mxu0 0
    %1402 = vmatprep.subr.bf16.mxu0 0
    %1403 = vmatpush1.bf16.msra.mxu0 0
    %1404 = vmatprep.subr.bf16.mxu0 0
    %1405 = vmatpush1.bf16.msra.mxu0 0
    %1406 = vmatprep.subr.bf16.mxu0 0
    %1407 = vmatpush1.bf16.msra.mxu0 0
    %1408 = vmatprep.subr.bf16.mxu0 0
    %1409 = vmatpush1.bf16.msra.mxu0 0
    %1410 = vmatprep.subr.bf16.mxu0 0
    %1411 = vmatpush1.bf16.msra.mxu0 0
    %1412 = vmatprep.subr.bf16.mxu0 0
    %1413 = vmatpush1.bf16.msra.mxu0 0
    %1414 = vmatprep.subr.bf16.mxu0 0
    %1415 = vmatpush1.bf16.msra.mxu0 0
    %1416 = vmatprep.subr.bf16.mxu0 0
    %1417 = vmatpush1.bf16.msra.mxu0 0
    %1418 = vmatprep.mubr.bf16.mxu0 0
    %1419 = vmatmul.mubr.bf16.gmra.mrb[0].mxu0 %v1384
    %v1420 = vpop.f32.mrb[0].mxu0
    %v1421 = vadd.f32 0.0, %v1420
    %v1422 = vpop.f32.mrb[0].mxu0
    %v1423 = vpop.f32.mrb[0].mxu0
    %v1424 = vpop.f32.mrb[0].mxu0
    %1425 = vdwg.mxu0
    %v1426 = vadd.f32 %v1349, %v1421
    %v1427 = vld [vmem:[%s25 + $0xa0] sm:$0xf]
    %v1428 = vld [vmem:[%s25 + $0xa4] sm:$0xf]
    %v1429 = vld [vmem:[%s25 + $0xa8] sm:$0xf]
    %v1430 = vld [vmem:[%s25 + $0xac] sm:$0xf]
    %v1431 = vld [vmem:[%s25 + $0xb0] sm:$0xf]
    %v1432 = vld [vmem:[%s25 + $0xb4] sm:$0xf]
    %v1433 = vld [vmem:[%s25 + $0xb8] sm:$0xf]
    %v1434 = vld [vmem:[%s25 + $0xbc] sm:$0xf]
    %v1435 = vpack.c.bf16 %v1026, %v1026
    %v1444 = vunpack.c.l.b16 %v1427
    %v1445 = vunpack.c.l.b16 %v1428
    %v1446 = vunpack.c.l.b16 %v1429
    %v1447 = vunpack.c.l.b16 %v1430
    %v1448 = vunpack.c.l.b16 %v1431
    %v1449 = vunpack.c.l.b16 %v1432
    %v1450 = vunpack.c.l.b16 %v1433
    %v1451 = vunpack.c.l.b16 %v1434
    %v1452 = vpack.c.b16 %v1445, %v1444
    %v1453 = vpack.c.b16 %v1447, %v1446
    %v1454 = vpack.c.b16 %v1449, %v1448
    %v1455 = vpack.c.b16 %v1451, %v1450
    %v1461 = vsel %vm874, %v1435, 0
    %1463 = vmatprep.subr.bf16.mxu0 0
    %1464 = vmatpush1.bf16.msra.mxu0 %v1452
    %1465 = vmatprep.subr.bf16.mxu0 0
    %1466 = vmatpush1.bf16.msra.mxu0 %v1453
    %1467 = vmatprep.subr.bf16.mxu0 0
    %1468 = vmatpush1.bf16.msra.mxu0 %v1454
    %1469 = vmatprep.subr.bf16.mxu0 0
    %1470 = vmatpush1.bf16.msra.mxu0 %v1455
    %1471 = vmatprep.subr.bf16.mxu0 0
    %1472 = vmatpush1.bf16.msra.mxu0 0
    %1473 = vmatprep.subr.bf16.mxu0 0
    %1474 = vmatpush1.bf16.msra.mxu0 0
    %1475 = vmatprep.subr.bf16.mxu0 0
    %1476 = vmatpush1.bf16.msra.mxu0 0
    %1477 = vmatprep.subr.bf16.mxu0 0
    %1478 = vmatpush1.bf16.msra.mxu0 0
    %1479 = vmatprep.subr.bf16.mxu0 0
    %1480 = vmatpush1.bf16.msra.mxu0 0
    %1481 = vmatprep.subr.bf16.mxu0 0
    %1482 = vmatpush1.bf16.msra.mxu0 0
    %1483 = vmatprep.subr.bf16.mxu0 0
    %1484 = vmatpush1.bf16.msra.mxu0 0
    %1485 = vmatprep.subr.bf16.mxu0 0
    %1486 = vmatpush1.bf16.msra.mxu0 0
    %1487 = vmatprep.subr.bf16.mxu0 0
    %1488 = vmatpush1.bf16.msra.mxu0 0
    %1489 = vmatprep.subr.bf16.mxu0 0
    %1490 = vmatpush1.bf16.msra.mxu0 0
    %1491 = vmatprep.subr.bf16.mxu0 0
    %1492 = vmatpush1.bf16.msra.mxu0 0
    %1493 = vmatprep.subr.bf16.mxu0 0
    %1494 = vmatpush1.bf16.msra.mxu0 0
    %1495 = vmatprep.mubr.bf16.mxu0 0
    %1496 = vmatmul.mubr.bf16.gmra.mrb[0].mxu0 %v1461
    %v1497 = vpop.f32.mrb[0].mxu0
    %v1498 = vadd.f32 0.0, %v1497
    %v1499 = vpop.f32.mrb[0].mxu0
    %v1500 = vpop.f32.mrb[0].mxu0
    %v1501 = vpop.f32.mrb[0].mxu0
    %1502 = vdwg.mxu0
    %v1503 = vadd.f32 %v1426, %v1498
    %v1504 = vld [vmem:[%s25 + $0xc0] sm:$0xf]
    %v1505 = vld [vmem:[%s25 + $0xc4] sm:$0xf]
    %v1506 = vld [vmem:[%s25 + $0xc8] sm:$0xf]
    %v1507 = vld [vmem:[%s25 + $0xcc] sm:$0xf]
    %v1508 = vld [vmem:[%s25 + $0xd0] sm:$0xf]
    %v1509 = vld [vmem:[%s25 + $0xd4] sm:$0xf]
    %v1510 = vld [vmem:[%s25 + $0xd8] sm:$0xf]
    %v1511 = vld [vmem:[%s25 + $0xdc] sm:$0xf]
    %v1512 = vpack.c.bf16 %v1031, %v1031
    %v1521 = vunpack.c.l.b16 %v1504
    %v1522 = vunpack.c.l.b16 %v1505
    %v1523 = vunpack.c.l.b16 %v1506
    %v1524 = vunpack.c.l.b16 %v1507
    %v1525 = vunpack.c.l.b16 %v1508
    %v1526 = vunpack.c.l.b16 %v1509
    %v1527 = vunpack.c.l.b16 %v1510
    %v1528 = vunpack.c.l.b16 %v1511
    %v1529 = vpack.c.b16 %v1522, %v1521
    %v1530 = vpack.c.b16 %v1524, %v1523
    %v1531 = vpack.c.b16 %v1526, %v1525
    %v1532 = vpack.c.b16 %v1528, %v1527
    %v1538 = vsel %vm874, %v1512, 0
    %1540 = vmatprep.subr.bf16.mxu0 0
    %1541 = vmatpush1.bf16.msra.mxu0 %v1529
    %1542 = vmatprep.subr.bf16.mxu0 0
    %1543 = vmatpush1.bf16.msra.mxu0 %v1530
    %1544 = vmatprep.subr.bf16.mxu0 0
    %1545 = vmatpush1.bf16.msra.mxu0 %v1531
    %1546 = vmatprep.subr.bf16.mxu0 0
    %1547 = vmatpush1.bf16.msra.mxu0 %v1532
    %1548 = vmatprep.subr.bf16.mxu0 0
    %1549 = vmatpush1.bf16.msra.mxu0 0
    %1550 = vmatprep.subr.bf16.mxu0 0
    %1551 = vmatpush1.bf16.msra.mxu0 0
    %1552 = vmatprep.subr.bf16.mxu0 0
    %1553 = vmatpush1.bf16.msra.mxu0 0
    %1554 = vmatprep.subr.bf16.mxu0 0
    %1555 = vmatpush1.bf16.msra.mxu0 0
    %1556 = vmatprep.subr.bf16.mxu0 0
    %1557 = vmatpush1.bf16.msra.mxu0 0
    %1558 = vmatprep.subr.bf16.mxu0 0
    %1559 = vmatpush1.bf16.msra.mxu0 0
    %1560 = vmatprep.subr.bf16.mxu0 0
    %1561 = vmatpush1.bf16.msra.mxu0 0
    %1562 = vmatprep.subr.bf16.mxu0 0
    %1563 = vmatpush1.bf16.msra.mxu0 0
    %1564 = vmatprep.subr.bf16.mxu0 0
    %1565 = vmatpush1.bf16.msra.mxu0 0
    %1566 = vmatprep.subr.bf16.mxu0 0
    %1567 = vmatpush1.bf16.msra.mxu0 0
    %1568 = vmatprep.subr.bf16.mxu0 0
    %1569 = vmatpush1.bf16.msra.mxu0 0
    %1570 = vmatprep.subr.bf16.mxu0 0
    %1571 = vmatpush1.bf16.msra.mxu0 0
    %1572 = vmatprep.mubr.bf16.mxu0 0
    %1573 = vmatmul.mubr.bf16.gmra.mrb[0].mxu0 %v1538
    %v1574 = vpop.f32.mrb[0].mxu0
    %v1575 = vadd.f32 0.0, %v1574
    %v1576 = vpop.f32.mrb[0].mxu0
    %v1577 = vpop.f32.mrb[0].mxu0
    %v1578 = vpop.f32.mrb[0].mxu0
    %1579 = vdwg.mxu0
    %v1580 = vadd.f32 %v1503, %v1575
    %v1581 = vld [vmem:[%s25 + $0xe0] sm:$0xf]
    %v1582 = vld [vmem:[%s25 + $0xe4] sm:$0xf]
    %v1583 = vld [vmem:[%s25 + $0xe8] sm:$0xf]
    %v1584 = vld [vmem:[%s25 + $0xec] sm:$0xf]
    %v1585 = vld [vmem:[%s25 + $0xf0] sm:$0xf]
    %v1586 = vld [vmem:[%s25 + $0xf4] sm:$0xf]
    %v1587 = vld [vmem:[%s25 + $0xf8] sm:$0xf]
    %v1588 = vld [vmem:[%s25 + $0xfc] sm:$0xf]
    %v1589 = vpack.c.bf16 %v1034, %v1034
    %v1598 = vunpack.c.l.b16 %v1581
    %v1599 = vunpack.c.l.b16 %v1582
    %v1600 = vunpack.c.l.b16 %v1583
    %v1601 = vunpack.c.l.b16 %v1584
    %v1602 = vunpack.c.l.b16 %v1585
    %v1603 = vunpack.c.l.b16 %v1586
    %v1604 = vunpack.c.l.b16 %v1587
    %v1605 = vunpack.c.l.b16 %v1588
    %v1606 = vpack.c.b16 %v1599, %v1598
    %v1607 = vpack.c.b16 %v1601, %v1600
    %v1608 = vpack.c.b16 %v1603, %v1602
    %v1609 = vpack.c.b16 %v1605, %v1604
    %v1615 = vsel %vm874, %v1589, 0
    %1617 = vmatprep.subr.bf16.mxu0 0
    %1618 = vmatpush1.bf16.msra.mxu0 %v1606
    %1619 = vmatprep.subr.bf16.mxu0 0
    %1620 = vmatpush1.bf16.msra.mxu0 %v1607
    %1621 = vmatprep.subr.bf16.mxu0 0
    %1622 = vmatpush1.bf16.msra.mxu0 %v1608
    %1623 = vmatprep.subr.bf16.mxu0 0
    %1624 = vmatpush1.bf16.msra.mxu0 %v1609
    %1625 = vmatprep.subr.bf16.mxu0 0
    %1626 = vmatpush1.bf16.msra.mxu0 0
    %1627 = vmatprep.subr.bf16.mxu0 0
    %1628 = vmatpush1.bf16.msra.mxu0 0
    %1629 = vmatprep.subr.bf16.mxu0 0
    %1630 = vmatpush1.bf16.msra.mxu0 0
    %1631 = vmatprep.subr.bf16.mxu0 0
    %1632 = vmatpush1.bf16.msra.mxu0 0
    %1633 = vmatprep.subr.bf16.mxu0 0
    %1634 = vmatpush1.bf16.msra.mxu0 0
    %1635 = vmatprep.subr.bf16.mxu0 0
    %1636 = vmatpush1.bf16.msra.mxu0 0
    %1637 = vmatprep.subr.bf16.mxu0 0
    %1638 = vmatpush1.bf16.msra.mxu0 0
    %1639 = vmatprep.subr.bf16.mxu0 0
    %1640 = vmatpush1.bf16.msra.mxu0 0
    %1641 = vmatprep.subr.bf16.mxu0 0
    %1642 = vmatpush1.bf16.msra.mxu0 0
    %1643 = vmatprep.subr.bf16.mxu0 0
    %1644 = vmatpush1.bf16.msra.mxu0 0
    %1645 = vmatprep.subr.bf16.mxu0 0
    %1646 = vmatpush1.bf16.msra.mxu0 0
    %1647 = vmatprep.subr.bf16.mxu0 0
    %1648 = vmatpush1.bf16.msra.mxu0 0
    %1649 = vmatprep.mubr.bf16.mxu0 0
    %1650 = vmatmul.mubr.bf16.gmra.mrb[0].mxu0 %v1615
    %v1651 = vpop.f32.mrb[0].mxu0
    %v1652 = vadd.f32 0.0, %v1651
    %v1653 = vpop.f32.mrb[0].mxu0
    %v1654 = vpop.f32.mrb[0].mxu0
    %v1655 = vpop.f32.mrb[0].mxu0
    %1656 = vdwg.mxu0
    %v1657 = vadd.f32 %v1580, %v1652
    %v1658 = vld [vmem:[%s25 + $0x100] sm:$0xf]
    %v1659 = vld [vmem:[%s25 + $0x104] sm:$0xf]
    %v1660 = vld [vmem:[%s25 + $0x108] sm:$0xf]
    %v1661 = vld [vmem:[%s25 + $0x10c] sm:$0xf]
    %v1662 = vld [vmem:[%s25 + $0x110] sm:$0xf]
    %v1663 = vld [vmem:[%s25 + $0x114] sm:$0xf]
    %v1664 = vld [vmem:[%s25 + $0x118] sm:$0xf]
    %v1665 = vld [vmem:[%s25 + $0x11c] sm:$0xf]
    %v1666 = vpack.c.bf16 %v1039, %v1039
    %v1675 = vunpack.c.l.b16 %v1658
    %v1676 = vunpack.c.l.b16 %v1659
    %v1677 = vunpack.c.l.b16 %v1660
    %v1678 = vunpack.c.l.b16 %v1661
    %v1679 = vunpack.c.l.b16 %v1662
    %v1680 = vunpack.c.l.b16 %v1663
    %v1681 = vunpack.c.l.b16 %v1664
    %v1682 = vunpack.c.l.b16 %v1665
    %v1683 = vpack.c.b16 %v1676, %v1675
    %v1684 = vpack.c.b16 %v1678, %v1677
    %v1685 = vpack.c.b16 %v1680, %v1679
    %v1686 = vpack.c.b16 %v1682, %v1681
    %v1692 = vsel %vm874, %v1666, 0
    %1694 = vmatprep.subr.bf16.mxu0 0
    %1695 = vmatpush1.bf16.msra.mxu0 %v1683
    %1696 = vmatprep.subr.bf16.mxu0 0
    %1697 = vmatpush1.bf16.msra.mxu0 %v1684
    %1698 = vmatprep.subr.bf16.mxu0 0
    %1699 = vmatpush1.bf16.msra.mxu0 %v1685
    %1700 = vmatprep.subr.bf16.mxu0 0
    %1701 = vmatpush1.bf16.msra.mxu0 %v1686
    %1702 = vmatprep.subr.bf16.mxu0 0
    %1703 = vmatpush1.bf16.msra.mxu0 0
    %1704 = vmatprep.subr.bf16.mxu0 0
    %1705 = vmatpush1.bf16.msra.mxu0 0
    %1706 = vmatprep.subr.bf16.mxu0 0
    %1707 = vmatpush1.bf16.msra.mxu0 0
    %1708 = vmatprep.subr.bf16.mxu0 0
    %1709 = vmatpush1.bf16.msra.mxu0 0
    %1710 = vmatprep.subr.bf16.mxu0 0
    %1711 = vmatpush1.bf16.msra.mxu0 0
    %1712 = vmatprep.subr.bf16.mxu0 0
    %1713 = vmatpush1.bf16.msra.mxu0 0
    %1714 = vmatprep.subr.bf16.mxu0 0
    %1715 = vmatpush1.bf16.msra.mxu0 0
    %1716 = vmatprep.subr.bf16.mxu0 0
    %1717 = vmatpush1.bf16.msra.mxu0 0
    %1718 = vmatprep.subr.bf16.mxu0 0
    %1719 = vmatpush1.bf16.msra.mxu0 0
    %1720 = vmatprep.subr.bf16.mxu0 0
    %1721 = vmatpush1.bf16.msra.mxu0 0
    %1722 = vmatprep.subr.bf16.mxu0 0
    %1723 = vmatpush1.bf16.msra.mxu0 0
    %1724 = vmatprep.subr.bf16.mxu0 0
    %1725 = vmatpush1.bf16.msra.mxu0 0
    %1726 = vmatprep.mubr.bf16.mxu0 0
    %1727 = vmatmul.mubr.bf16.gmra.mrb[0].mxu0 %v1692
    %v1728 = vpop.f32.mrb[0].mxu0
    %v1729 = vadd.f32 0.0, %v1728
    %v1730 = vpop.f32.mrb[0].mxu0
    %v1731 = vpop.f32.mrb[0].mxu0
    %v1732 = vpop.f32.mrb[0].mxu0
    %1733 = vdwg.mxu0
    %v1734 = vadd.f32 %v1657, %v1729
    %v1735 = vld [vmem:[%s27] sm:$0x1]
    %v1736 = vunpack.c.l.bf16 %v1735
    %v1737 = vlaneseq
    %v1738 = vshrl.u32 %v1737, 7
    %v1739 = vsub.s32 0, %v1738
    %v1740 = vrot.slane %v1736, %v1739
    %v1741 = vadd.f32 %v1734, %v1740
    %v1742 = vmax.f32 %v1741, 0.0
    %v1743 = vld [vmem:[%s29] sm:$0xff]
    %v1744 = vld [vmem:[%s29 + $0x8] sm:$0xff]
    %v1745 = vld [vmem:[%s29 + $0x10] sm:$0xff]
    %v1746 = vld [vmem:[%s29 + $0x18] sm:$0xff]
    %v1747 = vld [vmem:[%s29 + $0x20] sm:$0xff]
    %v1748 = vld [vmem:[%s29 + $0x28] sm:$0xff]
    %v1749 = vld [vmem:[%s29 + $0x30] sm:$0xff]
    %v1750 = vld [vmem:[%s29 + $0x38] sm:$0xff]
    %v1751 = vpack.c.bf16 %v1742, %v1742
    %v1752 = vld [vmem:[%s31] sm:$0x3]
    %v1753 = vunpack.c.l.bf16 %v1752
    %v1755 = vlaneseq
    %v1756 = vshrl.u32 %v1755, 7
    %v1757 = vsub.s32 0, %v1756
    %v1758 = vrot.slane %v1753, %v1757
    %v1759 = vlaneseq
    %v1760 = vshrl.u32 %v1759, 7
    %v1761 = vsub.s32 2, %v1760
    %v1762 = vrot.slane %v1753, %v1761
    %v1765 = vlaneseq
    %v1766 = vshrl.u32 %v1765, 7
    %v1767 = vsub.s32 0, %v1766
    %v1768 = vrot.slane %v1758, %v1767
    %v1769 = vlaneseq
    %v1770 = vshrl.u32 %v1769, 7
    %v1771 = vsub.s32 0, %v1770
    %v1772 = vrot.slane %v1762, %v1771
    %v1781 = vunpack.c.l.b16 %v1743
    %v1782 = vunpack.c.h.b16 %v1743
    %v1783 = vunpack.c.l.b16 %v1744
    %v1784 = vunpack.c.h.b16 %v1744
    %v1785 = vunpack.c.l.b16 %v1745
    %v1786 = vunpack.c.h.b16 %v1745
    %v1787 = vunpack.c.l.b16 %v1746
    %v1788 = vunpack.c.h.b16 %v1746
    %v1789 = vunpack.c.l.b16 %v1747
    %v1790 = vunpack.c.h.b16 %v1747
    %v1791 = vunpack.c.l.b16 %v1748
    %v1792 = vunpack.c.h.b16 %v1748
    %v1793 = vunpack.c.l.b16 %v1749
    %v1794 = vunpack.c.h.b16 %v1749
    %v1795 = vunpack.c.l.b16 %v1750
    %v1796 = vunpack.c.h.b16 %v1750
    %v1797 = vpack.c.b16 %v1783, %v1781
    %v1798 = vpack.c.b16 %v1784, %v1782
    %v1799 = vpack.c.b16 %v1787, %v1785
    %v1800 = vpack.c.b16 %v1788, %v1786
    %v1801 = vpack.c.b16 %v1791, %v1789
    %v1802 = vpack.c.b16 %v1792, %v1790
    %v1803 = vpack.c.b16 %v1795, %v1793
    %v1804 = vpack.c.b16 %v1796, %v1794
    %v1814 = vsel %vm874, %v1751, 0
    %1816 = vmatprep.subr.bf16.mxu0 %v1798
    %1817 = vmatpush1.bf16.msra.mxu0 %v1797
    %1818 = vmatprep.subr.bf16.mxu0 %v1800
    %1819 = vmatpush1.bf16.msra.mxu0 %v1799
    %1820 = vmatprep.subr.bf16.mxu0 %v1802
    %1821 = vmatpush1.bf16.msra.mxu0 %v1801
    %1822 = vmatprep.subr.bf16.mxu0 %v1804
    %1823 = vmatpush1.bf16.msra.mxu0 %v1803
    %1824 = vmatprep.subr.bf16.mxu0 0
    %1825 = vmatpush1.bf16.msra.mxu0 0
    %1826 = vmatprep.subr.bf16.mxu0 0
    %1827 = vmatpush1.bf16.msra.mxu0 0
    %1828 = vmatprep.subr.bf16.mxu0 0
    %1829 = vmatpush1.bf16.msra.mxu0 0
    %1830 = vmatprep.subr.bf16.mxu0 0
    %1831 = vmatpush1.bf16.msra.mxu0 0
    %1832 = vmatprep.subr.bf16.mxu0 0
    %1833 = vmatpush1.bf16.msra.mxu0 0
    %1834 = vmatprep.subr.bf16.mxu0 0
    %1835 = vmatpush1.bf16.msra.mxu0 0
    %1836 = vmatprep.subr.bf16.mxu0 0
    %1837 = vmatpush1.bf16.msra.mxu0 0
    %1838 = vmatprep.subr.bf16.mxu0 0
    %1839 = vmatpush1.bf16.msra.mxu0 0
    %1840 = vmatprep.subr.bf16.mxu0 0
    %1841 = vmatpush1.bf16.msra.mxu0 0
    %1842 = vmatprep.subr.bf16.mxu0 0
    %1843 = vmatpush1.bf16.msra.mxu0 0
    %1844 = vmatprep.subr.bf16.mxu0 0
    %1845 = vmatpush1.bf16.msra.mxu0 0
    %1846 = vmatprep.subr.bf16.mxu0 0
    %1847 = vmatpush1.bf16.msra.mxu0 0
    %1848 = vmatprep.mubr.bf16.mxu0 0
    %1849 = vmatmul.mubr.bf16.gmra.mrb[0].mxu0 %v1814
    %v1850 = vpop.f32.mrb[0].mxu0
    %v1851 = vadd.f32 %v1768, %v1850
    %v1852 = vpop.f32.mrb[0].mxu0
    %v1853 = vadd.f32 %v1772, %v1852
    %v1854 = vpop.f32.mrb[0].mxu0
    %v1855 = vpop.f32.mrb[0].mxu0
    %1856 = vdwg.mxu0
    %v1857 = vld [vmem:[%s33] sm:$0xff]
    %v1858 = vld [vmem:[%s33 + $0x8] sm:$0xff]
    %v1859 = vld [vmem:[%s33 + $0x10] sm:$0xff]
    %v1860 = vld [vmem:[%s33 + $0x18] sm:$0xff]
    %v1861 = vld [vmem:[%s33 + $0x20] sm:$0xff]
    %v1862 = vld [vmem:[%s33 + $0x28] sm:$0xff]
    %v1863 = vld [vmem:[%s33 + $0x30] sm:$0xff]
    %v1864 = vld [vmem:[%s33 + $0x38] sm:$0xff]
    %v1865 = vld [vmem:[%s35] sm:$0x3]
    %v1866 = vunpack.c.l.bf16 %v1865
    %v1868 = vlaneseq
    %v1869 = vshrl.u32 %v1868, 7
    %v1870 = vsub.s32 0, %v1869
    %v1871 = vrot.slane %v1866, %v1870
    %v1872 = vlaneseq
    %v1873 = vshrl.u32 %v1872, 7
    %v1874 = vsub.s32 2, %v1873
    %v1875 = vrot.slane %v1866, %v1874
    %v1878 = vlaneseq
    %v1879 = vshrl.u32 %v1878, 7
    %v1880 = vsub.s32 0, %v1879
    %v1881 = vrot.slane %v1871, %v1880
    %v1882 = vlaneseq
    %v1883 = vshrl.u32 %v1882, 7
    %v1884 = vsub.s32 0, %v1883
    %v1885 = vrot.slane %v1875, %v1884
    %v1894 = vunpack.c.l.b16 %v1857
    %v1895 = vunpack.c.h.b16 %v1857
    %v1896 = vunpack.c.l.b16 %v1858
    %v1897 = vunpack.c.h.b16 %v1858
    %v1898 = vunpack.c.l.b16 %v1859
    %v1899 = vunpack.c.h.b16 %v1859
    %v1900 = vunpack.c.l.b16 %v1860
    %v1901 = vunpack.c.h.b16 %v1860
    %v1902 = vunpack.c.l.b16 %v1861
    %v1903 = vunpack.c.h.b16 %v1861
    %v1904 = vunpack.c.l.b16 %v1862
    %v1905 = vunpack.c.h.b16 %v1862
    %v1906 = vunpack.c.l.b16 %v1863
    %v1907 = vunpack.c.h.b16 %v1863
    %v1908 = vunpack.c.l.b16 %v1864
    %v1909 = vunpack.c.h.b16 %v1864
    %v1910 = vpack.c.b16 %v1896, %v1894
    %v1911 = vpack.c.b16 %v1897, %v1895
    %v1912 = vpack.c.b16 %v1900, %v1898
    %v1913 = vpack.c.b16 %v1901, %v1899
    %v1914 = vpack.c.b16 %v1904, %v1902
    %v1915 = vpack.c.b16 %v1905, %v1903
    %v1916 = vpack.c.b16 %v1908, %v1906
    %v1917 = vpack.c.b16 %v1909, %v1907
    %1926 = vmatprep.subr.bf16.mxu0 %v1911
    %1927 = vmatpush1.bf16.msra.mxu0 %v1910
    %1928 = vmatprep.subr.bf16.mxu0 %v1913
    %1929 = vmatpush1.bf16.msra.mxu0 %v1912
    %1930 = vmatprep.subr.bf16.mxu0 %v1915
    %1931 = vmatpush1.bf16.msra.mxu0 %v1914
    %1932 = vmatprep.subr.bf16.mxu0 %v1917
    %1933 = vmatpush1.bf16.msra.mxu0 %v1916
    %1934 = vmatprep.subr.bf16.mxu0 0
    %1935 = vmatpush1.bf16.msra.mxu0 0
    %1936 = vmatprep.subr.bf16.mxu0 0
    %1937 = vmatpush1.bf16.msra.mxu0 0
    %1938 = vmatprep.subr.bf16.mxu0 0
    %1939 = vmatpush1.bf16.msra.mxu0 0
    %1940 = vmatprep.subr.bf16.mxu0 0
    %1941 = vmatpush1.bf16.msra.mxu0 0
    %1942 = vmatprep.subr.bf16.mxu0 0
    %1943 = vmatpush1.bf16.msra.mxu0 0
    %1944 = vmatprep.subr.bf16.mxu0 0
    %1945 = vmatpush1.bf16.msra.mxu0 0
    %1946 = vmatprep.subr.bf16.mxu0 0
    %1947 = vmatpush1.bf16.msra.mxu0 0
    %1948 = vmatprep.subr.bf16.mxu0 0
    %1949 = vmatpush1.bf16.msra.mxu0 0
    %1950 = vmatprep.subr.bf16.mxu0 0
    %1951 = vmatpush1.bf16.msra.mxu0 0
    %1952 = vmatprep.subr.bf16.mxu0 0
    %1953 = vmatpush1.bf16.msra.mxu0 0
    %1954 = vmatprep.subr.bf16.mxu0 0
    %1955 = vmatpush1.bf16.msra.mxu0 0
    %1956 = vmatprep.subr.bf16.mxu0 0
    %1957 = vmatpush1.bf16.msra.mxu0 0
    %1958 = vmatprep.mubr.bf16.mxu0 0
    %1959 = vmatmul.mubr.bf16.gmra.mrb[0].mxu0 %v876
    %v1960 = vpop.f32.mrb[0].mxu0
    %v1961 = vadd.f32 %v1881, %v1960
    %v1962 = vpop.f32.mrb[0].mxu0
    %v1963 = vadd.f32 %v1885, %v1962
    %v1964 = vpop.f32.mrb[0].mxu0
    %v1965 = vpop.f32.mrb[0].mxu0
    %1966 = vdwg.mxu0
    %v1967 = vadd.f32 %v1851, %v1961
    %v1968 = vadd.f32 %v1853, %v1963
    %v1969 = vmax.f32 %v1967, 0.0
    %v1970 = vmax.f32 %v1968, 0.0
    %v1971 = vld [vmem:[%s37] sm:$0xf]
    %v1972 = vld [vmem:[%s37 + $0x4] sm:$0xf]
    %v1973 = vld [vmem:[%s37 + $0x8] sm:$0xf]
    %v1974 = vld [vmem:[%s37 + $0xc] sm:$0xf]
    %v1975 = vld [vmem:[%s37 + $0x10] sm:$0xf]
    %v1976 = vld [vmem:[%s37 + $0x14] sm:$0xf]
    %v1977 = vld [vmem:[%s37 + $0x18] sm:$0xf]
    %v1978 = vld [vmem:[%s37 + $0x1c] sm:$0xf]
    %v1979 = vld [vmem:[%s37 + $0x20] sm:$0xf]
    %v1980 = vld [vmem:[%s37 + $0x24] sm:$0xf]
    %v1981 = vld [vmem:[%s37 + $0x28] sm:$0xf]
    %v1982 = vld [vmem:[%s37 + $0x2c] sm:$0xf]
    %v1983 = vld [vmem:[%s37 + $0x30] sm:$0xf]
    %v1984 = vld [vmem:[%s37 + $0x34] sm:$0xf]
    %v1985 = vld [vmem:[%s37 + $0x38] sm:$0xf]
    %v1986 = vld [vmem:[%s37 + $0x3c] sm:$0xf]
    %v1987 = vld [vmem:[%s37 + $0x40] sm:$0xf]
    %v1988 = vld [vmem:[%s37 + $0x44] sm:$0xf]
    %v1989 = vld [vmem:[%s37 + $0x48] sm:$0xf]
    %v1990 = vld [vmem:[%s37 + $0x4c] sm:$0xf]
    %v1991 = vld [vmem:[%s37 + $0x50] sm:$0xf]
    %v1992 = vld [vmem:[%s37 + $0x54] sm:$0xf]
    %v1993 = vld [vmem:[%s37 + $0x58] sm:$0xf]
    %v1994 = vld [vmem:[%s37 + $0x5c] sm:$0xf]
    %v1995 = vld [vmem:[%s37 + $0x60] sm:$0xf]
    %v1996 = vld [vmem:[%s37 + $0x64] sm:$0xf]
    %v1997 = vld [vmem:[%s37 + $0x68] sm:$0xf]
    %v1998 = vld [vmem:[%s37 + $0x6c] sm:$0xf]
    %v1999 = vld [vmem:[%s37 + $0x70] sm:$0xf]
    %v2000 = vld [vmem:[%s37 + $0x74] sm:$0xf]
    %v2001 = vld [vmem:[%s37 + $0x78] sm:$0xf]
    %v2002 = vld [vmem:[%s37 + $0x7c] sm:$0xf]
    %v2003 = vpack.c.bf16 %v1969, %v1969
    %v2004 = vpack.c.bf16 %v1970, %v1970
    %v2005 = vld [vmem:[%s39] sm:$0x1]
    %v2006 = vunpack.c.l.bf16 %v2005
    %v2007 = vlaneseq
    %v2008 = vshrl.u32 %v2007, 7
    %v2009 = vsub.s32 0, %v2008
    %v2010 = vrot.slane %v2006, %v2009
    %v2043 = vunpack.c.l.b16 %v1971
    %v2044 = vunpack.c.l.b16 %v1972
    %v2045 = vunpack.c.l.b16 %v1973
    %v2046 = vunpack.c.l.b16 %v1974
    %v2047 = vunpack.c.l.b16 %v1975
    %v2048 = vunpack.c.l.b16 %v1976
    %v2049 = vunpack.c.l.b16 %v1977
    %v2050 = vunpack.c.l.b16 %v1978
    %v2051 = vunpack.c.l.b16 %v1979
    %v2052 = vunpack.c.l.b16 %v1980
    %v2053 = vunpack.c.l.b16 %v1981
    %v2054 = vunpack.c.l.b16 %v1982
    %v2055 = vunpack.c.l.b16 %v1983
    %v2056 = vunpack.c.l.b16 %v1984
    %v2057 = vunpack.c.l.b16 %v1985
    %v2058 = vunpack.c.l.b16 %v1986
    %v2059 = vunpack.c.l.b16 %v1987
    %v2060 = vunpack.c.l.b16 %v1988
    %v2061 = vunpack.c.l.b16 %v1989
    %v2062 = vunpack.c.l.b16 %v1990
    %v2063 = vunpack.c.l.b16 %v1991
    %v2064 = vunpack.c.l.b16 %v1992
    %v2065 = vunpack.c.l.b16 %v1993
    %v2066 = vunpack.c.l.b16 %v1994
    %v2067 = vunpack.c.l.b16 %v1995
    %v2068 = vunpack.c.l.b16 %v1996
    %v2069 = vunpack.c.l.b16 %v1997
    %v2070 = vunpack.c.l.b16 %v1998
    %v2071 = vunpack.c.l.b16 %v1999
    %v2072 = vunpack.c.l.b16 %v2000
    %v2073 = vunpack.c.l.b16 %v2001
    %v2074 = vunpack.c.l.b16 %v2002
    %v2075 = vpack.c.b16 %v2044, %v2043
    %v2076 = vpack.c.b16 %v2046, %v2045
    %v2077 = vpack.c.b16 %v2048, %v2047
    %v2078 = vpack.c.b16 %v2050, %v2049
    %v2079 = vpack.c.b16 %v2052, %v2051
    %v2080 = vpack.c.b16 %v2054, %v2053
    %v2081 = vpack.c.b16 %v2056, %v2055
    %v2082 = vpack.c.b16 %v2058, %v2057
    %v2083 = vpack.c.b16 %v2060, %v2059
    %v2084 = vpack.c.b16 %v2062, %v2061
    %v2085 = vpack.c.b16 %v2064, %v2063
    %v2086 = vpack.c.b16 %v2066, %v2065
    %v2087 = vpack.c.b16 %v2068, %v2067
    %v2088 = vpack.c.b16 %v2070, %v2069
    %v2089 = vpack.c.b16 %v2072, %v2071
    %v2090 = vpack.c.b16 %v2074, %v2073
    %2107 = vmatprep.subr.bf16.mxu0 0
    %2108 = vmatpush1.bf16.msra.mxu0 %v2075
    %2109 = vmatprep.subr.bf16.mxu0 0
    %2110 = vmatpush1.bf16.msra.mxu0 %v2076
    %2111 = vmatprep.subr.bf16.mxu0 0
    %2112 = vmatpush1.bf16.msra.mxu0 %v2077
    %2113 = vmatprep.subr.bf16.mxu0 0
    %2114 = vmatpush1.bf16.msra.mxu0 %v2078
    %2115 = vmatprep.subr.bf16.mxu0 0
    %2116 = vmatpush1.bf16.msra.mxu0 %v2079
    %2117 = vmatprep.subr.bf16.mxu0 0
    %2118 = vmatpush1.bf16.msra.mxu0 %v2080
    %2119 = vmatprep.subr.bf16.mxu0 0
    %2120 = vmatpush1.bf16.msra.mxu0 %v2081
    %2121 = vmatprep.subr.bf16.mxu0 0
    %2122 = vmatpush1.bf16.msra.mxu0 %v2082
    %2123 = vmatprep.subr.bf16.mxu0 0
    %2124 = vmatpush1.bf16.msra.mxu0 %v2083
    %2125 = vmatprep.subr.bf16.mxu0 0
    %2126 = vmatpush1.bf16.msra.mxu0 %v2084
    %2127 = vmatprep.subr.bf16.mxu0 0
    %2128 = vmatpush1.bf16.msra.mxu0 %v2085
    %2129 = vmatprep.subr.bf16.mxu0 0
    %2130 = vmatpush1.bf16.msra.mxu0 %v2086
    %2131 = vmatprep.subr.bf16.mxu0 0
    %2132 = vmatpush1.bf16.msra.mxu0 %v2087
    %2133 = vmatprep.subr.bf16.mxu0 0
    %2134 = vmatpush1.bf16.msra.mxu0 %v2088
    %2135 = vmatprep.subr.bf16.mxu0 0
    %2136 = vmatpush1.bf16.msra.mxu0 %v2089
    %2137 = vmatprep.subr.bf16.mxu0 0
    %2138 = vmatpush1.bf16.msra.mxu0 %v2090
    %2139 = vmatprep.mubr.bf16.mxu0 %v2004
    %2140 = vmatmul.mubr.bf16.gmra.mrb[0].mxu0 %v2003
    %v2141 = vpop.f32.mrb[0].mxu0
    %v2142 = vadd.f32 %v2010, %v2141
    %v2143 = vpop.f32.mrb[0].mxu0
    %v2144 = vpop.f32.mrb[0].mxu0
    %v2145 = vpop.f32.mrb[0].mxu0
    %2146 = vdwg.mxu0
    %v2147 = vmax.f32 %v2142, 0.0
    %v2148 = vpack.c.bf16 %v2147, %v2147
    %v2150 = vsel %vm968, %v2148, 0
    %2152 = vmatprep.subr.bf16.mxu0 0
    %2153 = vmatpush1.bf16.msra.mxu0 %v2150
    %2154 = vmatprep.subr.bf16.mxu0 0
    %2155 = vmatpush1.bf16.msra.mxu0 0
    %2156 = vmatprep.subr.bf16.mxu0 0
    %2157 = vmatpush1.bf16.msra.mxu0 0
    %2158 = vmatprep.subr.bf16.mxu0 0
    %2159 = vmatpush1.bf16.msra.mxu0 0
    %2160 = vmatprep.subr.bf16.mxu0 0
    %2161 = vmatpush1.bf16.msra.mxu0 0
    %2162 = vmatprep.subr.bf16.mxu0 0
    %2163 = vmatpush1.bf16.msra.mxu0 0
    %2164 = vmatprep.subr.bf16.mxu0 0
    %2165 = vmatpush1.bf16.msra.mxu0 0
    %2166 = vmatprep.subr.bf16.mxu0 0
    %2167 = vmatpush1.bf16.msra.mxu0 0
    %2168 = vmatprep.subr.bf16.mxu0 0
    %2169 = vmatpush1.bf16.msra.mxu0 0
    %2170 = vmatprep.subr.bf16.mxu0 0
    %2171 = vmatpush1.bf16.msra.mxu0 0
    %2172 = vmatprep.subr.bf16.mxu0 0
    %2173 = vmatpush1.bf16.msra.mxu0 0
    %2174 = vmatprep.subr.bf16.mxu0 0
    %2175 = vmatpush1.bf16.msra.mxu0 0
    %2176 = vmatprep.subr.bf16.mxu0 0
    %2177 = vmatpush1.bf16.msra.mxu0 0
    %2178 = vmatprep.subr.bf16.mxu0 0
    %2179 = vmatpush1.bf16.msra.mxu0 0
    %2180 = vmatprep.subr.bf16.mxu0 0
    %2181 = vmatpush1.bf16.msra.mxu0 0
    %2182 = vmatprep.subr.bf16.mxu0 0
    %2183 = vmatpush1.bf16.msra.mxu0 0
    %2184 = vmatprep.mubr.bf16.mxu0 0
    %2185 = vmatmul.mubr.bf16.gmra.mrb[0].mxu0 %v954
    %v2186 = vpop.f32.mrb[0].mxu0
    %v2187 = vadd.f32 0.0, %v2186
    %v2188 = vpop.f32.mrb[0].mxu0
    %v2189 = vpop.f32.mrb[0].mxu0
    %v2190 = vadd.f32 0.0, %v2189
    %v2191 = vpop.f32.mrb[0].mxu0
    %2192 = vmatprep.mubr.bf16.mxu0 0
    %2193 = vmatmul.mubr.bf16.gmra.mrb[0].mxu0 %v957
    %v2194 = vpop.f32.mrb[0].mxu0
    %v2195 = vadd.f32 0.0, %v2194
    %v2196 = vpop.f32.mrb[0].mxu0
    %v2197 = vpop.f32.mrb[0].mxu0
    %v2198 = vadd.f32 0.0, %v2197
    %v2199 = vpop.f32.mrb[0].mxu0
    %2200 = vmatprep.mubr.bf16.mxu0 0
    %2201 = vmatmul.mubr.bf16.gmra.mrb[0].mxu0 %v960
    %v2202 = vpop.f32.mrb[0].mxu0
    %v2203 = vadd.f32 0.0, %v2202
    %v2204 = vpop.f32.mrb[0].mxu0
    %v2205 = vpop.f32.mrb[0].mxu0
    %v2206 = vadd.f32 0.0, %v2205
    %v2207 = vpop.f32.mrb[0].mxu0
    %2208 = vmatprep.mubr.bf16.mxu0 0
    %2209 = vmatmul.mubr.bf16.gmra.mrb[0].mxu0 %v963
    %v2210 = vpop.f32.mrb[0].mxu0
    %v2211 = vadd.f32 0.0, %v2210
    %v2212 = vpop.f32.mrb[0].mxu0
    %v2213 = vpop.f32.mrb[0].mxu0
    %v2214 = vadd.f32 0.0, %v2213
    %v2215 = vpop.f32.mrb[0].mxu0
    %2216 = vmatprep.mubr.bf16.mxu0 0
    %2217 = vmatmul.mubr.bf16.gmra.mrb[0].mxu0 %v966
    %v2218 = vpop.f32.mrb[0].mxu0
    %v2219 = vadd.f32 0.0, %v2218
    %v2220 = vpop.f32.mrb[0].mxu0
    %v2221 = vpop.f32.mrb[0].mxu0
    %v2222 = vpop.f32.mrb[0].mxu0
    %2223 = vdwg.mxu0
    %v2224 = vld [vmem:[%s41] sm:$0xf]
    %v2225 = vld [vmem:[%s41 + $0x4] sm:$0xf]
    %v2226 = vld [vmem:[%s41 + $0x8] sm:$0xf]
    %v2227 = vld [vmem:[%s41 + $0xc] sm:$0xf]
    %v2228 = vld [vmem:[%s41 + $0x10] sm:$0xf]
    %v2229 = vld [vmem:[%s41 + $0x14] sm:$0xf]
    %v2230 = vld [vmem:[%s41 + $0x18] sm:$0xf]
    %v2231 = vld [vmem:[%s41 + $0x1c] sm:$0xf]
    %v2232 = vld [vmem:[%s41 + $0x20] sm:$0xf]
    %v2233 = vld [vmem:[%s41 + $0x24] sm:$0xf]
    %v2234 = vld [vmem:[%s41 + $0x28] sm:$0xf]
    %v2235 = vld [vmem:[%s41 + $0x2c] sm:$0xf]
    %v2236 = vld [vmem:[%s41 + $0x30] sm:$0xf]
    %v2237 = vld [vmem:[%s41 + $0x34] sm:$0xf]
    %v2238 = vld [vmem:[%s41 + $0x38] sm:$0xf]
    %v2239 = vld [vmem:[%s41 + $0x3c] sm:$0xf]
    %v2240 = vpack.c.bf16 %v2187, %v2187
    %v2241 = vld [vmem:[%s41 + $0x40] sm:$0xf]
    %v2242 = vld [vmem:[%s41 + $0x44] sm:$0xf]
    %v2243 = vld [vmem:[%s41 + $0x48] sm:$0xf]
    %v2244 = vld [vmem:[%s41 + $0x4c] sm:$0xf]
    %v2245 = vld [vmem:[%s41 + $0x50] sm:$0xf]
    %v2246 = vld [vmem:[%s41 + $0x54] sm:$0xf]
    %v2247 = vld [vmem:[%s41 + $0x58] sm:$0xf]
    %v2248 = vld [vmem:[%s41 + $0x5c] sm:$0xf]
    %v2249 = vld [vmem:[%s41 + $0x60] sm:$0xf]
    %v2250 = vld [vmem:[%s41 + $0x64] sm:$0xf]
    %v2251 = vld [vmem:[%s41 + $0x68] sm:$0xf]
    %v2252 = vld [vmem:[%s41 + $0x6c] sm:$0xf]
    %v2253 = vld [vmem:[%s41 + $0x70] sm:$0xf]
    %v2254 = vld [vmem:[%s41 + $0x74] sm:$0xf]
    %v2255 = vld [vmem:[%s41 + $0x78] sm:$0xf]
    %v2256 = vld [vmem:[%s41 + $0x7c] sm:$0xf]
    %v2257 = vpack.c.bf16 %v2190, %v2190
    %v2274 = vunpack.c.l.b16 %v2241
    %v2275 = vunpack.c.l.b16 %v2242
    %v2276 = vunpack.c.l.b16 %v2243
    %v2277 = vunpack.c.l.b16 %v2244
    %v2278 = vunpack.c.l.b16 %v2245
    %v2279 = vunpack.c.l.b16 %v2246
    %v2280 = vunpack.c.l.b16 %v2247
    %v2281 = vunpack.c.l.b16 %v2248
    %v2282 = vunpack.c.l.b16 %v2249
    %v2283 = vunpack.c.l.b16 %v2250
    %v2284 = vunpack.c.l.b16 %v2251
    %v2285 = vunpack.c.l.b16 %v2252
    %v2286 = vunpack.c.l.b16 %v2253
    %v2287 = vunpack.c.l.b16 %v2254
    %v2288 = vunpack.c.l.b16 %v2255
    %v2289 = vunpack.c.l.b16 %v2256
    %v2290 = vpack.c.b16 %v2275, %v2274
    %v2291 = vpack.c.b16 %v2277, %v2276
    %v2292 = vpack.c.b16 %v2279, %v2278
    %v2293 = vpack.c.b16 %v2281, %v2280
    %v2294 = vpack.c.b16 %v2283, %v2282
    %v2295 = vpack.c.b16 %v2285, %v2284
    %v2296 = vpack.c.b16 %v2287, %v2286
    %v2297 = vpack.c.b16 %v2289, %v2288
    %2306 = vmatprep.subr.bf16.mxu0 0
    %2307 = vmatpush1.bf16.msra.mxu0 %v2290
    %2308 = vmatprep.subr.bf16.mxu0 0
    %2309 = vmatpush1.bf16.msra.mxu0 %v2291
    %2310 = vmatprep.subr.bf16.mxu0 0
    %2311 = vmatpush1.bf16.msra.mxu0 %v2292
    %2312 = vmatprep.subr.bf16.mxu0 0
    %2313 = vmatpush1.bf16.msra.mxu0 %v2293
    %2314 = vmatprep.subr.bf16.mxu0 0
    %2315 = vmatpush1.bf16.msra.mxu0 %v2294
    %2316 = vmatprep.subr.bf16.mxu0 0
    %2317 = vmatpush1.bf16.msra.mxu0 %v2295
    %2318 = vmatprep.subr.bf16.mxu0 0
    %2319 = vmatpush1.bf16.msra.mxu0 %v2296
    %2320 = vmatprep.subr.bf16.mxu0 0
    %2321 = vmatpush1.bf16.msra.mxu0 %v2297
    %2322 = vmatprep.subr.bf16.mxu0 0
    %2323 = vmatpush1.bf16.msra.mxu0 0
    %2324 = vmatprep.subr.bf16.mxu0 0
    %2325 = vmatpush1.bf16.msra.mxu0 0
    %2326 = vmatprep.subr.bf16.mxu0 0
    %2327 = vmatpush1.bf16.msra.mxu0 0
    %2328 = vmatprep.subr.bf16.mxu0 0
    %2329 = vmatpush1.bf16.msra.mxu0 0
    %2330 = vmatprep.subr.bf16.mxu0 0
    %2331 = vmatpush1.bf16.msra.mxu0 0
    %2332 = vmatprep.subr.bf16.mxu0 0
    %2333 = vmatpush1.bf16.msra.mxu0 0
    %2334 = vmatprep.subr.bf16.mxu0 0
    %2335 = vmatpush1.bf16.msra.mxu0 0
    %2336 = vmatprep.subr.bf16.mxu0 0
    %2337 = vmatpush1.bf16.msra.mxu0 0
    %2338 = vmatprep.mubr.bf16.mxu0 0
    %2339 = vmatmul.mubr.bf16.gmra.mrb[0].mxu0 %v2257
    %v2340 = vpop.f32.mrb[0].mxu0
    %v2341 = vadd.f32 0.0, %v2340
    %v2342 = vpop.f32.mrb[0].mxu0
    %v2343 = vpop.f32.mrb[0].mxu0
    %v2344 = vpop.f32.mrb[0].mxu0
    %2345 = vdwg.mxu0
    %v2362 = vunpack.c.l.b16 %v2224
    %v2363 = vunpack.c.l.b16 %v2225
    %v2364 = vunpack.c.l.b16 %v2226
    %v2365 = vunpack.c.l.b16 %v2227
    %v2366 = vunpack.c.l.b16 %v2228
    %v2367 = vunpack.c.l.b16 %v2229
    %v2368 = vunpack.c.l.b16 %v2230
    %v2369 = vunpack.c.l.b16 %v2231
    %v2370 = vunpack.c.l.b16 %v2232
    %v2371 = vunpack.c.l.b16 %v2233
    %v2372 = vunpack.c.l.b16 %v2234
    %v2373 = vunpack.c.l.b16 %v2235
    %v2374 = vunpack.c.l.b16 %v2236
    %v2375 = vunpack.c.l.b16 %v2237
    %v2376 = vunpack.c.l.b16 %v2238
    %v2377 = vunpack.c.l.b16 %v2239
    %v2378 = vpack.c.b16 %v2363, %v2362
    %v2379 = vpack.c.b16 %v2365, %v2364
    %v2380 = vpack.c.b16 %v2367, %v2366
    %v2381 = vpack.c.b16 %v2369, %v2368
    %v2382 = vpack.c.b16 %v2371, %v2370
    %v2383 = vpack.c.b16 %v2373, %v2372
    %v2384 = vpack.c.b16 %v2375, %v2374
    %v2385 = vpack.c.b16 %v2377, %v2376
    %2394 = vmatprep.subr.bf16.mxu0 0
    %2395 = vmatpush1.bf16.msra.mxu0 %v2378
    %2396 = vmatprep.subr.bf16.mxu0 0
    %2397 = vmatpush1.bf16.msra.mxu0 %v2379
    %2398 = vmatprep.subr.bf16.mxu0 0
    %2399 = vmatpush1.bf16.msra.mxu0 %v2380
    %2400 = vmatprep.subr.bf16.mxu0 0
    %2401 = vmatpush1.bf16.msra.mxu0 %v2381
    %2402 = vmatprep.subr.bf16.mxu0 0
    %2403 = vmatpush1.bf16.msra.mxu0 %v2382
    %2404 = vmatprep.subr.bf16.mxu0 0
    %2405 = vmatpush1.bf16.msra.mxu0 %v2383
    %2406 = vmatprep.subr.bf16.mxu0 0
    %2407 = vmatpush1.bf16.msra.mxu0 %v2384
    %2408 = vmatprep.subr.bf16.mxu0 0
    %2409 = vmatpush1.bf16.msra.mxu0 %v2385
    %2410 = vmatprep.subr.bf16.mxu0 0
    %2411 = vmatpush1.bf16.msra.mxu0 0
    %2412 = vmatprep.subr.bf16.mxu0 0
    %2413 = vmatpush1.bf16.msra.mxu0 0
    %2414 = vmatprep.subr.bf16.mxu0 0
    %2415 = vmatpush1.bf16.msra.mxu0 0
    %2416 = vmatprep.subr.bf16.mxu0 0
    %2417 = vmatpush1.bf16.msra.mxu0 0
    %2418 = vmatprep.subr.bf16.mxu0 0
    %2419 = vmatpush1.bf16.msra.mxu0 0
    %2420 = vmatprep.subr.bf16.mxu0 0
    %2421 = vmatpush1.bf16.msra.mxu0 0
    %2422 = vmatprep.subr.bf16.mxu0 0
    %2423 = vmatpush1.bf16.msra.mxu0 0
    %2424 = vmatprep.subr.bf16.mxu0 0
    %2425 = vmatpush1.bf16.msra.mxu0 0
    %2426 = vmatprep.mubr.bf16.mxu0 0
    %2427 = vmatmul.mubr.bf16.gmra.mrb[0].mxu0 %v2240
    %v2428 = vpop.f32.mrb[0].mxu0
    %v2429 = vadd.f32 %v2341, %v2428
    %v2430 = vpop.f32.mrb[0].mxu0
    %v2431 = vpop.f32.mrb[0].mxu0
    %v2432 = vpop.f32.mrb[0].mxu0
    %2433 = vdwg.mxu0
    %v2434 = vld [vmem:[%s41 + $0x80] sm:$0xf]
    %v2435 = vld [vmem:[%s41 + $0x84] sm:$0xf]
    %v2436 = vld [vmem:[%s41 + $0x88] sm:$0xf]
    %v2437 = vld [vmem:[%s41 + $0x8c] sm:$0xf]
    %v2438 = vld [vmem:[%s41 + $0x90] sm:$0xf]
    %v2439 = vld [vmem:[%s41 + $0x94] sm:$0xf]
    %v2440 = vld [vmem:[%s41 + $0x98] sm:$0xf]
    %v2441 = vld [vmem:[%s41 + $0x9c] sm:$0xf]
    %v2442 = vld [vmem:[%s41 + $0xa0] sm:$0xf]
    %v2443 = vld [vmem:[%s41 + $0xa4] sm:$0xf]
    %v2444 = vld [vmem:[%s41 + $0xa8] sm:$0xf]
    %v2445 = vld [vmem:[%s41 + $0xac] sm:$0xf]
    %v2446 = vld [vmem:[%s41 + $0xb0] sm:$0xf]
    %v2447 = vld [vmem:[%s41 + $0xb4] sm:$0xf]
    %v2448 = vld [vmem:[%s41 + $0xb8] sm:$0xf]
    %v2449 = vld [vmem:[%s41 + $0xbc] sm:$0xf]
    %v2450 = vpack.c.bf16 %v2195, %v2195
    %v2467 = vunpack.c.l.b16 %v2434
    %v2468 = vunpack.c.l.b16 %v2435
    %v2469 = vunpack.c.l.b16 %v2436
    %v2470 = vunpack.c.l.b16 %v2437
    %v2471 = vunpack.c.l.b16 %v2438
    %v2472 = vunpack.c.l.b16 %v2439
    %v2473 = vunpack.c.l.b16 %v2440
    %v2474 = vunpack.c.l.b16 %v2441
    %v2475 = vunpack.c.l.b16 %v2442
    %v2476 = vunpack.c.l.b16 %v2443
    %v2477 = vunpack.c.l.b16 %v2444
    %v2478 = vunpack.c.l.b16 %v2445
    %v2479 = vunpack.c.l.b16 %v2446
    %v2480 = vunpack.c.l.b16 %v2447
    %v2481 = vunpack.c.l.b16 %v2448
    %v2482 = vunpack.c.l.b16 %v2449
    %v2483 = vpack.c.b16 %v2468, %v2467
    %v2484 = vpack.c.b16 %v2470, %v2469
    %v2485 = vpack.c.b16 %v2472, %v2471
    %v2486 = vpack.c.b16 %v2474, %v2473
    %v2487 = vpack.c.b16 %v2476, %v2475
    %v2488 = vpack.c.b16 %v2478, %v2477
    %v2489 = vpack.c.b16 %v2480, %v2479
    %v2490 = vpack.c.b16 %v2482, %v2481
    %2499 = vmatprep.subr.bf16.mxu0 0
    %2500 = vmatpush1.bf16.msra.mxu0 %v2483
    %2501 = vmatprep.subr.bf16.mxu0 0
    %2502 = vmatpush1.bf16.msra.mxu0 %v2484
    %2503 = vmatprep.subr.bf16.mxu0 0
    %2504 = vmatpush1.bf16.msra.mxu0 %v2485
    %2505 = vmatprep.subr.bf16.mxu0 0
    %2506 = vmatpush1.bf16.msra.mxu0 %v2486
    %2507 = vmatprep.subr.bf16.mxu0 0
    %2508 = vmatpush1.bf16.msra.mxu0 %v2487
    %2509 = vmatprep.subr.bf16.mxu0 0
    %2510 = vmatpush1.bf16.msra.mxu0 %v2488
    %2511 = vmatprep.subr.bf16.mxu0 0
    %2512 = vmatpush1.bf16.msra.mxu0 %v2489
    %2513 = vmatprep.subr.bf16.mxu0 0
    %2514 = vmatpush1.bf16.msra.mxu0 %v2490
    %2515 = vmatprep.subr.bf16.mxu0 0
    %2516 = vmatpush1.bf16.msra.mxu0 0
    %2517 = vmatprep.subr.bf16.mxu0 0
    %2518 = vmatpush1.bf16.msra.mxu0 0
    %2519 = vmatprep.subr.bf16.mxu0 0
    %2520 = vmatpush1.bf16.msra.mxu0 0
    %2521 = vmatprep.subr.bf16.mxu0 0
    %2522 = vmatpush1.bf16.msra.mxu0 0
    %2523 = vmatprep.subr.bf16.mxu0 0
    %2524 = vmatpush1.bf16.msra.mxu0 0
    %2525 = vmatprep.subr.bf16.mxu0 0
    %2526 = vmatpush1.bf16.msra.mxu0 0
    %2527 = vmatprep.subr.bf16.mxu0 0
    %2528 = vmatpush1.bf16.msra.mxu0 0
    %2529 = vmatprep.subr.bf16.mxu0 0
    %2530 = vmatpush1.bf16.msra.mxu0 0
    %2531 = vmatprep.mubr.bf16.mxu0 0
    %2532 = vmatmul.mubr.bf16.gmra.mrb[0].mxu0 %v2450
    %v2533 = vpop.f32.mrb[0].mxu0
    %v2534 = vadd.f32 0.0, %v2533
    %v2535 = vpop.f32.mrb[0].mxu0
    %v2536 = vpop.f32.mrb[0].mxu0
    %v2537 = vpop.f32.mrb[0].mxu0
    %2538 = vdwg.mxu0
    %v2539 = vadd.f32 %v2429, %v2534
    %v2540 = vld [vmem:[%s41 + $0xc0] sm:$0xf]
    %v2541 = vld [vmem:[%s41 + $0xc4] sm:$0xf]
    %v2542 = vld [vmem:[%s41 + $0xc8] sm:$0xf]
    %v2543 = vld [vmem:[%s41 + $0xcc] sm:$0xf]
    %v2544 = vld [vmem:[%s41 + $0xd0] sm:$0xf]
    %v2545 = vld [vmem:[%s41 + $0xd4] sm:$0xf]
    %v2546 = vld [vmem:[%s41 + $0xd8] sm:$0xf]
    %v2547 = vld [vmem:[%s41 + $0xdc] sm:$0xf]
    %v2548 = vld [vmem:[%s41 + $0xe0] sm:$0xf]
    %v2549 = vld [vmem:[%s41 + $0xe4] sm:$0xf]
    %v2550 = vld [vmem:[%s41 + $0xe8] sm:$0xf]
    %v2551 = vld [vmem:[%s41 + $0xec] sm:$0xf]
    %v2552 = vld [vmem:[%s41 + $0xf0] sm:$0xf]
    %v2553 = vld [vmem:[%s41 + $0xf4] sm:$0xf]
    %v2554 = vld [vmem:[%s41 + $0xf8] sm:$0xf]
    %v2555 = vld [vmem:[%s41 + $0xfc] sm:$0xf]
    %v2556 = vpack.c.bf16 %v2198, %v2198
    %v2573 = vunpack.c.l.b16 %v2540
    %v2574 = vunpack.c.l.b16 %v2541
    %v2575 = vunpack.c.l.b16 %v2542
    %v2576 = vunpack.c.l.b16 %v2543
    %v2577 = vunpack.c.l.b16 %v2544
    %v2578 = vunpack.c.l.b16 %v2545
    %v2579 = vunpack.c.l.b16 %v2546
    %v2580 = vunpack.c.l.b16 %v2547
    %v2581 = vunpack.c.l.b16 %v2548
    %v2582 = vunpack.c.l.b16 %v2549
    %v2583 = vunpack.c.l.b16 %v2550
    %v2584 = vunpack.c.l.b16 %v2551
    %v2585 = vunpack.c.l.b16 %v2552
    %v2586 = vunpack.c.l.b16 %v2553
    %v2587 = vunpack.c.l.b16 %v2554
    %v2588 = vunpack.c.l.b16 %v2555
    %v2589 = vpack.c.b16 %v2574, %v2573
    %v2590 = vpack.c.b16 %v2576, %v2575
    %v2591 = vpack.c.b16 %v2578, %v2577
    %v2592 = vpack.c.b16 %v2580, %v2579
    %v2593 = vpack.c.b16 %v2582, %v2581
    %v2594 = vpack.c.b16 %v2584, %v2583
    %v2595 = vpack.c.b16 %v2586, %v2585
    %v2596 = vpack.c.b16 %v2588, %v2587
    %2605 = vmatprep.subr.bf16.mxu0 0
    %2606 = vmatpush1.bf16.msra.mxu0 %v2589
    %2607 = vmatprep.subr.bf16.mxu0 0
    %2608 = vmatpush1.bf16.msra.mxu0 %v2590
    %2609 = vmatprep.subr.bf16.mxu0 0
    %2610 = vmatpush1.bf16.msra.mxu0 %v2591
    %2611 = vmatprep.subr.bf16.mxu0 0
    %2612 = vmatpush1.bf16.msra.mxu0 %v2592
    %2613 = vmatprep.subr.bf16.mxu0 0
    %2614 = vmatpush1.bf16.msra.mxu0 %v2593
    %2615 = vmatprep.subr.bf16.mxu0 0
    %2616 = vmatpush1.bf16.msra.mxu0 %v2594
    %2617 = vmatprep.subr.bf16.mxu0 0
    %2618 = vmatpush1.bf16.msra.mxu0 %v2595
    %2619 = vmatprep.subr.bf16.mxu0 0
    %2620 = vmatpush1.bf16.msra.mxu0 %v2596
    %2621 = vmatprep.subr.bf16.mxu0 0
    %2622 = vmatpush1.bf16.msra.mxu0 0
    %2623 = vmatprep.subr.bf16.mxu0 0
    %2624 = vmatpush1.bf16.msra.mxu0 0
    %2625 = vmatprep.subr.bf16.mxu0 0
    %2626 = vmatpush1.bf16.msra.mxu0 0
    %2627 = vmatprep.subr.bf16.mxu0 0
    %2628 = vmatpush1.bf16.msra.mxu0 0
    %2629 = vmatprep.subr.bf16.mxu0 0
    %2630 = vmatpush1.bf16.msra.mxu0 0
    %2631 = vmatprep.subr.bf16.mxu0 0
    %2632 = vmatpush1.bf16.msra.mxu0 0
    %2633 = vmatprep.subr.bf16.mxu0 0
    %2634 = vmatpush1.bf16.msra.mxu0 0
    %2635 = vmatprep.subr.bf16.mxu0 0
    %2636 = vmatpush1.bf16.msra.mxu0 0
    %2637 = vmatprep.mubr.bf16.mxu0 0
    %2638 = vmatmul.mubr.bf16.gmra.mrb[0].mxu0 %v2556
    %v2639 = vpop.f32.mrb[0].mxu0
    %v2640 = vadd.f32 0.0, %v2639
    %v2641 = vpop.f32.mrb[0].mxu0
    %v2642 = vpop.f32.mrb[0].mxu0
    %v2643 = vpop.f32.mrb[0].mxu0
    %2644 = vdwg.mxu0
    %v2645 = vadd.f32 %v2539, %v2640
    %v2646 = vld [vmem:[%s41 + $0x100] sm:$0xf]
    %v2647 = vld [vmem:[%s41 + $0x104] sm:$0xf]
    %v2648 = vld [vmem:[%s41 + $0x108] sm:$0xf]
    %v2649 = vld [vmem:[%s41 + $0x10c] sm:$0xf]
    %v2650 = vld [vmem:[%s41 + $0x110] sm:$0xf]
    %v2651 = vld [vmem:[%s41 + $0x114] sm:$0xf]
    %v2652 = vld [vmem:[%s41 + $0x118] sm:$0xf]
    %v2653 = vld [vmem:[%s41 + $0x11c] sm:$0xf]
    %v2654 = vld [vmem:[%s41 + $0x120] sm:$0xf]
    %v2655 = vld [vmem:[%s41 + $0x124] sm:$0xf]
    %v2656 = vld [vmem:[%s41 + $0x128] sm:$0xf]
    %v2657 = vld [vmem:[%s41 + $0x12c] sm:$0xf]
    %v2658 = vld [vmem:[%s41 + $0x130] sm:$0xf]
    %v2659 = vld [vmem:[%s41 + $0x134] sm:$0xf]
    %v2660 = vld [vmem:[%s41 + $0x138] sm:$0xf]
    %v2661 = vld [vmem:[%s41 + $0x13c] sm:$0xf]
    %v2662 = vpack.c.bf16 %v2203, %v2203
    %v2679 = vunpack.c.l.b16 %v2646
    %v2680 = vunpack.c.l.b16 %v2647
    %v2681 = vunpack.c.l.b16 %v2648
    %v2682 = vunpack.c.l.b16 %v2649
    %v2683 = vunpack.c.l.b16 %v2650
    %v2684 = vunpack.c.l.b16 %v2651
    %v2685 = vunpack.c.l.b16 %v2652
    %v2686 = vunpack.c.l.b16 %v2653
    %v2687 = vunpack.c.l.b16 %v2654
    %v2688 = vunpack.c.l.b16 %v2655
    %v2689 = vunpack.c.l.b16 %v2656
    %v2690 = vunpack.c.l.b16 %v2657
    %v2691 = vunpack.c.l.b16 %v2658
    %v2692 = vunpack.c.l.b16 %v2659
    %v2693 = vunpack.c.l.b16 %v2660
    %v2694 = vunpack.c.l.b16 %v2661
    %v2695 = vpack.c.b16 %v2680, %v2679
    %v2696 = vpack.c.b16 %v2682, %v2681
    %v2697 = vpack.c.b16 %v2684, %v2683
    %v2698 = vpack.c.b16 %v2686, %v2685
    %v2699 = vpack.c.b16 %v2688, %v2687
    %v2700 = vpack.c.b16 %v2690, %v2689
    %v2701 = vpack.c.b16 %v2692, %v2691
    %v2702 = vpack.c.b16 %v2694, %v2693
    %2711 = vmatprep.subr.bf16.mxu0 0
    %2712 = vmatpush1.bf16.msra.mxu0 %v2695
    %2713 = vmatprep.subr.bf16.mxu0 0
    %2714 = vmatpush1.bf16.msra.mxu0 %v2696
    %2715 = vmatprep.subr.bf16.mxu0 0
    %2716 = vmatpush1.bf16.msra.mxu0 %v2697
    %2717 = vmatprep.subr.bf16.mxu0 0
    %2718 = vmatpush1.bf16.msra.mxu0 %v2698
    %2719 = vmatprep.subr.bf16.mxu0 0
    %2720 = vmatpush1.bf16.msra.mxu0 %v2699
    %2721 = vmatprep.subr.bf16.mxu0 0
    %2722 = vmatpush1.bf16.msra.mxu0 %v2700
    %2723 = vmatprep.subr.bf16.mxu0 0
    %2724 = vmatpush1.bf16.msra.mxu0 %v2701
    %2725 = vmatprep.subr.bf16.mxu0 0
    %2726 = vmatpush1.bf16.msra.mxu0 %v2702
    %2727 = vmatprep.subr.bf16.mxu0 0
    %2728 = vmatpush1.bf16.msra.mxu0 0
    %2729 = vmatprep.subr.bf16.mxu0 0
    %2730 = vmatpush1.bf16.msra.mxu0 0
    %2731 = vmatprep.subr.bf16.mxu0 0
    %2732 = vmatpush1.bf16.msra.mxu0 0
    %2733 = vmatprep.subr.bf16.mxu0 0
    %2734 = vmatpush1.bf16.msra.mxu0 0
    %2735 = vmatprep.subr.bf16.mxu0 0
    %2736 = vmatpush1.bf16.msra.mxu0 0
    %2737 = vmatprep.subr.bf16.mxu0 0
    %2738 = vmatpush1.bf16.msra.mxu0 0
    %2739 = vmatprep.subr.bf16.mxu0 0
    %2740 = vmatpush1.bf16.msra.mxu0 0
    %2741 = vmatprep.subr.bf16.mxu0 0
    %2742 = vmatpush1.bf16.msra.mxu0 0
    %2743 = vmatprep.mubr.bf16.mxu0 0
    %2744 = vmatmul.mubr.bf16.gmra.mrb[0].mxu0 %v2662
    %v2745 = vpop.f32.mrb[0].mxu0
    %v2746 = vadd.f32 0.0, %v2745
    %v2747 = vpop.f32.mrb[0].mxu0
    %v2748 = vpop.f32.mrb[0].mxu0
    %v2749 = vpop.f32.mrb[0].mxu0
    %2750 = vdwg.mxu0
    %v2751 = vadd.f32 %v2645, %v2746
    %v2752 = vld [vmem:[%s41 + $0x140] sm:$0xf]
    %v2753 = vld [vmem:[%s41 + $0x144] sm:$0xf]
    %v2754 = vld [vmem:[%s41 + $0x148] sm:$0xf]
    %v2755 = vld [vmem:[%s41 + $0x14c] sm:$0xf]
    %v2756 = vld [vmem:[%s41 + $0x150] sm:$0xf]
    %v2757 = vld [vmem:[%s41 + $0x154] sm:$0xf]
    %v2758 = vld [vmem:[%s41 + $0x158] sm:$0xf]
    %v2759 = vld [vmem:[%s41 + $0x15c] sm:$0xf]
    %v2760 = vld [vmem:[%s41 + $0x160] sm:$0xf]
    %v2761 = vld [vmem:[%s41 + $0x164] sm:$0xf]
    %v2762 = vld [vmem:[%s41 + $0x168] sm:$0xf]
    %v2763 = vld [vmem:[%s41 + $0x16c] sm:$0xf]
    %v2764 = vld [vmem:[%s41 + $0x170] sm:$0xf]
    %v2765 = vld [vmem:[%s41 + $0x174] sm:$0xf]
    %v2766 = vld [vmem:[%s41 + $0x178] sm:$0xf]
    %v2767 = vld [vmem:[%s41 + $0x17c] sm:$0xf]
    %v2768 = vpack.c.bf16 %v2206, %v2206
    %v2785 = vunpack.c.l.b16 %v2752
    %v2786 = vunpack.c.l.b16 %v2753
    %v2787 = vunpack.c.l.b16 %v2754
    %v2788 = vunpack.c.l.b16 %v2755
    %v2789 = vunpack.c.l.b16 %v2756
    %v2790 = vunpack.c.l.b16 %v2757
    %v2791 = vunpack.c.l.b16 %v2758
    %v2792 = vunpack.c.l.b16 %v2759
    %v2793 = vunpack.c.l.b16 %v2760
    %v2794 = vunpack.c.l.b16 %v2761
    %v2795 = vunpack.c.l.b16 %v2762
    %v2796 = vunpack.c.l.b16 %v2763
    %v2797 = vunpack.c.l.b16 %v2764
    %v2798 = vunpack.c.l.b16 %v2765
    %v2799 = vunpack.c.l.b16 %v2766
    %v2800 = vunpack.c.l.b16 %v2767
    %v2801 = vpack.c.b16 %v2786, %v2785
    %v2802 = vpack.c.b16 %v2788, %v2787
    %v2803 = vpack.c.b16 %v2790, %v2789
    %v2804 = vpack.c.b16 %v2792, %v2791
    %v2805 = vpack.c.b16 %v2794, %v2793
    %v2806 = vpack.c.b16 %v2796, %v2795
    %v2807 = vpack.c.b16 %v2798, %v2797
    %v2808 = vpack.c.b16 %v2800, %v2799
    %2817 = vmatprep.subr.bf16.mxu0 0
    %2818 = vmatpush1.bf16.msra.mxu0 %v2801
    %2819 = vmatprep.subr.bf16.mxu0 0
    %2820 = vmatpush1.bf16.msra.mxu0 %v2802
    %2821 = vmatprep.subr.bf16.mxu0 0
    %2822 = vmatpush1.bf16.msra.mxu0 %v2803
    %2823 = vmatprep.subr.bf16.mxu0 0
    %2824 = vmatpush1.bf16.msra.mxu0 %v2804
    %2825 = vmatprep.subr.bf16.mxu0 0
    %2826 = vmatpush1.bf16.msra.mxu0 %v2805
    %2827 = vmatprep.subr.bf16.mxu0 0
    %2828 = vmatpush1.bf16.msra.mxu0 %v2806
    %2829 = vmatprep.subr.bf16.mxu0 0
    %2830 = vmatpush1.bf16.msra.mxu0 %v2807
    %2831 = vmatprep.subr.bf16.mxu0 0
    %2832 = vmatpush1.bf16.msra.mxu0 %v2808
    %2833 = vmatprep.subr.bf16.mxu0 0
    %2834 = vmatpush1.bf16.msra.mxu0 0
    %2835 = vmatprep.subr.bf16.mxu0 0
    %2836 = vmatpush1.bf16.msra.mxu0 0
    %2837 = vmatprep.subr.bf16.mxu0 0
    %2838 = vmatpush1.bf16.msra.mxu0 0
    %2839 = vmatprep.subr.bf16.mxu0 0
    %2840 = vmatpush1.bf16.msra.mxu0 0
    %2841 = vmatprep.subr.bf16.mxu0 0
    %2842 = vmatpush1.bf16.msra.mxu0 0
    %2843 = vmatprep.subr.bf16.mxu0 0
    %2844 = vmatpush1.bf16.msra.mxu0 0
    %2845 = vmatprep.subr.bf16.mxu0 0
    %2846 = vmatpush1.bf16.msra.mxu0 0
    %2847 = vmatprep.subr.bf16.mxu0 0
    %2848 = vmatpush1.bf16.msra.mxu0 0
    %2849 = vmatprep.mubr.bf16.mxu0 0
    %2850 = vmatmul.mubr.bf16.gmra.mrb[0].mxu0 %v2768
    %v2851 = vpop.f32.mrb[0].mxu0
    %v2852 = vadd.f32 0.0, %v2851
    %v2853 = vpop.f32.mrb[0].mxu0
    %v2854 = vpop.f32.mrb[0].mxu0
    %v2855 = vpop.f32.mrb[0].mxu0
    %2856 = vdwg.mxu0
    %v2857 = vadd.f32 %v2751, %v2852
    %v2858 = vld [vmem:[%s41 + $0x180] sm:$0xf]
    %v2859 = vld [vmem:[%s41 + $0x184] sm:$0xf]
    %v2860 = vld [vmem:[%s41 + $0x188] sm:$0xf]
    %v2861 = vld [vmem:[%s41 + $0x18c] sm:$0xf]
    %v2862 = vld [vmem:[%s41 + $0x190] sm:$0xf]
    %v2863 = vld [vmem:[%s41 + $0x194] sm:$0xf]
    %v2864 = vld [vmem:[%s41 + $0x198] sm:$0xf]
    %v2865 = vld [vmem:[%s41 + $0x19c] sm:$0xf]
    %v2866 = vld [vmem:[%s41 + $0x1a0] sm:$0xf]
    %v2867 = vld [vmem:[%s41 + $0x1a4] sm:$0xf]
    %v2868 = vld [vmem:[%s41 + $0x1a8] sm:$0xf]
    %v2869 = vld [vmem:[%s41 + $0x1ac] sm:$0xf]
    %v2870 = vld [vmem:[%s41 + $0x1b0] sm:$0xf]
    %v2871 = vld [vmem:[%s41 + $0x1b4] sm:$0xf]
    %v2872 = vld [vmem:[%s41 + $0x1b8] sm:$0xf]
    %v2873 = vld [vmem:[%s41 + $0x1bc] sm:$0xf]
    %v2874 = vpack.c.bf16 %v2211, %v2211
    %v2891 = vunpack.c.l.b16 %v2858
    %v2892 = vunpack.c.l.b16 %v2859
    %v2893 = vunpack.c.l.b16 %v2860
    %v2894 = vunpack.c.l.b16 %v2861
    %v2895 = vunpack.c.l.b16 %v2862
    %v2896 = vunpack.c.l.b16 %v2863
    %v2897 = vunpack.c.l.b16 %v2864
    %v2898 = vunpack.c.l.b16 %v2865
    %v2899 = vunpack.c.l.b16 %v2866
    %v2900 = vunpack.c.l.b16 %v2867
    %v2901 = vunpack.c.l.b16 %v2868
    %v2902 = vunpack.c.l.b16 %v2869
    %v2903 = vunpack.c.l.b16 %v2870
    %v2904 = vunpack.c.l.b16 %v2871
    %v2905 = vunpack.c.l.b16 %v2872
    %v2906 = vunpack.c.l.b16 %v2873
    %v2907 = vpack.c.b16 %v2892, %v2891
    %v2908 = vpack.c.b16 %v2894, %v2893
    %v2909 = vpack.c.b16 %v2896, %v2895
    %v2910 = vpack.c.b16 %v2898, %v2897
    %v2911 = vpack.c.b16 %v2900, %v2899
    %v2912 = vpack.c.b16 %v2902, %v2901
    %v2913 = vpack.c.b16 %v2904, %v2903
    %v2914 = vpack.c.b16 %v2906, %v2905
    %2923 = vmatprep.subr.bf16.mxu0 0
    %2924 = vmatpush1.bf16.msra.mxu0 %v2907
    %2925 = vmatprep.subr.bf16.mxu0 0
    %2926 = vmatpush1.bf16.msra.mxu0 %v2908
    %2927 = vmatprep.subr.bf16.mxu0 0
    %2928 = vmatpush1.bf16.msra.mxu0 %v2909
    %2929 = vmatprep.subr.bf16.mxu0 0
    %2930 = vmatpush1.bf16.msra.mxu0 %v2910
    %2931 = vmatprep.subr.bf16.mxu0 0
    %2932 = vmatpush1.bf16.msra.mxu0 %v2911
    %2933 = vmatprep.subr.bf16.mxu0 0
    %2934 = vmatpush1.bf16.msra.mxu0 %v2912
    %2935 = vmatprep.subr.bf16.mxu0 0
    %2936 = vmatpush1.bf16.msra.mxu0 %v2913
    %2937 = vmatprep.subr.bf16.mxu0 0
    %2938 = vmatpush1.bf16.msra.mxu0 %v2914
    %2939 = vmatprep.subr.bf16.mxu0 0
    %2940 = vmatpush1.bf16.msra.mxu0 0
    %2941 = vmatprep.subr.bf16.mxu0 0
    %2942 = vmatpush1.bf16.msra.mxu0 0
    %2943 = vmatprep.subr.bf16.mxu0 0
    %2944 = vmatpush1.bf16.msra.mxu0 0
    %2945 = vmatprep.subr.bf16.mxu0 0
    %2946 = vmatpush1.bf16.msra.mxu0 0
    %2947 = vmatprep.subr.bf16.mxu0 0
    %2948 = vmatpush1.bf16.msra.mxu0 0
    %2949 = vmatprep.subr.bf16.mxu0 0
    %2950 = vmatpush1.bf16.msra.mxu0 0
    %2951 = vmatprep.subr.bf16.mxu0 0
    %2952 = vmatpush1.bf16.msra.mxu0 0
    %2953 = vmatprep.subr.bf16.mxu0 0
    %2954 = vmatpush1.bf16.msra.mxu0 0
    %2955 = vmatprep.mubr.bf16.mxu0 0
    %2956 = vmatmul.mubr.bf16.gmra.mrb[0].mxu0 %v2874
    %v2957 = vpop.f32.mrb[0].mxu0
    %v2958 = vadd.f32 0.0, %v2957
    %v2959 = vpop.f32.mrb[0].mxu0
    %v2960 = vpop.f32.mrb[0].mxu0
    %v2961 = vpop.f32.mrb[0].mxu0
    %2962 = vdwg.mxu0
    %v2963 = vadd.f32 %v2857, %v2958
    %v2964 = vld [vmem:[%s41 + $0x1c0] sm:$0xf]
    %v2965 = vld [vmem:[%s41 + $0x1c4] sm:$0xf]
    %v2966 = vld [vmem:[%s41 + $0x1c8] sm:$0xf]
    %v2967 = vld [vmem:[%s41 + $0x1cc] sm:$0xf]
    %v2968 = vld [vmem:[%s41 + $0x1d0] sm:$0xf]
    %v2969 = vld [vmem:[%s41 + $0x1d4] sm:$0xf]
    %v2970 = vld [vmem:[%s41 + $0x1d8] sm:$0xf]
    %v2971 = vld [vmem:[%s41 + $0x1dc] sm:$0xf]
    %v2972 = vld [vmem:[%s41 + $0x1e0] sm:$0xf]
    %v2973 = vld [vmem:[%s41 + $0x1e4] sm:$0xf]
    %v2974 = vld [vmem:[%s41 + $0x1e8] sm:$0xf]
    %v2975 = vld [vmem:[%s41 + $0x1ec] sm:$0xf]
    %v2976 = vld [vmem:[%s41 + $0x1f0] sm:$0xf]
    %v2977 = vld [vmem:[%s41 + $0x1f4] sm:$0xf]
    %v2978 = vld [vmem:[%s41 + $0x1f8] sm:$0xf]
    %v2979 = vld [vmem:[%s41 + $0x1fc] sm:$0xf]
    %v2980 = vpack.c.bf16 %v2214, %v2214
    %v2997 = vunpack.c.l.b16 %v2964
    %v2998 = vunpack.c.l.b16 %v2965
    %v2999 = vunpack.c.l.b16 %v2966
    %v3000 = vunpack.c.l.b16 %v2967
    %v3001 = vunpack.c.l.b16 %v2968
    %v3002 = vunpack.c.l.b16 %v2969
    %v3003 = vunpack.c.l.b16 %v2970
    %v3004 = vunpack.c.l.b16 %v2971
    %v3005 = vunpack.c.l.b16 %v2972
    %v3006 = vunpack.c.l.b16 %v2973
    %v3007 = vunpack.c.l.b16 %v2974
    %v3008 = vunpack.c.l.b16 %v2975
    %v3009 = vunpack.c.l.b16 %v2976
    %v3010 = vunpack.c.l.b16 %v2977
    %v3011 = vunpack.c.l.b16 %v2978
    %v3012 = vunpack.c.l.b16 %v2979
    %v3013 = vpack.c.b16 %v2998, %v2997
    %v3014 = vpack.c.b16 %v3000, %v2999
    %v3015 = vpack.c.b16 %v3002, %v3001
    %v3016 = vpack.c.b16 %v3004, %v3003
    %v3017 = vpack.c.b16 %v3006, %v3005
    %v3018 = vpack.c.b16 %v3008, %v3007
    %v3019 = vpack.c.b16 %v3010, %v3009
    %v3020 = vpack.c.b16 %v3012, %v3011
    %3029 = vmatprep.subr.bf16.mxu0 0
    %3030 = vmatpush1.bf16.msra.mxu0 %v3013
    %3031 = vmatprep.subr.bf16.mxu0 0
    %3032 = vmatpush1.bf16.msra.mxu0 %v3014
    %3033 = vmatprep.subr.bf16.mxu0 0
    %3034 = vmatpush1.bf16.msra.mxu0 %v3015
    %3035 = vmatprep.subr.bf16.mxu0 0
    %3036 = vmatpush1.bf16.msra.mxu0 %v3016
    %3037 = vmatprep.subr.bf16.mxu0 0
    %3038 = vmatpush1.bf16.msra.mxu0 %v3017
    %3039 = vmatprep.subr.bf16.mxu0 0
    %3040 = vmatpush1.bf16.msra.mxu0 %v3018
    %3041 = vmatprep.subr.bf16.mxu0 0
    %3042 = vmatpush1.bf16.msra.mxu0 %v3019
    %3043 = vmatprep.subr.bf16.mxu0 0
    %3044 = vmatpush1.bf16.msra.mxu0 %v3020
    %3045 = vmatprep.subr.bf16.mxu0 0
    %3046 = vmatpush1.bf16.msra.mxu0 0
    %3047 = vmatprep.subr.bf16.mxu0 0
    %3048 = vmatpush1.bf16.msra.mxu0 0
    %3049 = vmatprep.subr.bf16.mxu0 0
    %3050 = vmatpush1.bf16.msra.mxu0 0
    %3051 = vmatprep.subr.bf16.mxu0 0
    %3052 = vmatpush1.bf16.msra.mxu0 0
    %3053 = vmatprep.subr.bf16.mxu0 0
    %3054 = vmatpush1.bf16.msra.mxu0 0
    %3055 = vmatprep.subr.bf16.mxu0 0
    %3056 = vmatpush1.bf16.msra.mxu0 0
    %3057 = vmatprep.subr.bf16.mxu0 0
    %3058 = vmatpush1.bf16.msra.mxu0 0
    %3059 = vmatprep.subr.bf16.mxu0 0
    %3060 = vmatpush1.bf16.msra.mxu0 0
    %3061 = vmatprep.mubr.bf16.mxu0 0
    %3062 = vmatmul.mubr.bf16.gmra.mrb[0].mxu0 %v2980
    %v3063 = vpop.f32.mrb[0].mxu0
    %v3064 = vadd.f32 0.0, %v3063
    %v3065 = vpop.f32.mrb[0].mxu0
    %v3066 = vpop.f32.mrb[0].mxu0
    %v3067 = vpop.f32.mrb[0].mxu0
    %3068 = vdwg.mxu0
    %v3069 = vadd.f32 %v2963, %v3064
    %v3070 = vld [vmem:[%s41 + $0x200] sm:$0xf]
    %v3071 = vld [vmem:[%s41 + $0x204] sm:$0xf]
    %v3072 = vld [vmem:[%s41 + $0x208] sm:$0xf]
    %v3073 = vld [vmem:[%s41 + $0x20c] sm:$0xf]
    %v3074 = vld [vmem:[%s41 + $0x210] sm:$0xf]
    %v3075 = vld [vmem:[%s41 + $0x214] sm:$0xf]
    %v3076 = vld [vmem:[%s41 + $0x218] sm:$0xf]
    %v3077 = vld [vmem:[%s41 + $0x21c] sm:$0xf]
    %v3078 = vld [vmem:[%s41 + $0x220] sm:$0xf]
    %v3079 = vld [vmem:[%s41 + $0x224] sm:$0xf]
    %v3080 = vld [vmem:[%s41 + $0x228] sm:$0xf]
    %v3081 = vld [vmem:[%s41 + $0x22c] sm:$0xf]
    %v3082 = vld [vmem:[%s41 + $0x230] sm:$0xf]
    %v3083 = vld [vmem:[%s41 + $0x234] sm:$0xf]
    %v3084 = vld [vmem:[%s41 + $0x238] sm:$0xf]
    %v3085 = vld [vmem:[%s41 + $0x23c] sm:$0xf]
    %v3086 = vpack.c.bf16 %v2219, %v2219
    %v3103 = vunpack.c.l.b16 %v3070
    %v3104 = vunpack.c.l.b16 %v3071
    %v3105 = vunpack.c.l.b16 %v3072
    %v3106 = vunpack.c.l.b16 %v3073
    %v3107 = vunpack.c.l.b16 %v3074
    %v3108 = vunpack.c.l.b16 %v3075
    %v3109 = vunpack.c.l.b16 %v3076
    %v3110 = vunpack.c.l.b16 %v3077
    %v3111 = vunpack.c.l.b16 %v3078
    %v3112 = vunpack.c.l.b16 %v3079
    %v3113 = vunpack.c.l.b16 %v3080
    %v3114 = vunpack.c.l.b16 %v3081
    %v3115 = vunpack.c.l.b16 %v3082
    %v3116 = vunpack.c.l.b16 %v3083
    %v3117 = vunpack.c.l.b16 %v3084
    %v3118 = vunpack.c.l.b16 %v3085
    %v3119 = vpack.c.b16 %v3104, %v3103
    %v3120 = vpack.c.b16 %v3106, %v3105
    %v3121 = vpack.c.b16 %v3108, %v3107
    %v3122 = vpack.c.b16 %v3110, %v3109
    %v3123 = vpack.c.b16 %v3112, %v3111
    %v3124 = vpack.c.b16 %v3114, %v3113
    %v3125 = vpack.c.b16 %v3116, %v3115
    %v3126 = vpack.c.b16 %v3118, %v3117
    %3135 = vmatprep.subr.bf16.mxu0 0
    %3136 = vmatpush1.bf16.msra.mxu0 %v3119
    %3137 = vmatprep.subr.bf16.mxu0 0
    %3138 = vmatpush1.bf16.msra.mxu0 %v3120
    %3139 = vmatprep.subr.bf16.mxu0 0
    %3140 = vmatpush1.bf16.msra.mxu0 %v3121
    %3141 = vmatprep.subr.bf16.mxu0 0
    %3142 = vmatpush1.bf16.msra.mxu0 %v3122
    %3143 = vmatprep.subr.bf16.mxu0 0
    %3144 = vmatpush1.bf16.msra.mxu0 %v3123
    %3145 = vmatprep.subr.bf16.mxu0 0
    %3146 = vmatpush1.bf16.msra.mxu0 %v3124
    %3147 = vmatprep.subr.bf16.mxu0 0
    %3148 = vmatpush1.bf16.msra.mxu0 %v3125
    %3149 = vmatprep.subr.bf16.mxu0 0
    %3150 = vmatpush1.bf16.msra.mxu0 %v3126
    %3151 = vmatprep.subr.bf16.mxu0 0
    %3152 = vmatpush1.bf16.msra.mxu0 0
    %3153 = vmatprep.subr.bf16.mxu0 0
    %3154 = vmatpush1.bf16.msra.mxu0 0
    %3155 = vmatprep.subr.bf16.mxu0 0
    %3156 = vmatpush1.bf16.msra.mxu0 0
    %3157 = vmatprep.subr.bf16.mxu0 0
    %3158 = vmatpush1.bf16.msra.mxu0 0
    %3159 = vmatprep.subr.bf16.mxu0 0
    %3160 = vmatpush1.bf16.msra.mxu0 0
    %3161 = vmatprep.subr.bf16.mxu0 0
    %3162 = vmatpush1.bf16.msra.mxu0 0
    %3163 = vmatprep.subr.bf16.mxu0 0
    %3164 = vmatpush1.bf16.msra.mxu0 0
    %3165 = vmatprep.subr.bf16.mxu0 0
    %3166 = vmatpush1.bf16.msra.mxu0 0
    %3167 = vmatprep.mubr.bf16.mxu0 0
    %3168 = vmatmul.mubr.bf16.gmra.mrb[0].mxu0 %v3086
    %v3169 = vpop.f32.mrb[0].mxu0
    %v3170 = vadd.f32 0.0, %v3169
    %v3171 = vpop.f32.mrb[0].mxu0
    %v3172 = vpop.f32.mrb[0].mxu0
    %v3173 = vpop.f32.mrb[0].mxu0
    %3174 = vdwg.mxu0
    %v3175 = vadd.f32 %v3069, %v3170
    %v3176 = vld [vmem:[%s43] sm:$0x1]
    %v3177 = vunpack.c.l.bf16 %v3176
    %v3178 = vlaneseq
    %v3179 = vshrl.u32 %v3178, 7
    %v3180 = vsub.s32 0, %v3179
    %v3181 = vrot.slane %v3177, %v3180
    %v3182 = vadd.f32 %v3175, %v3181
    %v3183 = vmax.f32 %v3182, 0.0
    %v3184 = vld [vmem:[%s45] sm:$0xf]
    %v3185 = vld [vmem:[%s45 + $0x4] sm:$0xf]
    %v3186 = vld [vmem:[%s45 + $0x8] sm:$0xf]
    %v3187 = vld [vmem:[%s45 + $0xc] sm:$0xf]
    %v3188 = vld [vmem:[%s45 + $0x10] sm:$0xf]
    %v3189 = vld [vmem:[%s45 + $0x14] sm:$0xf]
    %v3190 = vld [vmem:[%s45 + $0x18] sm:$0xf]
    %v3191 = vld [vmem:[%s45 + $0x1c] sm:$0xf]
    %v3192 = vld [vmem:[%s45 + $0x20] sm:$0xf]
    %v3193 = vld [vmem:[%s45 + $0x24] sm:$0xf]
    %v3194 = vld [vmem:[%s45 + $0x28] sm:$0xf]
    %v3195 = vld [vmem:[%s45 + $0x2c] sm:$0xf]
    %v3196 = vld [vmem:[%s45 + $0x30] sm:$0xf]
    %v3197 = vld [vmem:[%s45 + $0x34] sm:$0xf]
    %v3198 = vld [vmem:[%s45 + $0x38] sm:$0xf]
    %v3199 = vld [vmem:[%s45 + $0x3c] sm:$0xf]
    %v3200 = vpack.c.bf16 %v3183, %v3183
    %v3201 = vld [vmem:[%s47] sm:$0x1]
    %v3202 = vunpack.c.l.bf16 %v3201
    %v3203 = vlaneseq
    %v3204 = vshrl.u32 %v3203, 7
    %v3205 = vsub.s32 0, %v3204
    %v3206 = vrot.slane %v3202, %v3205
    %v3223 = vunpack.c.l.b16 %v3184
    %v3224 = vunpack.c.l.b16 %v3185
    %v3225 = vunpack.c.l.b16 %v3186
    %v3226 = vunpack.c.l.b16 %v3187
    %v3227 = vunpack.c.l.b16 %v3188
    %v3228 = vunpack.c.l.b16 %v3189
    %v3229 = vunpack.c.l.b16 %v3190
    %v3230 = vunpack.c.l.b16 %v3191
    %v3231 = vunpack.c.l.b16 %v3192
    %v3232 = vunpack.c.l.b16 %v3193
    %v3233 = vunpack.c.l.b16 %v3194
    %v3234 = vunpack.c.l.b16 %v3195
    %v3235 = vunpack.c.l.b16 %v3196
    %v3236 = vunpack.c.l.b16 %v3197
    %v3237 = vunpack.c.l.b16 %v3198
    %v3238 = vunpack.c.l.b16 %v3199
    %v3239 = vpack.c.b16 %v3224, %v3223
    %v3240 = vpack.c.b16 %v3226, %v3225
    %v3241 = vpack.c.b16 %v3228, %v3227
    %v3242 = vpack.c.b16 %v3230, %v3229
    %v3243 = vpack.c.b16 %v3232, %v3231
    %v3244 = vpack.c.b16 %v3234, %v3233
    %v3245 = vpack.c.b16 %v3236, %v3235
    %v3246 = vpack.c.b16 %v3238, %v3237
    %3255 = vmatprep.subr.bf16.mxu0 0
    %3256 = vmatpush1.bf16.msra.mxu0 %v3239
    %3257 = vmatprep.subr.bf16.mxu0 0
    %3258 = vmatpush1.bf16.msra.mxu0 %v3240
    %3259 = vmatprep.subr.bf16.mxu0 0
    %3260 = vmatpush1.bf16.msra.mxu0 %v3241
    %3261 = vmatprep.subr.bf16.mxu0 0
    %3262 = vmatpush1.bf16.msra.mxu0 %v3242
    %3263 = vmatprep.subr.bf16.mxu0 0
    %3264 = vmatpush1.bf16.msra.mxu0 %v3243
    %3265 = vmatprep.subr.bf16.mxu0 0
    %3266 = vmatpush1.bf16.msra.mxu0 %v3244
    %3267 = vmatprep.subr.bf16.mxu0 0
    %3268 = vmatpush1.bf16.msra.mxu0 %v3245
    %3269 = vmatprep.subr.bf16.mxu0 0
    %3270 = vmatpush1.bf16.msra.mxu0 %v3246
    %3271 = vmatprep.subr.bf16.mxu0 0
    %3272 = vmatpush1.bf16.msra.mxu0 0
    %3273 = vmatprep.subr.bf16.mxu0 0
    %3274 = vmatpush1.bf16.msra.mxu0 0
    %3275 = vmatprep.subr.bf16.mxu0 0
    %3276 = vmatpush1.bf16.msra.mxu0 0
    %3277 = vmatprep.subr.bf16.mxu0 0
    %3278 = vmatpush1.bf16.msra.mxu0 0
    %3279 = vmatprep.subr.bf16.mxu0 0
    %3280 = vmatpush1.bf16.msra.mxu0 0
    %3281 = vmatprep.subr.bf16.mxu0 0
    %3282 = vmatpush1.bf16.msra.mxu0 0
    %3283 = vmatprep.subr.bf16.mxu0 0
    %3284 = vmatpush1.bf16.msra.mxu0 0
    %3285 = vmatprep.subr.bf16.mxu0 0
    %3286 = vmatpush1.bf16.msra.mxu0 0
    %3287 = vmatprep.mubr.bf16.mxu0 0
    %3288 = vmatmul.mubr.bf16.gmra.mrb[0].mxu0 %v3200
    %v3289 = vpop.f32.mrb[0].mxu0
    %v3290 = vadd.f32 %v3206, %v3289
    %v3291 = vpop.f32.mrb[0].mxu0
    %v3292 = vpop.f32.mrb[0].mxu0
    %v3293 = vpop.f32.mrb[0].mxu0
    %3294 = vdwg.mxu0
    %v3295 = vld [vmem:[%s49] sm:$0xf]
    %v3296 = vld [vmem:[%s49 + $0x4] sm:$0xf]
    %v3297 = vld [vmem:[%s49 + $0x8] sm:$0xf]
    %v3298 = vld [vmem:[%s49 + $0xc] sm:$0xf]
    %v3299 = vld [vmem:[%s49 + $0x10] sm:$0xf]
    %v3300 = vld [vmem:[%s49 + $0x14] sm:$0xf]
    %v3301 = vld [vmem:[%s49 + $0x18] sm:$0xf]
    %v3302 = vld [vmem:[%s49 + $0x1c] sm:$0xf]
    %v3303 = vld [vmem:[%s49 + $0x20] sm:$0xf]
    %v3304 = vld [vmem:[%s49 + $0x24] sm:$0xf]
    %v3305 = vld [vmem:[%s49 + $0x28] sm:$0xf]
    %v3306 = vld [vmem:[%s49 + $0x2c] sm:$0xf]
    %v3307 = vld [vmem:[%s49 + $0x30] sm:$0xf]
    %v3308 = vld [vmem:[%s49 + $0x34] sm:$0xf]
    %v3309 = vld [vmem:[%s49 + $0x38] sm:$0xf]
    %v3310 = vld [vmem:[%s49 + $0x3c] sm:$0xf]
    %v3311 = vld [vmem:[%s49 + $0x40] sm:$0xf]
    %v3312 = vld [vmem:[%s49 + $0x44] sm:$0xf]
    %v3313 = vld [vmem:[%s49 + $0x48] sm:$0xf]
    %v3314 = vld [vmem:[%s49 + $0x4c] sm:$0xf]
    %v3315 = vld [vmem:[%s49 + $0x50] sm:$0xf]
    %v3316 = vld [vmem:[%s49 + $0x54] sm:$0xf]
    %v3317 = vld [vmem:[%s49 + $0x58] sm:$0xf]
    %v3318 = vld [vmem:[%s49 + $0x5c] sm:$0xf]
    %v3319 = vld [vmem:[%s49 + $0x60] sm:$0xf]
    %v3320 = vld [vmem:[%s49 + $0x64] sm:$0xf]
    %v3321 = vld [vmem:[%s49 + $0x68] sm:$0xf]
    %v3322 = vld [vmem:[%s49 + $0x6c] sm:$0xf]
    %v3323 = vld [vmem:[%s49 + $0x70] sm:$0xf]
    %v3324 = vld [vmem:[%s49 + $0x74] sm:$0xf]
    %v3325 = vld [vmem:[%s49 + $0x78] sm:$0xf]
    %v3326 = vld [vmem:[%s49 + $0x7c] sm:$0xf]
    %v3327 = vld [vmem:[%s51] sm:$0x1]
    %v3328 = vunpack.c.l.bf16 %v3327
    %v3329 = vlaneseq
    %v3330 = vshrl.u32 %v3329, 7
    %v3331 = vsub.s32 0, %v3330
    %v3332 = vrot.slane %v3328, %v3331
    %v3365 = vunpack.c.l.b16 %v3295
    %v3366 = vunpack.c.l.b16 %v3296
    %v3367 = vunpack.c.l.b16 %v3297
    %v3368 = vunpack.c.l.b16 %v3298
    %v3369 = vunpack.c.l.b16 %v3299
    %v3370 = vunpack.c.l.b16 %v3300
    %v3371 = vunpack.c.l.b16 %v3301
    %v3372 = vunpack.c.l.b16 %v3302
    %v3373 = vunpack.c.l.b16 %v3303
    %v3374 = vunpack.c.l.b16 %v3304
    %v3375 = vunpack.c.l.b16 %v3305
    %v3376 = vunpack.c.l.b16 %v3306
    %v3377 = vunpack.c.l.b16 %v3307
    %v3378 = vunpack.c.l.b16 %v3308
    %v3379 = vunpack.c.l.b16 %v3309
    %v3380 = vunpack.c.l.b16 %v3310
    %v3381 = vunpack.c.l.b16 %v3311
    %v3382 = vunpack.c.l.b16 %v3312
    %v3383 = vunpack.c.l.b16 %v3313
    %v3384 = vunpack.c.l.b16 %v3314
    %v3385 = vunpack.c.l.b16 %v3315
    %v3386 = vunpack.c.l.b16 %v3316
    %v3387 = vunpack.c.l.b16 %v3317
    %v3388 = vunpack.c.l.b16 %v3318
    %v3389 = vunpack.c.l.b16 %v3319
    %v3390 = vunpack.c.l.b16 %v3320
    %v3391 = vunpack.c.l.b16 %v3321
    %v3392 = vunpack.c.l.b16 %v3322
    %v3393 = vunpack.c.l.b16 %v3323
    %v3394 = vunpack.c.l.b16 %v3324
    %v3395 = vunpack.c.l.b16 %v3325
    %v3396 = vunpack.c.l.b16 %v3326
    %v3397 = vpack.c.b16 %v3366, %v3365
    %v3398 = vpack.c.b16 %v3368, %v3367
    %v3399 = vpack.c.b16 %v3370, %v3369
    %v3400 = vpack.c.b16 %v3372, %v3371
    %v3401 = vpack.c.b16 %v3374, %v3373
    %v3402 = vpack.c.b16 %v3376, %v3375
    %v3403 = vpack.c.b16 %v3378, %v3377
    %v3404 = vpack.c.b16 %v3380, %v3379
    %v3405 = vpack.c.b16 %v3382, %v3381
    %v3406 = vpack.c.b16 %v3384, %v3383
    %v3407 = vpack.c.b16 %v3386, %v3385
    %v3408 = vpack.c.b16 %v3388, %v3387
    %v3409 = vpack.c.b16 %v3390, %v3389
    %v3410 = vpack.c.b16 %v3392, %v3391
    %v3411 = vpack.c.b16 %v3394, %v3393
    %v3412 = vpack.c.b16 %v3396, %v3395
    %3429 = vmatprep.subr.bf16.mxu0 0
    %3430 = vmatpush1.bf16.msra.mxu0 %v3397
    %3431 = vmatprep.subr.bf16.mxu0 0
    %3432 = vmatpush1.bf16.msra.mxu0 %v3398
    %3433 = vmatprep.subr.bf16.mxu0 0
    %3434 = vmatpush1.bf16.msra.mxu0 %v3399
    %3435 = vmatprep.subr.bf16.mxu0 0
    %3436 = vmatpush1.bf16.msra.mxu0 %v3400
    %3437 = vmatprep.subr.bf16.mxu0 0
    %3438 = vmatpush1.bf16.msra.mxu0 %v3401
    %3439 = vmatprep.subr.bf16.mxu0 0
    %3440 = vmatpush1.bf16.msra.mxu0 %v3402
    %3441 = vmatprep.subr.bf16.mxu0 0
    %3442 = vmatpush1.bf16.msra.mxu0 %v3403
    %3443 = vmatprep.subr.bf16.mxu0 0
    %3444 = vmatpush1.bf16.msra.mxu0 %v3404
    %3445 = vmatprep.subr.bf16.mxu0 0
    %3446 = vmatpush1.bf16.msra.mxu0 %v3405
    %3447 = vmatprep.subr.bf16.mxu0 0
    %3448 = vmatpush1.bf16.msra.mxu0 %v3406
    %3449 = vmatprep.subr.bf16.mxu0 0
    %3450 = vmatpush1.bf16.msra.mxu0 %v3407
    %3451 = vmatprep.subr.bf16.mxu0 0
    %3452 = vmatpush1.bf16.msra.mxu0 %v3408
    %3453 = vmatprep.subr.bf16.mxu0 0
    %3454 = vmatpush1.bf16.msra.mxu0 %v3409
    %3455 = vmatprep.subr.bf16.mxu0 0
    %3456 = vmatpush1.bf16.msra.mxu0 %v3410
    %3457 = vmatprep.subr.bf16.mxu0 0
    %3458 = vmatpush1.bf16.msra.mxu0 %v3411
    %3459 = vmatprep.subr.bf16.mxu0 0
    %3460 = vmatpush1.bf16.msra.mxu0 %v3412
    %3461 = vmatprep.mubr.bf16.mxu0 %v2004
    %3462 = vmatmul.mubr.bf16.gmra.mrb[0].mxu0 %v2003
    %v3463 = vpop.f32.mrb[0].mxu0
    %v3464 = vadd.f32 %v3332, %v3463
    %v3465 = vpop.f32.mrb[0].mxu0
    %v3466 = vpop.f32.mrb[0].mxu0
    %v3467 = vpop.f32.mrb[0].mxu0
    %3468 = vdwg.mxu0
    %v3469 = vadd.f32 %v3290, %v3464
    %v3470 = vmax.f32 %v3469, 0.0
    %v3471 = vld [vmem:[%s5] sm:$0xff]
    %v3472 = vadd.f32 %v3470, %v3471
    %v3473 = vld [vmem:[%s7] sm:$0xff]
    %v3474 = vld [vmem:[%s7 + $0x8] sm:$0xff]
    %v3475 = vld [vmem:[%s9] sm:$0xff]
    %v3476 = vld [vmem:[%s9 + $0x8] sm:$0xff]
    %v3477 = vld [vmem:[%s85] sm:$0x3f]
    %v3478 = vld [vmem:[%s95] sm:$0x3]
    %v3479 = vld [vmem:[%s11] sm:$0xff]
    %v3480 = vld [vmem:[%s11 + $0x8] sm:$0xff]
    %v3481 = vld [vmem:[%s53] sm:$0xf]
    %v3482 = vld [vmem:[%s53 + $0x4] sm:$0xf]
    %v3483 = vld [vmem:[%s53 + $0x8] sm:$0xf]
    %v3484 = vld [vmem:[%s53 + $0xc] sm:$0xf]
    %v3485 = vpack.c.bf16 %v3474, %v3473
    %v3486 = vld [vmem:[%s55] sm:$0x1]
    %v3487 = vunpack.c.l.bf16 %v3486
    %v3488 = vlaneseq
    %v3489 = vshrl.u32 %v3488, 7
    %v3490 = vsub.s32 0, %v3489
    %v3491 = vrot.slane %v3487, %v3490
    %v3496 = vunpack.c.l.b16 %v3481
    %v3497 = vunpack.c.l.b16 %v3482
    %v3498 = vunpack.c.l.b16 %v3483
    %v3499 = vunpack.c.l.b16 %v3484
    %v3500 = vpack.c.b16 %v3497, %v3496
    %v3501 = vpack.c.b16 %v3499, %v3498
    %vm3504 = vcmask 261120
    %v3506 = vsel %vm3504, %v3485, 0
    %3508 = vmatprep.subr.bf16.mxu0 0
    %3509 = vmatpush1.bf16.msra.mxu0 %v3500
    %3510 = vmatprep.subr.bf16.mxu0 0
    %3511 = vmatpush1.bf16.msra.mxu0 %v3501
    %3512 = vmatprep.subr.bf16.mxu0 0
    %3513 = vmatpush1.bf16.msra.mxu0 0
    %3514 = vmatprep.subr.bf16.mxu0 0
    %3515 = vmatpush1.bf16.msra.mxu0 0
    %3516 = vmatprep.subr.bf16.mxu0 0
    %3517 = vmatpush1.bf16.msra.mxu0 0
    %3518 = vmatprep.subr.bf16.mxu0 0
    %3519 = vmatpush1.bf16.msra.mxu0 0
    %3520 = vmatprep.subr.bf16.mxu0 0
    %3521 = vmatpush1.bf16.msra.mxu0 0
    %3522 = vmatprep.subr.bf16.mxu0 0
    %3523 = vmatpush1.bf16.msra.mxu0 0
    %3524 = vmatprep.subr.bf16.mxu0 0
    %3525 = vmatpush1.bf16.msra.mxu0 0
    %3526 = vmatprep.subr.bf16.mxu0 0
    %3527 = vmatpush1.bf16.msra.mxu0 0
    %3528 = vmatprep.subr.bf16.mxu0 0
    %3529 = vmatpush1.bf16.msra.mxu0 0
    %3530 = vmatprep.subr.bf16.mxu0 0
    %3531 = vmatpush1.bf16.msra.mxu0 0
    %3532 = vmatprep.subr.bf16.mxu0 0
    %3533 = vmatpush1.bf16.msra.mxu0 0
    %3534 = vmatprep.subr.bf16.mxu0 0
    %3535 = vmatpush1.bf16.msra.mxu0 0
    %3536 = vmatprep.subr.bf16.mxu0 0
    %3537 = vmatpush1.bf16.msra.mxu0 0
    %3538 = vmatprep.subr.bf16.mxu0 0
    %3539 = vmatpush1.bf16.msra.mxu0 0
    %3540 = vmatprep.mubr.bf16.mxu0 0
    %3541 = vmatmul.mubr.bf16.gmra.mrb[0].mxu0 %v3506
    %v3542 = vpop.f32.mrb[0].mxu0
    %v3543 = vadd.f32 %v3491, %v3542
    %v3544 = vpop.f32.mrb[0].mxu0
    %v3545 = vpop.f32.mrb[0].mxu0
    %v3546 = vadd.f32 %v3491, %v3545
    %v3547 = vpop.f32.mrb[0].mxu0
    %3548 = vdwg.mxu0
    %v3549 = vld [vmem:[%s57] sm:$0xf]
    %v3550 = vld [vmem:[%s57 + $0x4] sm:$0xf]
    %v3551 = vld [vmem:[%s57 + $0x8] sm:$0xf]
    %v3552 = vld [vmem:[%s57 + $0xc] sm:$0xf]
    %v3553 = vpack.c.bf16 %v3472, %v3472
    %v3554 = vld [vmem:[%s59] sm:$0x1]
    %v3555 = vunpack.c.l.bf16 %v3554
    %v3556 = vlaneseq
    %v3557 = vshrl.u32 %v3556, 7
    %v3558 = vsub.s32 0, %v3557
    %v3559 = vrot.slane %v3555, %v3558
    %v3564 = vunpack.c.l.b16 %v3549
    %v3565 = vunpack.c.l.b16 %v3550
    %v3566 = vunpack.c.l.b16 %v3551
    %v3567 = vunpack.c.l.b16 %v3552
    %v3568 = vpack.c.b16 %v3565, %v3564
    %v3569 = vpack.c.b16 %v3567, %v3566
    %v3573 = vsel %vm3504, %v3553, 0
    %3575 = vmatprep.subr.bf16.mxu0 0
    %3576 = vmatpush1.bf16.msra.mxu0 %v3568
    %3577 = vmatprep.subr.bf16.mxu0 0
    %3578 = vmatpush1.bf16.msra.mxu0 %v3569
    %3579 = vmatprep.subr.bf16.mxu0 0
    %3580 = vmatpush1.bf16.msra.mxu0 0
    %3581 = vmatprep.subr.bf16.mxu0 0
    %3582 = vmatpush1.bf16.msra.mxu0 0
    %3583 = vmatprep.subr.bf16.mxu0 0
    %3584 = vmatpush1.bf16.msra.mxu0 0
    %3585 = vmatprep.subr.bf16.mxu0 0
    %3586 = vmatpush1.bf16.msra.mxu0 0
    %3587 = vmatprep.subr.bf16.mxu0 0
    %3588 = vmatpush1.bf16.msra.mxu0 0
    %3589 = vmatprep.subr.bf16.mxu0 0
    %3590 = vmatpush1.bf16.msra.mxu0 0
    %3591 = vmatprep.subr.bf16.mxu0 0
    %3592 = vmatpush1.bf16.msra.mxu0 0
    %3593 = vmatprep.subr.bf16.mxu0 0
    %3594 = vmatpush1.bf16.msra.mxu0 0
    %3595 = vmatprep.subr.bf16.mxu0 0
    %3596 = vmatpush1.bf16.msra.mxu0 0
    %3597 = vmatprep.subr.bf16.mxu0 0
    %3598 = vmatpush1.bf16.msra.mxu0 0
    %3599 = vmatprep.subr.bf16.mxu0 0
    %3600 = vmatpush1.bf16.msra.mxu0 0
    %3601 = vmatprep.subr.bf16.mxu0 0
    %3602 = vmatpush1.bf16.msra.mxu0 0
    %3603 = vmatprep.subr.bf16.mxu0 0
    %3604 = vmatpush1.bf16.msra.mxu0 0
    %3605 = vmatprep.subr.bf16.mxu0 0
    %3606 = vmatpush1.bf16.msra.mxu0 0
    %3607 = vmatprep.mubr.bf16.mxu0 0
    %3608 = vmatmul.mubr.bf16.gmra.mrb[0].mxu0 %v3573
    %v3609 = vpop.f32.mrb[0].mxu0
    %v3610 = vadd.f32 %v3559, %v3609
    %v3611 = vpop.f32.mrb[0].mxu0
    %v3612 = vpop.f32.mrb[0].mxu0
    %v3613 = vpop.f32.mrb[0].mxu0
    %3614 = vdwg.mxu0
    %v3615 = vld [vmem:[%s61] sm:$0xff]
    %v3616 = vld [vmem:[%s61 + $0x8] sm:$0xff]
    %v3617 = vld [vmem:[%s61 + $0x10] sm:$0xff]
    %v3618 = vld [vmem:[%s61 + $0x18] sm:$0xff]
    %v3619 = vpack.c.bf16 %v3546, %v3543
    %v3620 = vpack.c.bf16 %v3610, %v3610
    %v3622 = vsel %vm952, %v3619, 0
    %v3625 = vsel %vm952, %v3620, 0
    %3627 = vmatprep.subr.bf16.mxu0 0
    %3628 = vmatpush1.bf16.xpose.msra.mxu0 %v3625
    %3629 = vmatprep.subr.bf16.mxu0 0
    %3630 = vmatpush1.bf16.xpose.msra.mxu0 0
    %3631 = vmatprep.subr.bf16.mxu0 0
    %3632 = vmatpush1.bf16.xpose.msra.mxu0 0
    %3633 = vmatprep.subr.bf16.mxu0 0
    %3634 = vmatpush1.bf16.xpose.msra.mxu0 0
    %3635 = vmatprep.subr.bf16.mxu0 0
    %3636 = vmatpush1.bf16.xpose.msra.mxu0 0
    %3637 = vmatprep.subr.bf16.mxu0 0
    %3638 = vmatpush1.bf16.xpose.msra.mxu0 0
    %3639 = vmatprep.subr.bf16.mxu0 0
    %3640 = vmatpush1.bf16.xpose.msra.mxu0 0
    %3641 = vmatprep.subr.bf16.mxu0 0
    %3642 = vmatpush1.bf16.xpose.msra.mxu0 0
    %3643 = vmatprep.subr.bf16.mxu0 0
    %3644 = vmatpush1.bf16.xpose.msra.mxu0 0
    %3645 = vmatprep.subr.bf16.mxu0 0
    %3646 = vmatpush1.bf16.xpose.msra.mxu0 0
    %3647 = vmatprep.subr.bf16.mxu0 0
    %3648 = vmatpush1.bf16.xpose.msra.mxu0 0
    %3649 = vmatprep.subr.bf16.mxu0 0
    %3650 = vmatpush1.bf16.xpose.msra.mxu0 0
    %3651 = vmatprep.subr.bf16.mxu0 0
    %3652 = vmatpush1.bf16.xpose.msra.mxu0 0
    %3653 = vmatprep.subr.bf16.mxu0 0
    %3654 = vmatpush1.bf16.xpose.msra.mxu0 0
    %3655 = vmatprep.subr.bf16.mxu0 0
    %3656 = vmatpush1.bf16.xpose.msra.mxu0 0
    %3657 = vmatprep.subr.bf16.mxu0 0
    %3658 = vmatpush1.bf16.xpose.msra.mxu0 0
    %3659 = vmatprep.mubr.bf16.mxu0 0
    %3660 = vmatmul.mubr.bf16.gmra.mrb[0].mxu0 %v3622
    %v3661 = vpop.f32.mrb[0].mxu0
    %v3662 = vadd.f32 0.0, %v3661
    %v3663 = vpop.f32.mrb[0].mxu0
    %v3664 = vpop.f32.mrb[0].mxu0
    %v3665 = vadd.f32 0.0, %v3664
    %v3666 = vpop.f32.mrb[0].mxu0
    %3667 = vdwg.mxu0
    %v3668 = vmul.f32 %v3662, 0.35355338
    %v3669 = vmul.f32 %v3665, 0.35355338
    %v3670 = vadd.f32 %v3668, %v3479
    %v3671 = vadd.f32 %v3669, %v3480
    %v3672 = vsel %vm952, %v3670, -inf
    %3673 = vmax.xlane.f32.xlu0 %v3672
    %v3674 = vpop.xlane.xlu0 %3673
    %v3675 = vsel %vm952, %v3671, -inf
    %3676 = vmax.xlane.f32.xlu0 %v3675
    %v3677 = vpop.xlane.xlu0 %3676
    %v3678 = vsub.f32 %v3670, %v3674
    %v3679 = vsub.f32 %v3671, %v3677
    %v3680 = vmul.f32 %v3678, 1.442695
    %v3681 = vpow.pop %v3680
    %v3682 = vmul.f32 %v3679, 1.442695
    %v3683 = vpow.pop %v3682
    %v3684 = vsel %vm952, %v3681, 0.0
    %3685 = vadd.xlane.f32.xlu0 %v3684
    %v3686 = vpop.xlane.xlu0 %3685
    %v3687 = vsel %vm952, %v3683, 0.0
    %3688 = vadd.xlane.f32.xlu0 %v3687
    %v3689 = vpop.xlane.xlu0 %3688
    %v3690 = vrcp.pop %v3686
    %v3691 = vrcp.pop %v3689
    %v3692 = vmul.f32 %v3681, %v3690
    %v3693 = vmul.f32 %v3683, %v3691
    %v3694 = vpack.c.bf16 %v3693, %v3692
    %3696 = vrot.lane.b32.xlu0 %v3620, 96
    %v3697 = vpop.permute.xlu0 %3696
    %v3699 = vsel %vm952, %v3694, 0
    %v3702 = vsel %vm968, %v3697, 0
    %3704 = vmatprep.subr.bf16.mxu0 0
    %3705 = vmatpush1.bf16.msra.mxu0 %v3702
    %3706 = vmatprep.subr.bf16.mxu0 0
    %3707 = vmatpush1.bf16.msra.mxu0 0
    %3708 = vmatprep.subr.bf16.mxu0 0
    %3709 = vmatpush1.bf16.msra.mxu0 0
    %3710 = vmatprep.subr.bf16.mxu0 0
    %3711 = vmatpush1.bf16.msra.mxu0 0
    %3712 = vmatprep.subr.bf16.mxu0 0
    %3713 = vmatpush1.bf16.msra.mxu0 0
    %3714 = vmatprep.subr.bf16.mxu0 0
    %3715 = vmatpush1.bf16.msra.mxu0 0
    %3716 = vmatprep.subr.bf16.mxu0 0
    %3717 = vmatpush1.bf16.msra.mxu0 0
    %3718 = vmatprep.subr.bf16.mxu0 0
    %3719 = vmatpush1.bf16.msra.mxu0 0
    %3720 = vmatprep.subr.bf16.mxu0 0
    %3721 = vmatpush1.bf16.msra.mxu0 0
    %3722 = vmatprep.subr.bf16.mxu0 0
    %3723 = vmatpush1.bf16.msra.mxu0 0
    %3724 = vmatprep.subr.bf16.mxu0 0
    %3725 = vmatpush1.bf16.msra.mxu0 0
    %3726 = vmatprep.subr.bf16.mxu0 0
    %3727 = vmatpush1.bf16.msra.mxu0 0
    %3728 = vmatprep.subr.bf16.mxu0 0
    %3729 = vmatpush1.bf16.msra.mxu0 0
    %3730 = vmatprep.subr.bf16.mxu0 0
    %3731 = vmatpush1.bf16.msra.mxu0 0
    %3732 = vmatprep.subr.bf16.mxu0 0
    %3733 = vmatpush1.bf16.msra.mxu0 0
    %3734 = vmatprep.subr.bf16.mxu0 0
    %3735 = vmatpush1.bf16.msra.mxu0 0
    %3736 = vmatprep.mubr.bf16.mxu0 0
    %3737 = vmatmul.mubr.bf16.gmra.mrb[0].mxu0 %v3699
    %v3738 = vpop.f32.mrb[0].mxu0
    %v3739 = vadd.f32 0.0, %v3738
    %v3740 = vpop.f32.mrb[0].mxu0
    %v3741 = vpop.f32.mrb[0].mxu0
    %v3742 = vadd.f32 0.0, %v3741
    %v3743 = vpop.f32.mrb[0].mxu0
    %3744 = vdwg.mxu0
    %v3745 = vpack.c.bf16 %v3742, %v3739
    %v3746 = vpack.c.bf16 %v3615, %v3615
    %3748 = vrot.lane.b32.xlu0 %v3619, 120
    %v3749 = vpop.permute.xlu0 %3748
    %3750 = vrot.lane.b32.xlu0 %v3620, 120
    %v3751 = vpop.permute.xlu0 %3750
    %v3753 = vsel %vm952, %v3749, 0
    %v3756 = vsel %vm952, %v3751, 0
    %3758 = vmatprep.subr.bf16.mxu0 0
    %3759 = vmatpush1.bf16.xpose.msra.mxu0 %v3756
    %3760 = vmatprep.subr.bf16.mxu0 0
    %3761 = vmatpush1.bf16.xpose.msra.mxu0 0
    %3762 = vmatprep.subr.bf16.mxu0 0
    %3763 = vmatpush1.bf16.xpose.msra.mxu0 0
    %3764 = vmatprep.subr.bf16.mxu0 0
    %3765 = vmatpush1.bf16.xpose.msra.mxu0 0
    %3766 = vmatprep.subr.bf16.mxu0 0
    %3767 = vmatpush1.bf16.xpose.msra.mxu0 0
    %3768 = vmatprep.subr.bf16.mxu0 0
    %3769 = vmatpush1.bf16.xpose.msra.mxu0 0
    %3770 = vmatprep.subr.bf16.mxu0 0
    %3771 = vmatpush1.bf16.xpose.msra.mxu0 0
    %3772 = vmatprep.subr.bf16.mxu0 0
    %3773 = vmatpush1.bf16.xpose.msra.mxu0 0
    %3774 = vmatprep.subr.bf16.mxu0 0
    %3775 = vmatpush1.bf16.xpose.msra.mxu0 0
    %3776 = vmatprep.subr.bf16.mxu0 0
    %3777 = vmatpush1.bf16.xpose.msra.mxu0 0
    %3778 = vmatprep.subr.bf16.mxu0 0
    %3779 = vmatpush1.bf16.xpose.msra.mxu0 0
    %3780 = vmatprep.subr.bf16.mxu0 0
    %3781 = vmatpush1.bf16.xpose.msra.mxu0 0
    %3782 = vmatprep.subr.bf16.mxu0 0
    %3783 = vmatpush1.bf16.xpose.msra.mxu0 0
    %3784 = vmatprep.subr.bf16.mxu0 0
    %3785 = vmatpush1.bf16.xpose.msra.mxu0 0
    %3786 = vmatprep.subr.bf16.mxu0 0
    %3787 = vmatpush1.bf16.xpose.msra.mxu0 0
    %3788 = vmatprep.subr.bf16.mxu0 0
    %3789 = vmatpush1.bf16.xpose.msra.mxu0 0
    %3790 = vmatprep.mubr.bf16.mxu0 0
    %3791 = vmatmul.mubr.bf16.gmra.mrb[0].mxu0 %v3753
    %v3792 = vpop.f32.mrb[0].mxu0
    %v3793 = vadd.f32 0.0, %v3792
    %v3794 = vpop.f32.mrb[0].mxu0
    %v3795 = vpop.f32.mrb[0].mxu0
    %v3796 = vadd.f32 0.0, %v3795
    %v3797 = vpop.f32.mrb[0].mxu0
    %3798 = vdwg.mxu0
    %v3799 = vmul.f32 %v3793, 0.35355338
    %v3800 = vmul.f32 %v3796, 0.35355338
    %v3801 = vadd.f32 %v3799, %v3479
    %v3802 = vadd.f32 %v3800, %v3480
    %v3803 = vsel %vm952, %v3801, -inf
    %3804 = vmax.xlane.f32.xlu0 %v3803
    %v3805 = vpop.xlane.xlu0 %3804
    %v3806 = vsel %vm952, %v3802, -inf
    %3807 = vmax.xlane.f32.xlu0 %v3806
    %v3808 = vpop.xlane.xlu0 %3807
    %v3809 = vsub.f32 %v3801, %v3805
    %v3810 = vsub.f32 %v3802, %v3808
    %v3811 = vmul.f32 %v3809, 1.442695
    %v3812 = vpow.pop %v3811
    %v3813 = vmul.f32 %v3810, 1.442695
    %v3814 = vpow.pop %v3813
    %v3815 = vsel %vm952, %v3812, 0.0
    %3816 = vadd.xlane.f32.xlu0 %v3815
    %v3817 = vpop.xlane.xlu0 %3816
    %v3818 = vsel %vm952, %v3814, 0.0
    %3819 = vadd.xlane.f32.xlu0 %v3818
    %v3820 = vpop.xlane.xlu0 %3819
    %v3821 = vrcp.pop %v3817
    %v3822 = vrcp.pop %v3820
    %v3823 = vmul.f32 %v3812, %v3821
    %v3824 = vmul.f32 %v3814, %v3822
    %v3825 = vpack.c.bf16 %v3824, %v3823
    %3826 = vrot.lane.b32.xlu0 %v3620, 88
    %v3827 = vpop.permute.xlu0 %3826
    %v3829 = vsel %vm952, %v3825, 0
    %v3832 = vsel %vm968, %v3827, 0
    %3834 = vmatprep.subr.bf16.mxu0 0
    %3835 = vmatpush1.bf16.msra.mxu0 %v3832
    %3836 = vmatprep.subr.bf16.mxu0 0
    %3837 = vmatpush1.bf16.msra.mxu0 0
    %3838 = vmatprep.subr.bf16.mxu0 0
    %3839 = vmatpush1.bf16.msra.mxu0 0
    %3840 = vmatprep.subr.bf16.mxu0 0
    %3841 = vmatpush1.bf16.msra.mxu0 0
    %3842 = vmatprep.subr.bf16.mxu0 0
    %3843 = vmatpush1.bf16.msra.mxu0 0
    %3844 = vmatprep.subr.bf16.mxu0 0
    %3845 = vmatpush1.bf16.msra.mxu0 0
    %3846 = vmatprep.subr.bf16.mxu0 0
    %3847 = vmatpush1.bf16.msra.mxu0 0
    %3848 = vmatprep.subr.bf16.mxu0 0
    %3849 = vmatpush1.bf16.msra.mxu0 0
    %3850 = vmatprep.subr.bf16.mxu0 0
    %3851 = vmatpush1.bf16.msra.mxu0 0
    %3852 = vmatprep.subr.bf16.mxu0 0
    %3853 = vmatpush1.bf16.msra.mxu0 0
    %3854 = vmatprep.subr.bf16.mxu0 0
    %3855 = vmatpush1.bf16.msra.mxu0 0
    %3856 = vmatprep.subr.bf16.mxu0 0
    %3857 = vmatpush1.bf16.msra.mxu0 0
    %3858 = vmatprep.subr.bf16.mxu0 0
    %3859 = vmatpush1.bf16.msra.mxu0 0
    %3860 = vmatprep.subr.bf16.mxu0 0
    %3861 = vmatpush1.bf16.msra.mxu0 0
    %3862 = vmatprep.subr.bf16.mxu0 0
    %3863 = vmatpush1.bf16.msra.mxu0 0
    %3864 = vmatprep.subr.bf16.mxu0 0
    %3865 = vmatpush1.bf16.msra.mxu0 0
    %3866 = vmatprep.mubr.bf16.mxu0 0
    %3867 = vmatmul.mubr.bf16.gmra.mrb[0].mxu0 %v3829
    %v3868 = vpop.f32.mrb[0].mxu0
    %v3869 = vadd.f32 0.0, %v3868
    %v3870 = vpop.f32.mrb[0].mxu0
    %v3871 = vpop.f32.mrb[0].mxu0
    %v3872 = vadd.f32 0.0, %v3871
    %v3873 = vpop.f32.mrb[0].mxu0
    %3874 = vdwg.mxu0
    %v3875 = vpack.c.bf16 %v3872, %v3869
    %v3876 = vpack.c.bf16 %v3616, %v3616
    %v3878 = vsel %vm952, %v3875, 0
    %v3881 = vsel %vm968, %v3876, 0
    %3883 = vmatprep.subr.bf16.mxu0 0
    %3884 = vmatpush1.bf16.msra.mxu0 %v3881
    %3885 = vmatprep.subr.bf16.mxu0 0
    %3886 = vmatpush1.bf16.msra.mxu0 0
    %3887 = vmatprep.subr.bf16.mxu0 0
    %3888 = vmatpush1.bf16.msra.mxu0 0
    %3889 = vmatprep.subr.bf16.mxu0 0
    %3890 = vmatpush1.bf16.msra.mxu0 0
    %3891 = vmatprep.subr.bf16.mxu0 0
    %3892 = vmatpush1.bf16.msra.mxu0 0
    %3893 = vmatprep.subr.bf16.mxu0 0
    %3894 = vmatpush1.bf16.msra.mxu0 0
    %3895 = vmatprep.subr.bf16.mxu0 0
    %3896 = vmatpush1.bf16.msra.mxu0 0
    %3897 = vmatprep.subr.bf16.mxu0 0
    %3898 = vmatpush1.bf16.msra.mxu0 0
    %3899 = vmatprep.subr.bf16.mxu0 0
    %3900 = vmatpush1.bf16.msra.mxu0 0
    %3901 = vmatprep.subr.bf16.mxu0 0
    %3902 = vmatpush1.bf16.msra.mxu0 0
    %3903 = vmatprep.subr.bf16.mxu0 0
    %3904 = vmatpush1.bf16.msra.mxu0 0
    %3905 = vmatprep.subr.bf16.mxu0 0
    %3906 = vmatpush1.bf16.msra.mxu0 0
    %3907 = vmatprep.subr.bf16.mxu0 0
    %3908 = vmatpush1.bf16.msra.mxu0 0
    %3909 = vmatprep.subr.bf16.mxu0 0
    %3910 = vmatpush1.bf16.msra.mxu0 0
    %3911 = vmatprep.subr.bf16.mxu0 0
    %3912 = vmatpush1.bf16.msra.mxu0 0
    %3913 = vmatprep.subr.bf16.mxu0 0
    %3914 = vmatpush1.bf16.msra.mxu0 0
    %3915 = vmatprep.mubr.bf16.mxu0 0
    %3916 = vmatmul.mubr.bf16.gmra.mrb[0].mxu0 %v3878
    %v3917 = vpop.f32.mrb[0].mxu0
    %v3918 = vadd.f32 0.0, %v3917
    %v3919 = vpop.f32.mrb[0].mxu0
    %v3920 = vpop.f32.mrb[0].mxu0
    %v3921 = vadd.f32 0.0, %v3920
    %v3922 = vpop.f32.mrb[0].mxu0
    %3923 = vdwg.mxu0
    %v3925 = vsel %vm952, %v3745, 0
    %v3928 = vsel %vm968, %v3746, 0
    %3930 = vmatprep.subr.bf16.mxu0 0
    %3931 = vmatpush1.bf16.msra.mxu0 %v3928
    %3932 = vmatprep.subr.bf16.mxu0 0
    %3933 = vmatpush1.bf16.msra.mxu0 0
    %3934 = vmatprep.subr.bf16.mxu0 0
    %3935 = vmatpush1.bf16.msra.mxu0 0
    %3936 = vmatprep.subr.bf16.mxu0 0
    %3937 = vmatpush1.bf16.msra.mxu0 0
    %3938 = vmatprep.subr.bf16.mxu0 0
    %3939 = vmatpush1.bf16.msra.mxu0 0
    %3940 = vmatprep.subr.bf16.mxu0 0
    %3941 = vmatpush1.bf16.msra.mxu0 0
    %3942 = vmatprep.subr.bf16.mxu0 0
    %3943 = vmatpush1.bf16.msra.mxu0 0
    %3944 = vmatprep.subr.bf16.mxu0 0
    %3945 = vmatpush1.bf16.msra.mxu0 0
    %3946 = vmatprep.subr.bf16.mxu0 0
    %3947 = vmatpush1.bf16.msra.mxu0 0
    %3948 = vmatprep.subr.bf16.mxu0 0
    %3949 = vmatpush1.bf16.msra.mxu0 0
    %3950 = vmatprep.subr.bf16.mxu0 0
    %3951 = vmatpush1.bf16.msra.mxu0 0
    %3952 = vmatprep.subr.bf16.mxu0 0
    %3953 = vmatpush1.bf16.msra.mxu0 0
    %3954 = vmatprep.subr.bf16.mxu0 0
    %3955 = vmatpush1.bf16.msra.mxu0 0
    %3956 = vmatprep.subr.bf16.mxu0 0
    %3957 = vmatpush1.bf16.msra.mxu0 0
    %3958 = vmatprep.subr.bf16.mxu0 0
    %3959 = vmatpush1.bf16.msra.mxu0 0
    %3960 = vmatprep.subr.bf16.mxu0 0
    %3961 = vmatpush1.bf16.msra.mxu0 0
    %3962 = vmatprep.mubr.bf16.mxu0 0
    %3963 = vmatmul.mubr.bf16.gmra.mrb[0].mxu0 %v3925
    %v3964 = vpop.f32.mrb[0].mxu0
    %v3965 = vadd.f32 %v3918, %v3964
    %v3966 = vpop.f32.mrb[0].mxu0
    %v3967 = vpop.f32.mrb[0].mxu0
    %v3968 = vadd.f32 %v3921, %v3967
    %v3969 = vpop.f32.mrb[0].mxu0
    %3970 = vdwg.mxu0
    %3971 = vrot.lane.b32.xlu0 %v3619, 112
    %v3972 = vpop.permute.xlu0 %3971
    %3973 = vrot.lane.b32.xlu0 %v3620, 112
    %v3974 = vpop.permute.xlu0 %3973
    %v3976 = vsel %vm952, %v3972, 0
    %v3979 = vsel %vm952, %v3974, 0
    %3981 = vmatprep.subr.bf16.mxu0 0
    %3982 = vmatpush1.bf16.xpose.msra.mxu0 %v3979
    %3983 = vmatprep.subr.bf16.mxu0 0
    %3984 = vmatpush1.bf16.xpose.msra.mxu0 0
    %3985 = vmatprep.subr.bf16.mxu0 0
    %3986 = vmatpush1.bf16.xpose.msra.mxu0 0
    %3987 = vmatprep.subr.bf16.mxu0 0
    %3988 = vmatpush1.bf16.xpose.msra.mxu0 0
    %3989 = vmatprep.subr.bf16.mxu0 0
    %3990 = vmatpush1.bf16.xpose.msra.mxu0 0
    %3991 = vmatprep.subr.bf16.mxu0 0
    %3992 = vmatpush1.bf16.xpose.msra.mxu0 0
    %3993 = vmatprep.subr.bf16.mxu0 0
    %3994 = vmatpush1.bf16.xpose.msra.mxu0 0
    %3995 = vmatprep.subr.bf16.mxu0 0
    %3996 = vmatpush1.bf16.xpose.msra.mxu0 0
    %3997 = vmatprep.subr.bf16.mxu0 0
    %3998 = vmatpush1.bf16.xpose.msra.mxu0 0
    %3999 = vmatprep.subr.bf16.mxu0 0
    %4000 = vmatpush1.bf16.xpose.msra.mxu0 0
    %4001 = vmatprep.subr.bf16.mxu0 0
    %4002 = vmatpush1.bf16.xpose.msra.mxu0 0
    %4003 = vmatprep.subr.bf16.mxu0 0
    %4004 = vmatpush1.bf16.xpose.msra.mxu0 0
    %4005 = vmatprep.subr.bf16.mxu0 0
    %4006 = vmatpush1.bf16.xpose.msra.mxu0 0
    %4007 = vmatprep.subr.bf16.mxu0 0
    %4008 = vmatpush1.bf16.xpose.msra.mxu0 0
    %4009 = vmatprep.subr.bf16.mxu0 0
    %4010 = vmatpush1.bf16.xpose.msra.mxu0 0
    %4011 = vmatprep.subr.bf16.mxu0 0
    %4012 = vmatpush1.bf16.xpose.msra.mxu0 0
    %4013 = vmatprep.mubr.bf16.mxu0 0
    %4014 = vmatmul.mubr.bf16.gmra.mrb[0].mxu0 %v3976
    %v4015 = vpop.f32.mrb[0].mxu0
    %v4016 = vadd.f32 0.0, %v4015
    %v4017 = vpop.f32.mrb[0].mxu0
    %v4018 = vpop.f32.mrb[0].mxu0
    %v4019 = vadd.f32 0.0, %v4018
    %v4020 = vpop.f32.mrb[0].mxu0
    %4021 = vdwg.mxu0
    %v4022 = vmul.f32 %v4016, 0.35355338
    %v4023 = vmul.f32 %v4019, 0.35355338
    %v4024 = vadd.f32 %v4022, %v3479
    %v4025 = vadd.f32 %v4023, %v3480
    %v4026 = vsel %vm952, %v4024, -inf
    %4027 = vmax.xlane.f32.xlu0 %v4026
    %v4028 = vpop.xlane.xlu0 %4027
    %v4029 = vsel %vm952, %v4025, -inf
    %4030 = vmax.xlane.f32.xlu0 %v4029
    %v4031 = vpop.xlane.xlu0 %4030
    %v4032 = vsub.f32 %v4024, %v4028
    %v4033 = vsub.f32 %v4025, %v4031
    %v4034 = vmul.f32 %v4032, 1.442695
    %v4035 = vpow.pop %v4034
    %v4036 = vmul.f32 %v4033, 1.442695
    %v4037 = vpow.pop %v4036
    %v4038 = vsel %vm952, %v4035, 0.0
    %4039 = vadd.xlane.f32.xlu0 %v4038
    %v4040 = vpop.xlane.xlu0 %4039
    %v4041 = vsel %vm952, %v4037, 0.0
    %4042 = vadd.xlane.f32.xlu0 %v4041
    %v4043 = vpop.xlane.xlu0 %4042
    %v4044 = vrcp.pop %v4040
    %v4045 = vrcp.pop %v4043
    %v4046 = vmul.f32 %v4035, %v4044
    %v4047 = vmul.f32 %v4037, %v4045
    %v4048 = vpack.c.bf16 %v4047, %v4046
    %4049 = vrot.lane.b32.xlu0 %v3620, 80
    %v4050 = vpop.permute.xlu0 %4049
    %v4052 = vsel %vm952, %v4048, 0
    %v4055 = vsel %vm968, %v4050, 0
    %4057 = vmatprep.subr.bf16.mxu0 0
    %4058 = vmatpush1.bf16.msra.mxu0 %v4055
    %4059 = vmatprep.subr.bf16.mxu0 0
    %4060 = vmatpush1.bf16.msra.mxu0 0
    %4061 = vmatprep.subr.bf16.mxu0 0
    %4062 = vmatpush1.bf16.msra.mxu0 0
    %4063 = vmatprep.subr.bf16.mxu0 0
    %4064 = vmatpush1.bf16.msra.mxu0 0
    %4065 = vmatprep.subr.bf16.mxu0 0
    %4066 = vmatpush1.bf16.msra.mxu0 0
    %4067 = vmatprep.subr.bf16.mxu0 0
    %4068 = vmatpush1.bf16.msra.mxu0 0
    %4069 = vmatprep.subr.bf16.mxu0 0
    %4070 = vmatpush1.bf16.msra.mxu0 0
    %4071 = vmatprep.subr.bf16.mxu0 0
    %4072 = vmatpush1.bf16.msra.mxu0 0
    %4073 = vmatprep.subr.bf16.mxu0 0
    %4074 = vmatpush1.bf16.msra.mxu0 0
    %4075 = vmatprep.subr.bf16.mxu0 0
    %4076 = vmatpush1.bf16.msra.mxu0 0
    %4077 = vmatprep.subr.bf16.mxu0 0
    %4078 = vmatpush1.bf16.msra.mxu0 0
    %4079 = vmatprep.subr.bf16.mxu0 0
    %4080 = vmatpush1.bf16.msra.mxu0 0
    %4081 = vmatprep.subr.bf16.mxu0 0
    %4082 = vmatpush1.bf16.msra.mxu0 0
    %4083 = vmatprep.subr.bf16.mxu0 0
    %4084 = vmatpush1.bf16.msra.mxu0 0
    %4085 = vmatprep.subr.bf16.mxu0 0
    %4086 = vmatpush1.bf16.msra.mxu0 0
    %4087 = vmatprep.subr.bf16.mxu0 0
    %4088 = vmatpush1.bf16.msra.mxu0 0
    %4089 = vmatprep.mubr.bf16.mxu0 0
    %4090 = vmatmul.mubr.bf16.gmra.mrb[0].mxu0 %v4052
    %v4091 = vpop.f32.mrb[0].mxu0
    %v4092 = vadd.f32 0.0, %v4091
    %v4093 = vpop.f32.mrb[0].mxu0
    %v4094 = vpop.f32.mrb[0].mxu0
    %v4095 = vadd.f32 0.0, %v4094
    %v4096 = vpop.f32.mrb[0].mxu0
    %4097 = vdwg.mxu0
    %v4098 = vpack.c.bf16 %v4095, %v4092
    %v4099 = vpack.c.bf16 %v3617, %v3617
    %v4101 = vsel %vm952, %v4098, 0
    %v4104 = vsel %vm968, %v4099, 0
    %4106 = vmatprep.subr.bf16.mxu0 0
    %4107 = vmatpush1.bf16.msra.mxu0 %v4104
    %4108 = vmatprep.subr.bf16.mxu0 0
    %4109 = vmatpush1.bf16.msra.mxu0 0
    %4110 = vmatprep.subr.bf16.mxu0 0
    %4111 = vmatpush1.bf16.msra.mxu0 0
    %4112 = vmatprep.subr.bf16.mxu0 0
    %4113 = vmatpush1.bf16.msra.mxu0 0
    %4114 = vmatprep.subr.bf16.mxu0 0
    %4115 = vmatpush1.bf16.msra.mxu0 0
    %4116 = vmatprep.subr.bf16.mxu0 0
    %4117 = vmatpush1.bf16.msra.mxu0 0
    %4118 = vmatprep.subr.bf16.mxu0 0
    %4119 = vmatpush1.bf16.msra.mxu0 0
    %4120 = vmatprep.subr.bf16.mxu0 0
    %4121 = vmatpush1.bf16.msra.mxu0 0
    %4122 = vmatprep.subr.bf16.mxu0 0
    %4123 = vmatpush1.bf16.msra.mxu0 0
    %4124 = vmatprep.subr.bf16.mxu0 0
    %4125 = vmatpush1.bf16.msra.mxu0 0
    %4126 = vmatprep.subr.bf16.mxu0 0
    %4127 = vmatpush1.bf16.msra.mxu0 0
    %4128 = vmatprep.subr.bf16.mxu0 0
    %4129 = vmatpush1.bf16.msra.mxu0 0
    %4130 = vmatprep.subr.bf16.mxu0 0
    %4131 = vmatpush1.bf16.msra.mxu0 0
    %4132 = vmatprep.subr.bf16.mxu0 0
    %4133 = vmatpush1.bf16.msra.mxu0 0
    %4134 = vmatprep.subr.bf16.mxu0 0
    %4135 = vmatpush1.bf16.msra.mxu0 0
    %4136 = vmatprep.subr.bf16.mxu0 0
    %4137 = vmatpush1.bf16.msra.mxu0 0
    %4138 = vmatprep.mubr.bf16.mxu0 0
    %4139 = vmatmul.mubr.bf16.gmra.mrb[0].mxu0 %v4101
    %v4140 = vpop.f32.mrb[0].mxu0
    %v4141 = vadd.f32 0.0, %v4140
    %v4142 = vpop.f32.mrb[0].mxu0
    %v4143 = vpop.f32.mrb[0].mxu0
    %v4144 = vadd.f32 0.0, %v4143
    %v4145 = vpop.f32.mrb[0].mxu0
    %4146 = vdwg.mxu0
    %v4147 = vadd.f32 %v3965, %v4141
    %v4148 = vadd.f32 %v3968, %v4144
    %4149 = vrot.lane.b32.xlu0 %v3619, 104
    %v4150 = vpop.permute.xlu0 %4149
    %4151 = vrot.lane.b32.xlu0 %v3620, 104
    %v4152 = vpop.permute.xlu0 %4151
    %v4154 = vsel %vm952, %v4150, 0
    %v4157 = vsel %vm952, %v4152, 0
    %4159 = vmatprep.subr.bf16.mxu0 0
    %4160 = vmatpush1.bf16.xpose.msra.mxu0 %v4157
    %4161 = vmatprep.subr.bf16.mxu0 0
    %4162 = vmatpush1.bf16.xpose.msra.mxu0 0
    %4163 = vmatprep.subr.bf16.mxu0 0
    %4164 = vmatpush1.bf16.xpose.msra.mxu0 0
    %4165 = vmatprep.subr.bf16.mxu0 0
    %4166 = vmatpush1.bf16.xpose.msra.mxu0 0
    %4167 = vmatprep.subr.bf16.mxu0 0
    %4168 = vmatpush1.bf16.xpose.msra.mxu0 0
    %4169 = vmatprep.subr.bf16.mxu0 0
    %4170 = vmatpush1.bf16.xpose.msra.mxu0 0
    %4171 = vmatprep.subr.bf16.mxu0 0
    %4172 = vmatpush1.bf16.xpose.msra.mxu0 0
    %4173 = vmatprep.subr.bf16.mxu0 0
    %4174 = vmatpush1.bf16.xpose.msra.mxu0 0
    %4175 = vmatprep.subr.bf16.mxu0 0
    %4176 = vmatpush1.bf16.xpose.msra.mxu0 0
    %4177 = vmatprep.subr.bf16.mxu0 0
    %4178 = vmatpush1.bf16.xpose.msra.mxu0 0
    %4179 = vmatprep.subr.bf16.mxu0 0
    %4180 = vmatpush1.bf16.xpose.msra.mxu0 0
    %4181 = vmatprep.subr.bf16.mxu0 0
    %4182 = vmatpush1.bf16.xpose.msra.mxu0 0
    %4183 = vmatprep.subr.bf16.mxu0 0
    %4184 = vmatpush1.bf16.xpose.msra.mxu0 0
    %4185 = vmatprep.subr.bf16.mxu0 0
    %4186 = vmatpush1.bf16.xpose.msra.mxu0 0
    %4187 = vmatprep.subr.bf16.mxu0 0
    %4188 = vmatpush1.bf16.xpose.msra.mxu0 0
    %4189 = vmatprep.subr.bf16.mxu0 0
    %4190 = vmatpush1.bf16.xpose.msra.mxu0 0
    %4191 = vmatprep.mubr.bf16.mxu0 0
    %4192 = vmatmul.mubr.bf16.gmra.mrb[0].mxu0 %v4154
    %v4193 = vpop.f32.mrb[0].mxu0
    %v4194 = vadd.f32 0.0, %v4193
    %v4195 = vpop.f32.mrb[0].mxu0
    %v4196 = vpop.f32.mrb[0].mxu0
    %v4197 = vadd.f32 0.0, %v4196
    %v4198 = vpop.f32.mrb[0].mxu0
    %4199 = vdwg.mxu0
    %v4200 = vmul.f32 %v4194, 0.35355338
    %v4201 = vmul.f32 %v4197, 0.35355338
    %v4202 = vadd.f32 %v4200, %v3479
    %v4203 = vadd.f32 %v4201, %v3480
    %v4204 = vsel %vm952, %v4202, -inf
    %4205 = vmax.xlane.f32.xlu0 %v4204
    %v4206 = vpop.xlane.xlu0 %4205
    %v4207 = vsel %vm952, %v4203, -inf
    %4208 = vmax.xlane.f32.xlu0 %v4207
    %v4209 = vpop.xlane.xlu0 %4208
    %v4210 = vsub.f32 %v4202, %v4206
    %v4211 = vsub.f32 %v4203, %v4209
    %v4212 = vmul.f32 %v4210, 1.442695
    %v4213 = vpow.pop %v4212
    %v4214 = vmul.f32 %v4211, 1.442695
    %v4215 = vpow.pop %v4214
    %v4216 = vsel %vm952, %v4213, 0.0
    %4217 = vadd.xlane.f32.xlu0 %v4216
    %v4218 = vpop.xlane.xlu0 %4217
    %v4219 = vsel %vm952, %v4215, 0.0
    %4220 = vadd.xlane.f32.xlu0 %v4219
    %v4221 = vpop.xlane.xlu0 %4220
    %v4222 = vrcp.pop %v4218
    %v4223 = vrcp.pop %v4221
    %v4224 = vmul.f32 %v4213, %v4222
    %v4225 = vmul.f32 %v4215, %v4223
    %v4226 = vpack.c.bf16 %v4225, %v4224
    %4227 = vrot.lane.b32.xlu0 %v3620, 72
    %v4228 = vpop.permute.xlu0 %4227
    %v4230 = vsel %vm952, %v4226, 0
    %v4233 = vsel %vm968, %v4228, 0
    %4235 = vmatprep.subr.bf16.mxu0 0
    %4236 = vmatpush1.bf16.msra.mxu0 %v4233
    %4237 = vmatprep.subr.bf16.mxu0 0
    %4238 = vmatpush1.bf16.msra.mxu0 0
    %4239 = vmatprep.subr.bf16.mxu0 0
    %4240 = vmatpush1.bf16.msra.mxu0 0
    %4241 = vmatprep.subr.bf16.mxu0 0
    %4242 = vmatpush1.bf16.msra.mxu0 0
    %4243 = vmatprep.subr.bf16.mxu0 0
    %4244 = vmatpush1.bf16.msra.mxu0 0
    %4245 = vmatprep.subr.bf16.mxu0 0
    %4246 = vmatpush1.bf16.msra.mxu0 0
    %4247 = vmatprep.subr.bf16.mxu0 0
    %4248 = vmatpush1.bf16.msra.mxu0 0
    %4249 = vmatprep.subr.bf16.mxu0 0
    %4250 = vmatpush1.bf16.msra.mxu0 0
    %4251 = vmatprep.subr.bf16.mxu0 0
    %4252 = vmatpush1.bf16.msra.mxu0 0
    %4253 = vmatprep.subr.bf16.mxu0 0
    %4254 = vmatpush1.bf16.msra.mxu0 0
    %4255 = vmatprep.subr.bf16.mxu0 0
    %4256 = vmatpush1.bf16.msra.mxu0 0
    %4257 = vmatprep.subr.bf16.mxu0 0
    %4258 = vmatpush1.bf16.msra.mxu0 0
    %4259 = vmatprep.subr.bf16.mxu0 0
    %4260 = vmatpush1.bf16.msra.mxu0 0
    %4261 = vmatprep.subr.bf16.mxu0 0
    %4262 = vmatpush1.bf16.msra.mxu0 0
    %4263 = vmatprep.subr.bf16.mxu0 0
    %4264 = vmatpush1.bf16.msra.mxu0 0
    %4265 = vmatprep.subr.bf16.mxu0 0
    %4266 = vmatpush1.bf16.msra.mxu0 0
    %4267 = vmatprep.mubr.bf16.mxu0 0
    %4268 = vmatmul.mubr.bf16.gmra.mrb[0].mxu0 %v4230
    %v4269 = vpop.f32.mrb[0].mxu0
    %v4270 = vadd.f32 0.0, %v4269
    %v4271 = vpop.f32.mrb[0].mxu0
    %v4272 = vpop.f32.mrb[0].mxu0
    %v4273 = vadd.f32 0.0, %v4272
    %v4274 = vpop.f32.mrb[0].mxu0
    %4275 = vdwg.mxu0
    %v4276 = vpack.c.bf16 %v4273, %v4270
    %v4277 = vpack.c.bf16 %v3618, %v3618
    %v4279 = vsel %vm952, %v4276, 0
    %v4282 = vsel %vm968, %v4277, 0
    %4284 = vmatprep.subr.bf16.mxu0 0
    %4285 = vmatpush1.bf16.msra.mxu0 %v4282
    %4286 = vmatprep.subr.bf16.mxu0 0
    %4287 = vmatpush1.bf16.msra.mxu0 0
    %4288 = vmatprep.subr.bf16.mxu0 0
    %4289 = vmatpush1.bf16.msra.mxu0 0
    %4290 = vmatprep.subr.bf16.mxu0 0
    %4291 = vmatpush1.bf16.msra.mxu0 0
    %4292 = vmatprep.subr.bf16.mxu0 0
    %4293 = vmatpush1.bf16.msra.mxu0 0
    %4294 = vmatprep.subr.bf16.mxu0 0
    %4295 = vmatpush1.bf16.msra.mxu0 0
    %4296 = vmatprep.subr.bf16.mxu0 0
    %4297 = vmatpush1.bf16.msra.mxu0 0
    %4298 = vmatprep.subr.bf16.mxu0 0
    %4299 = vmatpush1.bf16.msra.mxu0 0
    %4300 = vmatprep.subr.bf16.mxu0 0
    %4301 = vmatpush1.bf16.msra.mxu0 0
    %4302 = vmatprep.subr.bf16.mxu0 0
    %4303 = vmatpush1.bf16.msra.mxu0 0
    %4304 = vmatprep.subr.bf16.mxu0 0
    %4305 = vmatpush1.bf16.msra.mxu0 0
    %4306 = vmatprep.subr.bf16.mxu0 0
    %4307 = vmatpush1.bf16.msra.mxu0 0
    %4308 = vmatprep.subr.bf16.mxu0 0
    %4309 = vmatpush1.bf16.msra.mxu0 0
    %4310 = vmatprep.subr.bf16.mxu0 0
    %4311 = vmatpush1.bf16.msra.mxu0 0
    %4312 = vmatprep.subr.bf16.mxu0 0
    %4313 = vmatpush1.bf16.msra.mxu0 0
    %4314 = vmatprep.subr.bf16.mxu0 0
    %4315 = vmatpush1.bf16.msra.mxu0 0
    %4316 = vmatprep.mubr.bf16.mxu0 0
    %4317 = vmatmul.mubr.bf16.gmra.mrb[0].mxu0 %v4279
    %v4318 = vpop.f32.mrb[0].mxu0
    %v4319 = vadd.f32 0.0, %v4318
    %v4320 = vpop.f32.mrb[0].mxu0
    %v4321 = vpop.f32.mrb[0].mxu0
    %v4322 = vadd.f32 0.0, %v4321
    %v4323 = vpop.f32.mrb[0].mxu0
    %4324 = vdwg.mxu0
    %v4325 = vadd.f32 %v4147, %v4319
    %v4326 = vadd.f32 %v4148, %v4322
    %v4327 = vld [vmem:[#allocation2] sm:$0x1]
    %v4328 = vunpack.c.l.bf16 %v4327
    %v4329 = vlaneseq
    %v4330 = vshrl.u32 %v4329, 7
    %v4331 = vsub.s32 0, %v4330
    %v4332 = vrot.slane %v4328, %v4331
    %v4333 = vadd.f32 %v4325, %v4332
    %v4334 = vadd.f32 %v4326, %v4332
    %v4335 = vld [vmem:[%s13] sm:$0xff]
    %v4336 = vld [vmem:[%s13 + $0x8] sm:$0xff]
    %v4337 = vld [vmem:[%s65] sm:$0xf]
    %v4338 = vld [vmem:[%s65 + $0x4] sm:$0xf]
    %v4339 = vld [vmem:[%s65 + $0x8] sm:$0xf]
    %v4340 = vld [vmem:[%s65 + $0xc] sm:$0xf]
    %v4341 = vpack.c.bf16 %v3476, %v3475
    %v4342 = vld [vmem:[#allocation5] sm:$0x1]
    %v4343 = vunpack.c.l.bf16 %v4342
    %v4344 = vlaneseq
    %v4345 = vshrl.u32 %v4344, 7
    %v4346 = vsub.s32 0, %v4345
    %v4347 = vrot.slane %v4343, %v4346
    %v4352 = vunpack.c.l.b16 %v4337
    %v4353 = vunpack.c.l.b16 %v4338
    %v4354 = vunpack.c.l.b16 %v4339
    %v4355 = vunpack.c.l.b16 %v4340
    %v4356 = vpack.c.b16 %v4353, %v4352
    %v4357 = vpack.c.b16 %v4355, %v4354
    %v4361 = vsel %vm3504, %v4341, 0
    %4363 = vmatprep.subr.bf16.mxu0 0
    %4364 = vmatpush1.bf16.msra.mxu0 %v4356
    %4365 = vmatprep.subr.bf16.mxu0 0
    %4366 = vmatpush1.bf16.msra.mxu0 %v4357
    %4367 = vmatprep.subr.bf16.mxu0 0
    %4368 = vmatpush1.bf16.msra.mxu0 0
    %4369 = vmatprep.subr.bf16.mxu0 0
    %4370 = vmatpush1.bf16.msra.mxu0 0
    %4371 = vmatprep.subr.bf16.mxu0 0
    %4372 = vmatpush1.bf16.msra.mxu0 0
    %4373 = vmatprep.subr.bf16.mxu0 0
    %4374 = vmatpush1.bf16.msra.mxu0 0
    %4375 = vmatprep.subr.bf16.mxu0 0
    %4376 = vmatpush1.bf16.msra.mxu0 0
    %4377 = vmatprep.subr.bf16.mxu0 0
    %4378 = vmatpush1.bf16.msra.mxu0 0
    %4379 = vmatprep.subr.bf16.mxu0 0
    %4380 = vmatpush1.bf16.msra.mxu0 0
    %4381 = vmatprep.subr.bf16.mxu0 0
    %4382 = vmatpush1.bf16.msra.mxu0 0
    %4383 = vmatprep.subr.bf16.mxu0 0
    %4384 = vmatpush1.bf16.msra.mxu0 0
    %4385 = vmatprep.subr.bf16.mxu0 0
    %4386 = vmatpush1.bf16.msra.mxu0 0
    %4387 = vmatprep.subr.bf16.mxu0 0
    %4388 = vmatpush1.bf16.msra.mxu0 0
    %4389 = vmatprep.subr.bf16.mxu0 0
    %4390 = vmatpush1.bf16.msra.mxu0 0
    %4391 = vmatprep.subr.bf16.mxu0 0
    %4392 = vmatpush1.bf16.msra.mxu0 0
    %4393 = vmatprep.subr.bf16.mxu0 0
    %4394 = vmatpush1.bf16.msra.mxu0 0
    %4395 = vmatprep.mubr.bf16.mxu0 0
    %4396 = vmatmul.mubr.bf16.gmra.mrb[0].mxu0 %v4361
    %v4397 = vpop.f32.mrb[0].mxu0
    %v4398 = vadd.f32 %v4347, %v4397
    %v4399 = vpop.f32.mrb[0].mxu0
    %v4400 = vpop.f32.mrb[0].mxu0
    %v4401 = vadd.f32 %v4347, %v4400
    %v4402 = vpop.f32.mrb[0].mxu0
    %4403 = vdwg.mxu0
    %v4404 = vld [vmem:[%s69] sm:$0xff]
    %v4405 = vld [vmem:[%s69 + $0x8] sm:$0xff]
    %v4406 = vld [vmem:[%s69 + $0x10] sm:$0xff]
    %v4407 = vld [vmem:[%s69 + $0x18] sm:$0xff]
    %v4408 = vpack.c.bf16 %v4401, %v4398
    %4410 = vrot.lane.b32.xlu0 %v4408, 96
    %v4411 = vpop.permute.xlu0 %4410
    %v4413 = vsel %vm952, %v4408, 0
    %v4416 = vsel %vm952, %v4411, 0
    %4418 = vmatprep.subr.bf16.mxu0 0
    %4419 = vmatpush1.bf16.xpose.msra.mxu0 %v4416
    %4420 = vmatprep.subr.bf16.mxu0 0
    %4421 = vmatpush1.bf16.xpose.msra.mxu0 0
    %4422 = vmatprep.subr.bf16.mxu0 0
    %4423 = vmatpush1.bf16.xpose.msra.mxu0 0
    %4424 = vmatprep.subr.bf16.mxu0 0
    %4425 = vmatpush1.bf16.xpose.msra.mxu0 0
    %4426 = vmatprep.subr.bf16.mxu0 0
    %4427 = vmatpush1.bf16.xpose.msra.mxu0 0
    %4428 = vmatprep.subr.bf16.mxu0 0
    %4429 = vmatpush1.bf16.xpose.msra.mxu0 0
    %4430 = vmatprep.subr.bf16.mxu0 0
    %4431 = vmatpush1.bf16.xpose.msra.mxu0 0
    %4432 = vmatprep.subr.bf16.mxu0 0
    %4433 = vmatpush1.bf16.xpose.msra.mxu0 0
    %4434 = vmatprep.subr.bf16.mxu0 0
    %4435 = vmatpush1.bf16.xpose.msra.mxu0 0
    %4436 = vmatprep.subr.bf16.mxu0 0
    %4437 = vmatpush1.bf16.xpose.msra.mxu0 0
    %4438 = vmatprep.subr.bf16.mxu0 0
    %4439 = vmatpush1.bf16.xpose.msra.mxu0 0
    %4440 = vmatprep.subr.bf16.mxu0 0
    %4441 = vmatpush1.bf16.xpose.msra.mxu0 0
    %4442 = vmatprep.subr.bf16.mxu0 0
    %4443 = vmatpush1.bf16.xpose.msra.mxu0 0
    %4444 = vmatprep.subr.bf16.mxu0 0
    %4445 = vmatpush1.bf16.xpose.msra.mxu0 0
    %4446 = vmatprep.subr.bf16.mxu0 0
    %4447 = vmatpush1.bf16.xpose.msra.mxu0 0
    %4448 = vmatprep.subr.bf16.mxu0 0
    %4449 = vmatpush1.bf16.xpose.msra.mxu0 0
    %4450 = vmatprep.mubr.bf16.mxu0 0
    %4451 = vmatmul.mubr.bf16.gmra.mrb[0].mxu0 %v4413
    %v4452 = vpop.f32.mrb[0].mxu0
    %v4453 = vadd.f32 0.0, %v4452
    %v4454 = vpop.f32.mrb[0].mxu0
    %v4455 = vpop.f32.mrb[0].mxu0
    %v4456 = vadd.f32 0.0, %v4455
    %v4457 = vpop.f32.mrb[0].mxu0
    %4458 = vdwg.mxu0
    %v4459 = vmul.f32 %v4453, 0.35355338
    %v4460 = vmul.f32 %v4456, 0.35355338
    %v4461 = vadd.f32 %v4459, %v4335
    %v4462 = vadd.f32 %v4460, %v4336
    %vm4463 = vcmask 130048
    %v4464 = vsel %vm4463, %v4461, -inf
    %4465 = vmax.xlane.f32.xlu0 %v4464
    %v4466 = vpop.xlane.xlu0 %4465
    %v4467 = vsel %vm4463, %v4462, -inf
    %4468 = vmax.xlane.f32.xlu0 %v4467
    %v4469 = vpop.xlane.xlu0 %4468
    %v4470 = vsub.f32 %v4461, %v4466
    %v4471 = vsub.f32 %v4462, %v4469
    %v4472 = vmul.f32 %v4470, 1.442695
    %v4473 = vpow.pop %v4472
    %v4474 = vmul.f32 %v4471, 1.442695
    %v4475 = vpow.pop %v4474
    %v4476 = vsel %vm4463, %v4473, 0.0
    %4477 = vadd.xlane.f32.xlu0 %v4476
    %v4478 = vpop.xlane.xlu0 %4477
    %v4479 = vsel %vm4463, %v4475, 0.0
    %4480 = vadd.xlane.f32.xlu0 %v4479
    %v4481 = vpop.xlane.xlu0 %4480
    %v4482 = vrcp.pop %v4478
    %v4483 = vrcp.pop %v4481
    %v4484 = vmul.f32 %v4473, %v4482
    %v4485 = vmul.f32 %v4475, %v4483
    %v4486 = vpack.c.bf16 %v4485, %v4484
    %4487 = vrot.lane.b32.xlu0 %v4408, 64
    %v4488 = vpop.permute.xlu0 %4487
    %v4491 = vsel %vm4463, %v4486, 0
    %4493 = vmatprep.subr.bf16.mxu0 0
    %4494 = vmatpush1.bf16.msra.mxu0 %v4488
    %4495 = vmatprep.subr.bf16.mxu0 0
    %4496 = vmatpush1.bf16.msra.mxu0 0
    %4497 = vmatprep.subr.bf16.mxu0 0
    %4498 = vmatpush1.bf16.msra.mxu0 0
    %4499 = vmatprep.subr.bf16.mxu0 0
    %4500 = vmatpush1.bf16.msra.mxu0 0
    %4501 = vmatprep.subr.bf16.mxu0 0
    %4502 = vmatpush1.bf16.msra.mxu0 0
    %4503 = vmatprep.subr.bf16.mxu0 0
    %4504 = vmatpush1.bf16.msra.mxu0 0
    %4505 = vmatprep.subr.bf16.mxu0 0
    %4506 = vmatpush1.bf16.msra.mxu0 0
    %4507 = vmatprep.subr.bf16.mxu0 0
    %4508 = vmatpush1.bf16.msra.mxu0 0
    %4509 = vmatprep.subr.bf16.mxu0 0
    %4510 = vmatpush1.bf16.msra.mxu0 0
    %4511 = vmatprep.subr.bf16.mxu0 0
    %4512 = vmatpush1.bf16.msra.mxu0 0
    %4513 = vmatprep.subr.bf16.mxu0 0
    %4514 = vmatpush1.bf16.msra.mxu0 0
    %4515 = vmatprep.subr.bf16.mxu0 0
    %4516 = vmatpush1.bf16.msra.mxu0 0
    %4517 = vmatprep.subr.bf16.mxu0 0
    %4518 = vmatpush1.bf16.msra.mxu0 0
    %4519 = vmatprep.subr.bf16.mxu0 0
    %4520 = vmatpush1.bf16.msra.mxu0 0
    %4521 = vmatprep.subr.bf16.mxu0 0
    %4522 = vmatpush1.bf16.msra.mxu0 0
    %4523 = vmatprep.subr.bf16.mxu0 0
    %4524 = vmatpush1.bf16.msra.mxu0 0
    %4525 = vmatprep.mubr.bf16.mxu0 0
    %4526 = vmatmul.mubr.bf16.gmra.mrb[0].mxu0 %v4491
    %v4527 = vpop.f32.mrb[0].mxu0
    %v4528 = vadd.f32 0.0, %v4527
    %v4529 = vpop.f32.mrb[0].mxu0
    %v4530 = vpop.f32.mrb[0].mxu0
    %v4531 = vadd.f32 0.0, %v4530
    %v4532 = vpop.f32.mrb[0].mxu0
    %4533 = vdwg.mxu0
    %v4534 = vpack.c.bf16 %v4531, %v4528
    %v4535 = vpack.c.bf16 %v4404, %v4404
    %4536 = vrot.lane.b32.xlu0 %v4408, 120
    %v4537 = vpop.permute.xlu0 %4536
    %4538 = vrot.lane.b32.xlu0 %v4408, 88
    %v4539 = vpop.permute.xlu0 %4538
    %v4541 = vsel %vm952, %v4537, 0
    %v4544 = vsel %vm952, %v4539, 0
    %4546 = vmatprep.subr.bf16.mxu0 0
    %4547 = vmatpush1.bf16.xpose.msra.mxu0 %v4544
    %4548 = vmatprep.subr.bf16.mxu0 0
    %4549 = vmatpush1.bf16.xpose.msra.mxu0 0
    %4550 = vmatprep.subr.bf16.mxu0 0
    %4551 = vmatpush1.bf16.xpose.msra.mxu0 0
    %4552 = vmatprep.subr.bf16.mxu0 0
    %4553 = vmatpush1.bf16.xpose.msra.mxu0 0
    %4554 = vmatprep.subr.bf16.mxu0 0
    %4555 = vmatpush1.bf16.xpose.msra.mxu0 0
    %4556 = vmatprep.subr.bf16.mxu0 0
    %4557 = vmatpush1.bf16.xpose.msra.mxu0 0
    %4558 = vmatprep.subr.bf16.mxu0 0
    %4559 = vmatpush1.bf16.xpose.msra.mxu0 0
    %4560 = vmatprep.subr.bf16.mxu0 0
    %4561 = vmatpush1.bf16.xpose.msra.mxu0 0
    %4562 = vmatprep.subr.bf16.mxu0 0
    %4563 = vmatpush1.bf16.xpose.msra.mxu0 0
    %4564 = vmatprep.subr.bf16.mxu0 0
    %4565 = vmatpush1.bf16.xpose.msra.mxu0 0
    %4566 = vmatprep.subr.bf16.mxu0 0
    %4567 = vmatpush1.bf16.xpose.msra.mxu0 0
    %4568 = vmatprep.subr.bf16.mxu0 0
    %4569 = vmatpush1.bf16.xpose.msra.mxu0 0
    %4570 = vmatprep.subr.bf16.mxu0 0
    %4571 = vmatpush1.bf16.xpose.msra.mxu0 0
    %4572 = vmatprep.subr.bf16.mxu0 0
    %4573 = vmatpush1.bf16.xpose.msra.mxu0 0
    %4574 = vmatprep.subr.bf16.mxu0 0
    %4575 = vmatpush1.bf16.xpose.msra.mxu0 0
    %4576 = vmatprep.subr.bf16.mxu0 0
    %4577 = vmatpush1.bf16.xpose.msra.mxu0 0
    %4578 = vmatprep.mubr.bf16.mxu0 0
    %4579 = vmatmul.mubr.bf16.gmra.mrb[0].mxu0 %v4541
    %v4580 = vpop.f32.mrb[0].mxu0
    %v4581 = vadd.f32 0.0, %v4580
    %v4582 = vpop.f32.mrb[0].mxu0
    %v4583 = vpop.f32.mrb[0].mxu0
    %v4584 = vadd.f32 0.0, %v4583
    %v4585 = vpop.f32.mrb[0].mxu0
    %4586 = vdwg.mxu0
    %v4587 = vmul.f32 %v4581, 0.35355338
    %v4588 = vmul.f32 %v4584, 0.35355338
    %v4589 = vadd.f32 %v4587, %v4335
    %v4590 = vadd.f32 %v4588, %v4336
    %v4591 = vsel %vm4463, %v4589, -inf
    %4592 = vmax.xlane.f32.xlu0 %v4591
    %v4593 = vpop.xlane.xlu0 %4592
    %v4594 = vsel %vm4463, %v4590, -inf
    %4595 = vmax.xlane.f32.xlu0 %v4594
    %v4596 = vpop.xlane.xlu0 %4595
    %v4597 = vsub.f32 %v4589, %v4593
    %v4598 = vsub.f32 %v4590, %v4596
    %v4599 = vmul.f32 %v4597, 1.442695
    %v4600 = vpow.pop %v4599
    %v4601 = vmul.f32 %v4598, 1.442695
    %v4602 = vpow.pop %v4601
    %v4603 = vsel %vm4463, %v4600, 0.0
    %4604 = vadd.xlane.f32.xlu0 %v4603
    %v4605 = vpop.xlane.xlu0 %4604
    %v4606 = vsel %vm4463, %v4602, 0.0
    %4607 = vadd.xlane.f32.xlu0 %v4606
    %v4608 = vpop.xlane.xlu0 %4607
    %v4609 = vrcp.pop %v4605
    %v4610 = vrcp.pop %v4608
    %v4611 = vmul.f32 %v4600, %v4609
    %v4612 = vmul.f32 %v4602, %v4610
    %v4613 = vpack.c.bf16 %v4612, %v4611
    %4614 = vrot.lane.b32.xlu0 %v4408, 56
    %v4615 = vpop.permute.xlu0 %4614
    %v4618 = vsel %vm4463, %v4613, 0
    %4620 = vmatprep.subr.bf16.mxu0 0
    %4621 = vmatpush1.bf16.msra.mxu0 %v4615
    %4622 = vmatprep.subr.bf16.mxu0 0
    %4623 = vmatpush1.bf16.msra.mxu0 0
    %4624 = vmatprep.subr.bf16.mxu0 0
    %4625 = vmatpush1.bf16.msra.mxu0 0
    %4626 = vmatprep.subr.bf16.mxu0 0
    %4627 = vmatpush1.bf16.msra.mxu0 0
    %4628 = vmatprep.subr.bf16.mxu0 0
    %4629 = vmatpush1.bf16.msra.mxu0 0
    %4630 = vmatprep.subr.bf16.mxu0 0
    %4631 = vmatpush1.bf16.msra.mxu0 0
    %4632 = vmatprep.subr.bf16.mxu0 0
    %4633 = vmatpush1.bf16.msra.mxu0 0
    %4634 = vmatprep.subr.bf16.mxu0 0
    %4635 = vmatpush1.bf16.msra.mxu0 0
    %4636 = vmatprep.subr.bf16.mxu0 0
    %4637 = vmatpush1.bf16.msra.mxu0 0
    %4638 = vmatprep.subr.bf16.mxu0 0
    %4639 = vmatpush1.bf16.msra.mxu0 0
    %4640 = vmatprep.subr.bf16.mxu0 0
    %4641 = vmatpush1.bf16.msra.mxu0 0
    %4642 = vmatprep.subr.bf16.mxu0 0
    %4643 = vmatpush1.bf16.msra.mxu0 0
    %4644 = vmatprep.subr.bf16.mxu0 0
    %4645 = vmatpush1.bf16.msra.mxu0 0
    %4646 = vmatprep.subr.bf16.mxu0 0
    %4647 = vmatpush1.bf16.msra.mxu0 0
    %4648 = vmatprep.subr.bf16.mxu0 0
    %4649 = vmatpush1.bf16.msra.mxu0 0
    %4650 = vmatprep.subr.bf16.mxu0 0
    %4651 = vmatpush1.bf16.msra.mxu0 0
    %4652 = vmatprep.mubr.bf16.mxu0 0
    %4653 = vmatmul.mubr.bf16.gmra.mrb[0].mxu0 %v4618
    %v4654 = vpop.f32.mrb[0].mxu0
    %v4655 = vadd.f32 0.0, %v4654
    %v4656 = vpop.f32.mrb[0].mxu0
    %v4657 = vpop.f32.mrb[0].mxu0
    %v4658 = vadd.f32 0.0, %v4657
    %v4659 = vpop.f32.mrb[0].mxu0
    %4660 = vdwg.mxu0
    %v4661 = vpack.c.bf16 %v4658, %v4655
    %v4662 = vpack.c.bf16 %v4405, %v4405
    %v4664 = vsel %vm952, %v4661, 0
    %v4667 = vsel %vm968, %v4662, 0
    %4669 = vmatprep.subr.bf16.mxu0 0
    %4670 = vmatpush1.bf16.msra.mxu0 %v4667
    %4671 = vmatprep.subr.bf16.mxu0 0
    %4672 = vmatpush1.bf16.msra.mxu0 0
    %4673 = vmatprep.subr.bf16.mxu0 0
    %4674 = vmatpush1.bf16.msra.mxu0 0
    %4675 = vmatprep.subr.bf16.mxu0 0
    %4676 = vmatpush1.bf16.msra.mxu0 0
    %4677 = vmatprep.subr.bf16.mxu0 0
    %4678 = vmatpush1.bf16.msra.mxu0 0
    %4679 = vmatprep.subr.bf16.mxu0 0
    %4680 = vmatpush1.bf16.msra.mxu0 0
    %4681 = vmatprep.subr.bf16.mxu0 0
    %4682 = vmatpush1.bf16.msra.mxu0 0
    %4683 = vmatprep.subr.bf16.mxu0 0
    %4684 = vmatpush1.bf16.msra.mxu0 0
    %4685 = vmatprep.subr.bf16.mxu0 0
    %4686 = vmatpush1.bf16.msra.mxu0 0
    %4687 = vmatprep.subr.bf16.mxu0 0
    %4688 = vmatpush1.bf16.msra.mxu0 0
    %4689 = vmatprep.subr.bf16.mxu0 0
    %4690 = vmatpush1.bf16.msra.mxu0 0
    %4691 = vmatprep.subr.bf16.mxu0 0
    %4692 = vmatpush1.bf16.msra.mxu0 0
    %4693 = vmatprep.subr.bf16.mxu0 0
    %4694 = vmatpush1.bf16.msra.mxu0 0
    %4695 = vmatprep.subr.bf16.mxu0 0
    %4696 = vmatpush1.bf16.msra.mxu0 0
    %4697 = vmatprep.subr.bf16.mxu0 0
    %4698 = vmatpush1.bf16.msra.mxu0 0
    %4699 = vmatprep.subr.bf16.mxu0 0
    %4700 = vmatpush1.bf16.msra.mxu0 0
    %4701 = vmatprep.mubr.bf16.mxu0 0
    %4702 = vmatmul.mubr.bf16.gmra.mrb[0].mxu0 %v4664
    %v4703 = vpop.f32.mrb[0].mxu0
    %v4704 = vadd.f32 0.0, %v4703
    %v4705 = vpop.f32.mrb[0].mxu0
    %v4706 = vpop.f32.mrb[0].mxu0
    %v4707 = vadd.f32 0.0, %v4706
    %v4708 = vpop.f32.mrb[0].mxu0
    %4709 = vdwg.mxu0
    %v4711 = vsel %vm952, %v4534, 0
    %v4714 = vsel %vm968, %v4535, 0
    %4716 = vmatprep.subr.bf16.mxu0 0
    %4717 = vmatpush1.bf16.msra.mxu0 %v4714
    %4718 = vmatprep.subr.bf16.mxu0 0
    %4719 = vmatpush1.bf16.msra.mxu0 0
    %4720 = vmatprep.subr.bf16.mxu0 0
    %4721 = vmatpush1.bf16.msra.mxu0 0
    %4722 = vmatprep.subr.bf16.mxu0 0
    %4723 = vmatpush1.bf16.msra.mxu0 0
    %4724 = vmatprep.subr.bf16.mxu0 0
    %4725 = vmatpush1.bf16.msra.mxu0 0
    %4726 = vmatprep.subr.bf16.mxu0 0
    %4727 = vmatpush1.bf16.msra.mxu0 0
    %4728 = vmatprep.subr.bf16.mxu0 0
    %4729 = vmatpush1.bf16.msra.mxu0 0
    %4730 = vmatprep.subr.bf16.mxu0 0
    %4731 = vmatpush1.bf16.msra.mxu0 0
    %4732 = vmatprep.subr.bf16.mxu0 0
    %4733 = vmatpush1.bf16.msra.mxu0 0
    %4734 = vmatprep.subr.bf16.mxu0 0
    %4735 = vmatpush1.bf16.msra.mxu0 0
    %4736 = vmatprep.subr.bf16.mxu0 0
    %4737 = vmatpush1.bf16.msra.mxu0 0
    %4738 = vmatprep.subr.bf16.mxu0 0
    %4739 = vmatpush1.bf16.msra.mxu0 0
    %4740 = vmatprep.subr.bf16.mxu0 0
    %4741 = vmatpush1.bf16.msra.mxu0 0
    %4742 = vmatprep.subr.bf16.mxu0 0
    %4743 = vmatpush1.bf16.msra.mxu0 0
    %4744 = vmatprep.subr.bf16.mxu0 0
    %4745 = vmatpush1.bf16.msra.mxu0 0
    %4746 = vmatprep.subr.bf16.mxu0 0
    %4747 = vmatpush1.bf16.msra.mxu0 0
    %4748 = vmatprep.mubr.bf16.mxu0 0
    %4749 = vmatmul.mubr.bf16.gmra.mrb[0].mxu0 %v4711
    %v4750 = vpop.f32.mrb[0].mxu0
    %v4751 = vadd.f32 %v4704, %v4750
    %v4752 = vpop.f32.mrb[0].mxu0
    %v4753 = vpop.f32.mrb[0].mxu0
    %v4754 = vadd.f32 %v4707, %v4753
    %v4755 = vpop.f32.mrb[0].mxu0
    %4756 = vdwg.mxu0
    %4757 = vrot.lane.b32.xlu0 %v4408, 112
    %v4758 = vpop.permute.xlu0 %4757
    %4759 = vrot.lane.b32.xlu0 %v4408, 80
    %v4760 = vpop.permute.xlu0 %4759
    %v4762 = vsel %vm952, %v4758, 0
    %v4765 = vsel %vm952, %v4760, 0
    %4767 = vmatprep.subr.bf16.mxu0 0
    %4768 = vmatpush1.bf16.xpose.msra.mxu0 %v4765
    %4769 = vmatprep.subr.bf16.mxu0 0
    %4770 = vmatpush1.bf16.xpose.msra.mxu0 0
    %4771 = vmatprep.subr.bf16.mxu0 0
    %4772 = vmatpush1.bf16.xpose.msra.mxu0 0
    %4773 = vmatprep.subr.bf16.mxu0 0
    %4774 = vmatpush1.bf16.xpose.msra.mxu0 0
    %4775 = vmatprep.subr.bf16.mxu0 0
    %4776 = vmatpush1.bf16.xpose.msra.mxu0 0
    %4777 = vmatprep.subr.bf16.mxu0 0
    %4778 = vmatpush1.bf16.xpose.msra.mxu0 0
    %4779 = vmatprep.subr.bf16.mxu0 0
    %4780 = vmatpush1.bf16.xpose.msra.mxu0 0
    %4781 = vmatprep.subr.bf16.mxu0 0
    %4782 = vmatpush1.bf16.xpose.msra.mxu0 0
    %4783 = vmatprep.subr.bf16.mxu0 0
    %4784 = vmatpush1.bf16.xpose.msra.mxu0 0
    %4785 = vmatprep.subr.bf16.mxu0 0
    %4786 = vmatpush1.bf16.xpose.msra.mxu0 0
    %4787 = vmatprep.subr.bf16.mxu0 0
    %4788 = vmatpush1.bf16.xpose.msra.mxu0 0
    %4789 = vmatprep.subr.bf16.mxu0 0
    %4790 = vmatpush1.bf16.xpose.msra.mxu0 0
    %4791 = vmatprep.subr.bf16.mxu0 0
    %4792 = vmatpush1.bf16.xpose.msra.mxu0 0
    %4793 = vmatprep.subr.bf16.mxu0 0
    %4794 = vmatpush1.bf16.xpose.msra.mxu0 0
    %4795 = vmatprep.subr.bf16.mxu0 0
    %4796 = vmatpush1.bf16.xpose.msra.mxu0 0
    %4797 = vmatprep.subr.bf16.mxu0 0
    %4798 = vmatpush1.bf16.xpose.msra.mxu0 0
    %4799 = vmatprep.mubr.bf16.mxu0 0
    %4800 = vmatmul.mubr.bf16.gmra.mrb[0].mxu0 %v4762
    %v4801 = vpop.f32.mrb[0].mxu0
    %v4802 = vadd.f32 0.0, %v4801
    %v4803 = vpop.f32.mrb[0].mxu0
    %v4804 = vpop.f32.mrb[0].mxu0
    %v4805 = vadd.f32 0.0, %v4804
    %v4806 = vpop.f32.mrb[0].mxu0
    %4807 = vdwg.mxu0
    %v4808 = vmul.f32 %v4802, 0.35355338
    %v4809 = vmul.f32 %v4805, 0.35355338
    %v4810 = vadd.f32 %v4808, %v4335
    %v4811 = vadd.f32 %v4809, %v4336
    %v4812 = vsel %vm4463, %v4810, -inf
    %4813 = vmax.xlane.f32.xlu0 %v4812
    %v4814 = vpop.xlane.xlu0 %4813
    %v4815 = vsel %vm4463, %v4811, -inf
    %4816 = vmax.xlane.f32.xlu0 %v4815
    %v4817 = vpop.xlane.xlu0 %4816
    %v4818 = vsub.f32 %v4810, %v4814
    %v4819 = vsub.f32 %v4811, %v4817
    %v4820 = vmul.f32 %v4818, 1.442695
    %v4821 = vpow.pop %v4820
    %v4822 = vmul.f32 %v4819, 1.442695
    %v4823 = vpow.pop %v4822
    %v4824 = vsel %vm4463, %v4821, 0.0
    %4825 = vadd.xlane.f32.xlu0 %v4824
    %v4826 = vpop.xlane.xlu0 %4825
    %v4827 = vsel %vm4463, %v4823, 0.0
    %4828 = vadd.xlane.f32.xlu0 %v4827
    %v4829 = vpop.xlane.xlu0 %4828
    %v4830 = vrcp.pop %v4826
    %v4831 = vrcp.pop %v4829
    %v4832 = vmul.f32 %v4821, %v4830
    %v4833 = vmul.f32 %v4823, %v4831
    %v4834 = vpack.c.bf16 %v4833, %v4832
    %4835 = vrot.lane.b32.xlu0 %v4408, 48
    %v4836 = vpop.permute.xlu0 %4835
    %v4839 = vsel %vm4463, %v4834, 0
    %4841 = vmatprep.subr.bf16.mxu0 0
    %4842 = vmatpush1.bf16.msra.mxu0 %v4836
    %4843 = vmatprep.subr.bf16.mxu0 0
    %4844 = vmatpush1.bf16.msra.mxu0 0
    %4845 = vmatprep.subr.bf16.mxu0 0
    %4846 = vmatpush1.bf16.msra.mxu0 0
    %4847 = vmatprep.subr.bf16.mxu0 0
    %4848 = vmatpush1.bf16.msra.mxu0 0
    %4849 = vmatprep.subr.bf16.mxu0 0
    %4850 = vmatpush1.bf16.msra.mxu0 0
    %4851 = vmatprep.subr.bf16.mxu0 0
    %4852 = vmatpush1.bf16.msra.mxu0 0
    %4853 = vmatprep.subr.bf16.mxu0 0
    %4854 = vmatpush1.bf16.msra.mxu0 0
    %4855 = vmatprep.subr.bf16.mxu0 0
    %4856 = vmatpush1.bf16.msra.mxu0 0
    %4857 = vmatprep.subr.bf16.mxu0 0
    %4858 = vmatpush1.bf16.msra.mxu0 0
    %4859 = vmatprep.subr.bf16.mxu0 0
    %4860 = vmatpush1.bf16.msra.mxu0 0
    %4861 = vmatprep.subr.bf16.mxu0 0
    %4862 = vmatpush1.bf16.msra.mxu0 0
    %4863 = vmatprep.subr.bf16.mxu0 0
    %4864 = vmatpush1.bf16.msra.mxu0 0
    %4865 = vmatprep.subr.bf16.mxu0 0
    %4866 = vmatpush1.bf16.msra.mxu0 0
    %4867 = vmatprep.subr.bf16.mxu0 0
    %4868 = vmatpush1.bf16.msra.mxu0 0
    %4869 = vmatprep.subr.bf16.mxu0 0
    %4870 = vmatpush1.bf16.msra.mxu0 0
    %4871 = vmatprep.subr.bf16.mxu0 0
    %4872 = vmatpush1.bf16.msra.mxu0 0
    %4873 = vmatprep.mubr.bf16.mxu0 0
    %4874 = vmatmul.mubr.bf16.gmra.mrb[0].mxu0 %v4839
    %v4875 = vpop.f32.mrb[0].mxu0
    %v4876 = vadd.f32 0.0, %v4875
    %v4877 = vpop.f32.mrb[0].mxu0
    %v4878 = vpop.f32.mrb[0].mxu0
    %v4879 = vadd.f32 0.0, %v4878
    %v4880 = vpop.f32.mrb[0].mxu0
    %4881 = vdwg.mxu0
    %v4882 = vpack.c.bf16 %v4879, %v4876
    %v4883 = vpack.c.bf16 %v4406, %v4406
    %v4885 = vsel %vm952, %v4882, 0
    %v4888 = vsel %vm968, %v4883, 0
    %4890 = vmatprep.subr.bf16.mxu0 0
    %4891 = vmatpush1.bf16.msra.mxu0 %v4888
    %4892 = vmatprep.subr.bf16.mxu0 0
    %4893 = vmatpush1.bf16.msra.mxu0 0
    %4894 = vmatprep.subr.bf16.mxu0 0
    %4895 = vmatpush1.bf16.msra.mxu0 0
    %4896 = vmatprep.subr.bf16.mxu0 0
    %4897 = vmatpush1.bf16.msra.mxu0 0
    %4898 = vmatprep.subr.bf16.mxu0 0
    %4899 = vmatpush1.bf16.msra.mxu0 0
    %4900 = vmatprep.subr.bf16.mxu0 0
    %4901 = vmatpush1.bf16.msra.mxu0 0
    %4902 = vmatprep.subr.bf16.mxu0 0
    %4903 = vmatpush1.bf16.msra.mxu0 0
    %4904 = vmatprep.subr.bf16.mxu0 0
    %4905 = vmatpush1.bf16.msra.mxu0 0
    %4906 = vmatprep.subr.bf16.mxu0 0
    %4907 = vmatpush1.bf16.msra.mxu0 0
    %4908 = vmatprep.subr.bf16.mxu0 0
    %4909 = vmatpush1.bf16.msra.mxu0 0
    %4910 = vmatprep.subr.bf16.mxu0 0
    %4911 = vmatpush1.bf16.msra.mxu0 0
    %4912 = vmatprep.subr.bf16.mxu0 0
    %4913 = vmatpush1.bf16.msra.mxu0 0
    %4914 = vmatprep.subr.bf16.mxu0 0
    %4915 = vmatpush1.bf16.msra.mxu0 0
    %4916 = vmatprep.subr.bf16.mxu0 0
    %4917 = vmatpush1.bf16.msra.mxu0 0
    %4918 = vmatprep.subr.bf16.mxu0 0
    %4919 = vmatpush1.bf16.msra.mxu0 0
    %4920 = vmatprep.subr.bf16.mxu0 0
    %4921 = vmatpush1.bf16.msra.mxu0 0
    %4922 = vmatprep.mubr.bf16.mxu0 0
    %4923 = vmatmul.mubr.bf16.gmra.mrb[0].mxu0 %v4885
    %v4924 = vpop.f32.mrb[0].mxu0
    %v4925 = vadd.f32 0.0, %v4924
    %v4926 = vpop.f32.mrb[0].mxu0
    %v4927 = vpop.f32.mrb[0].mxu0
    %v4928 = vadd.f32 0.0, %v4927
    %v4929 = vpop.f32.mrb[0].mxu0
    %4930 = vdwg.mxu0
    %v4931 = vadd.f32 %v4751, %v4925
    %v4932 = vadd.f32 %v4754, %v4928
    %4933 = vrot.lane.b32.xlu0 %v4408, 104
    %v4934 = vpop.permute.xlu0 %4933
    %4935 = vrot.lane.b32.xlu0 %v4408, 72
    %v4936 = vpop.permute.xlu0 %4935
    %v4938 = vsel %vm952, %v4934, 0
    %v4941 = vsel %vm952, %v4936, 0
    %4943 = vmatprep.subr.bf16.mxu0 0
    %4944 = vmatpush1.bf16.xpose.msra.mxu0 %v4941
    %4945 = vmatprep.subr.bf16.mxu0 0
    %4946 = vmatpush1.bf16.xpose.msra.mxu0 0
    %4947 = vmatprep.subr.bf16.mxu0 0
    %4948 = vmatpush1.bf16.xpose.msra.mxu0 0
    %4949 = vmatprep.subr.bf16.mxu0 0
    %4950 = vmatpush1.bf16.xpose.msra.mxu0 0
    %4951 = vmatprep.subr.bf16.mxu0 0
    %4952 = vmatpush1.bf16.xpose.msra.mxu0 0
    %4953 = vmatprep.subr.bf16.mxu0 0
    %4954 = vmatpush1.bf16.xpose.msra.mxu0 0
    %4955 = vmatprep.subr.bf16.mxu0 0
    %4956 = vmatpush1.bf16.xpose.msra.mxu0 0
    %4957 = vmatprep.subr.bf16.mxu0 0
    %4958 = vmatpush1.bf16.xpose.msra.mxu0 0
    %4959 = vmatprep.subr.bf16.mxu0 0
    %4960 = vmatpush1.bf16.xpose.msra.mxu0 0
    %4961 = vmatprep.subr.bf16.mxu0 0
    %4962 = vmatpush1.bf16.xpose.msra.mxu0 0
    %4963 = vmatprep.subr.bf16.mxu0 0
    %4964 = vmatpush1.bf16.xpose.msra.mxu0 0
    %4965 = vmatprep.subr.bf16.mxu0 0
    %4966 = vmatpush1.bf16.xpose.msra.mxu0 0
    %4967 = vmatprep.subr.bf16.mxu0 0
    %4968 = vmatpush1.bf16.xpose.msra.mxu0 0
    %4969 = vmatprep.subr.bf16.mxu0 0
    %4970 = vmatpush1.bf16.xpose.msra.mxu0 0
    %4971 = vmatprep.subr.bf16.mxu0 0
    %4972 = vmatpush1.bf16.xpose.msra.mxu0 0
    %4973 = vmatprep.subr.bf16.mxu0 0
    %4974 = vmatpush1.bf16.xpose.msra.mxu0 0
    %4975 = vmatprep.mubr.bf16.mxu0 0
    %4976 = vmatmul.mubr.bf16.gmra.mrb[0].mxu0 %v4938
    %v4977 = vpop.f32.mrb[0].mxu0
    %v4978 = vadd.f32 0.0, %v4977
    %v4979 = vpop.f32.mrb[0].mxu0
    %v4980 = vpop.f32.mrb[0].mxu0
    %v4981 = vadd.f32 0.0, %v4980
    %v4982 = vpop.f32.mrb[0].mxu0
    %4983 = vdwg.mxu0
    %v4984 = vmul.f32 %v4978, 0.35355338
    %v4985 = vmul.f32 %v4981, 0.35355338
    %v4986 = vadd.f32 %v4984, %v4335
    %v4987 = vadd.f32 %v4985, %v4336
    %v4988 = vsel %vm4463, %v4986, -inf
    %4989 = vmax.xlane.f32.xlu0 %v4988
    %v4990 = vpop.xlane.xlu0 %4989
    %v4991 = vsel %vm4463, %v4987, -inf
    %4992 = vmax.xlane.f32.xlu0 %v4991
    %v4993 = vpop.xlane.xlu0 %4992
    %v4994 = vsub.f32 %v4986, %v4990
    %v4995 = vsub.f32 %v4987, %v4993
    %v4996 = vmul.f32 %v4994, 1.442695
    %v4997 = vpow.pop %v4996
    %v4998 = vmul.f32 %v4995, 1.442695
    %v4999 = vpow.pop %v4998
    %v5000 = vsel %vm4463, %v4997, 0.0
    %5001 = vadd.xlane.f32.xlu0 %v5000
    %v5002 = vpop.xlane.xlu0 %5001
    %v5003 = vsel %vm4463, %v4999, 0.0
    %5004 = vadd.xlane.f32.xlu0 %v5003
    %v5005 = vpop.xlane.xlu0 %5004
    %v5006 = vrcp.pop %v5002
    %v5007 = vrcp.pop %v5005
    %v5008 = vmul.f32 %v4997, %v5006
    %v5009 = vmul.f32 %v4999, %v5007
    %v5010 = vpack.c.bf16 %v5009, %v5008
    %5011 = vrot.lane.b32.xlu0 %v4408, 40
    %v5012 = vpop.permute.xlu0 %5011
    %v5015 = vsel %vm4463, %v5010, 0
    %5017 = vmatprep.subr.bf16.mxu0 0
    %5018 = vmatpush1.bf16.msra.mxu0 %v5012
    %5019 = vmatprep.subr.bf16.mxu0 0
    %5020 = vmatpush1.bf16.msra.mxu0 0
    %5021 = vmatprep.subr.bf16.mxu0 0
    %5022 = vmatpush1.bf16.msra.mxu0 0
    %5023 = vmatprep.subr.bf16.mxu0 0
    %5024 = vmatpush1.bf16.msra.mxu0 0
    %5025 = vmatprep.subr.bf16.mxu0 0
    %5026 = vmatpush1.bf16.msra.mxu0 0
    %5027 = vmatprep.subr.bf16.mxu0 0
    %5028 = vmatpush1.bf16.msra.mxu0 0
    %5029 = vmatprep.subr.bf16.mxu0 0
    %5030 = vmatpush1.bf16.msra.mxu0 0
    %5031 = vmatprep.subr.bf16.mxu0 0
    %5032 = vmatpush1.bf16.msra.mxu0 0
    %5033 = vmatprep.subr.bf16.mxu0 0
    %5034 = vmatpush1.bf16.msra.mxu0 0
    %5035 = vmatprep.subr.bf16.mxu0 0
    %5036 = vmatpush1.bf16.msra.mxu0 0
    %5037 = vmatprep.subr.bf16.mxu0 0
    %5038 = vmatpush1.bf16.msra.mxu0 0
    %5039 = vmatprep.subr.bf16.mxu0 0
    %5040 = vmatpush1.bf16.msra.mxu0 0
    %5041 = vmatprep.subr.bf16.mxu0 0
    %5042 = vmatpush1.bf16.msra.mxu0 0
    %5043 = vmatprep.subr.bf16.mxu0 0
    %5044 = vmatpush1.bf16.msra.mxu0 0
    %5045 = vmatprep.subr.bf16.mxu0 0
    %5046 = vmatpush1.bf16.msra.mxu0 0
    %5047 = vmatprep.subr.bf16.mxu0 0
    %5048 = vmatpush1.bf16.msra.mxu0 0
    %5049 = vmatprep.mubr.bf16.mxu0 0
    %5050 = vmatmul.mubr.bf16.gmra.mrb[0].mxu0 %v5015
    %v5051 = vpop.f32.mrb[0].mxu0
    %v5052 = vadd.f32 0.0, %v5051
    %v5053 = vpop.f32.mrb[0].mxu0
    %v5054 = vpop.f32.mrb[0].mxu0
    %v5055 = vadd.f32 0.0, %v5054
    %v5056 = vpop.f32.mrb[0].mxu0
    %5057 = vdwg.mxu0
    %v5058 = vpack.c.bf16 %v5055, %v5052
    %v5059 = vpack.c.bf16 %v4407, %v4407
    %v5061 = vsel %vm952, %v5058, 0
    %v5064 = vsel %vm968, %v5059, 0
    %5066 = vmatprep.subr.bf16.mxu0 0
    %5067 = vmatpush1.bf16.msra.mxu0 %v5064
    %5068 = vmatprep.subr.bf16.mxu0 0
    %5069 = vmatpush1.bf16.msra.mxu0 0
    %5070 = vmatprep.subr.bf16.mxu0 0
    %5071 = vmatpush1.bf16.msra.mxu0 0
    %5072 = vmatprep.subr.bf16.mxu0 0
    %5073 = vmatpush1.bf16.msra.mxu0 0
    %5074 = vmatprep.subr.bf16.mxu0 0
    %5075 = vmatpush1.bf16.msra.mxu0 0
    %5076 = vmatprep.subr.bf16.mxu0 0
    %5077 = vmatpush1.bf16.msra.mxu0 0
    %5078 = vmatprep.subr.bf16.mxu0 0
    %5079 = vmatpush1.bf16.msra.mxu0 0
    %5080 = vmatprep.subr.bf16.mxu0 0
    %5081 = vmatpush1.bf16.msra.mxu0 0
    %5082 = vmatprep.subr.bf16.mxu0 0
    %5083 = vmatpush1.bf16.msra.mxu0 0
    %5084 = vmatprep.subr.bf16.mxu0 0
    %5085 = vmatpush1.bf16.msra.mxu0 0
    %5086 = vmatprep.subr.bf16.mxu0 0
    %5087 = vmatpush1.bf16.msra.mxu0 0
    %5088 = vmatprep.subr.bf16.mxu0 0
    %5089 = vmatpush1.bf16.msra.mxu0 0
    %5090 = vmatprep.subr.bf16.mxu0 0
    %5091 = vmatpush1.bf16.msra.mxu0 0
    %5092 = vmatprep.subr.bf16.mxu0 0
    %5093 = vmatpush1.bf16.msra.mxu0 0
    %5094 = vmatprep.subr.bf16.mxu0 0
    %5095 = vmatpush1.bf16.msra.mxu0 0
    %5096 = vmatprep.subr.bf16.mxu0 0
    %5097 = vmatpush1.bf16.msra.mxu0 0
    %5098 = vmatprep.mubr.bf16.mxu0 0
    %5099 = vmatmul.mubr.bf16.gmra.mrb[0].mxu0 %v5061
    %v5100 = vpop.f32.mrb[0].mxu0
    %v5101 = vadd.f32 0.0, %v5100
    %v5102 = vpop.f32.mrb[0].mxu0
    %v5103 = vpop.f32.mrb[0].mxu0
    %v5104 = vadd.f32 0.0, %v5103
    %v5105 = vpop.f32.mrb[0].mxu0
    %5106 = vdwg.mxu0
    %v5107 = vadd.f32 %v4931, %v5101
    %v5108 = vadd.f32 %v4932, %v5104
    %v5109 = vld [vmem:[#allocation7] sm:$0x1]
    %v5110 = vunpack.c.l.bf16 %v5109
    %v5111 = vlaneseq
    %v5112 = vshrl.u32 %v5111, 7
    %v5113 = vsub.s32 0, %v5112
    %v5114 = vrot.slane %v5110, %v5113
    %v5115 = vadd.f32 %v5107, %v5114
    %v5116 = vadd.f32 %v5108, %v5114
    %v5117 = vadd.f32 %v3475, %v5115
    %v5118 = vadd.f32 %v3476, %v5116
    %v5119 = vsel %vm3504, %v5117, 0.0
    %5120 = vadd.xlane.f32.xlu0 %v5119
    %v5121 = vpop.xlane.xlu0 %5120
    %v5122 = vsel %vm3504, %v5118, 0.0
    %5123 = vadd.xlane.f32.xlu0 %v5122
    %v5124 = vpop.xlane.xlu0 %5123
    %v5125 = vrcp.pop 32.0
    %v5126 = vmul.f32 %v5121, %v5125
    %v5127 = vmul.f32 %v5124, %v5125
    %v5128 = vsub.f32 %v5117, %v5126
    %v5129 = vsub.f32 %v5118, %v5127
    %v5130 = vmul.f32 %v5128, %v5128
    %v5131 = vmul.f32 %v5129, %v5129
    %v5132 = vsel %vm3504, %v5130, 0.0
    %5133 = vadd.xlane.f32.xlu0 %v5132
    %v5134 = vpop.xlane.xlu0 %5133
    %v5135 = vsel %vm3504, %v5131, 0.0
    %5136 = vadd.xlane.f32.xlu0 %v5135
    %v5137 = vpop.xlane.xlu0 %5136
    %v5138 = vmul.f32 %v5134, %v5125
    %v5139 = vmul.f32 %v5137, %v5125
    %v5140 = vadd.f32 %v5138, 1e-05
    %v5141 = vadd.f32 %v5139, 1e-05
    %v5142 = vrsqrt.pop %v5140
    %v5143 = vrsqrt.pop %v5141
    %v5144 = vmul.f32 %v5128, %v5142
    %v5145 = vmul.f32 %v5129, %v5143
    %v5146 = vlaneseq
    %v5147 = vshrl.u32 %v5146, 7
    %v5148 = vsub.s32 0, %v5147
    %v5149 = vrot.slane %v3477, %v5148
    %v5150 = vmul.f32 %v5144, %v5149
    %v5151 = vmul.f32 %v5145, %v5149
    %v5152 = vlaneseq
    %v5153 = vshrl.u32 %v5152, 7
    %v5154 = vsub.s32 1, %v5153
    %v5155 = vrot.slane %v3477, %v5154
    %v5156 = vadd.f32 %v5150, %v5155
    %v5157 = vadd.f32 %v5151, %v5155
    %v5158 = vld [vmem:[%s15] sm:$0xff]
    %v5159 = vld [vmem:[%s15 + $0x8] sm:$0xff]
    %v5160 = vld [vmem:[%s73] sm:$0xf]
    %v5161 = vld [vmem:[%s73 + $0x4] sm:$0xf]
    %v5162 = vld [vmem:[%s73 + $0x8] sm:$0xf]
    %v5163 = vld [vmem:[%s73 + $0xc] sm:$0xf]
    %v5164 = vpack.c.bf16 %v5157, %v5156
    %v5165 = vld [vmem:[#allocation8] sm:$0x1]
    %v5166 = vunpack.c.l.bf16 %v5165
    %v5167 = vlaneseq
    %v5168 = vshrl.u32 %v5167, 7
    %v5169 = vsub.s32 0, %v5168
    %v5170 = vrot.slane %v5166, %v5169
    %v5175 = vunpack.c.l.b16 %v5160
    %v5176 = vunpack.c.l.b16 %v5161
    %v5177 = vunpack.c.l.b16 %v5162
    %v5178 = vunpack.c.l.b16 %v5163
    %v5179 = vpack.c.b16 %v5176, %v5175
    %v5180 = vpack.c.b16 %v5178, %v5177
    %v5184 = vsel %vm3504, %v5164, 0
    %5186 = vmatprep.subr.bf16.mxu0 0
    %5187 = vmatpush1.bf16.msra.mxu0 %v5179
    %5188 = vmatprep.subr.bf16.mxu0 0
    %5189 = vmatpush1.bf16.msra.mxu0 %v5180
    %5190 = vmatprep.subr.bf16.mxu0 0
    %5191 = vmatpush1.bf16.msra.mxu0 0
    %5192 = vmatprep.subr.bf16.mxu0 0
    %5193 = vmatpush1.bf16.msra.mxu0 0
    %5194 = vmatprep.subr.bf16.mxu0 0
    %5195 = vmatpush1.bf16.msra.mxu0 0
    %5196 = vmatprep.subr.bf16.mxu0 0
    %5197 = vmatpush1.bf16.msra.mxu0 0
    %5198 = vmatprep.subr.bf16.mxu0 0
    %5199 = vmatpush1.bf16.msra.mxu0 0
    %5200 = vmatprep.subr.bf16.mxu0 0
    %5201 = vmatpush1.bf16.msra.mxu0 0
    %5202 = vmatprep.subr.bf16.mxu0 0
    %5203 = vmatpush1.bf16.msra.mxu0 0
    %5204 = vmatprep.subr.bf16.mxu0 0
    %5205 = vmatpush1.bf16.msra.mxu0 0
    %5206 = vmatprep.subr.bf16.mxu0 0
    %5207 = vmatpush1.bf16.msra.mxu0 0
    %5208 = vmatprep.subr.bf16.mxu0 0
    %5209 = vmatpush1.bf16.msra.mxu0 0
    %5210 = vmatprep.subr.bf16.mxu0 0
    %5211 = vmatpush1.bf16.msra.mxu0 0
    %5212 = vmatprep.subr.bf16.mxu0 0
    %5213 = vmatpush1.bf16.msra.mxu0 0
    %5214 = vmatprep.subr.bf16.mxu0 0
    %5215 = vmatpush1.bf16.msra.mxu0 0
    %5216 = vmatprep.subr.bf16.mxu0 0
    %5217 = vmatpush1.bf16.msra.mxu0 0
    %5218 = vmatprep.mubr.bf16.mxu0 0
    %5219 = vmatmul.mubr.bf16.gmra.mrb[0].mxu0 %v5184
    %v5220 = vpop.f32.mrb[0].mxu0
    %v5221 = vadd.f32 %v5170, %v5220
    %v5222 = vpop.f32.mrb[0].mxu0
    %v5223 = vpop.f32.mrb[0].mxu0
    %v5224 = vadd.f32 %v5170, %v5223
    %v5225 = vpop.f32.mrb[0].mxu0
    %5226 = vdwg.mxu0
    %v5227 = vld [vmem:[%s77] sm:$0xf]
    %v5228 = vld [vmem:[%s77 + $0x4] sm:$0xf]
    %v5229 = vld [vmem:[%s77 + $0x8] sm:$0xf]
    %v5230 = vld [vmem:[%s77 + $0xc] sm:$0xf]
    %v5231 = vpack.c.bf16 %v4334, %v4333
    %v5232 = vld [vmem:[#allocation10] sm:$0x1]
    %v5233 = vunpack.c.l.bf16 %v5232
    %v5234 = vlaneseq
    %v5235 = vshrl.u32 %v5234, 7
    %v5236 = vsub.s32 0, %v5235
    %v5237 = vrot.slane %v5233, %v5236
    %v5242 = vunpack.c.l.b16 %v5227
    %v5243 = vunpack.c.l.b16 %v5228
    %v5244 = vunpack.c.l.b16 %v5229
    %v5245 = vunpack.c.l.b16 %v5230
    %v5246 = vpack.c.b16 %v5243, %v5242
    %v5247 = vpack.c.b16 %v5245, %v5244
    %v5251 = vsel %vm3504, %v5231, 0
    %5253 = vmatprep.subr.bf16.mxu0 0
    %5254 = vmatpush1.bf16.msra.mxu0 %v5246
    %5255 = vmatprep.subr.bf16.mxu0 0
    %5256 = vmatpush1.bf16.msra.mxu0 %v5247
    %5257 = vmatprep.subr.bf16.mxu0 0
    %5258 = vmatpush1.bf16.msra.mxu0 0
    %5259 = vmatprep.subr.bf16.mxu0 0
    %5260 = vmatpush1.bf16.msra.mxu0 0
    %5261 = vmatprep.subr.bf16.mxu0 0
    %5262 = vmatpush1.bf16.msra.mxu0 0
    %5263 = vmatprep.subr.bf16.mxu0 0
    %5264 = vmatpush1.bf16.msra.mxu0 0
    %5265 = vmatprep.subr.bf16.mxu0 0
    %5266 = vmatpush1.bf16.msra.mxu0 0
    %5267 = vmatprep.subr.bf16.mxu0 0
    %5268 = vmatpush1.bf16.msra.mxu0 0
    %5269 = vmatprep.subr.bf16.mxu0 0
    %5270 = vmatpush1.bf16.msra.mxu0 0
    %5271 = vmatprep.subr.bf16.mxu0 0
    %5272 = vmatpush1.bf16.msra.mxu0 0
    %5273 = vmatprep.subr.bf16.mxu0 0
    %5274 = vmatpush1.bf16.msra.mxu0 0
    %5275 = vmatprep.subr.bf16.mxu0 0
    %5276 = vmatpush1.bf16.msra.mxu0 0
    %5277 = vmatprep.subr.bf16.mxu0 0
    %5278 = vmatpush1.bf16.msra.mxu0 0
    %5279 = vmatprep.subr.bf16.mxu0 0
    %5280 = vmatpush1.bf16.msra.mxu0 0
    %5281 = vmatprep.subr.bf16.mxu0 0
    %5282 = vmatpush1.bf16.msra.mxu0 0
    %5283 = vmatprep.subr.bf16.mxu0 0
    %5284 = vmatpush1.bf16.msra.mxu0 0
    %5285 = vmatprep.mubr.bf16.mxu0 0
    %5286 = vmatmul.mubr.bf16.gmra.mrb[0].mxu0 %v5251
    %v5287 = vpop.f32.mrb[0].mxu0
    %v5288 = vadd.f32 %v5237, %v5287
    %v5289 = vpop.f32.mrb[0].mxu0
    %v5290 = vpop.f32.mrb[0].mxu0
    %v5291 = vadd.f32 %v5237, %v5290
    %v5292 = vpop.f32.mrb[0].mxu0
    %5293 = vdwg.mxu0
    %v5294 = vld [vmem:[%s81] sm:$0xff]
    %v5295 = vld [vmem:[%s81 + $0x8] sm:$0xff]
    %v5296 = vld [vmem:[%s81 + $0x10] sm:$0xff]
    %v5297 = vld [vmem:[%s81 + $0x18] sm:$0xff]
    %v5298 = vpack.c.bf16 %v5224, %v5221
    %v5299 = vpack.c.bf16 %v5291, %v5288
    %v5301 = vsel %vm952, %v5298, 0
    %v5304 = vsel %vm952, %v5299, 0
    %5306 = vmatprep.subr.bf16.mxu0 0
    %5307 = vmatpush1.bf16.xpose.msra.mxu0 %v5304
    %5308 = vmatprep.subr.bf16.mxu0 0
    %5309 = vmatpush1.bf16.xpose.msra.mxu0 0
    %5310 = vmatprep.subr.bf16.mxu0 0
    %5311 = vmatpush1.bf16.xpose.msra.mxu0 0
    %5312 = vmatprep.subr.bf16.mxu0 0
    %5313 = vmatpush1.bf16.xpose.msra.mxu0 0
    %5314 = vmatprep.subr.bf16.mxu0 0
    %5315 = vmatpush1.bf16.xpose.msra.mxu0 0
    %5316 = vmatprep.subr.bf16.mxu0 0
    %5317 = vmatpush1.bf16.xpose.msra.mxu0 0
    %5318 = vmatprep.subr.bf16.mxu0 0
    %5319 = vmatpush1.bf16.xpose.msra.mxu0 0
    %5320 = vmatprep.subr.bf16.mxu0 0
    %5321 = vmatpush1.bf16.xpose.msra.mxu0 0
    %5322 = vmatprep.subr.bf16.mxu0 0
    %5323 = vmatpush1.bf16.xpose.msra.mxu0 0
    %5324 = vmatprep.subr.bf16.mxu0 0
    %5325 = vmatpush1.bf16.xpose.msra.mxu0 0
    %5326 = vmatprep.subr.bf16.mxu0 0
    %5327 = vmatpush1.bf16.xpose.msra.mxu0 0
    %5328 = vmatprep.subr.bf16.mxu0 0
    %5329 = vmatpush1.bf16.xpose.msra.mxu0 0
    %5330 = vmatprep.subr.bf16.mxu0 0
    %5331 = vmatpush1.bf16.xpose.msra.mxu0 0
    %5332 = vmatprep.subr.bf16.mxu0 0
    %5333 = vmatpush1.bf16.xpose.msra.mxu0 0
    %5334 = vmatprep.subr.bf16.mxu0 0
    %5335 = vmatpush1.bf16.xpose.msra.mxu0 0
    %5336 = vmatprep.subr.bf16.mxu0 0
    %5337 = vmatpush1.bf16.xpose.msra.mxu0 0
    %5338 = vmatprep.mubr.bf16.mxu0 0
    %5339 = vmatmul.mubr.bf16.gmra.mrb[0].mxu0 %v5301
    %v5340 = vpop.f32.mrb[0].mxu0
    %v5341 = vadd.f32 0.0, %v5340
    %v5342 = vpop.f32.mrb[0].mxu0
    %v5343 = vpop.f32.mrb[0].mxu0
    %v5344 = vadd.f32 0.0, %v5343
    %v5345 = vpop.f32.mrb[0].mxu0
    %5346 = vdwg.mxu0
    %v5347 = vmul.f32 %v5341, 0.35355338
    %v5348 = vmul.f32 %v5344, 0.35355338
    %v5349 = vadd.f32 %v5347, %v5158
    %v5350 = vadd.f32 %v5348, %v5159
    %v5351 = vsel %vm4463, %v5349, -inf
    %5352 = vmax.xlane.f32.xlu0 %v5351
    %v5353 = vpop.xlane.xlu0 %5352
    %v5354 = vsel %vm4463, %v5350, -inf
    %5355 = vmax.xlane.f32.xlu0 %v5354
    %v5356 = vpop.xlane.xlu0 %5355
    %v5357 = vsub.f32 %v5349, %v5353
    %v5358 = vsub.f32 %v5350, %v5356
    %v5359 = vmul.f32 %v5357, 1.442695
    %v5360 = vpow.pop %v5359
    %v5361 = vmul.f32 %v5358, 1.442695
    %v5362 = vpow.pop %v5361
    %v5363 = vsel %vm4463, %v5360, 0.0
    %5364 = vadd.xlane.f32.xlu0 %v5363
    %v5365 = vpop.xlane.xlu0 %5364
    %v5366 = vsel %vm4463, %v5362, 0.0
    %5367 = vadd.xlane.f32.xlu0 %v5366
    %v5368 = vpop.xlane.xlu0 %5367
    %v5369 = vrcp.pop %v5365
    %v5370 = vrcp.pop %v5368
    %v5371 = vmul.f32 %v5360, %v5369
    %v5372 = vmul.f32 %v5362, %v5370
    %v5373 = vpack.c.bf16 %v5372, %v5371
    %5375 = vrot.lane.b32.xlu0 %v5299, 96
    %v5376 = vpop.permute.xlu0 %5375
    %v5379 = vsel %vm4463, %v5373, 0
    %5381 = vmatprep.subr.bf16.mxu0 0
    %5382 = vmatpush1.bf16.msra.mxu0 %v5376
    %5383 = vmatprep.subr.bf16.mxu0 0
    %5384 = vmatpush1.bf16.msra.mxu0 0
    %5385 = vmatprep.subr.bf16.mxu0 0
    %5386 = vmatpush1.bf16.msra.mxu0 0
    %5387 = vmatprep.subr.bf16.mxu0 0
    %5388 = vmatpush1.bf16.msra.mxu0 0
    %5389 = vmatprep.subr.bf16.mxu0 0
    %5390 = vmatpush1.bf16.msra.mxu0 0
    %5391 = vmatprep.subr.bf16.mxu0 0
    %5392 = vmatpush1.bf16.msra.mxu0 0
    %5393 = vmatprep.subr.bf16.mxu0 0
    %5394 = vmatpush1.bf16.msra.mxu0 0
    %5395 = vmatprep.subr.bf16.mxu0 0
    %5396 = vmatpush1.bf16.msra.mxu0 0
    %5397 = vmatprep.subr.bf16.mxu0 0
    %5398 = vmatpush1.bf16.msra.mxu0 0
    %5399 = vmatprep.subr.bf16.mxu0 0
    %5400 = vmatpush1.bf16.msra.mxu0 0
    %5401 = vmatprep.subr.bf16.mxu0 0
    %5402 = vmatpush1.bf16.msra.mxu0 0
    %5403 = vmatprep.subr.bf16.mxu0 0
    %5404 = vmatpush1.bf16.msra.mxu0 0
    %5405 = vmatprep.subr.bf16.mxu0 0
    %5406 = vmatpush1.bf16.msra.mxu0 0
    %5407 = vmatprep.subr.bf16.mxu0 0
    %5408 = vmatpush1.bf16.msra.mxu0 0
    %5409 = vmatprep.subr.bf16.mxu0 0
    %5410 = vmatpush1.bf16.msra.mxu0 0
    %5411 = vmatprep.subr.bf16.mxu0 0
    %5412 = vmatpush1.bf16.msra.mxu0 0
    %5413 = vmatprep.mubr.bf16.mxu0 0
    %5414 = vmatmul.mubr.bf16.gmra.mrb[0].mxu0 %v5379
    %v5415 = vpop.f32.mrb[0].mxu0
    %v5416 = vadd.f32 0.0, %v5415
    %v5417 = vpop.f32.mrb[0].mxu0
    %v5418 = vpop.f32.mrb[0].mxu0
    %v5419 = vadd.f32 0.0, %v5418
    %v5420 = vpop.f32.mrb[0].mxu0
    %5421 = vdwg.mxu0
    %v5422 = vpack.c.bf16 %v5419, %v5416
    %v5423 = vpack.c.bf16 %v5294, %v5294
    %5425 = vrot.lane.b32.xlu0 %v5298, 120
    %v5426 = vpop.permute.xlu0 %5425
    %5427 = vrot.lane.b32.xlu0 %v5299, 120
    %v5428 = vpop.permute.xlu0 %5427
    %v5430 = vsel %vm952, %v5426, 0
    %v5433 = vsel %vm952, %v5428, 0
    %5435 = vmatprep.subr.bf16.mxu0 0
    %5436 = vmatpush1.bf16.xpose.msra.mxu0 %v5433
    %5437 = vmatprep.subr.bf16.mxu0 0
    %5438 = vmatpush1.bf16.xpose.msra.mxu0 0
    %5439 = vmatprep.subr.bf16.mxu0 0
    %5440 = vmatpush1.bf16.xpose.msra.mxu0 0
    %5441 = vmatprep.subr.bf16.mxu0 0
    %5442 = vmatpush1.bf16.xpose.msra.mxu0 0
    %5443 = vmatprep.subr.bf16.mxu0 0
    %5444 = vmatpush1.bf16.xpose.msra.mxu0 0
    %5445 = vmatprep.subr.bf16.mxu0 0
    %5446 = vmatpush1.bf16.xpose.msra.mxu0 0
    %5447 = vmatprep.subr.bf16.mxu0 0
    %5448 = vmatpush1.bf16.xpose.msra.mxu0 0
    %5449 = vmatprep.subr.bf16.mxu0 0
    %5450 = vmatpush1.bf16.xpose.msra.mxu0 0
    %5451 = vmatprep.subr.bf16.mxu0 0
    %5452 = vmatpush1.bf16.xpose.msra.mxu0 0
    %5453 = vmatprep.subr.bf16.mxu0 0
    %5454 = vmatpush1.bf16.xpose.msra.mxu0 0
    %5455 = vmatprep.subr.bf16.mxu0 0
    %5456 = vmatpush1.bf16.xpose.msra.mxu0 0
    %5457 = vmatprep.subr.bf16.mxu0 0
    %5458 = vmatpush1.bf16.xpose.msra.mxu0 0
    %5459 = vmatprep.subr.bf16.mxu0 0
    %5460 = vmatpush1.bf16.xpose.msra.mxu0 0
    %5461 = vmatprep.subr.bf16.mxu0 0
    %5462 = vmatpush1.bf16.xpose.msra.mxu0 0
    %5463 = vmatprep.subr.bf16.mxu0 0
    %5464 = vmatpush1.bf16.xpose.msra.mxu0 0
    %5465 = vmatprep.subr.bf16.mxu0 0
    %5466 = vmatpush1.bf16.xpose.msra.mxu0 0
    %5467 = vmatprep.mubr.bf16.mxu0 0
    %5468 = vmatmul.mubr.bf16.gmra.mrb[0].mxu0 %v5430
    %v5469 = vpop.f32.mrb[0].mxu0
    %v5470 = vadd.f32 0.0, %v5469
    %v5471 = vpop.f32.mrb[0].mxu0
    %v5472 = vpop.f32.mrb[0].mxu0
    %v5473 = vadd.f32 0.0, %v5472
    %v5474 = vpop.f32.mrb[0].mxu0
    %5475 = vdwg.mxu0
    %v5476 = vmul.f32 %v5470, 0.35355338
    %v5477 = vmul.f32 %v5473, 0.35355338
    %v5478 = vadd.f32 %v5476, %v5158
    %v5479 = vadd.f32 %v5477, %v5159
    %v5480 = vsel %vm4463, %v5478, -inf
    %5481 = vmax.xlane.f32.xlu0 %v5480
    %v5482 = vpop.xlane.xlu0 %5481
    %v5483 = vsel %vm4463, %v5479, -inf
    %5484 = vmax.xlane.f32.xlu0 %v5483
    %v5485 = vpop.xlane.xlu0 %5484
    %v5486 = vsub.f32 %v5478, %v5482
    %v5487 = vsub.f32 %v5479, %v5485
    %v5488 = vmul.f32 %v5486, 1.442695
    %v5489 = vpow.pop %v5488
    %v5490 = vmul.f32 %v5487, 1.442695
    %v5491 = vpow.pop %v5490
    %v5492 = vsel %vm4463, %v5489, 0.0
    %5493 = vadd.xlane.f32.xlu0 %v5492
    %v5494 = vpop.xlane.xlu0 %5493
    %v5495 = vsel %vm4463, %v5491, 0.0
    %5496 = vadd.xlane.f32.xlu0 %v5495
    %v5497 = vpop.xlane.xlu0 %5496
    %v5498 = vrcp.pop %v5494
    %v5499 = vrcp.pop %v5497
    %v5500 = vmul.f32 %v5489, %v5498
    %v5501 = vmul.f32 %v5491, %v5499
    %v5502 = vpack.c.bf16 %v5501, %v5500
    %5503 = vrot.lane.b32.xlu0 %v5299, 88
    %v5504 = vpop.permute.xlu0 %5503
    %v5507 = vsel %vm4463, %v5502, 0
    %5509 = vmatprep.subr.bf16.mxu0 0
    %5510 = vmatpush1.bf16.msra.mxu0 %v5504
    %5511 = vmatprep.subr.bf16.mxu0 0
    %5512 = vmatpush1.bf16.msra.mxu0 0
    %5513 = vmatprep.subr.bf16.mxu0 0
    %5514 = vmatpush1.bf16.msra.mxu0 0
    %5515 = vmatprep.subr.bf16.mxu0 0
    %5516 = vmatpush1.bf16.msra.mxu0 0
    %5517 = vmatprep.subr.bf16.mxu0 0
    %5518 = vmatpush1.bf16.msra.mxu0 0
    %5519 = vmatprep.subr.bf16.mxu0 0
    %5520 = vmatpush1.bf16.msra.mxu0 0
    %5521 = vmatprep.subr.bf16.mxu0 0
    %5522 = vmatpush1.bf16.msra.mxu0 0
    %5523 = vmatprep.subr.bf16.mxu0 0
    %5524 = vmatpush1.bf16.msra.mxu0 0
    %5525 = vmatprep.subr.bf16.mxu0 0
    %5526 = vmatpush1.bf16.msra.mxu0 0
    %5527 = vmatprep.subr.bf16.mxu0 0
    %5528 = vmatpush1.bf16.msra.mxu0 0
    %5529 = vmatprep.subr.bf16.mxu0 0
    %5530 = vmatpush1.bf16.msra.mxu0 0
    %5531 = vmatprep.subr.bf16.mxu0 0
    %5532 = vmatpush1.bf16.msra.mxu0 0
    %5533 = vmatprep.subr.bf16.mxu0 0
    %5534 = vmatpush1.bf16.msra.mxu0 0
    %5535 = vmatprep.subr.bf16.mxu0 0
    %5536 = vmatpush1.bf16.msra.mxu0 0
    %5537 = vmatprep.subr.bf16.mxu0 0
    %5538 = vmatpush1.bf16.msra.mxu0 0
    %5539 = vmatprep.subr.bf16.mxu0 0
    %5540 = vmatpush1.bf16.msra.mxu0 0
    %5541 = vmatprep.mubr.bf16.mxu0 0
    %5542 = vmatmul.mubr.bf16.gmra.mrb[0].mxu0 %v5507
    %v5543 = vpop.f32.mrb[0].mxu0
    %v5544 = vadd.f32 0.0, %v5543
    %v5545 = vpop.f32.mrb[0].mxu0
    %v5546 = vpop.f32.mrb[0].mxu0
    %v5547 = vadd.f32 0.0, %v5546
    %v5548 = vpop.f32.mrb[0].mxu0
    %5549 = vdwg.mxu0
    %v5550 = vpack.c.bf16 %v5547, %v5544
    %v5551 = vpack.c.bf16 %v5295, %v5295
    %v5553 = vsel %vm952, %v5550, 0
    %v5556 = vsel %vm968, %v5551, 0
    %5558 = vmatprep.subr.bf16.mxu0 0
    %5559 = vmatpush1.bf16.msra.mxu0 %v5556
    %5560 = vmatprep.subr.bf16.mxu0 0
    %5561 = vmatpush1.bf16.msra.mxu0 0
    %5562 = vmatprep.subr.bf16.mxu0 0
    %5563 = vmatpush1.bf16.msra.mxu0 0
    %5564 = vmatprep.subr.bf16.mxu0 0
    %5565 = vmatpush1.bf16.msra.mxu0 0
    %5566 = vmatprep.subr.bf16.mxu0 0
    %5567 = vmatpush1.bf16.msra.mxu0 0
    %5568 = vmatprep.subr.bf16.mxu0 0
    %5569 = vmatpush1.bf16.msra.mxu0 0
    %5570 = vmatprep.subr.bf16.mxu0 0
    %5571 = vmatpush1.bf16.msra.mxu0 0
    %5572 = vmatprep.subr.bf16.mxu0 0
    %5573 = vmatpush1.bf16.msra.mxu0 0
    %5574 = vmatprep.subr.bf16.mxu0 0
    %5575 = vmatpush1.bf16.msra.mxu0 0
    %5576 = vmatprep.subr.bf16.mxu0 0
    %5577 = vmatpush1.bf16.msra.mxu0 0
    %5578 = vmatprep.subr.bf16.mxu0 0
    %5579 = vmatpush1.bf16.msra.mxu0 0
    %5580 = vmatprep.subr.bf16.mxu0 0
    %5581 = vmatpush1.bf16.msra.mxu0 0
    %5582 = vmatprep.subr.bf16.mxu0 0
    %5583 = vmatpush1.bf16.msra.mxu0 0
    %5584 = vmatprep.subr.bf16.mxu0 0
    %5585 = vmatpush1.bf16.msra.mxu0 0
    %5586 = vmatprep.subr.bf16.mxu0 0
    %5587 = vmatpush1.bf16.msra.mxu0 0
    %5588 = vmatprep.subr.bf16.mxu0 0
    %5589 = vmatpush1.bf16.msra.mxu0 0
    %5590 = vmatprep.mubr.bf16.mxu0 0
    %5591 = vmatmul.mubr.bf16.gmra.mrb[0].mxu0 %v5553
    %v5592 = vpop.f32.mrb[0].mxu0
    %v5593 = vadd.f32 0.0, %v5592
    %v5594 = vpop.f32.mrb[0].mxu0
    %v5595 = vpop.f32.mrb[0].mxu0
    %v5596 = vadd.f32 0.0, %v5595
    %v5597 = vpop.f32.mrb[0].mxu0
    %5598 = vdwg.mxu0
    %v5600 = vsel %vm952, %v5422, 0
    %v5603 = vsel %vm968, %v5423, 0
    %5605 = vmatprep.subr.bf16.mxu0 0
    %5606 = vmatpush1.bf16.msra.mxu0 %v5603
    %5607 = vmatprep.subr.bf16.mxu0 0
    %5608 = vmatpush1.bf16.msra.mxu0 0
    %5609 = vmatprep.subr.bf16.mxu0 0
    %5610 = vmatpush1.bf16.msra.mxu0 0
    %5611 = vmatprep.subr.bf16.mxu0 0
    %5612 = vmatpush1.bf16.msra.mxu0 0
    %5613 = vmatprep.subr.bf16.mxu0 0
    %5614 = vmatpush1.bf16.msra.mxu0 0
    %5615 = vmatprep.subr.bf16.mxu0 0
    %5616 = vmatpush1.bf16.msra.mxu0 0
    %5617 = vmatprep.subr.bf16.mxu0 0
    %5618 = vmatpush1.bf16.msra.mxu0 0
    %5619 = vmatprep.subr.bf16.mxu0 0
    %5620 = vmatpush1.bf16.msra.mxu0 0
    %5621 = vmatprep.subr.bf16.mxu0 0
    %5622 = vmatpush1.bf16.msra.mxu0 0
    %5623 = vmatprep.subr.bf16.mxu0 0
    %5624 = vmatpush1.bf16.msra.mxu0 0
    %5625 = vmatprep.subr.bf16.mxu0 0
    %5626 = vmatpush1.bf16.msra.mxu0 0
    %5627 = vmatprep.subr.bf16.mxu0 0
    %5628 = vmatpush1.bf16.msra.mxu0 0
    %5629 = vmatprep.subr.bf16.mxu0 0
    %5630 = vmatpush1.bf16.msra.mxu0 0
    %5631 = vmatprep.subr.bf16.mxu0 0
    %5632 = vmatpush1.bf16.msra.mxu0 0
    %5633 = vmatprep.subr.bf16.mxu0 0
    %5634 = vmatpush1.bf16.msra.mxu0 0
    %5635 = vmatprep.subr.bf16.mxu0 0
    %5636 = vmatpush1.bf16.msra.mxu0 0
    %5637 = vmatprep.mubr.bf16.mxu0 0
    %5638 = vmatmul.mubr.bf16.gmra.mrb[0].mxu0 %v5600
    %v5639 = vpop.f32.mrb[0].mxu0
    %v5640 = vadd.f32 %v5593, %v5639
    %v5641 = vpop.f32.mrb[0].mxu0
    %v5642 = vpop.f32.mrb[0].mxu0
    %v5643 = vadd.f32 %v5596, %v5642
    %v5644 = vpop.f32.mrb[0].mxu0
    %5645 = vdwg.mxu0
    %5646 = vrot.lane.b32.xlu0 %v5298, 112
    %v5647 = vpop.permute.xlu0 %5646
    %5648 = vrot.lane.b32.xlu0 %v5299, 112
    %v5649 = vpop.permute.xlu0 %5648
    %v5651 = vsel %vm952, %v5647, 0
    %v5654 = vsel %vm952, %v5649, 0
    %5656 = vmatprep.subr.bf16.mxu0 0
    %5657 = vmatpush1.bf16.xpose.msra.mxu0 %v5654
    %5658 = vmatprep.subr.bf16.mxu0 0
    %5659 = vmatpush1.bf16.xpose.msra.mxu0 0
    %5660 = vmatprep.subr.bf16.mxu0 0
    %5661 = vmatpush1.bf16.xpose.msra.mxu0 0
    %5662 = vmatprep.subr.bf16.mxu0 0
    %5663 = vmatpush1.bf16.xpose.msra.mxu0 0
    %5664 = vmatprep.subr.bf16.mxu0 0
    %5665 = vmatpush1.bf16.xpose.msra.mxu0 0
    %5666 = vmatprep.subr.bf16.mxu0 0
    %5667 = vmatpush1.bf16.xpose.msra.mxu0 0
    %5668 = vmatprep.subr.bf16.mxu0 0
    %5669 = vmatpush1.bf16.xpose.msra.mxu0 0
    %5670 = vmatprep.subr.bf16.mxu0 0
    %5671 = vmatpush1.bf16.xpose.msra.mxu0 0
    %5672 = vmatprep.subr.bf16.mxu0 0
    %5673 = vmatpush1.bf16.xpose.msra.mxu0 0
    %5674 = vmatprep.subr.bf16.mxu0 0
    %5675 = vmatpush1.bf16.xpose.msra.mxu0 0
    %5676 = vmatprep.subr.bf16.mxu0 0
    %5677 = vmatpush1.bf16.xpose.msra.mxu0 0
    %5678 = vmatprep.subr.bf16.mxu0 0
    %5679 = vmatpush1.bf16.xpose.msra.mxu0 0
    %5680 = vmatprep.subr.bf16.mxu0 0
    %5681 = vmatpush1.bf16.xpose.msra.mxu0 0
    %5682 = vmatprep.subr.bf16.mxu0 0
    %5683 = vmatpush1.bf16.xpose.msra.mxu0 0
    %5684 = vmatprep.subr.bf16.mxu0 0
    %5685 = vmatpush1.bf16.xpose.msra.mxu0 0
    %5686 = vmatprep.subr.bf16.mxu0 0
    %5687 = vmatpush1.bf16.xpose.msra.mxu0 0
    %5688 = vmatprep.mubr.bf16.mxu0 0
    %5689 = vmatmul.mubr.bf16.gmra.mrb[0].mxu0 %v5651
    %v5690 = vpop.f32.mrb[0].mxu0
    %v5691 = vadd.f32 0.0, %v5690
    %v5692 = vpop.f32.mrb[0].mxu0
    %v5693 = vpop.f32.mrb[0].mxu0
    %v5694 = vadd.f32 0.0, %v5693
    %v5695 = vpop.f32.mrb[0].mxu0
    %5696 = vdwg.mxu0
    %v5697 = vmul.f32 %v5691, 0.35355338
    %v5698 = vmul.f32 %v5694, 0.35355338
    %v5699 = vadd.f32 %v5697, %v5158
    %v5700 = vadd.f32 %v5698, %v5159
    %v5701 = vsel %vm4463, %v5699, -inf
    %5702 = vmax.xlane.f32.xlu0 %v5701
    %v5703 = vpop.xlane.xlu0 %5702
    %v5704 = vsel %vm4463, %v5700, -inf
    %5705 = vmax.xlane.f32.xlu0 %v5704
    %v5706 = vpop.xlane.xlu0 %5705
    %v5707 = vsub.f32 %v5699, %v5703
    %v5708 = vsub.f32 %v5700, %v5706
    %v5709 = vmul.f32 %v5707, 1.442695
    %v5710 = vpow.pop %v5709
    %v5711 = vmul.f32 %v5708, 1.442695
    %v5712 = vpow.pop %v5711
    %v5713 = vsel %vm4463, %v5710, 0.0
    %5714 = vadd.xlane.f32.xlu0 %v5713
    %v5715 = vpop.xlane.xlu0 %5714
    %v5716 = vsel %vm4463, %v5712, 0.0
    %5717 = vadd.xlane.f32.xlu0 %v5716
    %v5718 = vpop.xlane.xlu0 %5717
    %v5719 = vrcp.pop %v5715
    %v5720 = vrcp.pop %v5718
    %v5721 = vmul.f32 %v5710, %v5719
    %v5722 = vmul.f32 %v5712, %v5720
    %v5723 = vpack.c.bf16 %v5722, %v5721
    %5724 = vrot.lane.b32.xlu0 %v5299, 80
    %v5725 = vpop.permute.xlu0 %5724
    %v5728 = vsel %vm4463, %v5723, 0
    %5730 = vmatprep.subr.bf16.mxu0 0
    %5731 = vmatpush1.bf16.msra.mxu0 %v5725
    %5732 = vmatprep.subr.bf16.mxu0 0
    %5733 = vmatpush1.bf16.msra.mxu0 0
    %5734 = vmatprep.subr.bf16.mxu0 0
    %5735 = vmatpush1.bf16.msra.mxu0 0
    %5736 = vmatprep.subr.bf16.mxu0 0
    %5737 = vmatpush1.bf16.msra.mxu0 0
    %5738 = vmatprep.subr.bf16.mxu0 0
    %5739 = vmatpush1.bf16.msra.mxu0 0
    %5740 = vmatprep.subr.bf16.mxu0 0
    %5741 = vmatpush1.bf16.msra.mxu0 0
    %5742 = vmatprep.subr.bf16.mxu0 0
    %5743 = vmatpush1.bf16.msra.mxu0 0
    %5744 = vmatprep.subr.bf16.mxu0 0
    %5745 = vmatpush1.bf16.msra.mxu0 0
    %5746 = vmatprep.subr.bf16.mxu0 0
    %5747 = vmatpush1.bf16.msra.mxu0 0
    %5748 = vmatprep.subr.bf16.mxu0 0
    %5749 = vmatpush1.bf16.msra.mxu0 0
    %5750 = vmatprep.subr.bf16.mxu0 0
    %5751 = vmatpush1.bf16.msra.mxu0 0
    %5752 = vmatprep.subr.bf16.mxu0 0
    %5753 = vmatpush1.bf16.msra.mxu0 0
    %5754 = vmatprep.subr.bf16.mxu0 0
    %5755 = vmatpush1.bf16.msra.mxu0 0
    %5756 = vmatprep.subr.bf16.mxu0 0
    %5757 = vmatpush1.bf16.msra.mxu0 0
    %5758 = vmatprep.subr.bf16.mxu0 0
    %5759 = vmatpush1.bf16.msra.mxu0 0
    %5760 = vmatprep.subr.bf16.mxu0 0
    %5761 = vmatpush1.bf16.msra.mxu0 0
    %5762 = vmatprep.mubr.bf16.mxu0 0
    %5763 = vmatmul.mubr.bf16.gmra.mrb[0].mxu0 %v5728
    %v5764 = vpop.f32.mrb[0].mxu0
    %v5765 = vadd.f32 0.0, %v5764
    %v5766 = vpop.f32.mrb[0].mxu0
    %v5767 = vpop.f32.mrb[0].mxu0
    %v5768 = vadd.f32 0.0, %v5767
    %v5769 = vpop.f32.mrb[0].mxu0
    %5770 = vdwg.mxu0
    %v5771 = vpack.c.bf16 %v5768, %v5765
    %v5772 = vpack.c.bf16 %v5296, %v5296
    %v5774 = vsel %vm952, %v5771, 0
    %v5777 = vsel %vm968, %v5772, 0
    %5779 = vmatprep.subr.bf16.mxu0 0
    %5780 = vmatpush1.bf16.msra.mxu0 %v5777
    %5781 = vmatprep.subr.bf16.mxu0 0
    %5782 = vmatpush1.bf16.msra.mxu0 0
    %5783 = vmatprep.subr.bf16.mxu0 0
    %5784 = vmatpush1.bf16.msra.mxu0 0
    %5785 = vmatprep.subr.bf16.mxu0 0
    %5786 = vmatpush1.bf16.msra.mxu0 0
    %5787 = vmatprep.subr.bf16.mxu0 0
    %5788 = vmatpush1.bf16.msra.mxu0 0
    %5789 = vmatprep.subr.bf16.mxu0 0
    %5790 = vmatpush1.bf16.msra.mxu0 0
    %5791 = vmatprep.subr.bf16.mxu0 0
    %5792 = vmatpush1.bf16.msra.mxu0 0
    %5793 = vmatprep.subr.bf16.mxu0 0
    %5794 = vmatpush1.bf16.msra.mxu0 0
    %5795 = vmatprep.subr.bf16.mxu0 0
    %5796 = vmatpush1.bf16.msra.mxu0 0
    %5797 = vmatprep.subr.bf16.mxu0 0
    %5798 = vmatpush1.bf16.msra.mxu0 0
    %5799 = vmatprep.subr.bf16.mxu0 0
    %5800 = vmatpush1.bf16.msra.mxu0 0
    %5801 = vmatprep.subr.bf16.mxu0 0
    %5802 = vmatpush1.bf16.msra.mxu0 0
    %5803 = vmatprep.subr.bf16.mxu0 0
    %5804 = vmatpush1.bf16.msra.mxu0 0
    %5805 = vmatprep.subr.bf16.mxu0 0
    %5806 = vmatpush1.bf16.msra.mxu0 0
    %5807 = vmatprep.subr.bf16.mxu0 0
    %5808 = vmatpush1.bf16.msra.mxu0 0
    %5809 = vmatprep.subr.bf16.mxu0 0
    %5810 = vmatpush1.bf16.msra.mxu0 0
    %5811 = vmatprep.mubr.bf16.mxu0 0
    %5812 = vmatmul.mubr.bf16.gmra.mrb[0].mxu0 %v5774
    %v5813 = vpop.f32.mrb[0].mxu0
    %v5814 = vadd.f32 0.0, %v5813
    %v5815 = vpop.f32.mrb[0].mxu0
    %v5816 = vpop.f32.mrb[0].mxu0
    %v5817 = vadd.f32 0.0, %v5816
    %v5818 = vpop.f32.mrb[0].mxu0
    %5819 = vdwg.mxu0
    %v5820 = vadd.f32 %v5640, %v5814
    %v5821 = vadd.f32 %v5643, %v5817
    %5822 = vrot.lane.b32.xlu0 %v5298, 104
    %v5823 = vpop.permute.xlu0 %5822
    %5824 = vrot.lane.b32.xlu0 %v5299, 104
    %v5825 = vpop.permute.xlu0 %5824
    %v5827 = vsel %vm952, %v5823, 0
    %v5830 = vsel %vm952, %v5825, 0
    %5832 = vmatprep.subr.bf16.mxu0 0
    %5833 = vmatpush1.bf16.xpose.msra.mxu0 %v5830
    %5834 = vmatprep.subr.bf16.mxu0 0
    %5835 = vmatpush1.bf16.xpose.msra.mxu0 0
    %5836 = vmatprep.subr.bf16.mxu0 0
    %5837 = vmatpush1.bf16.xpose.msra.mxu0 0
    %5838 = vmatprep.subr.bf16.mxu0 0
    %5839 = vmatpush1.bf16.xpose.msra.mxu0 0
    %5840 = vmatprep.subr.bf16.mxu0 0
    %5841 = vmatpush1.bf16.xpose.msra.mxu0 0
    %5842 = vmatprep.subr.bf16.mxu0 0
    %5843 = vmatpush1.bf16.xpose.msra.mxu0 0
    %5844 = vmatprep.subr.bf16.mxu0 0
    %5845 = vmatpush1.bf16.xpose.msra.mxu0 0
    %5846 = vmatprep.subr.bf16.mxu0 0
    %5847 = vmatpush1.bf16.xpose.msra.mxu0 0
    %5848 = vmatprep.subr.bf16.mxu0 0
    %5849 = vmatpush1.bf16.xpose.msra.mxu0 0
    %5850 = vmatprep.subr.bf16.mxu0 0
    %5851 = vmatpush1.bf16.xpose.msra.mxu0 0
    %5852 = vmatprep.subr.bf16.mxu0 0
    %5853 = vmatpush1.bf16.xpose.msra.mxu0 0
    %5854 = vmatprep.subr.bf16.mxu0 0
    %5855 = vmatpush1.bf16.xpose.msra.mxu0 0
    %5856 = vmatprep.subr.bf16.mxu0 0
    %5857 = vmatpush1.bf16.xpose.msra.mxu0 0
    %5858 = vmatprep.subr.bf16.mxu0 0
    %5859 = vmatpush1.bf16.xpose.msra.mxu0 0
    %5860 = vmatprep.subr.bf16.mxu0 0
    %5861 = vmatpush1.bf16.xpose.msra.mxu0 0
    %5862 = vmatprep.subr.bf16.mxu0 0
    %5863 = vmatpush1.bf16.xpose.msra.mxu0 0
    %5864 = vmatprep.mubr.bf16.mxu0 0
    %5865 = vmatmul.mubr.bf16.gmra.mrb[0].mxu0 %v5827
    %v5866 = vpop.f32.mrb[0].mxu0
    %v5867 = vadd.f32 0.0, %v5866
    %v5868 = vpop.f32.mrb[0].mxu0
    %v5869 = vpop.f32.mrb[0].mxu0
    %v5870 = vadd.f32 0.0, %v5869
    %v5871 = vpop.f32.mrb[0].mxu0
    %5872 = vdwg.mxu0
    %v5873 = vmul.f32 %v5867, 0.35355338
    %v5874 = vmul.f32 %v5870, 0.35355338
    %v5875 = vadd.f32 %v5873, %v5158
    %v5876 = vadd.f32 %v5874, %v5159
    %v5877 = vsel %vm4463, %v5875, -inf
    %5878 = vmax.xlane.f32.xlu0 %v5877
    %v5879 = vpop.xlane.xlu0 %5878
    %v5880 = vsel %vm4463, %v5876, -inf
    %5881 = vmax.xlane.f32.xlu0 %v5880
    %v5882 = vpop.xlane.xlu0 %5881
    %v5883 = vsub.f32 %v5875, %v5879
    %v5884 = vsub.f32 %v5876, %v5882
    %v5885 = vmul.f32 %v5883, 1.442695
    %v5886 = vpow.pop %v5885
    %v5887 = vmul.f32 %v5884, 1.442695
    %v5888 = vpow.pop %v5887
    %v5889 = vsel %vm4463, %v5886, 0.0
    %5890 = vadd.xlane.f32.xlu0 %v5889
    %v5891 = vpop.xlane.xlu0 %5890
    %v5892 = vsel %vm4463, %v5888, 0.0
    %5893 = vadd.xlane.f32.xlu0 %v5892
    %v5894 = vpop.xlane.xlu0 %5893
    %v5895 = vrcp.pop %v5891
    %v5896 = vrcp.pop %v5894
    %v5897 = vmul.f32 %v5886, %v5895
    %v5898 = vmul.f32 %v5888, %v5896
    %v5899 = vpack.c.bf16 %v5898, %v5897
    %5900 = vrot.lane.b32.xlu0 %v5299, 72
    %v5901 = vpop.permute.xlu0 %5900
    %v5904 = vsel %vm4463, %v5899, 0
    %5906 = vmatprep.subr.bf16.mxu0 0
    %5907 = vmatpush1.bf16.msra.mxu0 %v5901
    %5908 = vmatprep.subr.bf16.mxu0 0
    %5909 = vmatpush1.bf16.msra.mxu0 0
    %5910 = vmatprep.subr.bf16.mxu0 0
    %5911 = vmatpush1.bf16.msra.mxu0 0
    %5912 = vmatprep.subr.bf16.mxu0 0
    %5913 = vmatpush1.bf16.msra.mxu0 0
    %5914 = vmatprep.subr.bf16.mxu0 0
    %5915 = vmatpush1.bf16.msra.mxu0 0
    %5916 = vmatprep.subr.bf16.mxu0 0
    %5917 = vmatpush1.bf16.msra.mxu0 0
    %5918 = vmatprep.subr.bf16.mxu0 0
    %5919 = vmatpush1.bf16.msra.mxu0 0
    %5920 = vmatprep.subr.bf16.mxu0 0
    %5921 = vmatpush1.bf16.msra.mxu0 0
    %5922 = vmatprep.subr.bf16.mxu0 0
    %5923 = vmatpush1.bf16.msra.mxu0 0
    %5924 = vmatprep.subr.bf16.mxu0 0
    %5925 = vmatpush1.bf16.msra.mxu0 0
    %5926 = vmatprep.subr.bf16.mxu0 0
    %5927 = vmatpush1.bf16.msra.mxu0 0
    %5928 = vmatprep.subr.bf16.mxu0 0
    %5929 = vmatpush1.bf16.msra.mxu0 0
    %5930 = vmatprep.subr.bf16.mxu0 0
    %5931 = vmatpush1.bf16.msra.mxu0 0
    %5932 = vmatprep.subr.bf16.mxu0 0
    %5933 = vmatpush1.bf16.msra.mxu0 0
    %5934 = vmatprep.subr.bf16.mxu0 0
    %5935 = vmatpush1.bf16.msra.mxu0 0
    %5936 = vmatprep.subr.bf16.mxu0 0
    %5937 = vmatpush1.bf16.msra.mxu0 0
    %5938 = vmatprep.mubr.bf16.mxu0 0
    %5939 = vmatmul.mubr.bf16.gmra.mrb[0].mxu0 %v5904
    %v5940 = vpop.f32.mrb[0].mxu0
    %v5941 = vadd.f32 0.0, %v5940
    %v5942 = vpop.f32.mrb[0].mxu0
    %v5943 = vpop.f32.mrb[0].mxu0
    %v5944 = vadd.f32 0.0, %v5943
    %v5945 = vpop.f32.mrb[0].mxu0
    %5946 = vdwg.mxu0
    %v5947 = vpack.c.bf16 %v5944, %v5941
    %v5948 = vpack.c.bf16 %v5297, %v5297
    %v5950 = vsel %vm952, %v5947, 0
    %v5953 = vsel %vm968, %v5948, 0
    %5955 = vmatprep.subr.bf16.mxu0 0
    %5956 = vmatpush1.bf16.msra.mxu0 %v5953
    %5957 = vmatprep.subr.bf16.mxu0 0
    %5958 = vmatpush1.bf16.msra.mxu0 0
    %5959 = vmatprep.subr.bf16.mxu0 0
    %5960 = vmatpush1.bf16.msra.mxu0 0
    %5961 = vmatprep.subr.bf16.mxu0 0
    %5962 = vmatpush1.bf16.msra.mxu0 0
    %5963 = vmatprep.subr.bf16.mxu0 0
    %5964 = vmatpush1.bf16.msra.mxu0 0
    %5965 = vmatprep.subr.bf16.mxu0 0
    %5966 = vmatpush1.bf16.msra.mxu0 0
    %5967 = vmatprep.subr.bf16.mxu0 0
    %5968 = vmatpush1.bf16.msra.mxu0 0
    %5969 = vmatprep.subr.bf16.mxu0 0
    %5970 = vmatpush1.bf16.msra.mxu0 0
    %5971 = vmatprep.subr.bf16.mxu0 0
    %5972 = vmatpush1.bf16.msra.mxu0 0
    %5973 = vmatprep.subr.bf16.mxu0 0
    %5974 = vmatpush1.bf16.msra.mxu0 0
    %5975 = vmatprep.subr.bf16.mxu0 0
    %5976 = vmatpush1.bf16.msra.mxu0 0
    %5977 = vmatprep.subr.bf16.mxu0 0
    %5978 = vmatpush1.bf16.msra.mxu0 0
    %5979 = vmatprep.subr.bf16.mxu0 0
    %5980 = vmatpush1.bf16.msra.mxu0 0
    %5981 = vmatprep.subr.bf16.mxu0 0
    %5982 = vmatpush1.bf16.msra.mxu0 0
    %5983 = vmatprep.subr.bf16.mxu0 0
    %5984 = vmatpush1.bf16.msra.mxu0 0
    %5985 = vmatprep.subr.bf16.mxu0 0
    %5986 = vmatpush1.bf16.msra.mxu0 0
    %5987 = vmatprep.mubr.bf16.mxu0 0
    %5988 = vmatmul.mubr.bf16.gmra.mrb[0].mxu0 %v5950
    %v5989 = vpop.f32.mrb[0].mxu0
    %v5990 = vadd.f32 0.0, %v5989
    %v5991 = vpop.f32.mrb[0].mxu0
    %v5992 = vpop.f32.mrb[0].mxu0
    %v5993 = vadd.f32 0.0, %v5992
    %v5994 = vpop.f32.mrb[0].mxu0
    %5995 = vdwg.mxu0
    %v5996 = vadd.f32 %v5820, %v5990
    %v5997 = vadd.f32 %v5821, %v5993
    %v5998 = vld [vmem:[#allocation11] sm:$0x1]
    %v5999 = vunpack.c.l.bf16 %v5998
    %v6000 = vlaneseq
    %v6001 = vshrl.u32 %v6000, 7
    %v6002 = vsub.s32 0, %v6001
    %v6003 = vrot.slane %v5999, %v6002
    %v6004 = vadd.f32 %v5996, %v6003
    %v6005 = vadd.f32 %v5997, %v6003
    %v6006 = vadd.f32 %v5156, %v6004
    %v6007 = vadd.f32 %v5157, %v6005
    %v6008 = vsel %vm3504, %v6006, 0.0
    %6009 = vadd.xlane.f32.xlu0 %v6008
    %v6010 = vpop.xlane.xlu0 %6009
    %v6011 = vsel %vm3504, %v6007, 0.0
    %6012 = vadd.xlane.f32.xlu0 %v6011
    %v6013 = vpop.xlane.xlu0 %6012
    %v6014 = vmul.f32 %v6010, %v5125
    %v6015 = vmul.f32 %v6013, %v5125
    %v6016 = vsub.f32 %v6006, %v6014
    %v6017 = vsub.f32 %v6007, %v6015
    %v6018 = vmul.f32 %v6016, %v6016
    %v6019 = vmul.f32 %v6017, %v6017
    %v6020 = vsel %vm3504, %v6018, 0.0
    %6021 = vadd.xlane.f32.xlu0 %v6020
    %v6022 = vpop.xlane.xlu0 %6021
    %v6023 = vsel %vm3504, %v6019, 0.0
    %6024 = vadd.xlane.f32.xlu0 %v6023
    %v6025 = vpop.xlane.xlu0 %6024
    %v6026 = vmul.f32 %v6022, %v5125
    %v6027 = vmul.f32 %v6025, %v5125
    %v6028 = vadd.f32 %v6026, 1e-05
    %v6029 = vadd.f32 %v6027, 1e-05
    %v6030 = vrsqrt.pop %v6028
    %v6031 = vrsqrt.pop %v6029
    %v6032 = vmul.f32 %v6016, %v6030
    %v6033 = vmul.f32 %v6017, %v6031
    %v6034 = vlaneseq
    %v6035 = vshrl.u32 %v6034, 7
    %v6036 = vsub.s32 2, %v6035
    %v6037 = vrot.slane %v3477, %v6036
    %v6038 = vmul.f32 %v6032, %v6037
    %v6039 = vmul.f32 %v6033, %v6037
    %v6040 = vlaneseq
    %v6041 = vshrl.u32 %v6040, 7
    %v6042 = vsub.s32 3, %v6041
    %v6043 = vrot.slane %v3477, %v6042
    %v6044 = vadd.f32 %v6038, %v6043
    %v6045 = vadd.f32 %v6039, %v6043
    %v6046 = vld [vmem:[%s87] sm:$0xf]
    %v6047 = vld [vmem:[%s87 + $0x4] sm:$0xf]
    %v6048 = vld [vmem:[%s87 + $0x8] sm:$0xf]
    %v6049 = vld [vmem:[%s87 + $0xc] sm:$0xf]
    %v6050 = vpack.c.bf16 %v6045, %v6044
    %v6051 = vld [vmem:[#allocation13] sm:$0x1]
    %v6052 = vunpack.c.l.bf16 %v6051
    %v6053 = vlaneseq
    %v6054 = vshrl.u32 %v6053, 7
    %v6055 = vsub.s32 0, %v6054
    %v6056 = vrot.slane %v6052, %v6055
    %v6061 = vunpack.c.l.b16 %v6046
    %v6062 = vunpack.c.l.b16 %v6047
    %v6063 = vunpack.c.l.b16 %v6048
    %v6064 = vunpack.c.l.b16 %v6049
    %v6065 = vpack.c.b16 %v6062, %v6061
    %v6066 = vpack.c.b16 %v6064, %v6063
    %v6070 = vsel %vm3504, %v6050, 0
    %6072 = vmatprep.subr.bf16.mxu0 0
    %6073 = vmatpush1.bf16.msra.mxu0 %v6065
    %6074 = vmatprep.subr.bf16.mxu0 0
    %6075 = vmatpush1.bf16.msra.mxu0 %v6066
    %6076 = vmatprep.subr.bf16.mxu0 0
    %6077 = vmatpush1.bf16.msra.mxu0 0
    %6078 = vmatprep.subr.bf16.mxu0 0
    %6079 = vmatpush1.bf16.msra.mxu0 0
    %6080 = vmatprep.subr.bf16.mxu0 0
    %6081 = vmatpush1.bf16.msra.mxu0 0
    %6082 = vmatprep.subr.bf16.mxu0 0
    %6083 = vmatpush1.bf16.msra.mxu0 0
    %6084 = vmatprep.subr.bf16.mxu0 0
    %6085 = vmatpush1.bf16.msra.mxu0 0
    %6086 = vmatprep.subr.bf16.mxu0 0
    %6087 = vmatpush1.bf16.msra.mxu0 0
    %6088 = vmatprep.subr.bf16.mxu0 0
    %6089 = vmatpush1.bf16.msra.mxu0 0
    %6090 = vmatprep.subr.bf16.mxu0 0
    %6091 = vmatpush1.bf16.msra.mxu0 0
    %6092 = vmatprep.subr.bf16.mxu0 0
    %6093 = vmatpush1.bf16.msra.mxu0 0
    %6094 = vmatprep.subr.bf16.mxu0 0
    %6095 = vmatpush1.bf16.msra.mxu0 0
    %6096 = vmatprep.subr.bf16.mxu0 0
    %6097 = vmatpush1.bf16.msra.mxu0 0
    %6098 = vmatprep.subr.bf16.mxu0 0
    %6099 = vmatpush1.bf16.msra.mxu0 0
    %6100 = vmatprep.subr.bf16.mxu0 0
    %6101 = vmatpush1.bf16.msra.mxu0 0
    %6102 = vmatprep.subr.bf16.mxu0 0
    %6103 = vmatpush1.bf16.msra.mxu0 0
    %6104 = vmatprep.mubr.bf16.mxu0 0
    %6105 = vmatmul.mubr.bf16.gmra.mrb[0].mxu0 %v6070
    %v6106 = vpop.f32.mrb[0].mxu0
    %v6107 = vadd.f32 %v6056, %v6106
    %v6108 = vpop.f32.mrb[0].mxu0
    %v6109 = vpop.f32.mrb[0].mxu0
    %v6110 = vadd.f32 %v6056, %v6109
    %v6111 = vpop.f32.mrb[0].mxu0
    %6112 = vdwg.mxu0
    %v6113 = vmax.f32 %v6107, 0.0
    %v6114 = vmax.f32 %v6110, 0.0
    %v6115 = vld [vmem:[%s91] sm:$0xf]
    %v6116 = vld [vmem:[%s91 + $0x4] sm:$0xf]
    %v6117 = vld [vmem:[%s91 + $0x8] sm:$0xf]
    %v6118 = vld [vmem:[%s91 + $0xc] sm:$0xf]
    %v6119 = vld [vmem:[%s91 + $0x10] sm:$0xf]
    %v6120 = vld [vmem:[%s91 + $0x14] sm:$0xf]
    %v6121 = vld [vmem:[%s91 + $0x18] sm:$0xf]
    %v6122 = vld [vmem:[%s91 + $0x1c] sm:$0xf]
    %v6123 = vpack.c.bf16 %v6114, %v6113
    %v6132 = vunpack.c.l.b16 %v6115
    %v6133 = vunpack.c.l.b16 %v6116
    %v6134 = vunpack.c.l.b16 %v6117
    %v6135 = vunpack.c.l.b16 %v6118
    %v6136 = vunpack.c.l.b16 %v6119
    %v6137 = vunpack.c.l.b16 %v6120
    %v6138 = vunpack.c.l.b16 %v6121
    %v6139 = vunpack.c.l.b16 %v6122
    %v6140 = vpack.c.b16 %v6133, %v6132
    %v6141 = vpack.c.b16 %v6135, %v6134
    %v6142 = vpack.c.b16 %v6137, %v6136
    %v6143 = vpack.c.b16 %v6139, %v6138
    %v6149 = vsel %vm874, %v6123, 0
    %6151 = vmatprep.subr.bf16.mxu0 0
    %6152 = vmatpush1.bf16.msra.mxu0 %v6140
    %6153 = vmatprep.subr.bf16.mxu0 0
    %6154 = vmatpush1.bf16.msra.mxu0 %v6141
    %6155 = vmatprep.subr.bf16.mxu0 0
    %6156 = vmatpush1.bf16.msra.mxu0 %v6142
    %6157 = vmatprep.subr.bf16.mxu0 0
    %6158 = vmatpush1.bf16.msra.mxu0 %v6143
    %6159 = vmatprep.subr.bf16.mxu0 0
    %6160 = vmatpush1.bf16.msra.mxu0 0
    %6161 = vmatprep.subr.bf16.mxu0 0
    %6162 = vmatpush1.bf16.msra.mxu0 0
    %6163 = vmatprep.subr.bf16.mxu0 0
    %6164 = vmatpush1.bf16.msra.mxu0 0
    %6165 = vmatprep.subr.bf16.mxu0 0
    %6166 = vmatpush1.bf16.msra.mxu0 0
    %6167 = vmatprep.subr.bf16.mxu0 0
    %6168 = vmatpush1.bf16.msra.mxu0 0
    %6169 = vmatprep.subr.bf16.mxu0 0
    %6170 = vmatpush1.bf16.msra.mxu0 0
    %6171 = vmatprep.subr.bf16.mxu0 0
    %6172 = vmatpush1.bf16.msra.mxu0 0
    %6173 = vmatprep.subr.bf16.mxu0 0
    %6174 = vmatpush1.bf16.msra.mxu0 0
    %6175 = vmatprep.subr.bf16.mxu0 0
    %6176 = vmatpush1.bf16.msra.mxu0 0
    %6177 = vmatprep.subr.bf16.mxu0 0
    %6178 = vmatpush1.bf16.msra.mxu0 0
    %6179 = vmatprep.subr.bf16.mxu0 0
    %6180 = vmatpush1.bf16.msra.mxu0 0
    %6181 = vmatprep.subr.bf16.mxu0 0
    %6182 = vmatpush1.bf16.msra.mxu0 0
    %6183 = vmatprep.mubr.bf16.mxu0 0
    %6184 = vmatmul.mubr.bf16.gmra.mrb[0].mxu0 %v6149
    %v6185 = vpop.f32.mrb[0].mxu0
    %v6186 = vadd.f32 0.0, %v6185
    %v6187 = vpop.f32.mrb[0].mxu0
    %v6188 = vpop.f32.mrb[0].mxu0
    %v6189 = vadd.f32 0.0, %v6188
    %v6190 = vpop.f32.mrb[0].mxu0
    %6191 = vdwg.mxu0
    %v6192 = vadd.f32 %v6044, %v6186
    %v6193 = vadd.f32 %v6045, %v6189
    %v6194 = vld [vmem:[#allocation14] sm:$0x1]
    %v6195 = vunpack.c.l.bf16 %v6194
    %v6196 = vlaneseq
    %v6197 = vshrl.u32 %v6196, 7
    %v6198 = vsub.s32 0, %v6197
    %v6199 = vrot.slane %v6195, %v6198
    %v6200 = vadd.f32 %v6192, %v6199
    %v6201 = vadd.f32 %v6193, %v6199
    %v6202 = vsel %vm3504, %v6200, 0.0
    %6203 = vadd.xlane.f32.xlu0 %v6202
    %v6204 = vpop.xlane.xlu0 %6203
    %v6205 = vsel %vm3504, %v6201, 0.0
    %6206 = vadd.xlane.f32.xlu0 %v6205
    %v6207 = vpop.xlane.xlu0 %6206
    %v6208 = vmul.f32 %v6204, %v5125
    %v6209 = vmul.f32 %v6207, %v5125
    %v6210 = vsub.f32 %v6200, %v6208
    %v6211 = vsub.f32 %v6201, %v6209
    %v6212 = vmul.f32 %v6210, %v6210
    %v6213 = vmul.f32 %v6211, %v6211
    %v6214 = vsel %vm3504, %v6212, 0.0
    %6215 = vadd.xlane.f32.xlu0 %v6214
    %v6216 = vpop.xlane.xlu0 %6215
    %v6217 = vsel %vm3504, %v6213, 0.0
    %6218 = vadd.xlane.f32.xlu0 %v6217
    %v6219 = vpop.xlane.xlu0 %6218
    %v6220 = vmul.f32 %v6216, %v5125
    %v6221 = vmul.f32 %v6219, %v5125
    %v6222 = vadd.f32 %v6220, 1e-05
    %v6223 = vadd.f32 %v6221, 1e-05
    %v6224 = vrsqrt.pop %v6222
    %v6225 = vrsqrt.pop %v6223
    %v6226 = vmul.f32 %v6210, %v6224
    %v6227 = vmul.f32 %v6211, %v6225
    %v6228 = vlaneseq
    %v6229 = vshrl.u32 %v6228, 7
    %v6230 = vsub.s32 4, %v6229
    %v6231 = vrot.slane %v3477, %v6230
    %v6232 = vmul.f32 %v6226, %v6231
    %v6233 = vmul.f32 %v6227, %v6231
    %v6234 = vlaneseq
    %v6235 = vshrl.u32 %v6234, 7
    %v6236 = vsub.s32 5, %v6235
    %v6237 = vrot.slane %v3477, %v6236
    %v6238 = vadd.f32 %v6232, %v6237
    %v6239 = vadd.f32 %v6233, %v6237
    %v6240 = vsel %vm3504, %v6238, 0.0
    %6241 = vadd.xlane.f32.xlu0 %v6240
    %v6242 = vpop.xlane.xlu0 %6241
    %v6243 = vsel %vm3504, %v6239, 0.0
    %6244 = vadd.xlane.f32.xlu0 %v6243
    %v6245 = vpop.xlane.xlu0 %6244
    %v6246 = vmul.f32 %v6242, %v5125
    %v6247 = vmul.f32 %v6245, %v5125
    %v6248 = vsub.f32 %v6238, %v6246
    %v6249 = vsub.f32 %v6239, %v6247
    %v6250 = vmul.f32 %v6248, %v6248
    %v6251 = vmul.f32 %v6249, %v6249
    %v6252 = vsel %vm3504, %v6250, 0.0
    %6253 = vadd.xlane.f32.xlu0 %v6252
    %v6254 = vpop.xlane.xlu0 %6253
    %v6255 = vsel %vm3504, %v6251, 0.0
    %6256 = vadd.xlane.f32.xlu0 %v6255
    %v6257 = vpop.xlane.xlu0 %6256
    %v6258 = vmul.f32 %v6254, %v5125
    %v6259 = vmul.f32 %v6257, %v5125
    %v6260 = vadd.f32 %v6258, 1e-05
    %v6261 = vadd.f32 %v6259, 1e-05
    %v6262 = vrsqrt.pop %v6260
    %v6263 = vrsqrt.pop %v6261
    %v6264 = vmul.f32 %v6248, %v6262
    %v6265 = vmul.f32 %v6249, %v6263
    %v6266 = vlaneseq
    %v6267 = vshrl.u32 %v6266, 7
    %v6268 = vsub.s32 0, %v6267
    %v6269 = vrot.slane %v3478, %v6268
    %v6270 = vmul.f32 %v6264, %v6269
    %v6271 = vmul.f32 %v6265, %v6269
    %v6272 = vlaneseq
    %v6273 = vshrl.u32 %v6272, 7
    %v6274 = vsub.s32 1, %v6273
    %v6275 = vrot.slane %v3478, %v6274
    %v6276 = vadd.f32 %v6270, %v6275
    %v6277 = vadd.f32 %v6271, %v6275
    %v6278 = vld [vmem:[%s97] sm:$0xff]
    %v6279 = vld [vmem:[%s97 + $0x8] sm:$0xff]
    %v6280 = vld [vmem:[%s97 + $0x10] sm:$0xff]
    %v6281 = vld [vmem:[%s97 + $0x18] sm:$0xff]
    %v6282 = vld [vmem:[%s97 + $0x20] sm:$0xff]
    %v6283 = vld [vmem:[%s97 + $0x28] sm:$0xff]
    %v6284 = vld [vmem:[%s97 + $0x30] sm:$0xff]
    %v6285 = vld [vmem:[%s97 + $0x38] sm:$0xff]
    %v6286 = vpack.c.bf16 %v6277, %v6276
    %v6287 = vld [vmem:[%s99] sm:$0xf]
    %v6288 = vunpack.c.l.bf16 %v6287
    %v6290 = vlaneseq
    %v6291 = vshrl.u32 %v6290, 7
    %v6292 = vsub.s32 0, %v6291
    %v6293 = vrot.slane %v6288, %v6292
    %v6294 = vlaneseq
    %v6295 = vshrl.u32 %v6294, 7
    %v6296 = vsub.s32 2, %v6295
    %v6297 = vrot.slane %v6288, %v6296
    %v6298 = vlaneseq
    %v6299 = vshrl.u32 %v6298, 7
    %v6300 = vsub.s32 4, %v6299
    %v6301 = vrot.slane %v6288, %v6300
    %v6302 = vlaneseq
    %v6303 = vshrl.u32 %v6302, 7
    %v6304 = vsub.s32 6, %v6303
    %v6305 = vrot.slane %v6288, %v6304
    %v6310 = vlaneseq
    %v6311 = vshrl.u32 %v6310, 7
    %v6312 = vsub.s32 0, %v6311
    %v6313 = vrot.slane %v6293, %v6312
    %v6314 = vlaneseq
    %v6315 = vshrl.u32 %v6314, 7
    %v6316 = vsub.s32 0, %v6315
    %v6317 = vrot.slane %v6297, %v6316
    %v6318 = vlaneseq
    %v6319 = vshrl.u32 %v6318, 7
    %v6320 = vsub.s32 0, %v6319
    %v6321 = vrot.slane %v6301, %v6320
    %v6322 = vlaneseq
    %v6323 = vshrl.u32 %v6322, 7
    %v6324 = vsub.s32 0, %v6323
    %v6325 = vrot.slane %v6305, %v6324
    %v6334 = vunpack.c.l.b16 %v6278
    %v6335 = vunpack.c.h.b16 %v6278
    %v6336 = vunpack.c.l.b16 %v6279
    %v6337 = vunpack.c.h.b16 %v6279
    %v6338 = vunpack.c.l.b16 %v6280
    %v6339 = vunpack.c.h.b16 %v6280
    %v6340 = vunpack.c.l.b16 %v6281
    %v6341 = vunpack.c.h.b16 %v6281
    %v6342 = vunpack.c.l.b16 %v6282
    %v6343 = vunpack.c.h.b16 %v6282
    %v6344 = vunpack.c.l.b16 %v6283
    %v6345 = vunpack.c.h.b16 %v6283
    %v6346 = vunpack.c.l.b16 %v6284
    %v6347 = vunpack.c.h.b16 %v6284
    %v6348 = vunpack.c.l.b16 %v6285
    %v6349 = vunpack.c.h.b16 %v6285
    %v6350 = vpack.c.b16 %v6338, %v6334
    %v6351 = vpack.c.b16 %v6339, %v6335
    %v6352 = vpack.c.b16 %v6340, %v6336
    %v6353 = vpack.c.b16 %v6341, %v6337
    %v6354 = vpack.c.b16 %v6346, %v6342
    %v6355 = vpack.c.b16 %v6347, %v6343
    %v6356 = vpack.c.b16 %v6348, %v6344
    %v6357 = vpack.c.b16 %v6349, %v6345
    %v6367 = vsel %vm3504, %v6286, 0
    %6369 = vmatprep.subr.bf16.mxu0 %v6351
    %6370 = vmatpush1.bf16.msra.mxu0 %v6350
    %6371 = vmatprep.subr.bf16.mxu0 %v6355
    %6372 = vmatpush1.bf16.msra.mxu0 %v6354
    %6373 = vmatprep.subr.bf16.mxu0 0
    %6374 = vmatpush1.bf16.msra.mxu0 0
    %6375 = vmatprep.subr.bf16.mxu0 0
    %6376 = vmatpush1.bf16.msra.mxu0 0
    %6377 = vmatprep.subr.bf16.mxu0 0
    %6378 = vmatpush1.bf16.msra.mxu0 0
    %6379 = vmatprep.subr.bf16.mxu0 0
    %6380 = vmatpush1.bf16.msra.mxu0 0
    %6381 = vmatprep.subr.bf16.mxu0 0
    %6382 = vmatpush1.bf16.msra.mxu0 0
    %6383 = vmatprep.subr.bf16.mxu0 0
    %6384 = vmatpush1.bf16.msra.mxu0 0
    %6385 = vmatprep.subr.bf16.mxu0 0
    %6386 = vmatpush1.bf16.msra.mxu0 0
    %6387 = vmatprep.subr.bf16.mxu0 0
    %6388 = vmatpush1.bf16.msra.mxu0 0
    %6389 = vmatprep.subr.bf16.mxu0 0
    %6390 = vmatpush1.bf16.msra.mxu0 0
    %6391 = vmatprep.subr.bf16.mxu0 0
    %6392 = vmatpush1.bf16.msra.mxu0 0
    %6393 = vmatprep.subr.bf16.mxu0 0
    %6394 = vmatpush1.bf16.msra.mxu0 0
    %6395 = vmatprep.subr.bf16.mxu0 0
    %6396 = vmatpush1.bf16.msra.mxu0 0
    %6397 = vmatprep.subr.bf16.mxu0 0
    %6398 = vmatpush1.bf16.msra.mxu0 0
    %6399 = vmatprep.subr.bf16.mxu0 0
    %6400 = vmatpush1.bf16.msra.mxu0 0
    %6401 = vmatprep.mubr.bf16.mxu0 0
    %6402 = vmatmul.mubr.bf16.gmra.mrb[0].mxu0 %v6367
    %v6403 = vpop.f32.mrb[0].mxu0
    %v6404 = vadd.f32 %v6313, %v6403
    %v6405 = vpop.f32.mrb[0].mxu0
    %v6406 = vadd.f32 %v6317, %v6405
    %v6407 = vpop.f32.mrb[0].mxu0
    %v6408 = vadd.f32 %v6313, %v6407
    %v6409 = vpop.f32.mrb[0].mxu0
    %v6410 = vadd.f32 %v6317, %v6409
    %6411 = vdwg.mxu0
    %6412 = vmatprep.subr.bf16.mxu0 %v6353
    %6413 = vmatpush1.bf16.msra.mxu0 %v6352
    %6414 = vmatprep.subr.bf16.mxu0 %v6357
    %6415 = vmatpush1.bf16.msra.mxu0 %v6356
    %6416 = vmatprep.subr.bf16.mxu0 0
    %6417 = vmatpush1.bf16.msra.mxu0 0
    %6418 = vmatprep.subr.bf16.mxu0 0
    %6419 = vmatpush1.bf16.msra.mxu0 0
    %6420 = vmatprep.subr.bf16.mxu0 0
    %6421 = vmatpush1.bf16.msra.mxu0 0
    %6422 = vmatprep.subr.bf16.mxu0 0
    %6423 = vmatpush1.bf16.msra.mxu0 0
    %6424 = vmatprep.subr.bf16.mxu0 0
    %6425 = vmatpush1.bf16.msra.mxu0 0
    %6426 = vmatprep.subr.bf16.mxu0 0
    %6427 = vmatpush1.bf16.msra.mxu0 0
    %6428 = vmatprep.subr.bf16.mxu0 0
    %6429 = vmatpush1.bf16.msra.mxu0 0
    %6430 = vmatprep.subr.bf16.mxu0 0
    %6431 = vmatpush1.bf16.msra.mxu0 0
    %6432 = vmatprep.subr.bf16.mxu0 0
    %6433 = vmatpush1.bf16.msra.mxu0 0
    %6434 = vmatprep.subr.bf16.mxu0 0
    %6435 = vmatpush1.bf16.msra.mxu0 0
    %6436 = vmatprep.subr.bf16.mxu0 0
    %6437 = vmatpush1.bf16.msra.mxu0 0
    %6438 = vmatprep.subr.bf16.mxu0 0
    %6439 = vmatpush1.bf16.msra.mxu0 0
    %6440 = vmatprep.subr.bf16.mxu0 0
    %6441 = vmatpush1.bf16.msra.mxu0 0
    %6442 = vmatprep.subr.bf16.mxu0 0
    %6443 = vmatpush1.bf16.msra.mxu0 0
    %6444 = vmatprep.mubr.bf16.mxu0 0
    %6445 = vmatmul.mubr.bf16.gmra.mrb[0].mxu0 %v6367
    %v6446 = vpop.f32.mrb[0].mxu0
    %v6447 = vadd.f32 %v6321, %v6446
    %v6448 = vpop.f32.mrb[0].mxu0
    %v6449 = vadd.f32 %v6325, %v6448
    %v6450 = vpop.f32.mrb[0].mxu0
    %v6451 = vadd.f32 %v6321, %v6450
    %v6452 = vpop.f32.mrb[0].mxu0
    %v6453 = vadd.f32 %v6325, %v6452
    %6454 = vdwg.mxu0
    %6455 = vst [vmem:[#allocation16] sm:$0xff] %v6404
    %6456 = vst [vmem:[#allocation16 + $0x8] sm:$0xff] %v6406
    %6457 = vst [vmem:[#allocation16 + $0x10] sm:$0xff] %v6447
    %6458 = vst [vmem:[#allocation16 + $0x18] sm:$0xff] %v6449
    %6459 = vst [vmem:[#allocation16 + $0x20] sm:$0xff] %v6408
    %6460 = vst [vmem:[#allocation16 + $0x28] sm:$0xff] %v6410
    %6461 = vst [vmem:[#allocation16 + $0x30] sm:$0xff] %v6451
    %6462 = vst [vmem:[#allocation16 + $0x38] sm:$0xff] %v6453
    // Predicated region
    $region234: #{prefix_lm_forward.1} parent=1 // pred_check
      _
    $region235: #{prefix_lm_forward.1} parent=1 // pred_check_branch
      %6464 = sbr.rel (0) target = $region237
    $region236: #{prefix_lm_forward.1} parent=1 // pred_region
      %s6466 = ssub.s32 1024, 1024
      %6467 = vsyncadd [#allocation4], %s6466
      %s6468 = sshll.u32 [#allocation16], 4
      %s6469 = int_to_ptr.vmem [resolvable:$true] %s6468
      %6474 = dma.vmem_to_hbm [thread:$0]  %s6469, 1024, %s101, [#allocation4], 512, 512, 32
    $region237: #{prefix_lm_forward.1} parent=1 // pred_fallthru
      _
    // Predicated region
    $region238: #{prefix_lm_forward.1} parent=1 // pred_check
      _
    $region239: #{prefix_lm_forward.1} parent=1 // pred_check_branch
      %6476 = sbr.rel (0) target = $region241
    $region240: #{prefix_lm_forward.1} parent=1 // pred_region
      %6477 = dma.done [#allocation4], 1024
    $region241: #{prefix_lm_forward.1} parent=1 // pred_fallthru
      _
    %6478 = vsyncpa [#allocation3], 1
    %6479 = vsyncpa [#allocation6], 1
    %6480 = vsyncpa [#allocation9], 1
    %6481 = vsyncpa [#allocation12], 1
    %6482 = vsyncpa [#allocation15], 1
    %6483 = vsyncpa [#allocation4], 1

</llo_original>
